<compile_context>
chip_gen: v7x
topology: tpu7x:2x2x1
jax: 0.10.0
libtpu: 0.0.40
codegen_flags: <defaults>
</compile_context>

<pallas_src>
import functools

import numpy as np
import jax
import jax.numpy as jnp
from jax.experimental import pallas as pl
from jax.experimental.pallas import tpu as pltpu

# Operand dtype fed to the MXU for the conv GEMMs (accumulation is f32).
MXU_DTYPE = jnp.bfloat16


# ---------------------------------------------------------------------------
# The fused Pallas kernel (one batch element per grid step)
# ---------------------------------------------------------------------------
def _encoder_kernel(x_ref, t0_ref, t1_ref, t2_ref, t3_ref, brow_ref,
                    ysel_ref, xsel_ref, vfc_ref, bfc_ref, o_ref, rp_ref,
                    *, W, chans):
    f32 = jnp.float32

    def reflect_rows(a, pad):
        """Row-reflect-pad value `a` (Hc, Lc) into the VMEM scratch rp_ref."""
        hc, lc = a.shape
        rp_ref[pad:pad + hc, 0:lc] = a
        for j in range(pad):
            rp_ref[j:j + 1, 0:lc] = a[pad - j:pad - j + 1, :]
            rp_ref[pad + hc + j:pad + hc + j + 1, 0:lc] = \
                a[hc - 2 - j:hc - 1 - j, :]
        return hc, lc

    def lane_block_total(v, c, n_x):
        """v: (1, n_x*c) -> per-lane totals over the n_x channel blocks."""
        tot = v
        r = v
        for _ in range(n_x - 1):            # cheap XLU lane rotations
            r = pltpu.roll(r, shift=c, axis=1)
            tot = tot + r
        return tot

    def conv_block(a, t_ref, brow, kh, pad, act, use_in, n_ch, n_x):
        """reflect-pad -> conv (kh row-band GEMMs) -> [InstanceNorm] -> act."""
        hc, lc = reflect_rows(a, pad)
        n_out = t_ref.shape[2]
        acc = jnp.zeros((hc, n_out), f32)
        for dy in range(kh):                # accumulate MXU row-band matmuls
            band = rp_ref[dy:dy + hc, 0:lc]
            acc = acc + jnp.dot(band.astype(MXU_DTYPE), t_ref[dy],
                                preferred_element_type=f32)
        acc = acc + brow
        if use_in:                          # nn.InstanceNorm2d(affine=False)
            inv_n = 1.0 / float(hc * n_x)
            mean = lane_block_total(jnp.sum(acc, axis=0, keepdims=True),
                                    n_ch, n_x) * inv_n
            cen = acc - mean
            var = lane_block_total(jnp.sum(cen * cen, axis=0, keepdims=True),
                                   n_ch, n_x) * inv_n
            acc = cen * jax.lax.rsqrt(var + 1e-5)
        if act == "tanh":
            return jnp.tanh(acc)
        return jnp.maximum(acc, 0.0)

    def maxpool(a, stage):
        """Exact 2x2 max-pool via 0/1 selection matmuls (f32, exact)."""
        hc = a.shape[0]
        ho = hc // 2
        ye = ysel_ref[stage, 0][0:ho, 0:hc]
        yo = ysel_ref[stage, 1][0:ho, 0:hc]
        rows = jnp.maximum(jnp.dot(ye, a, preferred_element_type=f32),
                           jnp.dot(yo, a, preferred_element_type=f32))
        xe = xsel_ref[stage, 0]
        xo = xsel_ref[stage, 1]
        return jnp.maximum(jnp.dot(rows, xe, preferred_element_type=f32),
                           jnp.dot(rows, xo, preferred_element_type=f32))

    c0, c1, c2, c3 = chans
    a = x_ref[...].astype(f32)                                  # (32, W*Cin)

    a = conv_block(a, t0_ref, brow_ref[0], 7, 3, "tanh", False, c0, W)
    a = maxpool(a, 0)
    a = conv_block(a, t1_ref, brow_ref[1], 5, 2, "relu", True, c1, W // 2)
    a = maxpool(a, 1)
    a = conv_block(a, t2_ref, brow_ref[2], 5, 2, "relu", True, c2, W // 4)
    a = maxpool(a, 2)
    a = conv_block(a, t3_ref, brow_ref[3], 5, 2, "relu", True, c3, W // 8)
    a = maxpool(a, 3)                                           # (2, (W//16)*c3)

    # rearrange 'b c h w -> b w (c h)' + fc, fused into the epilogue.
    wf = W // 16
    bfc = bfc_ref[...]                                          # (1, out_dim)
    for xx in range(wf):
        row = bfc
        for y in range(2):                                      # final h == 2
            q = a[y:y + 1, xx * c3:(xx + 1) * c3]               # (1, c3)
            row = row + jnp.dot(q, vfc_ref[y], preferred_element_type=f32)
        o_ref[xx:xx + 1, :] = row.astype(o_ref.dtype)


# ---------------------------------------------------------------------------
# One-time parameter lowering (runs once, outside the hot path)
# ---------------------------------------------------------------------------
def prepare_encoder(params, H, W, in_dim=1):
    """Convert PyTorch-layout parameters into fused-kernel operands."""
    assert H == 32 and W % 16 == 0 and W >= 32
    f32 = jnp.float32

    def lowered_conv_weight(w_oihw, wl, pad):
        """(Cout,Cin,kh,kw) -> (kh, wl*Cin, wl*Cout) row-band GEMM weights with
        the reflect column padding folded in."""
        cout, cin, kh, kw = w_oihw.shape
        wp = wl + 2 * pad
        jj = np.arange(wp)
        src = np.where(jj < pad, pad - jj,
                       np.where(jj < pad + wl, jj - pad,
                                2 * (wl - 1) - (jj - pad)))
        dx = jj[:, None] - np.arange(wl)[None, :]               # (wp, wl)
        valid = ((dx >= 0) & (dx < kw)).astype(np.float32)
        dxc = np.clip(dx, 0, kw - 1)
        wt = jnp.transpose(w_oihw.astype(f32), (2, 3, 1, 0))    # (kh,kw,cin,cout)
        t = wt[:, dxc] * valid[None, :, :, None, None]          # (kh,wp,wl,cin,cout)
        refl = jnp.asarray(
            (src[None, :] == np.arange(wl)[:, None]).astype(np.float32))
        t = jnp.einsum("rj,kjxio->krxio", refl, t)              # fold reflection
        t = jnp.transpose(t, (0, 1, 3, 2, 4)).reshape(kh, wl * cin, wl * cout)
        return t.astype(MXU_DTYPE)

    widths = [W, W // 2, W // 4, W // 8]
    pads = [3, 2, 2, 2]
    ts, brows, chans = [], [], []
    for l in range(4):
        w = params[f"conv{l}_w"]
        b = params[f"conv{l}_b"].astype(f32)
        chans.append(int(w.shape[0]))
        ts.append(lowered_conv_weight(w, widths[l], pads[l]))
        brows.append(jnp.tile(b, widths[l])[None, :])           # (1, widths[l]*Cout)
    brow = jnp.stack(brows, axis=0)                             # (4, 1, chans0*W)

    # 2x2 max-pool 0/1 selectors.  Row selectors padded to a common (16, 32)
    # buffer; column selectors are all (chans0*W, chans0*W//2).
    ysel = np.zeros((4, 2, 16, 32), np.float32)
    for i in range(4):
        hc = H >> i
        ho = hc // 2
        for k in range(2):
            ysel[i, k, :ho, :hc] = (
                np.arange(hc)[None, :] == (2 * np.arange(ho)[:, None] + k))
    lc = chans[0] * W
    xsel = np.zeros((4, 2, lc, lc // 2), np.float32)
    r = np.arange(lc)[:, None]
    q = np.arange(lc // 2)[None, :]
    for i in range(4):
        c = chans[i]
        for k in range(2):
            xsel[i, k] = ((r // c) == (2 * (q // c) + k)) & ((r % c) == (q % c))

    # fc folded with the 'b c h w -> b w (c h)' rearrange (final h is 2).
    fc_w = params["fc_w"].astype(f32)                           # (out, chans3*2)
    fc_b = params["fc_b"].astype(f32)
    vfc = jnp.stack([fc_w[:, y::2].T for y in range(2)], axis=0)  # (2, c3, out)
    bfc = fc_b[None, :]

    return {"t0": ts[0], "t1": ts[1], "t2": ts[2], "t3": ts[3],
            "brow": brow, "ysel": jnp.asarray(ysel), "xsel": jnp.asarray(xsel),
            "vfc": vfc, "bfc": bfc}


# ---------------------------------------------------------------------------
# Forward pass: one fused pallas_call
# ---------------------------------------------------------------------------
def encoder_forward(prep, x_nchw):
    B, in_dim, H, Win = x_nchw.shape
    assert H == 32, "Encoder requires H == 32 (so c*h == dims[-1]*4 at the fc)"
    assert Win % 16 == 0 and Win >= 32

    t0, t1, t2, t3 = prep["t0"], prep["t1"], prep["t2"], prep["t3"]
    brow, ysel, xsel = prep["brow"], prep["ysel"], prep["xsel"]
    vfc, bfc = prep["vfc"], prep["bfc"]
    out_dim = bfc.shape[1]
    chans = (t0.shape[2] // Win, t1.shape[2] // (Win // 2),
             t2.shape[2] // (Win // 4), t3.shape[2] // (Win // 8))
    wf = Win // 16

    # NCHW -> channel-fastest 2-D layout (B, H, W*Cin); pure layout change.
    x2d = jnp.transpose(x_nchw.astype(jnp.float32), (0, 2, 3, 1))
    x2d = x2d.reshape(B, H, Win * in_dim)

    kern = functools.partial(_encoder_kernel, W=Win, chans=chans)

    def const_spec(a):
        return pl.BlockSpec(a.shape, lambda b, nd=a.ndim: (0,) * nd)

    rp_rows = H + 6                                   # 7x7 / pad-3 first layer
    rp_cols = max(Win * in_dim, chans[0] * Win // 2)

    out = pl.pallas_call(
        kern,
        out_shape=jax.ShapeDtypeStruct((B, wf, out_dim), jnp.float32),
        grid=(B,),
        in_specs=[
            pl.BlockSpec((None, H, Win * in_dim), lambda b: (b, 0, 0)),
            const_spec(t0), const_spec(t1), const_spec(t2), const_spec(t3),
            const_spec(brow), const_spec(ysel), const_spec(xsel),
            const_spec(vfc), const_spec(bfc),
        ],
        out_specs=pl.BlockSpec((None, wf, out_dim), lambda b: (b, 0, 0)),
        scratch_shapes=[pltpu.VMEM((rp_rows, rp_cols), jnp.float32)],
        compiler_params=pltpu.CompilerParams(
            dimension_semantics=("parallel",)),
    )(x2d, t0, t1, t2, t3, brow, ysel, xsel, vfc, bfc)
    return out


# ---------------------------------------------------------------------------
# Pure-JAX/XLA reference (used only for a loose numerical self-check)
# ---------------------------------------------------------------------------
def encoder_reference(params, x_nchw):
    def conv_block(x, w, b, pad, norm, act):
        xp = jnp.pad(x, ((0, 0), (0, 0), (pad, pad), (pad, pad)), mode="reflect")
        y = jax.lax.conv_general_dilated(
            xp, w, window_strides=(1, 1), padding="VALID",
            dimension_numbers=("NCHW", "OIHW", "NCHW"))
        y = y + b[None, :, None, None]
        if norm == "in":
            m = jnp.mean(y, axis=(2, 3), keepdims=True)
            v = jnp.mean(jnp.square(y - m), axis=(2, 3), keepdims=True)
            y = (y - m) * jax.lax.rsqrt(v + 1e-5)
        return jnp.tanh(y) if act == "tanh" else jnp.maximum(y, 0.0)

    def pool(x):
        b, c, h, w = x.shape
        return x.reshape(b, c, h // 2, 2, w // 2, 2).max(axis=(3, 5))

    x = x_nchw.astype(jnp.float32)
    x = conv_block(x, params["conv0_w"], params["conv0_b"], 3, "none", "tanh")
    for i in range(1, 4):
        x = pool(x)
        x = conv_block(x, params[f"conv{i}_w"], params[f"conv{i}_b"], 2, "in", "relu")
    x = pool(x)
    b, c, h, w = x.shape
    x = jnp.transpose(x, (0, 3, 1, 2)).reshape(b, w, c * h)
    return x @ params["fc_w"].T + params["fc_b"]


# ---------------------------------------------------------------------------
# Parameter init (deterministic, shapes follow Encoder.__init__)
# ---------------------------------------------------------------------------
def init_encoder_params(key, ups=3, dim=64, in_dim=1):
    dims = [dim // 2 ** i for i in range(1, ups + 1)][::-1]     # [8, 16, 32]
    keys = jax.random.split(key, 10)
    params = {}
    params["conv0_w"] = 0.1 * jax.random.normal(keys[0], (dims[0], in_dim, 7, 7), jnp.float32)
    params["conv0_b"] = 0.1 * jax.random.normal(keys[1], (dims[0],), jnp.float32)
    for i, d in enumerate(dims):
        params[f"conv{i+1}_w"] = 0.1 * jax.random.normal(
            keys[2 + 2 * i], (2 * d, d, 5, 5), jnp.float32)
        params[f"conv{i+1}_b"] = 0.1 * jax.random.normal(
            keys[3 + 2 * i], (2 * d,), jnp.float32)
    params["fc_w"] = 0.1 * jax.random.normal(keys[8], (dim, dims[-1] * 4), jnp.float32)
    params["fc_b"] = 0.1 * jax.random.normal(keys[9], (dim,), jnp.float32)
    return params


# ---------------------------------------------------------------------------
if __name__ == "__main__":
    key = jax.random.PRNGKey(0)
    pkey, xkey = jax.random.split(key)

    params = init_encoder_params(pkey, ups=3, dim=64, in_dim=1)

    # Input: NCHW; H must be 32 so (c * h_final) == dims[-1]*4 == 128.
    B, C_in, H, W = 2, 1, 32, 32
    x = jax.random.normal(xkey, (B, C_in, H, W), jnp.float32)

    prep = prepare_encoder(params, H=H, W=W, in_dim=C_in)   # one-time lowering
    fwd = jax.jit(encoder_forward)
    out = jax.block_until_ready(fwd(prep, x))

    assert out.shape == (B, W // 16, 64), out.shape
    assert bool(jnp.all(jnp.isfinite(out)))

    # Loose check vs the XLA reference (kernel feeds the MXU bf16 operands).
    ref = jax.jit(encoder_reference)(params, x)
    err = float(jnp.mean(jnp.abs(out - ref)))
    assert err < 0.12, f"mean abs diff vs reference too large: {err}"

    print("KERNEL_OK")
</pallas_src>

<mosaic_0001>
module attributes {stable_mosaic.version = 11 : i64} {
  func.func @_encoder_kernel(%arg0: i32, %arg1: memref<1x32x32xf32, #tpu.memory_space<vmem>>, %arg2: memref<7x32x256xbf16, #tpu.memory_space<vmem>>, %arg3: memref<5x128x256xbf16, #tpu.memory_space<vmem>>, %arg4: memref<5x128x256xbf16, #tpu.memory_space<vmem>>, %arg5: memref<5x128x256xbf16, #tpu.memory_space<vmem>>, %arg6: memref<4x1x256xf32, #tpu.memory_space<vmem>>, %arg7: memref<4x2x16x32xf32, #tpu.memory_space<vmem>>, %arg8: memref<4x2x256x128xf32, #tpu.memory_space<vmem>>, %arg9: memref<2x64x64xf32, #tpu.memory_space<vmem>>, %arg10: memref<1x64xf32, #tpu.memory_space<vmem>>, %arg11: memref<1x2x64xf32, #tpu.memory_space<vmem>>, %arg12: memref<38x128xf32, #tpu.memory_space<vmem>>) attributes {dimension_semantics = [#tpu.dimension_semantics<parallel>], iteration_bounds = array<i64: 2>, scalar_prefetch = 0 : i64, scratch_operands = 1 : i64, tpu.core_type = #tpu.core_type<tc>, window_params = [{transform_indices = @transform_0, window_bounds = array<i64: 1, 32, 32>}, {pipeline_mode = #tpu.pipeline_mode<synchronous>, transform_indices = @transform_1, window_bounds = array<i64: 7, 32, 256>}, {pipeline_mode = #tpu.pipeline_mode<synchronous>, transform_indices = @transform_2, window_bounds = array<i64: 5, 128, 256>}, {pipeline_mode = #tpu.pipeline_mode<synchronous>, transform_indices = @transform_3, window_bounds = array<i64: 5, 128, 256>}, {pipeline_mode = #tpu.pipeline_mode<synchronous>, transform_indices = @transform_4, window_bounds = array<i64: 5, 128, 256>}, {pipeline_mode = #tpu.pipeline_mode<synchronous>, transform_indices = @transform_5, window_bounds = array<i64: 4, 1, 256>}, {pipeline_mode = #tpu.pipeline_mode<synchronous>, transform_indices = @transform_6, window_bounds = array<i64: 4, 2, 16, 32>}, {pipeline_mode = #tpu.pipeline_mode<synchronous>, transform_indices = @transform_7, window_bounds = array<i64: 4, 2, 256, 128>}, {pipeline_mode = #tpu.pipeline_mode<synchronous>, transform_indices = @transform_8, window_bounds = array<i64: 2, 64, 64>}, {pipeline_mode = #tpu.pipeline_mode<synchronous>, transform_indices = @transform_9, window_bounds = array<i64: 1, 64>}, {transform_indices = @transform_10, window_bounds = array<i64: 1, 2, 64>}]} {
    %c0 = arith.constant 0 : index
    %c0_0 = arith.constant 0 : index
    %c0_1 = arith.constant 0 : index
    %0 = vector.load %arg1[%c0, %c0_0, %c0_1] : memref<1x32x32xf32, #tpu.memory_space<vmem>>, vector<1x32x32xf32>
    %1 = vector.shape_cast %0 : vector<1x32x32xf32> to vector<32x32xf32>
    %c0_2 = arith.constant 0 : index
    %c0_3 = arith.constant 0 : index
    %c0_4 = arith.constant 0 : index
    %2 = vector.load %arg6[%c0_2, %c0_3, %c0_4] : memref<4x1x256xf32, #tpu.memory_space<vmem>>, vector<1x1x256xf32>
    %3 = vector.shape_cast %2 : vector<1x1x256xf32> to vector<1x256xf32>
    %c3 = arith.constant 3 : index
    %c0_5 = arith.constant 0 : index
    %4 = vector.load %arg12[%c3, %c0_5] : memref<38x128xf32, #tpu.memory_space<vmem>>, vector<32x32xf32>
    tpu.vector_store %arg12[%c3, %c0_5], %1 {strides = array<i32>} : memref<38x128xf32, #tpu.memory_space<vmem>>, vector<32x32xf32>,
    %5 = vector.extract_strided_slice %1 {offsets = [3, 0], sizes = [1, 32], strides = [1, 1]} : vector<32x32xf32> to vector<1x32xf32>
    %c0_6 = arith.constant 0 : index
    %c0_7 = arith.constant 0 : index
    %6 = vector.load %arg12[%c0_6, %c0_7] : memref<38x128xf32, #tpu.memory_space<vmem>>, vector<1x32xf32>
    tpu.vector_store %arg12[%c0_6, %c0_7], %5 {strides = array<i32>} : memref<38x128xf32, #tpu.memory_space<vmem>>, vector<1x32xf32>,
    %7 = vector.extract_strided_slice %1 {offsets = [30, 0], sizes = [1, 32], strides = [1, 1]} : vector<32x32xf32> to vector<1x32xf32>
    %c35 = arith.constant 35 : index
    %c0_8 = arith.constant 0 : index
    %8 = vector.load %arg12[%c35, %c0_8] : memref<38x128xf32, #tpu.memory_space<vmem>>, vector<1x32xf32>
    tpu.vector_store %arg12[%c35, %c0_8], %7 {strides = array<i32>} : memref<38x128xf32, #tpu.memory_space<vmem>>, vector<1x32xf32>,
    %9 = vector.extract_strided_slice %1 {offsets = [2, 0], sizes = [1, 32], strides = [1, 1]} : vector<32x32xf32> to vector<1x32xf32>
    %c1 = arith.constant 1 : index
    %c0_9 = arith.constant 0 : index
    %10 = vector.load %arg12[%c1, %c0_9] : memref<38x128xf32, #tpu.memory_space<vmem>>, vector<1x32xf32>
    tpu.vector_store %arg12[%c1, %c0_9], %9 {strides = array<i32>} : memref<38x128xf32, #tpu.memory_space<vmem>>, vector<1x32xf32>,
    %11 = vector.extract_strided_slice %1 {offsets = [29, 0], sizes = [1, 32], strides = [1, 1]} : vector<32x32xf32> to vector<1x32xf32>
    %c36 = arith.constant 36 : index
    %c0_10 = arith.constant 0 : index
    %12 = vector.load %arg12[%c36, %c0_10] : memref<38x128xf32, #tpu.memory_space<vmem>>, vector<1x32xf32>
    tpu.vector_store %arg12[%c36, %c0_10], %11 {strides = array<i32>} : memref<38x128xf32, #tpu.memory_space<vmem>>, vector<1x32xf32>,
    %13 = vector.extract_strided_slice %1 {offsets = [1, 0], sizes = [1, 32], strides = [1, 1]} : vector<32x32xf32> to vector<1x32xf32>
    %c2 = arith.constant 2 : index
    %c0_11 = arith.constant 0 : index
    %14 = vector.load %arg12[%c2, %c0_11] : memref<38x128xf32, #tpu.memory_space<vmem>>, vector<1x32xf32>
    tpu.vector_store %arg12[%c2, %c0_11], %13 {strides = array<i32>} : memref<38x128xf32, #tpu.memory_space<vmem>>, vector<1x32xf32>,
    %15 = vector.extract_strided_slice %1 {offsets = [28, 0], sizes = [1, 32], strides = [1, 1]} : vector<32x32xf32> to vector<1x32xf32>
    %c37 = arith.constant 37 : index
    %c0_12 = arith.constant 0 : index
    %16 = vector.load %arg12[%c37, %c0_12] : memref<38x128xf32, #tpu.memory_space<vmem>>, vector<1x32xf32>
    tpu.vector_store %arg12[%c37, %c0_12], %15 {strides = array<i32>} : memref<38x128xf32, #tpu.memory_space<vmem>>, vector<1x32xf32>,
    %cst = arith.constant 0.000000e+00 : f32
    %17 = vector.broadcast %cst : f32 to vector<32x256xf32>
    %c0_13 = arith.constant 0 : index
    %c0_14 = arith.constant 0 : index
    %18 = vector.load %arg12[%c0_13, %c0_14] : memref<38x128xf32, #tpu.memory_space<vmem>>, vector<32x32xf32>
    %19 = arith.truncf %18 : vector<32x32xf32> to vector<32x32xbf16>
    %c0_15 = arith.constant 0 : index
    %c0_16 = arith.constant 0 : index
    %c0_17 = arith.constant 0 : index
    %20 = vector.load %arg2[%c0_15, %c0_16, %c0_17] : memref<7x32x256xbf16, #tpu.memory_space<vmem>>, vector<1x32x256xbf16>
    %21 = vector.shape_cast %20 : vector<1x32x256xbf16> to vector<32x256xbf16>
    %cst_18 = arith.constant dense<0.000000e+00> : vector<32x256xf32>
    %22 = tpu.matmul %19, %21, %cst_18 {dimension_numbers = #tpu.dot_dimension_numbers<[1], [0], [0], [1], [0, 0, 1, 1], [], []>} : vector<32x32xbf16>, vector<32x256xbf16>, vector<32x256xf32> -> vector<32x256xf32>
    %23 = arith.addf %17, %22 : vector<32x256xf32>
    %c1_19 = arith.constant 1 : index
    %c0_20 = arith.constant 0 : index
    %24 = vector.load %arg12[%c1_19, %c0_20] : memref<38x128xf32, #tpu.memory_space<vmem>>, vector<32x32xf32>
    %25 = arith.truncf %24 : vector<32x32xf32> to vector<32x32xbf16>
    %c1_21 = arith.constant 1 : index
    %c0_22 = arith.constant 0 : index
    %c0_23 = arith.constant 0 : index
    %26 = vector.load %arg2[%c1_21, %c0_22, %c0_23] : memref<7x32x256xbf16, #tpu.memory_space<vmem>>, vector<1x32x256xbf16>
    %27 = vector.shape_cast %26 : vector<1x32x256xbf16> to vector<32x256xbf16>
    %cst_24 = arith.constant dense<0.000000e+00> : vector<32x256xf32>
    %28 = tpu.matmul %25, %27, %cst_24 {dimension_numbers = #tpu.dot_dimension_numbers<[1], [0], [0], [1], [0, 0, 1, 1], [], []>} : vector<32x32xbf16>, vector<32x256xbf16>, vector<32x256xf32> -> vector<32x256xf32>
    %29 = arith.addf %23, %28 : vector<32x256xf32>
    %c2_25 = arith.constant 2 : index
    %c0_26 = arith.constant 0 : index
    %30 = vector.load %arg12[%c2_25, %c0_26] : memref<38x128xf32, #tpu.memory_space<vmem>>, vector<32x32xf32>
    %31 = arith.truncf %30 : vector<32x32xf32> to vector<32x32xbf16>
    %c2_27 = arith.constant 2 : index
    %c0_28 = arith.constant 0 : index
    %c0_29 = arith.constant 0 : index
    %32 = vector.load %arg2[%c2_27, %c0_28, %c0_29] : memref<7x32x256xbf16, #tpu.memory_space<vmem>>, vector<1x32x256xbf16>
    %33 = vector.shape_cast %32 : vector<1x32x256xbf16> to vector<32x256xbf16>
    %cst_30 = arith.constant dense<0.000000e+00> : vector<32x256xf32>
    %34 = tpu.matmul %31, %33, %cst_30 {dimension_numbers = #tpu.dot_dimension_numbers<[1], [0], [0], [1], [0, 0, 1, 1], [], []>} : vector<32x32xbf16>, vector<32x256xbf16>, vector<32x256xf32> -> vector<32x256xf32>
    %35 = arith.addf %29, %34 : vector<32x256xf32>
    %c3_31 = arith.constant 3 : index
    %c0_32 = arith.constant 0 : index
    %36 = vector.load %arg12[%c3_31, %c0_32] : memref<38x128xf32, #tpu.memory_space<vmem>>, vector<32x32xf32>
    %37 = arith.truncf %36 : vector<32x32xf32> to vector<32x32xbf16>
    %c3_33 = arith.constant 3 : index
    %c0_34 = arith.constant 0 : index
    %c0_35 = arith.constant 0 : index
    %38 = vector.load %arg2[%c3_33, %c0_34, %c0_35] : memref<7x32x256xbf16, #tpu.memory_space<vmem>>, vector<1x32x256xbf16>
    %39 = vector.shape_cast %38 : vector<1x32x256xbf16> to vector<32x256xbf16>
    %cst_36 = arith.constant dense<0.000000e+00> : vector<32x256xf32>
    %40 = tpu.matmul %37, %39, %cst_36 {dimension_numbers = #tpu.dot_dimension_numbers<[1], [0], [0], [1], [0, 0, 1, 1], [], []>} : vector<32x32xbf16>, vector<32x256xbf16>, vector<32x256xf32> -> vector<32x256xf32>
    %41 = arith.addf %35, %40 : vector<32x256xf32>
    %c4 = arith.constant 4 : index
    %c0_37 = arith.constant 0 : index
    %42 = vector.load %arg12[%c4, %c0_37] : memref<38x128xf32, #tpu.memory_space<vmem>>, vector<32x32xf32>
    %43 = arith.truncf %42 : vector<32x32xf32> to vector<32x32xbf16>
    %c4_38 = arith.constant 4 : index
    %c0_39 = arith.constant 0 : index
    %c0_40 = arith.constant 0 : index
    %44 = vector.load %arg2[%c4_38, %c0_39, %c0_40] : memref<7x32x256xbf16, #tpu.memory_space<vmem>>, vector<1x32x256xbf16>
    %45 = vector.shape_cast %44 : vector<1x32x256xbf16> to vector<32x256xbf16>
    %cst_41 = arith.constant dense<0.000000e+00> : vector<32x256xf32>
    %46 = tpu.matmul %43, %45, %cst_41 {dimension_numbers = #tpu.dot_dimension_numbers<[1], [0], [0], [1], [0, 0, 1, 1], [], []>} : vector<32x32xbf16>, vector<32x256xbf16>, vector<32x256xf32> -> vector<32x256xf32>
    %47 = arith.addf %41, %46 : vector<32x256xf32>
    %c5 = arith.constant 5 : index
    %c0_42 = arith.constant 0 : index
    %48 = vector.load %arg12[%c5, %c0_42] : memref<38x128xf32, #tpu.memory_space<vmem>>, vector<32x32xf32>
    %49 = arith.truncf %48 : vector<32x32xf32> to vector<32x32xbf16>
    %c5_43 = arith.constant 5 : index
    %c0_44 = arith.constant 0 : index
    %c0_45 = arith.constant 0 : index
    %50 = vector.load %arg2[%c5_43, %c0_44, %c0_45] : memref<7x32x256xbf16, #tpu.memory_space<vmem>>, vector<1x32x256xbf16>
    %51 = vector.shape_cast %50 : vector<1x32x256xbf16> to vector<32x256xbf16>
    %cst_46 = arith.constant dense<0.000000e+00> : vector<32x256xf32>
    %52 = tpu.matmul %49, %51, %cst_46 {dimension_numbers = #tpu.dot_dimension_numbers<[1], [0], [0], [1], [0, 0, 1, 1], [], []>} : vector<32x32xbf16>, vector<32x256xbf16>, vector<32x256xf32> -> vector<32x256xf32>
    %53 = arith.addf %47, %52 : vector<32x256xf32>
    %c6 = arith.constant 6 : index
    %c0_47 = arith.constant 0 : index
    %54 = vector.load %arg12[%c6, %c0_47] : memref<38x128xf32, #tpu.memory_space<vmem>>, vector<32x32xf32>
    %55 = arith.truncf %54 : vector<32x32xf32> to vector<32x32xbf16>
    %c6_48 = arith.constant 6 : index
    %c0_49 = arith.constant 0 : index
    %c0_50 = arith.constant 0 : index
    %56 = vector.load %arg2[%c6_48, %c0_49, %c0_50] : memref<7x32x256xbf16, #tpu.memory_space<vmem>>, vector<1x32x256xbf16>
    %57 = vector.shape_cast %56 : vector<1x32x256xbf16> to vector<32x256xbf16>
    %cst_51 = arith.constant dense<0.000000e+00> : vector<32x256xf32>
    %58 = tpu.matmul %55, %57, %cst_51 {dimension_numbers = #tpu.dot_dimension_numbers<[1], [0], [0], [1], [0, 0, 1, 1], [], []>} : vector<32x32xbf16>, vector<32x256xbf16>, vector<32x256xf32> -> vector<32x256xf32>
    %59 = arith.addf %53, %58 : vector<32x256xf32>
    %60 = vector.broadcast %3 : vector<1x256xf32> to vector<32x256xf32>
    %61 = arith.addf %59, %60 : vector<32x256xf32>
    %62 = math.tanh %61 : vector<32x256xf32>
    %c0_52 = arith.constant 0 : index
    %c0_53 = arith.constant 0 : index
    %c0_54 = arith.constant 0 : index
    %c0_55 = arith.constant 0 : index
    %63 = vector.load %arg7[%c0_52, %c0_53, %c0_54, %c0_55] : memref<4x2x16x32xf32, #tpu.memory_space<vmem>>, vector<1x1x16x32xf32>
    %64 = vector.shape_cast %63 : vector<1x1x16x32xf32> to vector<16x32xf32>
    %c0_56 = arith.constant 0 : index
    %c1_57 = arith.constant 1 : index
    %c0_58 = arith.constant 0 : index
    %c0_59 = arith.constant 0 : index
    %65 = vector.load %arg7[%c0_56, %c1_57, %c0_58, %c0_59] : memref<4x2x16x32xf32, #tpu.memory_space<vmem>>, vector<1x1x16x32xf32>
    %66 = vector.shape_cast %65 : vector<1x1x16x32xf32> to vector<16x32xf32>
    %cst_60 = arith.constant dense<0.000000e+00> : vector<16x256xf32>
    %67 = tpu.matmul %64, %62, %cst_60 {dimension_numbers = #tpu.dot_dimension_numbers<[1], [0], [0], [1], [0, 0, 1, 1], [], []>} : vector<16x32xf32>, vector<32x256xf32>, vector<16x256xf32> -> vector<16x256xf32>
    %cst_61 = arith.constant dense<0.000000e+00> : vector<16x256xf32>
    %68 = tpu.matmul %66, %62, %cst_61 {dimension_numbers = #tpu.dot_dimension_numbers<[1], [0], [0], [1], [0, 0, 1, 1], [], []>} : vector<16x32xf32>, vector<32x256xf32>, vector<16x256xf32> -> vector<16x256xf32>
    %69 = arith.maximumf %67, %68 : vector<16x256xf32>
    %c0_62 = arith.constant 0 : index
    %c0_63 = arith.constant 0 : index
    %c0_64 = arith.constant 0 : index
    %c0_65 = arith.constant 0 : index
    %70 = vector.load %arg8[%c0_62, %c0_63, %c0_64, %c0_65] : memref<4x2x256x128xf32, #tpu.memory_space<vmem>>, vector<1x1x256x128xf32>
    %71 = vector.shape_cast %70 : vector<1x1x256x128xf32> to vector<256x128xf32>
    %c0_66 = arith.constant 0 : index
    %c1_67 = arith.constant 1 : index
    %c0_68 = arith.constant 0 : index
    %c0_69 = arith.constant 0 : index
    %72 = vector.load %arg8[%c0_66, %c1_67, %c0_68, %c0_69] : memref<4x2x256x128xf32, #tpu.memory_space<vmem>>, vector<1x1x256x128xf32>
    %73 = vector.shape_cast %72 : vector<1x1x256x128xf32> to vector<256x128xf32>
    %cst_70 = arith.constant dense<0.000000e+00> : vector<16x128xf32>
    %74 = tpu.matmul %69, %71, %cst_70 {dimension_numbers = #tpu.dot_dimension_numbers<[1], [0], [0], [1], [0, 0, 1, 1], [], []>} : vector<16x256xf32>, vector<256x128xf32>, vector<16x128xf32> -> vector<16x128xf32>
    %cst_71 = arith.constant dense<0.000000e+00> : vector<16x128xf32>
    %75 = tpu.matmul %69, %73, %cst_71 {dimension_numbers = #tpu.dot_dimension_numbers<[1], [0], [0], [1], [0, 0, 1, 1], [], []>} : vector<16x256xf32>, vector<256x128xf32>, vector<16x128xf32> -> vector<16x128xf32>
    %76 = arith.maximumf %74, %75 : vector<16x128xf32>
    %c1_72 = arith.constant 1 : index
    %c0_73 = arith.constant 0 : index
    %c0_74 = arith.constant 0 : index
    %77 = vector.load %arg6[%c1_72, %c0_73, %c0_74] : memref<4x1x256xf32, #tpu.memory_space<vmem>>, vector<1x1x256xf32>
    %78 = vector.shape_cast %77 : vector<1x1x256xf32> to vector<1x256xf32>
    %c2_75 = arith.constant 2 : index
    %c0_76 = arith.constant 0 : index
    %79 = vector.load %arg12[%c2_75, %c0_76] : memref<38x128xf32, #tpu.memory_space<vmem>>, vector<16x128xf32>
    tpu.vector_store %arg12[%c2_75, %c0_76], %76 {strides = array<i32>} : memref<38x128xf32, #tpu.memory_space<vmem>>, vector<16x128xf32>,
    %80 = vector.extract_strided_slice %76 {offsets = [2, 0], sizes = [1, 128], strides = [1, 1]} : vector<16x128xf32> to vector<1x128xf32>
    %c0_77 = arith.constant 0 : index
    %c0_78 = arith.constant 0 : index
    %81 = vector.load %arg12[%c0_77, %c0_78] : memref<38x128xf32, #tpu.memory_space<vmem>>, vector<1x128xf32>
    tpu.vector_store %arg12[%c0_77, %c0_78], %80 {strides = array<i32>} : memref<38x128xf32, #tpu.memory_space<vmem>>, vector<1x128xf32>,
    %82 = vector.extract_strided_slice %76 {offsets = [14, 0], sizes = [1, 128], strides = [1, 1]} : vector<16x128xf32> to vector<1x128xf32>
    %c18 = arith.constant 18 : index
    %c0_79 = arith.constant 0 : index
    %83 = vector.load %arg12[%c18, %c0_79] : memref<38x128xf32, #tpu.memory_space<vmem>>, vector<1x128xf32>
    tpu.vector_store %arg12[%c18, %c0_79], %82 {strides = array<i32>} : memref<38x128xf32, #tpu.memory_space<vmem>>, vector<1x128xf32>,
    %84 = vector.extract_strided_slice %76 {offsets = [1, 0], sizes = [1, 128], strides = [1, 1]} : vector<16x128xf32> to vector<1x128xf32>
    %c1_80 = arith.constant 1 : index
    %c0_81 = arith.constant 0 : index
    %85 = vector.load %arg12[%c1_80, %c0_81] : memref<38x128xf32, #tpu.memory_space<vmem>>, vector<1x128xf32>
    tpu.vector_store %arg12[%c1_80, %c0_81], %84 {strides = array<i32>} : memref<38x128xf32, #tpu.memory_space<vmem>>, vector<1x128xf32>,
    %86 = vector.extract_strided_slice %76 {offsets = [13, 0], sizes = [1, 128], strides = [1, 1]} : vector<16x128xf32> to vector<1x128xf32>
    %c19 = arith.constant 19 : index
    %c0_82 = arith.constant 0 : index
    %87 = vector.load %arg12[%c19, %c0_82] : memref<38x128xf32, #tpu.memory_space<vmem>>, vector<1x128xf32>
    tpu.vector_store %arg12[%c19, %c0_82], %86 {strides = array<i32>} : memref<38x128xf32, #tpu.memory_space<vmem>>, vector<1x128xf32>,
    %cst_83 = arith.constant 0.000000e+00 : f32
    %88 = vector.broadcast %cst_83 : f32 to vector<16x256xf32>
    %c0_84 = arith.constant 0 : index
    %c0_85 = arith.constant 0 : index
    %89 = vector.load %arg12[%c0_84, %c0_85] : memref<38x128xf32, #tpu.memory_space<vmem>>, vector<16x128xf32>
    %90 = arith.truncf %89 : vector<16x128xf32> to vector<16x128xbf16>
    %c0_86 = arith.constant 0 : index
    %c0_87 = arith.constant 0 : index
    %c0_88 = arith.constant 0 : index
    %91 = vector.load %arg3[%c0_86, %c0_87, %c0_88] : memref<5x128x256xbf16, #tpu.memory_space<vmem>>, vector<1x128x256xbf16>
    %92 = vector.shape_cast %91 : vector<1x128x256xbf16> to vector<128x256xbf16>
    %cst_89 = arith.constant dense<0.000000e+00> : vector<16x256xf32>
    %93 = tpu.matmul %90, %92, %cst_89 {dimension_numbers = #tpu.dot_dimension_numbers<[1], [0], [0], [1], [0, 0, 1, 1], [], []>} : vector<16x128xbf16>, vector<128x256xbf16>, vector<16x256xf32> -> vector<16x256xf32>
    %94 = arith.addf %88, %93 : vector<16x256xf32>
    %c1_90 = arith.constant 1 : index
    %c0_91 = arith.constant 0 : index
    %95 = vector.load %arg12[%c1_90, %c0_91] : memref<38x128xf32, #tpu.memory_space<vmem>>, vector<16x128xf32>
    %96 = arith.truncf %95 : vector<16x128xf32> to vector<16x128xbf16>
    %c1_92 = arith.constant 1 : index
    %c0_93 = arith.constant 0 : index
    %c0_94 = arith.constant 0 : index
    %97 = vector.load %arg3[%c1_92, %c0_93, %c0_94] : memref<5x128x256xbf16, #tpu.memory_space<vmem>>, vector<1x128x256xbf16>
    %98 = vector.shape_cast %97 : vector<1x128x256xbf16> to vector<128x256xbf16>
    %cst_95 = arith.constant dense<0.000000e+00> : vector<16x256xf32>
    %99 = tpu.matmul %96, %98, %cst_95 {dimension_numbers = #tpu.dot_dimension_numbers<[1], [0], [0], [1], [0, 0, 1, 1], [], []>} : vector<16x128xbf16>, vector<128x256xbf16>, vector<16x256xf32> -> vector<16x256xf32>
    %100 = arith.addf %94, %99 : vector<16x256xf32>
    %c2_96 = arith.constant 2 : index
    %c0_97 = arith.constant 0 : index
    %101 = vector.load %arg12[%c2_96, %c0_97] : memref<38x128xf32, #tpu.memory_space<vmem>>, vector<16x128xf32>
    %102 = arith.truncf %101 : vector<16x128xf32> to vector<16x128xbf16>
    %c2_98 = arith.constant 2 : index
    %c0_99 = arith.constant 0 : index
    %c0_100 = arith.constant 0 : index
    %103 = vector.load %arg3[%c2_98, %c0_99, %c0_100] : memref<5x128x256xbf16, #tpu.memory_space<vmem>>, vector<1x128x256xbf16>
    %104 = vector.shape_cast %103 : vector<1x128x256xbf16> to vector<128x256xbf16>
    %cst_101 = arith.constant dense<0.000000e+00> : vector<16x256xf32>
    %105 = tpu.matmul %102, %104, %cst_101 {dimension_numbers = #tpu.dot_dimension_numbers<[1], [0], [0], [1], [0, 0, 1, 1], [], []>} : vector<16x128xbf16>, vector<128x256xbf16>, vector<16x256xf32> -> vector<16x256xf32>
    %106 = arith.addf %100, %105 : vector<16x256xf32>
    %c3_102 = arith.constant 3 : index
    %c0_103 = arith.constant 0 : index
    %107 = vector.load %arg12[%c3_102, %c0_103] : memref<38x128xf32, #tpu.memory_space<vmem>>, vector<16x128xf32>
    %108 = arith.truncf %107 : vector<16x128xf32> to vector<16x128xbf16>
    %c3_104 = arith.constant 3 : index
    %c0_105 = arith.constant 0 : index
    %c0_106 = arith.constant 0 : index
    %109 = vector.load %arg3[%c3_104, %c0_105, %c0_106] : memref<5x128x256xbf16, #tpu.memory_space<vmem>>, vector<1x128x256xbf16>
    %110 = vector.shape_cast %109 : vector<1x128x256xbf16> to vector<128x256xbf16>
    %cst_107 = arith.constant dense<0.000000e+00> : vector<16x256xf32>
    %111 = tpu.matmul %108, %110, %cst_107 {dimension_numbers = #tpu.dot_dimension_numbers<[1], [0], [0], [1], [0, 0, 1, 1], [], []>} : vector<16x128xbf16>, vector<128x256xbf16>, vector<16x256xf32> -> vector<16x256xf32>
    %112 = arith.addf %106, %111 : vector<16x256xf32>
    %c4_108 = arith.constant 4 : index
    %c0_109 = arith.constant 0 : index
    %113 = vector.load %arg12[%c4_108, %c0_109] : memref<38x128xf32, #tpu.memory_space<vmem>>, vector<16x128xf32>
    %114 = arith.truncf %113 : vector<16x128xf32> to vector<16x128xbf16>
    %c4_110 = arith.constant 4 : index
    %c0_111 = arith.constant 0 : index
    %c0_112 = arith.constant 0 : index
    %115 = vector.load %arg3[%c4_110, %c0_111, %c0_112] : memref<5x128x256xbf16, #tpu.memory_space<vmem>>, vector<1x128x256xbf16>
    %116 = vector.shape_cast %115 : vector<1x128x256xbf16> to vector<128x256xbf16>
    %cst_113 = arith.constant dense<0.000000e+00> : vector<16x256xf32>
    %117 = tpu.matmul %114, %116, %cst_113 {dimension_numbers = #tpu.dot_dimension_numbers<[1], [0], [0], [1], [0, 0, 1, 1], [], []>} : vector<16x128xbf16>, vector<128x256xbf16>, vector<16x256xf32> -> vector<16x256xf32>
    %118 = arith.addf %112, %117 : vector<16x256xf32>
    %119 = vector.broadcast %78 : vector<1x256xf32> to vector<16x256xf32>
    %120 = arith.addf %118, %119 : vector<16x256xf32>
    %cst_114 = arith.constant dense<0.000000e+00> : vector<256xf32>
    %121 = vector.multi_reduction <add>, %120, %cst_114 [0] : vector<16x256xf32> to vector<256xf32>
    %122 = vector.shape_cast %121 : vector<256xf32> to vector<1x256xf32>
    %c16_i32 = arith.constant 16 : i32
    %123 = tpu.dynamic_rotate %122 by %c16_i32 dim 1 : vector<1x256xf32>, i32 -> vector<1x256xf32>
    %124 = arith.addf %122, %123 : vector<1x256xf32>
    %c16_i32_115 = arith.constant 16 : i32
    %125 = tpu.dynamic_rotate %123 by %c16_i32_115 dim 1 : vector<1x256xf32>, i32 -> vector<1x256xf32>
    %126 = arith.addf %124, %125 : vector<1x256xf32>
    %c16_i32_116 = arith.constant 16 : i32
    %127 = tpu.dynamic_rotate %125 by %c16_i32_116 dim 1 : vector<1x256xf32>, i32 -> vector<1x256xf32>
    %128 = arith.addf %126, %127 : vector<1x256xf32>
    %c16_i32_117 = arith.constant 16 : i32
    %129 = tpu.dynamic_rotate %127 by %c16_i32_117 dim 1 : vector<1x256xf32>, i32 -> vector<1x256xf32>
    %130 = arith.addf %128, %129 : vector<1x256xf32>
    %c16_i32_118 = arith.constant 16 : i32
    %131 = tpu.dynamic_rotate %129 by %c16_i32_118 dim 1 : vector<1x256xf32>, i32 -> vector<1x256xf32>
    %132 = arith.addf %130, %131 : vector<1x256xf32>
    %c16_i32_119 = arith.constant 16 : i32
    %133 = tpu.dynamic_rotate %131 by %c16_i32_119 dim 1 : vector<1x256xf32>, i32 -> vector<1x256xf32>
    %134 = arith.addf %132, %133 : vector<1x256xf32>
    %c16_i32_120 = arith.constant 16 : i32
    %135 = tpu.dynamic_rotate %133 by %c16_i32_120 dim 1 : vector<1x256xf32>, i32 -> vector<1x256xf32>
    %136 = arith.addf %134, %135 : vector<1x256xf32>
    %c16_i32_121 = arith.constant 16 : i32
    %137 = tpu.dynamic_rotate %135 by %c16_i32_121 dim 1 : vector<1x256xf32>, i32 -> vector<1x256xf32>
    %138 = arith.addf %136, %137 : vector<1x256xf32>
    %c16_i32_122 = arith.constant 16 : i32
    %139 = tpu.dynamic_rotate %137 by %c16_i32_122 dim 1 : vector<1x256xf32>, i32 -> vector<1x256xf32>
    %140 = arith.addf %138, %139 : vector<1x256xf32>
    %c16_i32_123 = arith.constant 16 : i32
    %141 = tpu.dynamic_rotate %139 by %c16_i32_123 dim 1 : vector<1x256xf32>, i32 -> vector<1x256xf32>
    %142 = arith.addf %140, %141 : vector<1x256xf32>
    %c16_i32_124 = arith.constant 16 : i32
    %143 = tpu.dynamic_rotate %141 by %c16_i32_124 dim 1 : vector<1x256xf32>, i32 -> vector<1x256xf32>
    %144 = arith.addf %142, %143 : vector<1x256xf32>
    %c16_i32_125 = arith.constant 16 : i32
    %145 = tpu.dynamic_rotate %143 by %c16_i32_125 dim 1 : vector<1x256xf32>, i32 -> vector<1x256xf32>
    %146 = arith.addf %144, %145 : vector<1x256xf32>
    %c16_i32_126 = arith.constant 16 : i32
    %147 = tpu.dynamic_rotate %145 by %c16_i32_126 dim 1 : vector<1x256xf32>, i32 -> vector<1x256xf32>
    %148 = arith.addf %146, %147 : vector<1x256xf32>
    %c16_i32_127 = arith.constant 16 : i32
    %149 = tpu.dynamic_rotate %147 by %c16_i32_127 dim 1 : vector<1x256xf32>, i32 -> vector<1x256xf32>
    %150 = arith.addf %148, %149 : vector<1x256xf32>
    %c16_i32_128 = arith.constant 16 : i32
    %151 = tpu.dynamic_rotate %149 by %c16_i32_128 dim 1 : vector<1x256xf32>, i32 -> vector<1x256xf32>
    %152 = arith.addf %150, %151 : vector<1x256xf32>
    %cst_129 = arith.constant 3.906250e-03 : f32
    %153 = vector.broadcast %cst_129 : f32 to vector<1x256xf32>
    %154 = arith.mulf %152, %153 : vector<1x256xf32>
    %155 = vector.broadcast %154 : vector<1x256xf32> to vector<16x256xf32>
    %156 = arith.subf %120, %155 : vector<16x256xf32>
    %157 = arith.mulf %156, %156 : vector<16x256xf32>
    %cst_130 = arith.constant dense<0.000000e+00> : vector<256xf32>
    %158 = vector.multi_reduction <add>, %157, %cst_130 [0] : vector<16x256xf32> to vector<256xf32>
    %159 = vector.shape_cast %158 : vector<256xf32> to vector<1x256xf32>
    %c16_i32_131 = arith.constant 16 : i32
    %160 = tpu.dynamic_rotate %159 by %c16_i32_131 dim 1 : vector<1x256xf32>, i32 -> vector<1x256xf32>
    %161 = arith.addf %159, %160 : vector<1x256xf32>
    %c16_i32_132 = arith.constant 16 : i32
    %162 = tpu.dynamic_rotate %160 by %c16_i32_132 dim 1 : vector<1x256xf32>, i32 -> vector<1x256xf32>
    %163 = arith.addf %161, %162 : vector<1x256xf32>
    %c16_i32_133 = arith.constant 16 : i32
    %164 = tpu.dynamic_rotate %162 by %c16_i32_133 dim 1 : vector<1x256xf32>, i32 -> vector<1x256xf32>
    %165 = arith.addf %163, %164 : vector<1x256xf32>
    %c16_i32_134 = arith.constant 16 : i32
    %166 = tpu.dynamic_rotate %164 by %c16_i32_134 dim 1 : vector<1x256xf32>, i32 -> vector<1x256xf32>
    %167 = arith.addf %165, %166 : vector<1x256xf32>
    %c16_i32_135 = arith.constant 16 : i32
    %168 = tpu.dynamic_rotate %166 by %c16_i32_135 dim 1 : vector<1x256xf32>, i32 -> vector<1x256xf32>
    %169 = arith.addf %167, %168 : vector<1x256xf32>
    %c16_i32_136 = arith.constant 16 : i32
    %170 = tpu.dynamic_rotate %168 by %c16_i32_136 dim 1 : vector<1x256xf32>, i32 -> vector<1x256xf32>
    %171 = arith.addf %169, %170 : vector<1x256xf32>
    %c16_i32_137 = arith.constant 16 : i32
    %172 = tpu.dynamic_rotate %170 by %c16_i32_137 dim 1 : vector<1x256xf32>, i32 -> vector<1x256xf32>
    %173 = arith.addf %171, %172 : vector<1x256xf32>
    %c16_i32_138 = arith.constant 16 : i32
    %174 = tpu.dynamic_rotate %172 by %c16_i32_138 dim 1 : vector<1x256xf32>, i32 -> vector<1x256xf32>
    %175 = arith.addf %173, %174 : vector<1x256xf32>
    %c16_i32_139 = arith.constant 16 : i32
    %176 = tpu.dynamic_rotate %174 by %c16_i32_139 dim 1 : vector<1x256xf32>, i32 -> vector<1x256xf32>
    %177 = arith.addf %175, %176 : vector<1x256xf32>
    %c16_i32_140 = arith.constant 16 : i32
    %178 = tpu.dynamic_rotate %176 by %c16_i32_140 dim 1 : vector<1x256xf32>, i32 -> vector<1x256xf32>
    %179 = arith.addf %177, %178 : vector<1x256xf32>
    %c16_i32_141 = arith.constant 16 : i32
    %180 = tpu.dynamic_rotate %178 by %c16_i32_141 dim 1 : vector<1x256xf32>, i32 -> vector<1x256xf32>
    %181 = arith.addf %179, %180 : vector<1x256xf32>
    %c16_i32_142 = arith.constant 16 : i32
    %182 = tpu.dynamic_rotate %180 by %c16_i32_142 dim 1 : vector<1x256xf32>, i32 -> vector<1x256xf32>
    %183 = arith.addf %181, %182 : vector<1x256xf32>
    %c16_i32_143 = arith.constant 16 : i32
    %184 = tpu.dynamic_rotate %182 by %c16_i32_143 dim 1 : vector<1x256xf32>, i32 -> vector<1x256xf32>
    %185 = arith.addf %183, %184 : vector<1x256xf32>
    %c16_i32_144 = arith.constant 16 : i32
    %186 = tpu.dynamic_rotate %184 by %c16_i32_144 dim 1 : vector<1x256xf32>, i32 -> vector<1x256xf32>
    %187 = arith.addf %185, %186 : vector<1x256xf32>
    %c16_i32_145 = arith.constant 16 : i32
    %188 = tpu.dynamic_rotate %186 by %c16_i32_145 dim 1 : vector<1x256xf32>, i32 -> vector<1x256xf32>
    %189 = arith.addf %187, %188 : vector<1x256xf32>
    %cst_146 = arith.constant 3.906250e-03 : f32
    %190 = vector.broadcast %cst_146 : f32 to vector<1x256xf32>
    %191 = arith.mulf %189, %190 : vector<1x256xf32>
    %cst_147 = arith.constant 9.99999974E-6 : f32
    %192 = vector.broadcast %cst_147 : f32 to vector<1x256xf32>
    %193 = arith.addf %191, %192 : vector<1x256xf32>
    %194 = math.rsqrt %193 : vector<1x256xf32>
    %195 = vector.broadcast %194 : vector<1x256xf32> to vector<16x256xf32>
    %196 = arith.mulf %156, %195 : vector<16x256xf32>
    %cst_148 = arith.constant 0.000000e+00 : f32
    %197 = vector.broadcast %cst_148 : f32 to vector<16x256xf32>
    %198 = arith.maximumf %196, %197 : vector<16x256xf32>
    %c1_149 = arith.constant 1 : index
    %c0_150 = arith.constant 0 : index
    %c0_151 = arith.constant 0 : index
    %c0_152 = arith.constant 0 : index
    %199 = vector.load %arg7[%c1_149, %c0_150, %c0_151, %c0_152] : memref<4x2x16x32xf32, #tpu.memory_space<vmem>>, vector<1x1x16x32xf32>
    %200 = vector.shape_cast %199 : vector<1x1x16x32xf32> to vector<16x32xf32>
    %201 = vector.extract_strided_slice %200 {offsets = [0, 0], sizes = [8, 16], strides = [1, 1]} : vector<16x32xf32> to vector<8x16xf32>
    %c1_153 = arith.constant 1 : index
    %c1_154 = arith.constant 1 : index
    %c0_155 = arith.constant 0 : index
    %c0_156 = arith.constant 0 : index
    %202 = vector.load %arg7[%c1_153, %c1_154, %c0_155, %c0_156] : memref<4x2x16x32xf32, #tpu.memory_space<vmem>>, vector<1x1x16x32xf32>
    %203 = vector.shape_cast %202 : vector<1x1x16x32xf32> to vector<16x32xf32>
    %204 = vector.extract_strided_slice %203 {offsets = [0, 0], sizes = [8, 16], strides = [1, 1]} : vector<16x32xf32> to vector<8x16xf32>
    %cst_157 = arith.constant dense<0.000000e+00> : vector<8x256xf32>
    %205 = tpu.matmul %201, %198, %cst_157 {dimension_numbers = #tpu.dot_dimension_numbers<[1], [0], [0], [1], [0, 0, 1, 1], [], []>} : vector<8x16xf32>, vector<16x256xf32>, vector<8x256xf32> -> vector<8x256xf32>
    %cst_158 = arith.constant dense<0.000000e+00> : vector<8x256xf32>
    %206 = tpu.matmul %204, %198, %cst_158 {dimension_numbers = #tpu.dot_dimension_numbers<[1], [0], [0], [1], [0, 0, 1, 1], [], []>} : vector<8x16xf32>, vector<16x256xf32>, vector<8x256xf32> -> vector<8x256xf32>
    %207 = arith.maximumf %205, %206 : vector<8x256xf32>
    %c1_159 = arith.constant 1 : index
    %c0_160 = arith.constant 0 : index
    %c0_161 = arith.constant 0 : index
    %c0_162 = arith.constant 0 : index
    %208 = vector.load %arg8[%c1_159, %c0_160, %c0_161, %c0_162] : memref<4x2x256x128xf32, #tpu.memory_space<vmem>>, vector<1x1x256x128xf32>
    %209 = vector.shape_cast %208 : vector<1x1x256x128xf32> to vector<256x128xf32>
    %c1_163 = arith.constant 1 : index
    %c1_164 = arith.constant 1 : index
    %c0_165 = arith.constant 0 : index
    %c0_166 = arith.constant 0 : index
    %210 = vector.load %arg8[%c1_163, %c1_164, %c0_165, %c0_166] : memref<4x2x256x128xf32, #tpu.memory_space<vmem>>, vector<1x1x256x128xf32>
    %211 = vector.shape_cast %210 : vector<1x1x256x128xf32> to vector<256x128xf32>
    %cst_167 = arith.constant dense<0.000000e+00> : vector<8x128xf32>
    %212 = tpu.matmul %207, %209, %cst_167 {dimension_numbers = #tpu.dot_dimension_numbers<[1], [0], [0], [1], [0, 0, 1, 1], [], []>} : vector<8x256xf32>, vector<256x128xf32>, vector<8x128xf32> -> vector<8x128xf32>
    %cst_168 = arith.constant dense<0.000000e+00> : vector<8x128xf32>
    %213 = tpu.matmul %207, %211, %cst_168 {dimension_numbers = #tpu.dot_dimension_numbers<[1], [0], [0], [1], [0, 0, 1, 1], [], []>} : vector<8x256xf32>, vector<256x128xf32>, vector<8x128xf32> -> vector<8x128xf32>
    %214 = arith.maximumf %212, %213 : vector<8x128xf32>
    %c2_169 = arith.constant 2 : index
    %c0_170 = arith.constant 0 : index
    %c0_171 = arith.constant 0 : index
    %215 = vector.load %arg6[%c2_169, %c0_170, %c0_171] : memref<4x1x256xf32, #tpu.memory_space<vmem>>, vector<1x1x256xf32>
    %216 = vector.shape_cast %215 : vector<1x1x256xf32> to vector<1x256xf32>
    %c2_172 = arith.constant 2 : index
    %c0_173 = arith.constant 0 : index
    %217 = vector.load %arg12[%c2_172, %c0_173] : memref<38x128xf32, #tpu.memory_space<vmem>>, vector<8x128xf32>
    tpu.vector_store %arg12[%c2_172, %c0_173], %214 {strides = array<i32>} : memref<38x128xf32, #tpu.memory_space<vmem>>, vector<8x128xf32>,
    %218 = vector.extract_strided_slice %214 {offsets = [2, 0], sizes = [1, 128], strides = [1, 1]} : vector<8x128xf32> to vector<1x128xf32>
    %c0_174 = arith.constant 0 : index
    %c0_175 = arith.constant 0 : index
    %219 = vector.load %arg12[%c0_174, %c0_175] : memref<38x128xf32, #tpu.memory_space<vmem>>, vector<1x128xf32>
    tpu.vector_store %arg12[%c0_174, %c0_175], %218 {strides = array<i32>} : memref<38x128xf32, #tpu.memory_space<vmem>>, vector<1x128xf32>,
    %220 = vector.extract_strided_slice %214 {offsets = [6, 0], sizes = [1, 128], strides = [1, 1]} : vector<8x128xf32> to vector<1x128xf32>
    %c10 = arith.constant 10 : index
    %c0_176 = arith.constant 0 : index
    %221 = vector.load %arg12[%c10, %c0_176] : memref<38x128xf32, #tpu.memory_space<vmem>>, vector<1x128xf32>
    tpu.vector_store %arg12[%c10, %c0_176], %220 {strides = array<i32>} : memref<38x128xf32, #tpu.memory_space<vmem>>, vector<1x128xf32>,
    %222 = vector.extract_strided_slice %214 {offsets = [1, 0], sizes = [1, 128], strides = [1, 1]} : vector<8x128xf32> to vector<1x128xf32>
    %c1_177 = arith.constant 1 : index
    %c0_178 = arith.constant 0 : index
    %223 = vector.load %arg12[%c1_177, %c0_178] : memref<38x128xf32, #tpu.memory_space<vmem>>, vector<1x128xf32>
    tpu.vector_store %arg12[%c1_177, %c0_178], %222 {strides = array<i32>} : memref<38x128xf32, #tpu.memory_space<vmem>>, vector<1x128xf32>,
    %224 = vector.extract_strided_slice %214 {offsets = [5, 0], sizes = [1, 128], strides = [1, 1]} : vector<8x128xf32> to vector<1x128xf32>
    %c11 = arith.constant 11 : index
    %c0_179 = arith.constant 0 : index
    %225 = vector.load %arg12[%c11, %c0_179] : memref<38x128xf32, #tpu.memory_space<vmem>>, vector<1x128xf32>
    tpu.vector_store %arg12[%c11, %c0_179], %224 {strides = array<i32>} : memref<38x128xf32, #tpu.memory_space<vmem>>, vector<1x128xf32>,
    %cst_180 = arith.constant 0.000000e+00 : f32
    %226 = vector.broadcast %cst_180 : f32 to vector<8x256xf32>
    %c0_181 = arith.constant 0 : index
    %c0_182 = arith.constant 0 : index
    %227 = vector.load %arg12[%c0_181, %c0_182] : memref<38x128xf32, #tpu.memory_space<vmem>>, vector<8x128xf32>
    %228 = arith.truncf %227 : vector<8x128xf32> to vector<8x128xbf16>
    %c0_183 = arith.constant 0 : index
    %c0_184 = arith.constant 0 : index
    %c0_185 = arith.constant 0 : index
    %229 = vector.load %arg4[%c0_183, %c0_184, %c0_185] : memref<5x128x256xbf16, #tpu.memory_space<vmem>>, vector<1x128x256xbf16>
    %230 = vector.shape_cast %229 : vector<1x128x256xbf16> to vector<128x256xbf16>
    %cst_186 = arith.constant dense<0.000000e+00> : vector<8x256xf32>
    %231 = tpu.matmul %228, %230, %cst_186 {dimension_numbers = #tpu.dot_dimension_numbers<[1], [0], [0], [1], [0, 0, 1, 1], [], []>} : vector<8x128xbf16>, vector<128x256xbf16>, vector<8x256xf32> -> vector<8x256xf32>
    %232 = arith.addf %226, %231 : vector<8x256xf32>
    %c1_187 = arith.constant 1 : index
    %c0_188 = arith.constant 0 : index
    %233 = vector.load %arg12[%c1_187, %c0_188] : memref<38x128xf32, #tpu.memory_space<vmem>>, vector<8x128xf32>
    %234 = arith.truncf %233 : vector<8x128xf32> to vector<8x128xbf16>
    %c1_189 = arith.constant 1 : index
    %c0_190 = arith.constant 0 : index
    %c0_191 = arith.constant 0 : index
    %235 = vector.load %arg4[%c1_189, %c0_190, %c0_191] : memref<5x128x256xbf16, #tpu.memory_space<vmem>>, vector<1x128x256xbf16>
    %236 = vector.shape_cast %235 : vector<1x128x256xbf16> to vector<128x256xbf16>
    %cst_192 = arith.constant dense<0.000000e+00> : vector<8x256xf32>
    %237 = tpu.matmul %234, %236, %cst_192 {dimension_numbers = #tpu.dot_dimension_numbers<[1], [0], [0], [1], [0, 0, 1, 1], [], []>} : vector<8x128xbf16>, vector<128x256xbf16>, vector<8x256xf32> -> vector<8x256xf32>
    %238 = arith.addf %232, %237 : vector<8x256xf32>
    %c2_193 = arith.constant 2 : index
    %c0_194 = arith.constant 0 : index
    %239 = vector.load %arg12[%c2_193, %c0_194] : memref<38x128xf32, #tpu.memory_space<vmem>>, vector<8x128xf32>
    %240 = arith.truncf %239 : vector<8x128xf32> to vector<8x128xbf16>
    %c2_195 = arith.constant 2 : index
    %c0_196 = arith.constant 0 : index
    %c0_197 = arith.constant 0 : index
    %241 = vector.load %arg4[%c2_195, %c0_196, %c0_197] : memref<5x128x256xbf16, #tpu.memory_space<vmem>>, vector<1x128x256xbf16>
    %242 = vector.shape_cast %241 : vector<1x128x256xbf16> to vector<128x256xbf16>
    %cst_198 = arith.constant dense<0.000000e+00> : vector<8x256xf32>
    %243 = tpu.matmul %240, %242, %cst_198 {dimension_numbers = #tpu.dot_dimension_numbers<[1], [0], [0], [1], [0, 0, 1, 1], [], []>} : vector<8x128xbf16>, vector<128x256xbf16>, vector<8x256xf32> -> vector<8x256xf32>
    %244 = arith.addf %238, %243 : vector<8x256xf32>
    %c3_199 = arith.constant 3 : index
    %c0_200 = arith.constant 0 : index
    %245 = vector.load %arg12[%c3_199, %c0_200] : memref<38x128xf32, #tpu.memory_space<vmem>>, vector<8x128xf32>
    %246 = arith.truncf %245 : vector<8x128xf32> to vector<8x128xbf16>
    %c3_201 = arith.constant 3 : index
    %c0_202 = arith.constant 0 : index
    %c0_203 = arith.constant 0 : index
    %247 = vector.load %arg4[%c3_201, %c0_202, %c0_203] : memref<5x128x256xbf16, #tpu.memory_space<vmem>>, vector<1x128x256xbf16>
    %248 = vector.shape_cast %247 : vector<1x128x256xbf16> to vector<128x256xbf16>
    %cst_204 = arith.constant dense<0.000000e+00> : vector<8x256xf32>
    %249 = tpu.matmul %246, %248, %cst_204 {dimension_numbers = #tpu.dot_dimension_numbers<[1], [0], [0], [1], [0, 0, 1, 1], [], []>} : vector<8x128xbf16>, vector<128x256xbf16>, vector<8x256xf32> -> vector<8x256xf32>
    %250 = arith.addf %244, %249 : vector<8x256xf32>
    %c4_205 = arith.constant 4 : index
    %c0_206 = arith.constant 0 : index
    %251 = vector.load %arg12[%c4_205, %c0_206] : memref<38x128xf32, #tpu.memory_space<vmem>>, vector<8x128xf32>
    %252 = arith.truncf %251 : vector<8x128xf32> to vector<8x128xbf16>
    %c4_207 = arith.constant 4 : index
    %c0_208 = arith.constant 0 : index
    %c0_209 = arith.constant 0 : index
    %253 = vector.load %arg4[%c4_207, %c0_208, %c0_209] : memref<5x128x256xbf16, #tpu.memory_space<vmem>>, vector<1x128x256xbf16>
    %254 = vector.shape_cast %253 : vector<1x128x256xbf16> to vector<128x256xbf16>
    %cst_210 = arith.constant dense<0.000000e+00> : vector<8x256xf32>
    %255 = tpu.matmul %252, %254, %cst_210 {dimension_numbers = #tpu.dot_dimension_numbers<[1], [0], [0], [1], [0, 0, 1, 1], [], []>} : vector<8x128xbf16>, vector<128x256xbf16>, vector<8x256xf32> -> vector<8x256xf32>
    %256 = arith.addf %250, %255 : vector<8x256xf32>
    %257 = vector.broadcast %216 : vector<1x256xf32> to vector<8x256xf32>
    %258 = arith.addf %256, %257 : vector<8x256xf32>
    %cst_211 = arith.constant dense<0.000000e+00> : vector<256xf32>
    %259 = vector.multi_reduction <add>, %258, %cst_211 [0] : vector<8x256xf32> to vector<256xf32>
    %260 = vector.shape_cast %259 : vector<256xf32> to vector<1x256xf32>
    %c32_i32 = arith.constant 32 : i32
    %261 = tpu.dynamic_rotate %260 by %c32_i32 dim 1 : vector<1x256xf32>, i32 -> vector<1x256xf32>
    %262 = arith.addf %260, %261 : vector<1x256xf32>
    %c32_i32_212 = arith.constant 32 : i32
    %263 = tpu.dynamic_rotate %261 by %c32_i32_212 dim 1 : vector<1x256xf32>, i32 -> vector<1x256xf32>
    %264 = arith.addf %262, %263 : vector<1x256xf32>
    %c32_i32_213 = arith.constant 32 : i32
    %265 = tpu.dynamic_rotate %263 by %c32_i32_213 dim 1 : vector<1x256xf32>, i32 -> vector<1x256xf32>
    %266 = arith.addf %264, %265 : vector<1x256xf32>
    %c32_i32_214 = arith.constant 32 : i32
    %267 = tpu.dynamic_rotate %265 by %c32_i32_214 dim 1 : vector<1x256xf32>, i32 -> vector<1x256xf32>
    %268 = arith.addf %266, %267 : vector<1x256xf32>
    %c32_i32_215 = arith.constant 32 : i32
    %269 = tpu.dynamic_rotate %267 by %c32_i32_215 dim 1 : vector<1x256xf32>, i32 -> vector<1x256xf32>
    %270 = arith.addf %268, %269 : vector<1x256xf32>
    %c32_i32_216 = arith.constant 32 : i32
    %271 = tpu.dynamic_rotate %269 by %c32_i32_216 dim 1 : vector<1x256xf32>, i32 -> vector<1x256xf32>
    %272 = arith.addf %270, %271 : vector<1x256xf32>
    %c32_i32_217 = arith.constant 32 : i32
    %273 = tpu.dynamic_rotate %271 by %c32_i32_217 dim 1 : vector<1x256xf32>, i32 -> vector<1x256xf32>
    %274 = arith.addf %272, %273 : vector<1x256xf32>
    %cst_218 = arith.constant 1.562500e-02 : f32
    %275 = vector.broadcast %cst_218 : f32 to vector<1x256xf32>
    %276 = arith.mulf %274, %275 : vector<1x256xf32>
    %277 = vector.broadcast %276 : vector<1x256xf32> to vector<8x256xf32>
    %278 = arith.subf %258, %277 : vector<8x256xf32>
    %279 = arith.mulf %278, %278 : vector<8x256xf32>
    %cst_219 = arith.constant dense<0.000000e+00> : vector<256xf32>
    %280 = vector.multi_reduction <add>, %279, %cst_219 [0] : vector<8x256xf32> to vector<256xf32>
    %281 = vector.shape_cast %280 : vector<256xf32> to vector<1x256xf32>
    %c32_i32_220 = arith.constant 32 : i32
    %282 = tpu.dynamic_rotate %281 by %c32_i32_220 dim 1 : vector<1x256xf32>, i32 -> vector<1x256xf32>
    %283 = arith.addf %281, %282 : vector<1x256xf32>
    %c32_i32_221 = arith.constant 32 : i32
    %284 = tpu.dynamic_rotate %282 by %c32_i32_221 dim 1 : vector<1x256xf32>, i32 -> vector<1x256xf32>
    %285 = arith.addf %283, %284 : vector<1x256xf32>
    %c32_i32_222 = arith.constant 32 : i32
    %286 = tpu.dynamic_rotate %284 by %c32_i32_222 dim 1 : vector<1x256xf32>, i32 -> vector<1x256xf32>
    %287 = arith.addf %285, %286 : vector<1x256xf32>
    %c32_i32_223 = arith.constant 32 : i32
    %288 = tpu.dynamic_rotate %286 by %c32_i32_223 dim 1 : vector<1x256xf32>, i32 -> vector<1x256xf32>
    %289 = arith.addf %287, %288 : vector<1x256xf32>
    %c32_i32_224 = arith.constant 32 : i32
    %290 = tpu.dynamic_rotate %288 by %c32_i32_224 dim 1 : vector<1x256xf32>, i32 -> vector<1x256xf32>
    %291 = arith.addf %289, %290 : vector<1x256xf32>
    %c32_i32_225 = arith.constant 32 : i32
    %292 = tpu.dynamic_rotate %290 by %c32_i32_225 dim 1 : vector<1x256xf32>, i32 -> vector<1x256xf32>
    %293 = arith.addf %291, %292 : vector<1x256xf32>
    %c32_i32_226 = arith.constant 32 : i32
    %294 = tpu.dynamic_rotate %292 by %c32_i32_226 dim 1 : vector<1x256xf32>, i32 -> vector<1x256xf32>
    %295 = arith.addf %293, %294 : vector<1x256xf32>
    %cst_227 = arith.constant 1.562500e-02 : f32
    %296 = vector.broadcast %cst_227 : f32 to vector<1x256xf32>
    %297 = arith.mulf %295, %296 : vector<1x256xf32>
    %cst_228 = arith.constant 9.99999974E-6 : f32
    %298 = vector.broadcast %cst_228 : f32 to vector<1x256xf32>
    %299 = arith.addf %297, %298 : vector<1x256xf32>
    %300 = math.rsqrt %299 : vector<1x256xf32>
    %301 = vector.broadcast %300 : vector<1x256xf32> to vector<8x256xf32>
    %302 = arith.mulf %278, %301 : vector<8x256xf32>
    %cst_229 = arith.constant 0.000000e+00 : f32
    %303 = vector.broadcast %cst_229 : f32 to vector<8x256xf32>
    %304 = arith.maximumf %302, %303 : vector<8x256xf32>
    %c2_230 = arith.constant 2 : index
    %c0_231 = arith.constant 0 : index
    %c0_232 = arith.constant 0 : index
    %c0_233 = arith.constant 0 : index
    %305 = vector.load %arg7[%c2_230, %c0_231, %c0_232, %c0_233] : memref<4x2x16x32xf32, #tpu.memory_space<vmem>>, vector<1x1x16x32xf32>
    %306 = vector.shape_cast %305 : vector<1x1x16x32xf32> to vector<16x32xf32>
    %307 = vector.extract_strided_slice %306 {offsets = [0, 0], sizes = [4, 8], strides = [1, 1]} : vector<16x32xf32> to vector<4x8xf32>
    %c2_234 = arith.constant 2 : index
    %c1_235 = arith.constant 1 : index
    %c0_236 = arith.constant 0 : index
    %c0_237 = arith.constant 0 : index
    %308 = vector.load %arg7[%c2_234, %c1_235, %c0_236, %c0_237] : memref<4x2x16x32xf32, #tpu.memory_space<vmem>>, vector<1x1x16x32xf32>
    %309 = vector.shape_cast %308 : vector<1x1x16x32xf32> to vector<16x32xf32>
    %310 = vector.extract_strided_slice %309 {offsets = [0, 0], sizes = [4, 8], strides = [1, 1]} : vector<16x32xf32> to vector<4x8xf32>
    %cst_238 = arith.constant dense<0.000000e+00> : vector<4x256xf32>
    %311 = tpu.matmul %307, %304, %cst_238 {dimension_numbers = #tpu.dot_dimension_numbers<[1], [0], [0], [1], [0, 0, 1, 1], [], []>} : vector<4x8xf32>, vector<8x256xf32>, vector<4x256xf32> -> vector<4x256xf32>
    %cst_239 = arith.constant dense<0.000000e+00> : vector<4x256xf32>
    %312 = tpu.matmul %310, %304, %cst_239 {dimension_numbers = #tpu.dot_dimension_numbers<[1], [0], [0], [1], [0, 0, 1, 1], [], []>} : vector<4x8xf32>, vector<8x256xf32>, vector<4x256xf32> -> vector<4x256xf32>
    %313 = arith.maximumf %311, %312 : vector<4x256xf32>
    %c2_240 = arith.constant 2 : index
    %c0_241 = arith.constant 0 : index
    %c0_242 = arith.constant 0 : index
    %c0_243 = arith.constant 0 : index
    %314 = vector.load %arg8[%c2_240, %c0_241, %c0_242, %c0_243] : memref<4x2x256x128xf32, #tpu.memory_space<vmem>>, vector<1x1x256x128xf32>
    %315 = vector.shape_cast %314 : vector<1x1x256x128xf32> to vector<256x128xf32>
    %c2_244 = arith.constant 2 : index
    %c1_245 = arith.constant 1 : index
    %c0_246 = arith.constant 0 : index
    %c0_247 = arith.constant 0 : index
    %316 = vector.load %arg8[%c2_244, %c1_245, %c0_246, %c0_247] : memref<4x2x256x128xf32, #tpu.memory_space<vmem>>, vector<1x1x256x128xf32>
    %317 = vector.shape_cast %316 : vector<1x1x256x128xf32> to vector<256x128xf32>
    %cst_248 = arith.constant dense<0.000000e+00> : vector<4x128xf32>
    %318 = tpu.matmul %313, %315, %cst_248 {dimension_numbers = #tpu.dot_dimension_numbers<[1], [0], [0], [1], [0, 0, 1, 1], [], []>} : vector<4x256xf32>, vector<256x128xf32>, vector<4x128xf32> -> vector<4x128xf32>
    %cst_249 = arith.constant dense<0.000000e+00> : vector<4x128xf32>
    %319 = tpu.matmul %313, %317, %cst_249 {dimension_numbers = #tpu.dot_dimension_numbers<[1], [0], [0], [1], [0, 0, 1, 1], [], []>} : vector<4x256xf32>, vector<256x128xf32>, vector<4x128xf32> -> vector<4x128xf32>
    %320 = arith.maximumf %318, %319 : vector<4x128xf32>
    %c3_250 = arith.constant 3 : index
    %c0_251 = arith.constant 0 : index
    %c0_252 = arith.constant 0 : index
    %321 = vector.load %arg6[%c3_250, %c0_251, %c0_252] : memref<4x1x256xf32, #tpu.memory_space<vmem>>, vector<1x1x256xf32>
    %322 = vector.shape_cast %321 : vector<1x1x256xf32> to vector<1x256xf32>
    %c2_253 = arith.constant 2 : index
    %c0_254 = arith.constant 0 : index
    %323 = vector.load %arg12[%c2_253, %c0_254] : memref<38x128xf32, #tpu.memory_space<vmem>>, vector<4x128xf32>
    tpu.vector_store %arg12[%c2_253, %c0_254], %320 {strides = array<i32>} : memref<38x128xf32, #tpu.memory_space<vmem>>, vector<4x128xf32>,
    %324 = vector.extract_strided_slice %320 {offsets = [2, 0], sizes = [1, 128], strides = [1, 1]} : vector<4x128xf32> to vector<1x128xf32>
    %c0_255 = arith.constant 0 : index
    %c0_256 = arith.constant 0 : index
    %325 = vector.load %arg12[%c0_255, %c0_256] : memref<38x128xf32, #tpu.memory_space<vmem>>, vector<1x128xf32>
    tpu.vector_store %arg12[%c0_255, %c0_256], %324 {strides = array<i32>} : memref<38x128xf32, #tpu.memory_space<vmem>>, vector<1x128xf32>,
    %326 = vector.extract_strided_slice %320 {offsets = [2, 0], sizes = [1, 128], strides = [1, 1]} : vector<4x128xf32> to vector<1x128xf32>
    %c6_257 = arith.constant 6 : index
    %c0_258 = arith.constant 0 : index
    %327 = vector.load %arg12[%c6_257, %c0_258] : memref<38x128xf32, #tpu.memory_space<vmem>>, vector<1x128xf32>
    tpu.vector_store %arg12[%c6_257, %c0_258], %326 {strides = array<i32>} : memref<38x128xf32, #tpu.memory_space<vmem>>, vector<1x128xf32>,
    %328 = vector.extract_strided_slice %320 {offsets = [1, 0], sizes = [1, 128], strides = [1, 1]} : vector<4x128xf32> to vector<1x128xf32>
    %c1_259 = arith.constant 1 : index
    %c0_260 = arith.constant 0 : index
    %329 = vector.load %arg12[%c1_259, %c0_260] : memref<38x128xf32, #tpu.memory_space<vmem>>, vector<1x128xf32>
    tpu.vector_store %arg12[%c1_259, %c0_260], %328 {strides = array<i32>} : memref<38x128xf32, #tpu.memory_space<vmem>>, vector<1x128xf32>,
    %330 = vector.extract_strided_slice %320 {offsets = [1, 0], sizes = [1, 128], strides = [1, 1]} : vector<4x128xf32> to vector<1x128xf32>
    %c7 = arith.constant 7 : index
    %c0_261 = arith.constant 0 : index
    %331 = vector.load %arg12[%c7, %c0_261] : memref<38x128xf32, #tpu.memory_space<vmem>>, vector<1x128xf32>
    tpu.vector_store %arg12[%c7, %c0_261], %330 {strides = array<i32>} : memref<38x128xf32, #tpu.memory_space<vmem>>, vector<1x128xf32>,
    %cst_262 = arith.constant 0.000000e+00 : f32
    %332 = vector.broadcast %cst_262 : f32 to vector<4x256xf32>
    %c0_263 = arith.constant 0 : index
    %c0_264 = arith.constant 0 : index
    %333 = vector.load %arg12[%c0_263, %c0_264] : memref<38x128xf32, #tpu.memory_space<vmem>>, vector<4x128xf32>
    %334 = arith.truncf %333 : vector<4x128xf32> to vector<4x128xbf16>
    %c0_265 = arith.constant 0 : index
    %c0_266 = arith.constant 0 : index
    %c0_267 = arith.constant 0 : index
    %335 = vector.load %arg5[%c0_265, %c0_266, %c0_267] : memref<5x128x256xbf16, #tpu.memory_space<vmem>>, vector<1x128x256xbf16>
    %336 = vector.shape_cast %335 : vector<1x128x256xbf16> to vector<128x256xbf16>
    %cst_268 = arith.constant dense<0.000000e+00> : vector<4x256xf32>
    %337 = tpu.matmul %334, %336, %cst_268 {dimension_numbers = #tpu.dot_dimension_numbers<[1], [0], [0], [1], [0, 0, 1, 1], [], []>} : vector<4x128xbf16>, vector<128x256xbf16>, vector<4x256xf32> -> vector<4x256xf32>
    %338 = arith.addf %332, %337 : vector<4x256xf32>
    %c1_269 = arith.constant 1 : index
    %c0_270 = arith.constant 0 : index
    %339 = vector.load %arg12[%c1_269, %c0_270] : memref<38x128xf32, #tpu.memory_space<vmem>>, vector<4x128xf32>
    %340 = arith.truncf %339 : vector<4x128xf32> to vector<4x128xbf16>
    %c1_271 = arith.constant 1 : index
    %c0_272 = arith.constant 0 : index
    %c0_273 = arith.constant 0 : index
    %341 = vector.load %arg5[%c1_271, %c0_272, %c0_273] : memref<5x128x256xbf16, #tpu.memory_space<vmem>>, vector<1x128x256xbf16>
    %342 = vector.shape_cast %341 : vector<1x128x256xbf16> to vector<128x256xbf16>
    %cst_274 = arith.constant dense<0.000000e+00> : vector<4x256xf32>
    %343 = tpu.matmul %340, %342, %cst_274 {dimension_numbers = #tpu.dot_dimension_numbers<[1], [0], [0], [1], [0, 0, 1, 1], [], []>} : vector<4x128xbf16>, vector<128x256xbf16>, vector<4x256xf32> -> vector<4x256xf32>
    %344 = arith.addf %338, %343 : vector<4x256xf32>
    %c2_275 = arith.constant 2 : index
    %c0_276 = arith.constant 0 : index
    %345 = vector.load %arg12[%c2_275, %c0_276] : memref<38x128xf32, #tpu.memory_space<vmem>>, vector<4x128xf32>
    %346 = arith.truncf %345 : vector<4x128xf32> to vector<4x128xbf16>
    %c2_277 = arith.constant 2 : index
    %c0_278 = arith.constant 0 : index
    %c0_279 = arith.constant 0 : index
    %347 = vector.load %arg5[%c2_277, %c0_278, %c0_279] : memref<5x128x256xbf16, #tpu.memory_space<vmem>>, vector<1x128x256xbf16>
    %348 = vector.shape_cast %347 : vector<1x128x256xbf16> to vector<128x256xbf16>
    %cst_280 = arith.constant dense<0.000000e+00> : vector<4x256xf32>
    %349 = tpu.matmul %346, %348, %cst_280 {dimension_numbers = #tpu.dot_dimension_numbers<[1], [0], [0], [1], [0, 0, 1, 1], [], []>} : vector<4x128xbf16>, vector<128x256xbf16>, vector<4x256xf32> -> vector<4x256xf32>
    %350 = arith.addf %344, %349 : vector<4x256xf32>
    %c3_281 = arith.constant 3 : index
    %c0_282 = arith.constant 0 : index
    %351 = vector.load %arg12[%c3_281, %c0_282] : memref<38x128xf32, #tpu.memory_space<vmem>>, vector<4x128xf32>
    %352 = arith.truncf %351 : vector<4x128xf32> to vector<4x128xbf16>
    %c3_283 = arith.constant 3 : index
    %c0_284 = arith.constant 0 : index
    %c0_285 = arith.constant 0 : index
    %353 = vector.load %arg5[%c3_283, %c0_284, %c0_285] : memref<5x128x256xbf16, #tpu.memory_space<vmem>>, vector<1x128x256xbf16>
    %354 = vector.shape_cast %353 : vector<1x128x256xbf16> to vector<128x256xbf16>
    %cst_286 = arith.constant dense<0.000000e+00> : vector<4x256xf32>
    %355 = tpu.matmul %352, %354, %cst_286 {dimension_numbers = #tpu.dot_dimension_numbers<[1], [0], [0], [1], [0, 0, 1, 1], [], []>} : vector<4x128xbf16>, vector<128x256xbf16>, vector<4x256xf32> -> vector<4x256xf32>
    %356 = arith.addf %350, %355 : vector<4x256xf32>
    %c4_287 = arith.constant 4 : index
    %c0_288 = arith.constant 0 : index
    %357 = vector.load %arg12[%c4_287, %c0_288] : memref<38x128xf32, #tpu.memory_space<vmem>>, vector<4x128xf32>
    %358 = arith.truncf %357 : vector<4x128xf32> to vector<4x128xbf16>
    %c4_289 = arith.constant 4 : index
    %c0_290 = arith.constant 0 : index
    %c0_291 = arith.constant 0 : index
    %359 = vector.load %arg5[%c4_289, %c0_290, %c0_291] : memref<5x128x256xbf16, #tpu.memory_space<vmem>>, vector<1x128x256xbf16>
    %360 = vector.shape_cast %359 : vector<1x128x256xbf16> to vector<128x256xbf16>
    %cst_292 = arith.constant dense<0.000000e+00> : vector<4x256xf32>
    %361 = tpu.matmul %358, %360, %cst_292 {dimension_numbers = #tpu.dot_dimension_numbers<[1], [0], [0], [1], [0, 0, 1, 1], [], []>} : vector<4x128xbf16>, vector<128x256xbf16>, vector<4x256xf32> -> vector<4x256xf32>
    %362 = arith.addf %356, %361 : vector<4x256xf32>
    %363 = vector.broadcast %322 : vector<1x256xf32> to vector<4x256xf32>
    %364 = arith.addf %362, %363 : vector<4x256xf32>
    %cst_293 = arith.constant dense<0.000000e+00> : vector<256xf32>
    %365 = vector.multi_reduction <add>, %364, %cst_293 [0] : vector<4x256xf32> to vector<256xf32>
    %366 = vector.shape_cast %365 : vector<256xf32> to vector<1x256xf32>
    %c64_i32 = arith.constant 64 : i32
    %367 = tpu.dynamic_rotate %366 by %c64_i32 dim 1 : vector<1x256xf32>, i32 -> vector<1x256xf32>
    %368 = arith.addf %366, %367 : vector<1x256xf32>
    %c64_i32_294 = arith.constant 64 : i32
    %369 = tpu.dynamic_rotate %367 by %c64_i32_294 dim 1 : vector<1x256xf32>, i32 -> vector<1x256xf32>
    %370 = arith.addf %368, %369 : vector<1x256xf32>
    %c64_i32_295 = arith.constant 64 : i32
    %371 = tpu.dynamic_rotate %369 by %c64_i32_295 dim 1 : vector<1x256xf32>, i32 -> vector<1x256xf32>
    %372 = arith.addf %370, %371 : vector<1x256xf32>
    %cst_296 = arith.constant 6.250000e-02 : f32
    %373 = vector.broadcast %cst_296 : f32 to vector<1x256xf32>
    %374 = arith.mulf %372, %373 : vector<1x256xf32>
    %375 = vector.broadcast %374 : vector<1x256xf32> to vector<4x256xf32>
    %376 = arith.subf %364, %375 : vector<4x256xf32>
    %377 = arith.mulf %376, %376 : vector<4x256xf32>
    %cst_297 = arith.constant dense<0.000000e+00> : vector<256xf32>
    %378 = vector.multi_reduction <add>, %377, %cst_297 [0] : vector<4x256xf32> to vector<256xf32>
    %379 = vector.shape_cast %378 : vector<256xf32> to vector<1x256xf32>
    %c64_i32_298 = arith.constant 64 : i32
    %380 = tpu.dynamic_rotate %379 by %c64_i32_298 dim 1 : vector<1x256xf32>, i32 -> vector<1x256xf32>
    %381 = arith.addf %379, %380 : vector<1x256xf32>
    %c64_i32_299 = arith.constant 64 : i32
    %382 = tpu.dynamic_rotate %380 by %c64_i32_299 dim 1 : vector<1x256xf32>, i32 -> vector<1x256xf32>
    %383 = arith.addf %381, %382 : vector<1x256xf32>
    %c64_i32_300 = arith.constant 64 : i32
    %384 = tpu.dynamic_rotate %382 by %c64_i32_300 dim 1 : vector<1x256xf32>, i32 -> vector<1x256xf32>
    %385 = arith.addf %383, %384 : vector<1x256xf32>
    %cst_301 = arith.constant 6.250000e-02 : f32
    %386 = vector.broadcast %cst_301 : f32 to vector<1x256xf32>
    %387 = arith.mulf %385, %386 : vector<1x256xf32>
    %cst_302 = arith.constant 9.99999974E-6 : f32
    %388 = vector.broadcast %cst_302 : f32 to vector<1x256xf32>
    %389 = arith.addf %387, %388 : vector<1x256xf32>
    %390 = math.rsqrt %389 : vector<1x256xf32>
    %391 = vector.broadcast %390 : vector<1x256xf32> to vector<4x256xf32>
    %392 = arith.mulf %376, %391 : vector<4x256xf32>
    %cst_303 = arith.constant 0.000000e+00 : f32
    %393 = vector.broadcast %cst_303 : f32 to vector<4x256xf32>
    %394 = arith.maximumf %392, %393 : vector<4x256xf32>
    %c3_304 = arith.constant 3 : index
    %c0_305 = arith.constant 0 : index
    %c0_306 = arith.constant 0 : index
    %c0_307 = arith.constant 0 : index
    %395 = vector.load %arg7[%c3_304, %c0_305, %c0_306, %c0_307] : memref<4x2x16x32xf32, #tpu.memory_space<vmem>>, vector<1x1x16x32xf32>
    %396 = vector.shape_cast %395 : vector<1x1x16x32xf32> to vector<16x32xf32>
    %397 = vector.extract_strided_slice %396 {offsets = [0, 0], sizes = [2, 4], strides = [1, 1]} : vector<16x32xf32> to vector<2x4xf32>
    %c3_308 = arith.constant 3 : index
    %c1_309 = arith.constant 1 : index
    %c0_310 = arith.constant 0 : index
    %c0_311 = arith.constant 0 : index
    %398 = vector.load %arg7[%c3_308, %c1_309, %c0_310, %c0_311] : memref<4x2x16x32xf32, #tpu.memory_space<vmem>>, vector<1x1x16x32xf32>
    %399 = vector.shape_cast %398 : vector<1x1x16x32xf32> to vector<16x32xf32>
    %400 = vector.extract_strided_slice %399 {offsets = [0, 0], sizes = [2, 4], strides = [1, 1]} : vector<16x32xf32> to vector<2x4xf32>
    %cst_312 = arith.constant dense<0.000000e+00> : vector<2x256xf32>
    %401 = tpu.matmul %397, %394, %cst_312 {dimension_numbers = #tpu.dot_dimension_numbers<[1], [0], [0], [1], [0, 0, 1, 1], [], []>} : vector<2x4xf32>, vector<4x256xf32>, vector<2x256xf32> -> vector<2x256xf32>
    %cst_313 = arith.constant dense<0.000000e+00> : vector<2x256xf32>
    %402 = tpu.matmul %400, %394, %cst_313 {dimension_numbers = #tpu.dot_dimension_numbers<[1], [0], [0], [1], [0, 0, 1, 1], [], []>} : vector<2x4xf32>, vector<4x256xf32>, vector<2x256xf32> -> vector<2x256xf32>
    %403 = arith.maximumf %401, %402 : vector<2x256xf32>
    %c3_314 = arith.constant 3 : index
    %c0_315 = arith.constant 0 : index
    %c0_316 = arith.constant 0 : index
    %c0_317 = arith.constant 0 : index
    %404 = vector.load %arg8[%c3_314, %c0_315, %c0_316, %c0_317] : memref<4x2x256x128xf32, #tpu.memory_space<vmem>>, vector<1x1x256x128xf32>
    %405 = vector.shape_cast %404 : vector<1x1x256x128xf32> to vector<256x128xf32>
    %c3_318 = arith.constant 3 : index
    %c1_319 = arith.constant 1 : index
    %c0_320 = arith.constant 0 : index
    %c0_321 = arith.constant 0 : index
    %406 = vector.load %arg8[%c3_318, %c1_319, %c0_320, %c0_321] : memref<4x2x256x128xf32, #tpu.memory_space<vmem>>, vector<1x1x256x128xf32>
    %407 = vector.shape_cast %406 : vector<1x1x256x128xf32> to vector<256x128xf32>
    %cst_322 = arith.constant dense<0.000000e+00> : vector<2x128xf32>
    %408 = tpu.matmul %403, %405, %cst_322 {dimension_numbers = #tpu.dot_dimension_numbers<[1], [0], [0], [1], [0, 0, 1, 1], [], []>} : vector<2x256xf32>, vector<256x128xf32>, vector<2x128xf32> -> vector<2x128xf32>
    %cst_323 = arith.constant dense<0.000000e+00> : vector<2x128xf32>
    %409 = tpu.matmul %403, %407, %cst_323 {dimension_numbers = #tpu.dot_dimension_numbers<[1], [0], [0], [1], [0, 0, 1, 1], [], []>} : vector<2x256xf32>, vector<256x128xf32>, vector<2x128xf32> -> vector<2x128xf32>
    %410 = arith.maximumf %408, %409 : vector<2x128xf32>
    %c0_324 = arith.constant 0 : index
    %c0_325 = arith.constant 0 : index
    %411 = vector.load %arg10[%c0_324, %c0_325] : memref<1x64xf32, #tpu.memory_space<vmem>>, vector<1x64xf32>
    %412 = vector.extract_strided_slice %410 {offsets = [0, 0], sizes = [1, 64], strides = [1, 1]} : vector<2x128xf32> to vector<1x64xf32>
    %c0_326 = arith.constant 0 : index
    %c0_327 = arith.constant 0 : index
    %c0_328 = arith.constant 0 : index
    %413 = vector.load %arg9[%c0_326, %c0_327, %c0_328] : memref<2x64x64xf32, #tpu.memory_space<vmem>>, vector<1x64x64xf32>
    %414 = vector.shape_cast %413 : vector<1x64x64xf32> to vector<64x64xf32>
    %cst_329 = arith.constant dense<0.000000e+00> : vector<1x64xf32>
    %415 = tpu.matmul %412, %414, %cst_329 {dimension_numbers = #tpu.dot_dimension_numbers<[1], [0], [0], [1], [0, 0, 1, 1], [], []>} : vector<1x64xf32>, vector<64x64xf32>, vector<1x64xf32> -> vector<1x64xf32>
    %416 = arith.addf %411, %415 : vector<1x64xf32>
    %417 = vector.extract_strided_slice %410 {offsets = [1, 0], sizes = [1, 64], strides = [1, 1]} : vector<2x128xf32> to vector<1x64xf32>
    %c1_330 = arith.constant 1 : index
    %c0_331 = arith.constant 0 : index
    %c0_332 = arith.constant 0 : index
    %418 = vector.load %arg9[%c1_330, %c0_331, %c0_332] : memref<2x64x64xf32, #tpu.memory_space<vmem>>, vector<1x64x64xf32>
    %419 = vector.shape_cast %418 : vector<1x64x64xf32> to vector<64x64xf32>
    %cst_333 = arith.constant dense<0.000000e+00> : vector<1x64xf32>
    %420 = tpu.matmul %417, %419, %cst_333 {dimension_numbers = #tpu.dot_dimension_numbers<[1], [0], [0], [1], [0, 0, 1, 1], [], []>} : vector<1x64xf32>, vector<64x64xf32>, vector<1x64xf32> -> vector<1x64xf32>
    %421 = arith.addf %416, %420 : vector<1x64xf32>
    %c0_334 = arith.constant 0 : index
    %c0_335 = arith.constant 0 : index
    %c0_336 = arith.constant 0 : index
    %422 = vector.load %arg11[%c0_334, %c0_335, %c0_336] : memref<1x2x64xf32, #tpu.memory_space<vmem>>, vector<1x1x64xf32>
    %423 = vector.shape_cast %422 : vector<1x1x64xf32> to vector<1x64xf32>
    %424 = vector.shape_cast %421 : vector<1x64xf32> to vector<1x1x64xf32>
    tpu.vector_store %arg11[%c0_334, %c0_335, %c0_336], %424 {strides = array<i32>} : memref<1x2x64xf32, #tpu.memory_space<vmem>>, vector<1x1x64xf32>,
    %425 = vector.extract_strided_slice %410 {offsets = [0, 64], sizes = [1, 64], strides = [1, 1]} : vector<2x128xf32> to vector<1x64xf32>
    %c0_337 = arith.constant 0 : index
    %c0_338 = arith.constant 0 : index
    %c0_339 = arith.constant 0 : index
    %426 = vector.load %arg9[%c0_337, %c0_338, %c0_339] : memref<2x64x64xf32, #tpu.memory_space<vmem>>, vector<1x64x64xf32>
    %427 = vector.shape_cast %426 : vector<1x64x64xf32> to vector<64x64xf32>
    %cst_340 = arith.constant dense<0.000000e+00> : vector<1x64xf32>
    %428 = tpu.matmul %425, %427, %cst_340 {dimension_numbers = #tpu.dot_dimension_numbers<[1], [0], [0], [1], [0, 0, 1, 1], [], []>} : vector<1x64xf32>, vector<64x64xf32>, vector<1x64xf32> -> vector<1x64xf32>
    %429 = arith.addf %411, %428 : vector<1x64xf32>
    %430 = vector.extract_strided_slice %410 {offsets = [1, 64], sizes = [1, 64], strides = [1, 1]} : vector<2x128xf32> to vector<1x64xf32>
    %c1_341 = arith.constant 1 : index
    %c0_342 = arith.constant 0 : index
    %c0_343 = arith.constant 0 : index
    %431 = vector.load %arg9[%c1_341, %c0_342, %c0_343] : memref<2x64x64xf32, #tpu.memory_space<vmem>>, vector<1x64x64xf32>
    %432 = vector.shape_cast %431 : vector<1x64x64xf32> to vector<64x64xf32>
    %cst_344 = arith.constant dense<0.000000e+00> : vector<1x64xf32>
    %433 = tpu.matmul %430, %432, %cst_344 {dimension_numbers = #tpu.dot_dimension_numbers<[1], [0], [0], [1], [0, 0, 1, 1], [], []>} : vector<1x64xf32>, vector<64x64xf32>, vector<1x64xf32> -> vector<1x64xf32>
    %434 = arith.addf %429, %433 : vector<1x64xf32>
    %c0_345 = arith.constant 0 : index
    %c1_346 = arith.constant 1 : index
    %c0_347 = arith.constant 0 : index
    %435 = vector.load %arg11[%c0_345, %c1_346, %c0_347] : memref<1x2x64xf32, #tpu.memory_space<vmem>>, vector<1x1x64xf32>
    %436 = vector.shape_cast %435 : vector<1x1x64xf32> to vector<1x64xf32>
    %437 = vector.shape_cast %434 : vector<1x64xf32> to vector<1x1x64xf32>
    tpu.vector_store %arg11[%c0_345, %c1_346, %c0_347], %437 {strides = array<i32>} : memref<1x2x64xf32, #tpu.memory_space<vmem>>, vector<1x1x64xf32>,
    return
  }
  func.func @transform_0(%arg0: i32) -> (i32, i32, i32) {
    %c0_i32 = arith.constant 0 : i32
    %c0_i32_0 = arith.constant 0 : i32
    %c0_i32_1 = arith.constant 0 : i32
    return %arg0, %c0_i32, %c0_i32_0 : i32, i32, i32
  }
  func.func @transform_1(%arg0: i32) -> (i32, i32, i32) {
    %c0_i32 = arith.constant 0 : i32
    %c0_i32_0 = arith.constant 0 : i32
    %c0_i32_1 = arith.constant 0 : i32
    %c0_i32_2 = arith.constant 0 : i32
    return %c0_i32, %c0_i32_0, %c0_i32_1 : i32, i32, i32
  }
  func.func @transform_2(%arg0: i32) -> (i32, i32, i32) {
    %c0_i32 = arith.constant 0 : i32
    %c0_i32_0 = arith.constant 0 : i32
    %c0_i32_1 = arith.constant 0 : i32
    %c0_i32_2 = arith.constant 0 : i32
    return %c0_i32, %c0_i32_0, %c0_i32_1 : i32, i32, i32
  }
  func.func @transform_3(%arg0: i32) -> (i32, i32, i32) {
    %c0_i32 = arith.constant 0 : i32
    %c0_i32_0 = arith.constant 0 : i32
    %c0_i32_1 = arith.constant 0 : i32
    %c0_i32_2 = arith.constant 0 : i32
    return %c0_i32, %c0_i32_0, %c0_i32_1 : i32, i32, i32
  }
  func.func @transform_4(%arg0: i32) -> (i32, i32, i32) {
    %c0_i32 = arith.constant 0 : i32
    %c0_i32_0 = arith.constant 0 : i32
    %c0_i32_1 = arith.constant 0 : i32
    %c0_i32_2 = arith.constant 0 : i32
    return %c0_i32, %c0_i32_0, %c0_i32_1 : i32, i32, i32
  }
  func.func @transform_5(%arg0: i32) -> (i32, i32, i32) {
    %c0_i32 = arith.constant 0 : i32
    %c0_i32_0 = arith.constant 0 : i32
    %c0_i32_1 = arith.constant 0 : i32
    %c0_i32_2 = arith.constant 0 : i32
    return %c0_i32, %c0_i32_0, %c0_i32_1 : i32, i32, i32
  }
  func.func @transform_6(%arg0: i32) -> (i32, i32, i32, i32) {
    %c0_i32 = arith.constant 0 : i32
    %c0_i32_0 = arith.constant 0 : i32
    %c0_i32_1 = arith.constant 0 : i32
    %c0_i32_2 = arith.constant 0 : i32
    %c0_i32_3 = arith.constant 0 : i32
    return %c0_i32, %c0_i32_0, %c0_i32_1, %c0_i32_2 : i32, i32, i32, i32
  }
  func.func @transform_7(%arg0: i32) -> (i32, i32, i32, i32) {
    %c0_i32 = arith.constant 0 : i32
    %c0_i32_0 = arith.constant 0 : i32
    %c0_i32_1 = arith.constant 0 : i32
    %c0_i32_2 = arith.constant 0 : i32
    %c0_i32_3 = arith.constant 0 : i32
    return %c0_i32, %c0_i32_0, %c0_i32_1, %c0_i32_2 : i32, i32, i32, i32
  }
  func.func @transform_8(%arg0: i32) -> (i32, i32, i32) {
    %c0_i32 = arith.constant 0 : i32
    %c0_i32_0 = arith.constant 0 : i32
    %c0_i32_1 = arith.constant 0 : i32
    %c0_i32_2 = arith.constant 0 : i32
    return %c0_i32, %c0_i32_0, %c0_i32_1 : i32, i32, i32
  }
  func.func @transform_9(%arg0: i32) -> (i32, i32) {
    %c0_i32 = arith.constant 0 : i32
    %c0_i32_0 = arith.constant 0 : i32
    %c0_i32_1 = arith.constant 0 : i32
    return %c0_i32, %c0_i32_0 : i32, i32
  }
  func.func @transform_10(%arg0: i32) -> (i32, i32, i32) {
    %c0_i32 = arith.constant 0 : i32
    %c0_i32_0 = arith.constant 0 : i32
    %c0_i32_1 = arith.constant 0 : i32
    return %arg0, %c0_i32, %c0_i32_0 : i32, i32, i32
  }
}

</mosaic_0001>

<llo_original>
// kernel: encoder_forward.1
$region0: #{encoder_forward.1}
  #allocation0 [shape = 'u32[]', space=smem, size = 0x4, offset = 0x4, fixed_abs, tag = 'smem constant byte address 0x4 - core index']
  #allocation1 [shape = 'u32[144,128]{1,0:T(1,128)}', space=vmem, size = 0x12000, scoped, tag = 'internal scratch']
  #allocation2 [shape = 'f32[38,128]{1,0:T(8,128)}', space=vmem, size = 0x5000, scoped, tag = 'scratch operand']
  %s0 = inlined_call_operand.hbm [shape: f32[2,32,32], index: 0, kind: input, shape index: {}]
  %s1 = inlined_call_operand.hbm [shape: bf16[7,32,256], index: 1, kind: input, shape index: {}]
  %s2 = inlined_call_operand.hbm [shape: bf16[5,128,256], index: 2, kind: input, shape index: {}]
  %s3 = inlined_call_operand.hbm [shape: bf16[5,128,256], index: 3, kind: input, shape index: {}]
  %s4 = inlined_call_operand.hbm [shape: bf16[5,128,256], index: 4, kind: input, shape index: {}]
  %s5 = inlined_call_operand.hbm [shape: f32[4,1,256], index: 5, kind: input, shape index: {}]
  %s6 = inlined_call_operand.hbm [shape: f32[4,2,16,32], index: 6, kind: input, shape index: {}]
  %s7 = inlined_call_operand.hbm [shape: f32[4,2,256,128], index: 7, kind: input, shape index: {}]
  %s8 = inlined_call_operand.hbm [shape: f32[2,64,64], index: 8, kind: input, shape index: {}]
  %s9 = inlined_call_operand.vmem [shape: f32[1,64], index: 9, kind: input, shape index: {}]
  %s10 = inlined_call_operand.hbm [shape: f32[2,2,64], index: 10, kind: output, shape index: {}]
  %s11 = sld [smem:[#allocation0]]
  $region109: #{encoder_forward.1} parent=0
    _
  %s13 = ssub.s32 1, %s11
  %s14 = scalar_select 0, %s13, %s11
  $region1: #{encoder_forward.1} parent=0
    #allocation3 [shape = 'u8[32768]{0}', space=vmem, size = 0x8000, scoped, tag = 'input window, operand 0']
    #allocation4 [shape = 's32[2]{0}', space=sflag, size = 0x8, scoped, tag = 'scoped memory for encoder_forward.1']
    #allocation5 [shape = 's32[2]{0}', space=sflag, size = 0x8, scoped, tag = 'scoped memory for encoder_forward.1']
    #allocation6 [shape = 'u8[114688]{0}', space=vmem, size = 0x1c000, scoped, tag = 'input window, operand 1, single buffered']
    #allocation7 [shape = 's32[1]{0}', space=sflag, size = 0x4, scoped, tag = 'scoped memory for encoder_forward.1']
    #allocation8 [shape = 'u8[327680]{0}', space=vmem, size = 0x50000, scoped, tag = 'input window, operand 2, single buffered']
    #allocation9 [shape = 'u8[327680]{0}', space=vmem, size = 0x50000, scoped, tag = 'input window, operand 3, single buffered']
    #allocation10 [shape = 's32[1]{0}', space=sflag, size = 0x4, scoped, tag = 'scoped memory for encoder_forward.1']
    #allocation11 [shape = 'u8[327680]{0}', space=vmem, size = 0x50000, scoped, tag = 'input window, operand 4, single buffered']
    #allocation12 [shape = 'u8[4096]{0}', space=vmem, size = 0x1000, scoped, tag = 'input window, operand 5, single buffered']
    #allocation13 [shape = 's32[1]{0}', space=sflag, size = 0x4, scoped, tag = 'scoped memory for encoder_forward.1']
    #allocation14 [shape = 'u8[65536]{0}', space=vmem, size = 0x10000, scoped, tag = 'input window, operand 6, single buffered']
    #allocation15 [shape = 'u8[1048576]{0}', space=vmem, size = 0x100000, scoped, tag = 'input window, operand 7, single buffered']
    #allocation16 [shape = 's32[1]{0}', space=sflag, size = 0x4, scoped, tag = 'scoped memory for encoder_forward.1']
    #allocation17 [shape = 'u8[65536]{0}', space=vmem, size = 0x10000, scoped, tag = 'input window, operand 8, single buffered']
    #allocation18 [shape = 'u8[2048]{0}', space=vmem, size = 0x800, scoped, tag = 'output window, operand 0']
    %15 = vsyncpa [#allocation4], 0
    %s16 = scalar_lea.sflag [#allocation4], 1
    %17 = vsyncpa %s16, 0
    %18 = vsyncpa [#allocation7], 0
    %19 = vsyncpa [#allocation10], 0
    %20 = vsyncpa [#allocation13], 0
    %21 = vsyncpa [#allocation16], 0
    %22 = vsyncpa [#allocation5], 0
    %s23 = scalar_lea.sflag [#allocation5], 1
    %24 = vsyncpa %s23, 0
    loop: start=0, step=1, limit=4
    $region2: #{encoder_forward.1} parent=1 // loop_pre_header
      _
    $region3: #{encoder_forward.1} parent=1 // loop_header
      %s26 = sphi 0, %s30
      %p27 = scmp.ge.s32.totalorder %s26, 4
      %s36 = sphi 0, %s38
      %s39 = sphi 0, %s36
      %s40 = sphi 0, %s39
      %s56 = sphi 0, %s40
      %s60 = sphi 0, %s60
      %s62 = sphi 0, %s60
      %s63 = sphi 0, %s62
      %s77 = sphi 0, %s63
      %s81 = sphi 0, %s81
      %s83 = sphi 0, %s81
      %s84 = sphi 0, %s83
      %s98 = sphi 0, %s84
      %s102 = sphi 0, %s102
      %s104 = sphi 0, %s102
      %s105 = sphi 0, %s104
      %s119 = sphi 0, %s105
      %s123 = sphi 0, %s123
      %s125 = sphi 0, %s123
      %s126 = sphi 0, %s125
      %s140 = sphi 0, %s126
      %s144 = sphi 0, %s144
      %s146 = sphi 0, %s144
      %s147 = sphi 0, %s146
      %s161 = sphi 0, %s147
      %s165 = sphi 0, %s165
      %s167 = sphi 0, %s165
      %s168 = sphi 0, %s167
      %s182 = sphi 0, %s168
      %s186 = sphi 0, %s186
      %s188 = sphi 0, %s186
      %s189 = sphi 0, %s188
      %s203 = sphi 0, %s189
      %s207 = sphi 0, %s207
      %s209 = sphi 0, %s207
      %s210 = sphi 0, %s209
      %s224 = sphi 0, %s210
      %s228 = sphi 0, %s228
      %s230 = sphi 0, %s228
      %s231 = sphi 0, %s230
      %s245 = sphi 0, %s231
      %s251 = sphi 0, %s253
      %s254 = sphi 0, %s251
      %s255 = sphi 0, %s254
      %s271 = sphi 0, %s255
    $region4: #{encoder_forward.1} parent=1 // loop_header_branch
      %29 = sbr.rel (%p27) target = $region8
    $region5: #{encoder_forward.1} parent=1 // loop_body
      %s31 = ssub.s32 %s26, 1
      %s32 = ssub.s32 %s26, 2
      %s33 = sadd.s32 %s26, 1
      %s34 = ssub.s32 %s26, %s33
      %p35 = scmp.eq.s32.totalorder %s34, 0
      %s37 = sadd.s32 %s36, 1
      %s38 = scalar_select %p35, %s36, %s37
      %p41 = pneg %p35
      %p42 = scmp.eq.s32.totalorder %s26, 1
      %p43 = por %p41, %p42
      %p44 = scmp.ne.s32.totalorder %s36, %s39
      %p45 = scmp.eq.s32.totalorder %s26, 0
      %p46 = por %p44, %p45
      %p47 = scmp.ne.s32.totalorder %s36, %s39
      %p48 = scmp.eq.s32.totalorder %s31, 1
      %p49 = por %p47, %p48
      %p50 = scmp.ne.s32.totalorder %s39, %s40
      %p51 = scmp.eq.s32.totalorder %s31, 0
      %p52 = por %p50, %p51
      %p53 = scmp.ne.s32.totalorder %s39, %s40
      %p54 = scmp.eq.s32.totalorder %s32, 1
      %p55 = por %p53, %p54
      %p57 = scmp.ne.s32.totalorder %s40, %s56
      %p58 = scmp.eq.s32.totalorder %s32, 0
      %p59 = por %p57, %p58
      %s61 = sadd.s32 %s60, 1
      %p64 = scmp.eq.s32.totalorder %s26, 1
      %p65 = scmp.ne.s32.totalorder %s60, %s62
      %p66 = scmp.eq.s32.totalorder %s26, 0
      %p67 = por %p65, %p66
      %p68 = scmp.ne.s32.totalorder %s60, %s62
      %p69 = scmp.eq.s32.totalorder %s31, 1
      %p70 = por %p68, %p69
      %p71 = scmp.ne.s32.totalorder %s62, %s63
      %p72 = scmp.eq.s32.totalorder %s31, 0
      %p73 = por %p71, %p72
      %p74 = scmp.ne.s32.totalorder %s62, %s63
      %p75 = scmp.eq.s32.totalorder %s32, 1
      %p76 = por %p74, %p75
      %p78 = scmp.ne.s32.totalorder %s63, %s77
      %p79 = scmp.eq.s32.totalorder %s32, 0
      %p80 = por %p78, %p79
      %s82 = sadd.s32 %s81, 1
      %p85 = scmp.eq.s32.totalorder %s26, 1
      %p86 = scmp.ne.s32.totalorder %s81, %s83
      %p87 = scmp.eq.s32.totalorder %s26, 0
      %p88 = por %p86, %p87
      %p89 = scmp.ne.s32.totalorder %s81, %s83
      %p90 = scmp.eq.s32.totalorder %s31, 1
      %p91 = por %p89, %p90
      %p92 = scmp.ne.s32.totalorder %s83, %s84
      %p93 = scmp.eq.s32.totalorder %s31, 0
      %p94 = por %p92, %p93
      %p95 = scmp.ne.s32.totalorder %s83, %s84
      %p96 = scmp.eq.s32.totalorder %s32, 1
      %p97 = por %p95, %p96
      %p99 = scmp.ne.s32.totalorder %s84, %s98
      %p100 = scmp.eq.s32.totalorder %s32, 0
      %p101 = por %p99, %p100
      %s103 = sadd.s32 %s102, 1
      %p106 = scmp.eq.s32.totalorder %s26, 1
      %p107 = scmp.ne.s32.totalorder %s102, %s104
      %p108 = scmp.eq.s32.totalorder %s26, 0
      %p109 = por %p107, %p108
      %p110 = scmp.ne.s32.totalorder %s102, %s104
      %p111 = scmp.eq.s32.totalorder %s31, 1
      %p112 = por %p110, %p111
      %p113 = scmp.ne.s32.totalorder %s104, %s105
      %p114 = scmp.eq.s32.totalorder %s31, 0
      %p115 = por %p113, %p114
      %p116 = scmp.ne.s32.totalorder %s104, %s105
      %p117 = scmp.eq.s32.totalorder %s32, 1
      %p118 = por %p116, %p117
      %p120 = scmp.ne.s32.totalorder %s105, %s119
      %p121 = scmp.eq.s32.totalorder %s32, 0
      %p122 = por %p120, %p121
      %s124 = sadd.s32 %s123, 1
      %p127 = scmp.eq.s32.totalorder %s26, 1
      %p128 = scmp.ne.s32.totalorder %s123, %s125
      %p129 = scmp.eq.s32.totalorder %s26, 0
      %p130 = por %p128, %p129
      %p131 = scmp.ne.s32.totalorder %s123, %s125
      %p132 = scmp.eq.s32.totalorder %s31, 1
      %p133 = por %p131, %p132
      %p134 = scmp.ne.s32.totalorder %s125, %s126
      %p135 = scmp.eq.s32.totalorder %s31, 0
      %p136 = por %p134, %p135
      %p137 = scmp.ne.s32.totalorder %s125, %s126
      %p138 = scmp.eq.s32.totalorder %s32, 1
      %p139 = por %p137, %p138
      %p141 = scmp.ne.s32.totalorder %s126, %s140
      %p142 = scmp.eq.s32.totalorder %s32, 0
      %p143 = por %p141, %p142
      %s145 = sadd.s32 %s144, 1
      %p148 = scmp.eq.s32.totalorder %s26, 1
      %p149 = scmp.ne.s32.totalorder %s144, %s146
      %p150 = scmp.eq.s32.totalorder %s26, 0
      %p151 = por %p149, %p150
      %p152 = scmp.ne.s32.totalorder %s144, %s146
      %p153 = scmp.eq.s32.totalorder %s31, 1
      %p154 = por %p152, %p153
      %p155 = scmp.ne.s32.totalorder %s146, %s147
      %p156 = scmp.eq.s32.totalorder %s31, 0
      %p157 = por %p155, %p156
      %p158 = scmp.ne.s32.totalorder %s146, %s147
      %p159 = scmp.eq.s32.totalorder %s32, 1
      %p160 = por %p158, %p159
      %p162 = scmp.ne.s32.totalorder %s147, %s161
      %p163 = scmp.eq.s32.totalorder %s32, 0
      %p164 = por %p162, %p163
      %s166 = sadd.s32 %s165, 1
      %p169 = scmp.eq.s32.totalorder %s26, 1
      %p170 = scmp.ne.s32.totalorder %s165, %s167
      %p171 = scmp.eq.s32.totalorder %s26, 0
      %p172 = por %p170, %p171
      %p173 = scmp.ne.s32.totalorder %s165, %s167
      %p174 = scmp.eq.s32.totalorder %s31, 1
      %p175 = por %p173, %p174
      %p176 = scmp.ne.s32.totalorder %s167, %s168
      %p177 = scmp.eq.s32.totalorder %s31, 0
      %p178 = por %p176, %p177
      %p179 = scmp.ne.s32.totalorder %s167, %s168
      %p180 = scmp.eq.s32.totalorder %s32, 1
      %p181 = por %p179, %p180
      %p183 = scmp.ne.s32.totalorder %s168, %s182
      %p184 = scmp.eq.s32.totalorder %s32, 0
      %p185 = por %p183, %p184
      %s187 = sadd.s32 %s186, 1
      %p190 = scmp.eq.s32.totalorder %s26, 1
      %p191 = scmp.ne.s32.totalorder %s186, %s188
      %p192 = scmp.eq.s32.totalorder %s26, 0
      %p193 = por %p191, %p192
      %p194 = scmp.ne.s32.totalorder %s186, %s188
      %p195 = scmp.eq.s32.totalorder %s31, 1
      %p196 = por %p194, %p195
      %p197 = scmp.ne.s32.totalorder %s188, %s189
      %p198 = scmp.eq.s32.totalorder %s31, 0
      %p199 = por %p197, %p198
      %p200 = scmp.ne.s32.totalorder %s188, %s189
      %p201 = scmp.eq.s32.totalorder %s32, 1
      %p202 = por %p200, %p201
      %p204 = scmp.ne.s32.totalorder %s189, %s203
      %p205 = scmp.eq.s32.totalorder %s32, 0
      %p206 = por %p204, %p205
      %s208 = sadd.s32 %s207, 1
      %p211 = scmp.eq.s32.totalorder %s26, 1
      %p212 = scmp.ne.s32.totalorder %s207, %s209
      %p213 = scmp.eq.s32.totalorder %s26, 0
      %p214 = por %p212, %p213
      %p215 = scmp.ne.s32.totalorder %s207, %s209
      %p216 = scmp.eq.s32.totalorder %s31, 1
      %p217 = por %p215, %p216
      %p218 = scmp.ne.s32.totalorder %s209, %s210
      %p219 = scmp.eq.s32.totalorder %s31, 0
      %p220 = por %p218, %p219
      %p221 = scmp.ne.s32.totalorder %s209, %s210
      %p222 = scmp.eq.s32.totalorder %s32, 1
      %p223 = por %p221, %p222
      %p225 = scmp.ne.s32.totalorder %s210, %s224
      %p226 = scmp.eq.s32.totalorder %s32, 0
      %p227 = por %p225, %p226
      %s229 = sadd.s32 %s228, 1
      %p232 = scmp.eq.s32.totalorder %s26, 1
      %p233 = scmp.ne.s32.totalorder %s228, %s230
      %p234 = scmp.eq.s32.totalorder %s26, 0
      %p235 = por %p233, %p234
      %p236 = scmp.ne.s32.totalorder %s228, %s230
      %p237 = scmp.eq.s32.totalorder %s31, 1
      %p238 = por %p236, %p237
      %p239 = scmp.ne.s32.totalorder %s230, %s231
      %p240 = scmp.eq.s32.totalorder %s31, 0
      %p241 = por %p239, %p240
      %p242 = scmp.ne.s32.totalorder %s230, %s231
      %p243 = scmp.eq.s32.totalorder %s32, 1
      %p244 = por %p242, %p243
      %p246 = scmp.ne.s32.totalorder %s231, %s245
      %p247 = scmp.eq.s32.totalorder %s32, 0
      %p248 = por %p246, %p247
      %s249 = ssub.s32 %s26, %s33
      %p250 = scmp.eq.s32.totalorder %s249, 0
      %s252 = sadd.s32 %s251, 1
      %s253 = scalar_select %p250, %s251, %s252
      %p256 = pneg %p250
      %p257 = scmp.eq.s32.totalorder %s26, 1
      %p258 = por %p256, %p257
      %p259 = scmp.ne.s32.totalorder %s251, %s254
      %p260 = scmp.eq.s32.totalorder %s26, 0
      %p261 = por %p259, %p260
      %p262 = scmp.ne.s32.totalorder %s251, %s254
      %p263 = scmp.eq.s32.totalorder %s31, 1
      %p264 = por %p262, %p263
      %p265 = scmp.ne.s32.totalorder %s254, %s255
      %p266 = scmp.eq.s32.totalorder %s31, 0
      %p267 = por %p265, %p266
      %p268 = scmp.ne.s32.totalorder %s254, %s255
      %p269 = scmp.eq.s32.totalorder %s32, 1
      %p270 = por %p268, %p269
      %p272 = scmp.ne.s32.totalorder %s255, %s271
      %p273 = scmp.eq.s32.totalorder %s32, 0
      %p274 = por %p272, %p273
      %p275 = scmp.le.s32.totalorder 1, %s26
      %p276 = scmp.lt.s32.totalorder %s26, 3
      %p277 = pnand %p275, %p276
      %p278 = pneg %p277
      // Predicated region
      $region9: #{encoder_forward.1} parent=5 // pred_check
        _
      $region10: #{encoder_forward.1} parent=5 // pred_check_branch
        %280 = sbr.rel (%p277) target = $region12
      $region11: #{encoder_forward.1} parent=5 // pred_region
        %s281 = ssub.s32 %s26, 1
        // Predicated region
        $region13: #{encoder_forward.1} parent=11 // pred_check
          %p282 = pneg %p73
        $region14: #{encoder_forward.1} parent=11 // pred_check_branch
          %284 = sbr.rel (%p282) target = $region16
        $region15: #{encoder_forward.1} parent=11 // pred_region
          %s286 = ssub.s32 3584, 3584
          %287 = vsyncadd [#allocation7], %s286
          %s288 = sshll.u32 [#allocation6], 4
          %s289 = int_to_ptr.vmem [resolvable:$true] %s288
          %294 = dma.hbm_to_vmem [thread:$0]  %s1, 3584, %s289, [#allocation7], 128, 128, 8
        $region16: #{encoder_forward.1} parent=11 // pred_fallthru
          _
        // Predicated region
        $region17: #{encoder_forward.1} parent=11 // pred_check
          %p295 = pneg %p94
        $region18: #{encoder_forward.1} parent=11 // pred_check_branch
          %297 = sbr.rel (%p295) target = $region20
        $region19: #{encoder_forward.1} parent=11 // pred_region
          %s299 = ssub.s32 10240, 10240
          %300 = vsyncadd [#allocation7], %s299
          %s301 = sshll.u32 [#allocation8], 4
          %s302 = int_to_ptr.vmem [resolvable:$true] %s301
          %307 = dma.hbm_to_vmem [thread:$0]  %s2, 10240, %s302, [#allocation7], 128, 128, 8
        $region20: #{encoder_forward.1} parent=11 // pred_fallthru
          _
        // Predicated region
        $region21: #{encoder_forward.1} parent=11 // pred_check
          %p308 = pneg %p115
        $region22: #{encoder_forward.1} parent=11 // pred_check_branch
          %310 = sbr.rel (%p308) target = $region24
        $region23: #{encoder_forward.1} parent=11 // pred_region
          %s312 = ssub.s32 10240, 10240
          %313 = vsyncadd [#allocation10], %s312
          %s314 = sshll.u32 [#allocation9], 4
          %s315 = int_to_ptr.vmem [resolvable:$true] %s314
          %320 = dma.hbm_to_vmem [thread:$0]  %s3, 10240, %s315, [#allocation10], 128, 128, 8
        $region24: #{encoder_forward.1} parent=11 // pred_fallthru
          _
        // Predicated region
        $region25: #{encoder_forward.1} parent=11 // pred_check
          %p321 = pneg %p136
        $region26: #{encoder_forward.1} parent=11 // pred_check_branch
          %323 = sbr.rel (%p321) target = $region28
        $region27: #{encoder_forward.1} parent=11 // pred_region
          %s325 = ssub.s32 10240, 10240
          %326 = vsyncadd [#allocation10], %s325
          %s327 = sshll.u32 [#allocation11], 4
          %s328 = int_to_ptr.vmem [resolvable:$true] %s327
          %333 = dma.hbm_to_vmem [thread:$0]  %s4, 10240, %s328, [#allocation10], 128, 128, 8
        $region28: #{encoder_forward.1} parent=11 // pred_fallthru
          _
        // Predicated region
        $region29: #{encoder_forward.1} parent=11 // pred_check
          %p334 = pneg %p157
        $region30: #{encoder_forward.1} parent=11 // pred_check_branch
          %336 = sbr.rel (%p334) target = $region32
        $region31: #{encoder_forward.1} parent=11 // pred_region
          %s338 = ssub.s32 128, 128
          %339 = vsyncadd [#allocation13], %s338
          %s340 = sshll.u32 [#allocation12], 4
          %s341 = int_to_ptr.vmem [resolvable:$true] %s340
          %346 = dma.hbm_to_vmem [thread:$0]  %s5, 128, %s341, [#allocation13], 32, 32, 2
        $region32: #{encoder_forward.1} parent=11 // pred_fallthru
          _
        // Predicated region
        $region33: #{encoder_forward.1} parent=11 // pred_check
          %p347 = pneg %p178
        $region34: #{encoder_forward.1} parent=11 // pred_check_branch
          %349 = sbr.rel (%p347) target = $region36
        $region35: #{encoder_forward.1} parent=11 // pred_region
          %s351 = ssub.s32 2048, 2048
          %352 = vsyncadd [#allocation13], %s351
          %s353 = sshll.u32 [#allocation14], 4
          %s354 = int_to_ptr.vmem [resolvable:$true] %s353
          %359 = dma.hbm_to_vmem [thread:$0]  %s6, 2048, %s354, [#allocation13], 128, 128, 8
        $region36: #{encoder_forward.1} parent=11 // pred_fallthru
          _
        // Predicated region
        $region37: #{encoder_forward.1} parent=11 // pred_check
          %p360 = pneg %p199
        $region38: #{encoder_forward.1} parent=11 // pred_check_branch
          %362 = sbr.rel (%p360) target = $region40
        $region39: #{encoder_forward.1} parent=11 // pred_region
          %s364 = ssub.s32 32768, 32768
          %365 = vsyncadd [#allocation16], %s364
          %s366 = sshll.u32 [#allocation15], 4
          %s367 = int_to_ptr.vmem [resolvable:$true] %s366
          %372 = dma.hbm_to_vmem [thread:$0]  %s7, 32768, %s367, [#allocation16], 128, 128, 8
        $region40: #{encoder_forward.1} parent=11 // pred_fallthru
          _
        // Predicated region
        $region41: #{encoder_forward.1} parent=11 // pred_check
          %p373 = pneg %p220
        $region42: #{encoder_forward.1} parent=11 // pred_check_branch
          %375 = sbr.rel (%p373) target = $region44
        $region43: #{encoder_forward.1} parent=11 // pred_region
          %s377 = ssub.s32 2048, 2048
          %378 = vsyncadd [#allocation16], %s377
          %s379 = sshll.u32 [#allocation17], 4
          %s380 = int_to_ptr.vmem [resolvable:$true] %s379
          %385 = dma.hbm_to_vmem [thread:$0]  %s8, 2048, %s380, [#allocation16], 128, 128, 8
        $region44: #{encoder_forward.1} parent=11 // pred_fallthru
          _
        // Predicated region
        $region45: #{encoder_forward.1} parent=11 // pred_check
          %p386 = pneg %p241
        $region46: #{encoder_forward.1} parent=11 // pred_check_branch
          %388 = sbr.rel (%p386) target = $region48
        $region47: #{encoder_forward.1} parent=11 // pred_region
          _
        $region48: #{encoder_forward.1} parent=11 // pred_fallthru
          _
      $region12: #{encoder_forward.1} parent=5 // pred_fallthru
        _
      %p389 = scmp.lt.s32.totalorder %s26, 2
      // Predicated region
      $region49: #{encoder_forward.1} parent=5 // pred_check
        %p390 = pneg %p389
      $region50: #{encoder_forward.1} parent=5 // pred_check_branch
        %392 = sbr.rel (%p390) target = $region52
      $region51: #{encoder_forward.1} parent=5 // pred_region
        // Predicated region
        $region53: #{encoder_forward.1} parent=51 // pred_check
          %p393 = pneg %p46
        $region54: #{encoder_forward.1} parent=51 // pred_check_branch
          %395 = sbr.rel (%p393) target = $region56
        $region55: #{encoder_forward.1} parent=51 // pred_region
          %s396 = sand.u32 %s36, 1
          %s397 = scalar_lea.sflag [#allocation4], %s396
          %s398 = sand.u32 %s36, 1
          %s399 = smul.addr %s398, 32
          %s400 = scalar_lea.vmem [#allocation3], %s399
          %s402 = ssub.s32 512, 512
          %403 = vsyncadd %s397, %s402
          %s404 = smul.addr %s26, 4
          %s405 = smul.addr %s404, 128
          %s406 = scalar_lea.hbm %s0, %s405
          %s407 = sshll.u32 %s400, 4
          %s408 = int_to_ptr.vmem [resolvable:$true] %s407
          %413 = dma.hbm_to_vmem [thread:$0]  %s406, 512, %s408, %s397, 128, 128, 8
        $region56: #{encoder_forward.1} parent=51 // pred_fallthru
          _
      $region52: #{encoder_forward.1} parent=5 // pred_fallthru
        _
      %p414 = scmp.le.s32.totalorder 1, %s26
      %p415 = scmp.lt.s32.totalorder %s26, 3
      %p416 = pnand %p414, %p415
      %p417 = pneg %p416
      // Predicated region
      $region57: #{encoder_forward.1} parent=5 // pred_check
        _
      $region58: #{encoder_forward.1} parent=5 // pred_check_branch
        %419 = sbr.rel (%p416) target = $region60
      $region59: #{encoder_forward.1} parent=5 // pred_region
        %s420 = ssub.s32 %s26, 1
        %s421 = sand.u32 %s39, 1
        %s422 = scalar_lea.sflag [#allocation4], %s421
        %s423 = sand.u32 %s39, 1
        %s424 = smul.addr %s423, 32
        %s425 = scalar_lea.vmem [#allocation3], %s424
        // Predicated region
        $region61: #{encoder_forward.1} parent=59 // pred_check
          %p426 = pneg %p52
        $region62: #{encoder_forward.1} parent=59 // pred_check_branch
          %428 = sbr.rel (%p426) target = $region64
        $region63: #{encoder_forward.1} parent=59 // pred_region
          %429 = dma.done %s422, 512
        $region64: #{encoder_forward.1} parent=59 // pred_fallthru
          _
        // Predicated region
        $region65: #{encoder_forward.1} parent=59 // pred_check
          %p430 = pneg %p73
        $region66: #{encoder_forward.1} parent=59 // pred_check_branch
          %432 = sbr.rel (%p430) target = $region68
        $region67: #{encoder_forward.1} parent=59 // pred_region
          %433 = dma.done [#allocation7], 3584
        $region68: #{encoder_forward.1} parent=59 // pred_fallthru
          _
        // Predicated region
        $region69: #{encoder_forward.1} parent=59 // pred_check
          %p434 = pneg %p94
        $region70: #{encoder_forward.1} parent=59 // pred_check_branch
          %436 = sbr.rel (%p434) target = $region72
        $region71: #{encoder_forward.1} parent=59 // pred_region
          %437 = dma.done [#allocation7], 10240
        $region72: #{encoder_forward.1} parent=59 // pred_fallthru
          _
        // Predicated region
        $region73: #{encoder_forward.1} parent=59 // pred_check
          %p438 = pneg %p115
        $region74: #{encoder_forward.1} parent=59 // pred_check_branch
          %440 = sbr.rel (%p438) target = $region76
        $region75: #{encoder_forward.1} parent=59 // pred_region
          %441 = dma.done [#allocation10], 10240
        $region76: #{encoder_forward.1} parent=59 // pred_fallthru
          _
        // Predicated region
        $region77: #{encoder_forward.1} parent=59 // pred_check
          %p442 = pneg %p136
        $region78: #{encoder_forward.1} parent=59 // pred_check_branch
          %444 = sbr.rel (%p442) target = $region80
        $region79: #{encoder_forward.1} parent=59 // pred_region
          %445 = dma.done [#allocation10], 10240
        $region80: #{encoder_forward.1} parent=59 // pred_fallthru
          _
        // Predicated region
        $region81: #{encoder_forward.1} parent=59 // pred_check
          %p446 = pneg %p157
        $region82: #{encoder_forward.1} parent=59 // pred_check_branch
          %448 = sbr.rel (%p446) target = $region84
        $region83: #{encoder_forward.1} parent=59 // pred_region
          %449 = dma.done [#allocation13], 128
        $region84: #{encoder_forward.1} parent=59 // pred_fallthru
          _
        // Predicated region
        $region85: #{encoder_forward.1} parent=59 // pred_check
          %p450 = pneg %p178
        $region86: #{encoder_forward.1} parent=59 // pred_check_branch
          %452 = sbr.rel (%p450) target = $region88
        $region87: #{encoder_forward.1} parent=59 // pred_region
          %453 = dma.done [#allocation13], 2048
        $region88: #{encoder_forward.1} parent=59 // pred_fallthru
          _
        // Predicated region
        $region89: #{encoder_forward.1} parent=59 // pred_check
          %p454 = pneg %p199
        $region90: #{encoder_forward.1} parent=59 // pred_check_branch
          %456 = sbr.rel (%p454) target = $region92
        $region91: #{encoder_forward.1} parent=59 // pred_region
          %457 = dma.done [#allocation16], 32768
        $region92: #{encoder_forward.1} parent=59 // pred_fallthru
          _
        // Predicated region
        $region93: #{encoder_forward.1} parent=59 // pred_check
          %p458 = pneg %p220
        $region94: #{encoder_forward.1} parent=59 // pred_check_branch
          %460 = sbr.rel (%p458) target = $region96
        $region95: #{encoder_forward.1} parent=59 // pred_region
          %461 = dma.done [#allocation16], 2048
        $region96: #{encoder_forward.1} parent=59 // pred_fallthru
          _
        %s462 = sand.u32 %s39, 1
        %s463 = scalar_lea.sflag [#allocation4], %s462
        %s464 = sand.u32 %s39, 1
        %s465 = smul.addr %s464, 32
        %s466 = scalar_lea.vmem [#allocation3], %s465
        %p467 = pneg %p52
        %p468 = pneg %p49
        %p469 = pneg %p73
        %p470 = pneg %p70
        %p471 = pneg %p94
        %p472 = pneg %p91
        %p473 = pneg %p115
        %p474 = pneg %p112
        %p475 = pneg %p136
        %p476 = pneg %p133
        %p477 = pneg %p157
        %p478 = pneg %p154
        %p479 = pneg %p178
        %p480 = pneg %p175
        %p481 = pneg %p199
        %p482 = pneg %p196
        %p483 = pneg %p220
        %p484 = pneg %p217
        %p485 = pneg %p241
        %p486 = pneg %p238
        %p487 = pneg %p267
        %p488 = pneg %p264
        %s489 = sand.u32 %s254, 1
        %s490 = scalar_lea.sflag [#allocation5], %s489
        %s491 = sand.u32 %s254, 1
        %s492 = smul.addr %s491, 2
        %s493 = scalar_lea.vmem [#allocation18], %s492
        %v495 = vld [vmem:[%s425] sm:$0xff]
        %v496 = vld [vmem:[%s425 + $0x8] sm:$0xff]
        %v497 = vld [vmem:[%s425 + $0x10] sm:$0xff]
        %v498 = vld [vmem:[%s425 + $0x18] sm:$0xff]
        %v499 = vld [vmem:[#allocation12] sm:$0x3]
        %vm500 = vcmask 261120
        %501 = vst.msk [vmem:[#allocation2 + $0x3] sm:$0xff] %vm500, %v495
        %502 = vst.msk [vmem:[#allocation2 + $0xb] sm:$0xff] %vm500, %v496
        %503 = vst.msk [vmem:[#allocation2 + $0x13] sm:$0xff] %vm500, %v497
        %504 = vst.msk [vmem:[#allocation2 + $0x1b] sm:$0xff] %vm500, %v498
        %vm505 = vcmask 257027
        %506 = vst.msk [vmem:[#allocation2 - $0x3] sm:$0x8] %vm505, %v495
        %vm507 = vcmask 260102
        %508 = vst.msk [vmem:[#allocation2 + $0x1d] sm:$0x40] %vm507, %v498
        %vm509 = vcmask 256002
        %510 = vst.msk [vmem:[#allocation2 - $0x1] sm:$0x4] %vm509, %v495
        %vm511 = vcmask 259077
        %512 = vst.msk [vmem:[#allocation2 + $0x1f] sm:$0x20] %vm511, %v498
        %vm513 = vcmask 254977
        %514 = vst.msk [vmem:[#allocation2 + $0x1] sm:$0x2] %vm513, %v495
        %vm515 = vcmask 258052
        %516 = vst.msk [vmem:[#allocation2 + $0x21] sm:$0x10] %vm515, %v498
        %v517 = vld [vmem:[#allocation2] sm:$0xff]
        %v518 = vld [vmem:[#allocation2 + $0x8] sm:$0xff]
        %v519 = vld [vmem:[#allocation2 + $0x10] sm:$0xff]
        %v520 = vld [vmem:[#allocation2 + $0x18] sm:$0xff]
        %v521 = vpack.c.bf16 %v518, %v517
        %v522 = vpack.c.bf16 %v520, %v519
        %v523 = vld [vmem:[#allocation6] sm:$0xff]
        %v524 = vld [vmem:[#allocation6 + $0x8] sm:$0xff]
        %v525 = vld [vmem:[#allocation6 + $0x10] sm:$0xff]
        %v526 = vld [vmem:[#allocation6 + $0x18] sm:$0xff]
        %v527 = vld [vmem:[#allocation2 + $0x1] sm:$0xff]
        %v528 = vld [vmem:[#allocation2 + $0x9] sm:$0xff]
        %v529 = vld [vmem:[#allocation2 + $0x11] sm:$0xff]
        %v530 = vld [vmem:[#allocation2 + $0x19] sm:$0xff]
        %v531 = vpack.c.bf16 %v528, %v527
        %v532 = vpack.c.bf16 %v530, %v529
        %s533 = scalar_lea.vmem [#allocation6], 32
        %v534 = vld [vmem:[%s533] sm:$0xff]
        %v535 = vld [vmem:[%s533 + $0x8] sm:$0xff]
        %v536 = vld [vmem:[%s533 + $0x10] sm:$0xff]
        %v537 = vld [vmem:[%s533 + $0x18] sm:$0xff]
        %v542 = vunpack.c.l.b16 %v534
        %v543 = vunpack.c.h.b16 %v534
        %v544 = vunpack.c.l.b16 %v535
        %v545 = vunpack.c.h.b16 %v535
        %v546 = vunpack.c.l.b16 %v536
        %v547 = vunpack.c.h.b16 %v536
        %v548 = vunpack.c.l.b16 %v537
        %v549 = vunpack.c.h.b16 %v537
        %v550 = vpack.c.b16 %v544, %v542
        %v551 = vpack.c.b16 %v545, %v543
        %v552 = vpack.c.b16 %v548, %v546
        %v553 = vpack.c.b16 %v549, %v547
        %v559 = vsel %vm500, %v531, 0
        %v562 = vsel %vm500, %v532, 0
        %564 = vmatprep.subr.bf16.mxu0 %v551
        %565 = vmatpush1.bf16.msra.mxu0 %v550
        %566 = vmatprep.subr.bf16.mxu0 %v553
        %567 = vmatpush1.bf16.msra.mxu0 %v552
        %568 = vmatprep.subr.bf16.mxu0 0
        %569 = vmatpush1.bf16.msra.mxu0 0
        %570 = vmatprep.subr.bf16.mxu0 0
        %571 = vmatpush1.bf16.msra.mxu0 0
        %572 = vmatprep.subr.bf16.mxu0 0
        %573 = vmatpush1.bf16.msra.mxu0 0
        %574 = vmatprep.subr.bf16.mxu0 0
        %575 = vmatpush1.bf16.msra.mxu0 0
        %576 = vmatprep.subr.bf16.mxu0 0
        %577 = vmatpush1.bf16.msra.mxu0 0
        %578 = vmatprep.subr.bf16.mxu0 0
        %579 = vmatpush1.bf16.msra.mxu0 0
        %580 = vmatprep.subr.bf16.mxu0 0
        %581 = vmatpush1.bf16.msra.mxu0 0
        %582 = vmatprep.subr.bf16.mxu0 0
        %583 = vmatpush1.bf16.msra.mxu0 0
        %584 = vmatprep.subr.bf16.mxu0 0
        %585 = vmatpush1.bf16.msra.mxu0 0
        %586 = vmatprep.subr.bf16.mxu0 0
        %587 = vmatpush1.bf16.msra.mxu0 0
        %588 = vmatprep.subr.bf16.mxu0 0
        %589 = vmatpush1.bf16.msra.mxu0 0
        %590 = vmatprep.subr.bf16.mxu0 0
        %591 = vmatpush1.bf16.msra.mxu0 0
        %592 = vmatprep.subr.bf16.mxu0 0
        %593 = vmatpush1.bf16.msra.mxu0 0
        %594 = vmatprep.subr.bf16.mxu0 0
        %595 = vmatpush1.bf16.msra.mxu0 0
        %596 = vmatprep.mubr.bf16.mxu0 0
        %597 = vmatmul.mubr.bf16.gmra.mrb[0].mxu0 %v559
        %v598 = vpop.f32.mrb[0].mxu0
        %v599 = vadd.f32 0.0, %v598
        %v600 = vpop.f32.mrb[0].mxu0
        %v601 = vadd.f32 0.0, %v600
        %v602 = vpop.f32.mrb[0].mxu0
        %v603 = vadd.f32 0.0, %v602
        %v604 = vpop.f32.mrb[0].mxu0
        %v605 = vadd.f32 0.0, %v604
        %606 = vmatprep.mubr.bf16.mxu0 0
        %607 = vmatmul.mubr.bf16.gmra.mrb[0].mxu0 %v562
        %v608 = vpop.f32.mrb[0].mxu0
        %v609 = vadd.f32 0.0, %v608
        %v610 = vpop.f32.mrb[0].mxu0
        %v611 = vadd.f32 0.0, %v610
        %v612 = vpop.f32.mrb[0].mxu0
        %v613 = vadd.f32 0.0, %v612
        %v614 = vpop.f32.mrb[0].mxu0
        %v615 = vadd.f32 0.0, %v614
        %616 = vdwg.mxu0
        %v621 = vunpack.c.l.b16 %v523
        %v622 = vunpack.c.h.b16 %v523
        %v623 = vunpack.c.l.b16 %v524
        %v624 = vunpack.c.h.b16 %v524
        %v625 = vunpack.c.l.b16 %v525
        %v626 = vunpack.c.h.b16 %v525
        %v627 = vunpack.c.l.b16 %v526
        %v628 = vunpack.c.h.b16 %v526
        %v629 = vpack.c.b16 %v623, %v621
        %v630 = vpack.c.b16 %v624, %v622
        %v631 = vpack.c.b16 %v627, %v625
        %v632 = vpack.c.b16 %v628, %v626
        %v638 = vsel %vm500, %v521, 0
        %v641 = vsel %vm500, %v522, 0
        %643 = vmatprep.subr.bf16.mxu0 %v630
        %644 = vmatpush1.bf16.msra.mxu0 %v629
        %645 = vmatprep.subr.bf16.mxu0 %v632
        %646 = vmatpush1.bf16.msra.mxu0 %v631
        %647 = vmatprep.subr.bf16.mxu0 0
        %648 = vmatpush1.bf16.msra.mxu0 0
        %649 = vmatprep.subr.bf16.mxu0 0
        %650 = vmatpush1.bf16.msra.mxu0 0
        %651 = vmatprep.subr.bf16.mxu0 0
        %652 = vmatpush1.bf16.msra.mxu0 0
        %653 = vmatprep.subr.bf16.mxu0 0
        %654 = vmatpush1.bf16.msra.mxu0 0
        %655 = vmatprep.subr.bf16.mxu0 0
        %656 = vmatpush1.bf16.msra.mxu0 0
        %657 = vmatprep.subr.bf16.mxu0 0
        %658 = vmatpush1.bf16.msra.mxu0 0
        %659 = vmatprep.subr.bf16.mxu0 0
        %660 = vmatpush1.bf16.msra.mxu0 0
        %661 = vmatprep.subr.bf16.mxu0 0
        %662 = vmatpush1.bf16.msra.mxu0 0
        %663 = vmatprep.subr.bf16.mxu0 0
        %664 = vmatpush1.bf16.msra.mxu0 0
        %665 = vmatprep.subr.bf16.mxu0 0
        %666 = vmatpush1.bf16.msra.mxu0 0
        %667 = vmatprep.subr.bf16.mxu0 0
        %668 = vmatpush1.bf16.msra.mxu0 0
        %669 = vmatprep.subr.bf16.mxu0 0
        %670 = vmatpush1.bf16.msra.mxu0 0
        %671 = vmatprep.subr.bf16.mxu0 0
        %672 = vmatpush1.bf16.msra.mxu0 0
        %673 = vmatprep.subr.bf16.mxu0 0
        %674 = vmatpush1.bf16.msra.mxu0 0
        %675 = vmatprep.mubr.bf16.mxu0 0
        %676 = vmatmul.mubr.bf16.gmra.mrb[0].mxu0 %v638
        %v677 = vpop.f32.mrb[0].mxu0
        %v678 = vadd.f32 %v599, %v677
        %v679 = vpop.f32.mrb[0].mxu0
        %v680 = vadd.f32 %v601, %v679
        %v681 = vpop.f32.mrb[0].mxu0
        %v682 = vadd.f32 %v603, %v681
        %v683 = vpop.f32.mrb[0].mxu0
        %v684 = vadd.f32 %v605, %v683
        %685 = vmatprep.mubr.bf16.mxu0 0
        %686 = vmatmul.mubr.bf16.gmra.mrb[0].mxu0 %v641
        %v687 = vpop.f32.mrb[0].mxu0
        %v688 = vadd.f32 %v609, %v687
        %v689 = vpop.f32.mrb[0].mxu0
        %v690 = vadd.f32 %v611, %v689
        %v691 = vpop.f32.mrb[0].mxu0
        %v692 = vadd.f32 %v613, %v691
        %v693 = vpop.f32.mrb[0].mxu0
        %v694 = vadd.f32 %v615, %v693
        %695 = vdwg.mxu0
        %v696 = vld [vmem:[#allocation2 + $0x2] sm:$0xff]
        %v697 = vld [vmem:[#allocation2 + $0xa] sm:$0xff]
        %v698 = vld [vmem:[#allocation2 + $0x12] sm:$0xff]
        %v699 = vld [vmem:[#allocation2 + $0x1a] sm:$0xff]
        %v700 = vpack.c.bf16 %v697, %v696
        %v701 = vpack.c.bf16 %v699, %v698
        %s702 = scalar_lea.vmem [#allocation6], 64
        %v703 = vld [vmem:[%s702] sm:$0xff]
        %v704 = vld [vmem:[%s702 + $0x8] sm:$0xff]
        %v705 = vld [vmem:[%s702 + $0x10] sm:$0xff]
        %v706 = vld [vmem:[%s702 + $0x18] sm:$0xff]
        %v711 = vunpack.c.l.b16 %v703
        %v712 = vunpack.c.h.b16 %v703
        %v713 = vunpack.c.l.b16 %v704
        %v714 = vunpack.c.h.b16 %v704
        %v715 = vunpack.c.l.b16 %v705
        %v716 = vunpack.c.h.b16 %v705
        %v717 = vunpack.c.l.b16 %v706
        %v718 = vunpack.c.h.b16 %v706
        %v719 = vpack.c.b16 %v713, %v711
        %v720 = vpack.c.b16 %v714, %v712
        %v721 = vpack.c.b16 %v717, %v715
        %v722 = vpack.c.b16 %v718, %v716
        %v728 = vsel %vm500, %v700, 0
        %v731 = vsel %vm500, %v701, 0
        %733 = vmatprep.subr.bf16.mxu0 %v720
        %734 = vmatpush1.bf16.msra.mxu0 %v719
        %735 = vmatprep.subr.bf16.mxu0 %v722
        %736 = vmatpush1.bf16.msra.mxu0 %v721
        %737 = vmatprep.subr.bf16.mxu0 0
        %738 = vmatpush1.bf16.msra.mxu0 0
        %739 = vmatprep.subr.bf16.mxu0 0
        %740 = vmatpush1.bf16.msra.mxu0 0
        %741 = vmatprep.subr.bf16.mxu0 0
        %742 = vmatpush1.bf16.msra.mxu0 0
        %743 = vmatprep.subr.bf16.mxu0 0
        %744 = vmatpush1.bf16.msra.mxu0 0
        %745 = vmatprep.subr.bf16.mxu0 0
        %746 = vmatpush1.bf16.msra.mxu0 0
        %747 = vmatprep.subr.bf16.mxu0 0
        %748 = vmatpush1.bf16.msra.mxu0 0
        %749 = vmatprep.subr.bf16.mxu0 0
        %750 = vmatpush1.bf16.msra.mxu0 0
        %751 = vmatprep.subr.bf16.mxu0 0
        %752 = vmatpush1.bf16.msra.mxu0 0
        %753 = vmatprep.subr.bf16.mxu0 0
        %754 = vmatpush1.bf16.msra.mxu0 0
        %755 = vmatprep.subr.bf16.mxu0 0
        %756 = vmatpush1.bf16.msra.mxu0 0
        %757 = vmatprep.subr.bf16.mxu0 0
        %758 = vmatpush1.bf16.msra.mxu0 0
        %759 = vmatprep.subr.bf16.mxu0 0
        %760 = vmatpush1.bf16.msra.mxu0 0
        %761 = vmatprep.subr.bf16.mxu0 0
        %762 = vmatpush1.bf16.msra.mxu0 0
        %763 = vmatprep.subr.bf16.mxu0 0
        %764 = vmatpush1.bf16.msra.mxu0 0
        %765 = vmatprep.mubr.bf16.mxu0 0
        %766 = vmatmul.mubr.bf16.gmra.mrb[0].mxu0 %v728
        %v767 = vpop.f32.mrb[0].mxu0
        %v768 = vadd.f32 0.0, %v767
        %v769 = vpop.f32.mrb[0].mxu0
        %v770 = vadd.f32 0.0, %v769
        %v771 = vpop.f32.mrb[0].mxu0
        %v772 = vadd.f32 0.0, %v771
        %v773 = vpop.f32.mrb[0].mxu0
        %v774 = vadd.f32 0.0, %v773
        %775 = vmatprep.mubr.bf16.mxu0 0
        %776 = vmatmul.mubr.bf16.gmra.mrb[0].mxu0 %v731
        %v777 = vpop.f32.mrb[0].mxu0
        %v778 = vadd.f32 0.0, %v777
        %v779 = vpop.f32.mrb[0].mxu0
        %v780 = vadd.f32 0.0, %v779
        %v781 = vpop.f32.mrb[0].mxu0
        %v782 = vadd.f32 0.0, %v781
        %v783 = vpop.f32.mrb[0].mxu0
        %v784 = vadd.f32 0.0, %v783
        %785 = vdwg.mxu0
        %v786 = vadd.f32 %v678, %v768
        %v787 = vadd.f32 %v680, %v770
        %v788 = vadd.f32 %v682, %v772
        %v789 = vadd.f32 %v684, %v774
        %v790 = vadd.f32 %v688, %v778
        %v791 = vadd.f32 %v690, %v780
        %v792 = vadd.f32 %v692, %v782
        %v793 = vadd.f32 %v694, %v784
        %v794 = vld [vmem:[#allocation2 + $0x3] sm:$0xff]
        %v795 = vld [vmem:[#allocation2 + $0xb] sm:$0xff]
        %v796 = vld [vmem:[#allocation2 + $0x13] sm:$0xff]
        %v797 = vld [vmem:[#allocation2 + $0x1b] sm:$0xff]
        %v798 = vpack.c.bf16 %v795, %v794
        %v799 = vpack.c.bf16 %v797, %v796
        %s800 = scalar_lea.vmem [#allocation6], 96
        %v801 = vld [vmem:[%s800] sm:$0xff]
        %v802 = vld [vmem:[%s800 + $0x8] sm:$0xff]
        %v803 = vld [vmem:[%s800 + $0x10] sm:$0xff]
        %v804 = vld [vmem:[%s800 + $0x18] sm:$0xff]
        %v809 = vunpack.c.l.b16 %v801
        %v810 = vunpack.c.h.b16 %v801
        %v811 = vunpack.c.l.b16 %v802
        %v812 = vunpack.c.h.b16 %v802
        %v813 = vunpack.c.l.b16 %v803
        %v814 = vunpack.c.h.b16 %v803
        %v815 = vunpack.c.l.b16 %v804
        %v816 = vunpack.c.h.b16 %v804
        %v817 = vpack.c.b16 %v811, %v809
        %v818 = vpack.c.b16 %v812, %v810
        %v819 = vpack.c.b16 %v815, %v813
        %v820 = vpack.c.b16 %v816, %v814
        %v826 = vsel %vm500, %v798, 0
        %v829 = vsel %vm500, %v799, 0
        %831 = vmatprep.subr.bf16.mxu0 %v818
        %832 = vmatpush1.bf16.msra.mxu0 %v817
        %833 = vmatprep.subr.bf16.mxu0 %v820
        %834 = vmatpush1.bf16.msra.mxu0 %v819
        %835 = vmatprep.subr.bf16.mxu0 0
        %836 = vmatpush1.bf16.msra.mxu0 0
        %837 = vmatprep.subr.bf16.mxu0 0
        %838 = vmatpush1.bf16.msra.mxu0 0
        %839 = vmatprep.subr.bf16.mxu0 0
        %840 = vmatpush1.bf16.msra.mxu0 0
        %841 = vmatprep.subr.bf16.mxu0 0
        %842 = vmatpush1.bf16.msra.mxu0 0
        %843 = vmatprep.subr.bf16.mxu0 0
        %844 = vmatpush1.bf16.msra.mxu0 0
        %845 = vmatprep.subr.bf16.mxu0 0
        %846 = vmatpush1.bf16.msra.mxu0 0
        %847 = vmatprep.subr.bf16.mxu0 0
        %848 = vmatpush1.bf16.msra.mxu0 0
        %849 = vmatprep.subr.bf16.mxu0 0
        %850 = vmatpush1.bf16.msra.mxu0 0
        %851 = vmatprep.subr.bf16.mxu0 0
        %852 = vmatpush1.bf16.msra.mxu0 0
        %853 = vmatprep.subr.bf16.mxu0 0
        %854 = vmatpush1.bf16.msra.mxu0 0
        %855 = vmatprep.subr.bf16.mxu0 0
        %856 = vmatpush1.bf16.msra.mxu0 0
        %857 = vmatprep.subr.bf16.mxu0 0
        %858 = vmatpush1.bf16.msra.mxu0 0
        %859 = vmatprep.subr.bf16.mxu0 0
        %860 = vmatpush1.bf16.msra.mxu0 0
        %861 = vmatprep.subr.bf16.mxu0 0
        %862 = vmatpush1.bf16.msra.mxu0 0
        %863 = vmatprep.mubr.bf16.mxu0 0
        %864 = vmatmul.mubr.bf16.gmra.mrb[0].mxu0 %v826
        %v865 = vpop.f32.mrb[0].mxu0
        %v866 = vadd.f32 0.0, %v865
        %v867 = vpop.f32.mrb[0].mxu0
        %v868 = vadd.f32 0.0, %v867
        %v869 = vpop.f32.mrb[0].mxu0
        %v870 = vadd.f32 0.0, %v869
        %v871 = vpop.f32.mrb[0].mxu0
        %v872 = vadd.f32 0.0, %v871
        %873 = vmatprep.mubr.bf16.mxu0 0
        %874 = vmatmul.mubr.bf16.gmra.mrb[0].mxu0 %v829
        %v875 = vpop.f32.mrb[0].mxu0
        %v876 = vadd.f32 0.0, %v875
        %v877 = vpop.f32.mrb[0].mxu0
        %v878 = vadd.f32 0.0, %v877
        %v879 = vpop.f32.mrb[0].mxu0
        %v880 = vadd.f32 0.0, %v879
        %v881 = vpop.f32.mrb[0].mxu0
        %v882 = vadd.f32 0.0, %v881
        %883 = vdwg.mxu0
        %v884 = vadd.f32 %v786, %v866
        %v885 = vadd.f32 %v787, %v868
        %v886 = vadd.f32 %v788, %v870
        %v887 = vadd.f32 %v789, %v872
        %v888 = vadd.f32 %v790, %v876
        %v889 = vadd.f32 %v791, %v878
        %v890 = vadd.f32 %v792, %v880
        %v891 = vadd.f32 %v793, %v882
        %v892 = vld [vmem:[#allocation2 + $0x4] sm:$0xff]
        %v893 = vld [vmem:[#allocation2 + $0xc] sm:$0xff]
        %v894 = vld [vmem:[#allocation2 + $0x14] sm:$0xff]
        %v895 = vld [vmem:[#allocation2 + $0x1c] sm:$0xff]
        %v896 = vpack.c.bf16 %v893, %v892
        %v897 = vpack.c.bf16 %v895, %v894
        %s898 = scalar_lea.vmem [#allocation6], 128
        %v899 = vld [vmem:[%s898] sm:$0xff]
        %v900 = vld [vmem:[%s898 + $0x8] sm:$0xff]
        %v901 = vld [vmem:[%s898 + $0x10] sm:$0xff]
        %v902 = vld [vmem:[%s898 + $0x18] sm:$0xff]
        %v907 = vunpack.c.l.b16 %v899
        %v908 = vunpack.c.h.b16 %v899
        %v909 = vunpack.c.l.b16 %v900
        %v910 = vunpack.c.h.b16 %v900
        %v911 = vunpack.c.l.b16 %v901
        %v912 = vunpack.c.h.b16 %v901
        %v913 = vunpack.c.l.b16 %v902
        %v914 = vunpack.c.h.b16 %v902
        %v915 = vpack.c.b16 %v909, %v907
        %v916 = vpack.c.b16 %v910, %v908
        %v917 = vpack.c.b16 %v913, %v911
        %v918 = vpack.c.b16 %v914, %v912
        %v924 = vsel %vm500, %v896, 0
        %v927 = vsel %vm500, %v897, 0
        %929 = vmatprep.subr.bf16.mxu0 %v916
        %930 = vmatpush1.bf16.msra.mxu0 %v915
        %931 = vmatprep.subr.bf16.mxu0 %v918
        %932 = vmatpush1.bf16.msra.mxu0 %v917
        %933 = vmatprep.subr.bf16.mxu0 0
        %934 = vmatpush1.bf16.msra.mxu0 0
        %935 = vmatprep.subr.bf16.mxu0 0
        %936 = vmatpush1.bf16.msra.mxu0 0
        %937 = vmatprep.subr.bf16.mxu0 0
        %938 = vmatpush1.bf16.msra.mxu0 0
        %939 = vmatprep.subr.bf16.mxu0 0
        %940 = vmatpush1.bf16.msra.mxu0 0
        %941 = vmatprep.subr.bf16.mxu0 0
        %942 = vmatpush1.bf16.msra.mxu0 0
        %943 = vmatprep.subr.bf16.mxu0 0
        %944 = vmatpush1.bf16.msra.mxu0 0
        %945 = vmatprep.subr.bf16.mxu0 0
        %946 = vmatpush1.bf16.msra.mxu0 0
        %947 = vmatprep.subr.bf16.mxu0 0
        %948 = vmatpush1.bf16.msra.mxu0 0
        %949 = vmatprep.subr.bf16.mxu0 0
        %950 = vmatpush1.bf16.msra.mxu0 0
        %951 = vmatprep.subr.bf16.mxu0 0
        %952 = vmatpush1.bf16.msra.mxu0 0
        %953 = vmatprep.subr.bf16.mxu0 0
        %954 = vmatpush1.bf16.msra.mxu0 0
        %955 = vmatprep.subr.bf16.mxu0 0
        %956 = vmatpush1.bf16.msra.mxu0 0
        %957 = vmatprep.subr.bf16.mxu0 0
        %958 = vmatpush1.bf16.msra.mxu0 0
        %959 = vmatprep.subr.bf16.mxu0 0
        %960 = vmatpush1.bf16.msra.mxu0 0
        %961 = vmatprep.mubr.bf16.mxu0 0
        %962 = vmatmul.mubr.bf16.gmra.mrb[0].mxu0 %v924
        %v963 = vpop.f32.mrb[0].mxu0
        %v964 = vadd.f32 0.0, %v963
        %v965 = vpop.f32.mrb[0].mxu0
        %v966 = vadd.f32 0.0, %v965
        %v967 = vpop.f32.mrb[0].mxu0
        %v968 = vadd.f32 0.0, %v967
        %v969 = vpop.f32.mrb[0].mxu0
        %v970 = vadd.f32 0.0, %v969
        %971 = vmatprep.mubr.bf16.mxu0 0
        %972 = vmatmul.mubr.bf16.gmra.mrb[0].mxu0 %v927
        %v973 = vpop.f32.mrb[0].mxu0
        %v974 = vadd.f32 0.0, %v973
        %v975 = vpop.f32.mrb[0].mxu0
        %v976 = vadd.f32 0.0, %v975
        %v977 = vpop.f32.mrb[0].mxu0
        %v978 = vadd.f32 0.0, %v977
        %v979 = vpop.f32.mrb[0].mxu0
        %v980 = vadd.f32 0.0, %v979
        %981 = vdwg.mxu0
        %v982 = vadd.f32 %v884, %v964
        %v983 = vadd.f32 %v885, %v966
        %v984 = vadd.f32 %v886, %v968
        %v985 = vadd.f32 %v887, %v970
        %v986 = vadd.f32 %v888, %v974
        %v987 = vadd.f32 %v889, %v976
        %v988 = vadd.f32 %v890, %v978
        %v989 = vadd.f32 %v891, %v980
        %v990 = vld [vmem:[#allocation2 + $0x5] sm:$0xff]
        %v991 = vld [vmem:[#allocation2 + $0xd] sm:$0xff]
        %v992 = vld [vmem:[#allocation2 + $0x15] sm:$0xff]
        %v993 = vld [vmem:[#allocation2 + $0x1d] sm:$0xff]
        %v994 = vpack.c.bf16 %v991, %v990
        %v995 = vpack.c.bf16 %v993, %v992
        %s996 = scalar_lea.vmem [#allocation6], 160
        %v997 = vld [vmem:[%s996] sm:$0xff]
        %v998 = vld [vmem:[%s996 + $0x8] sm:$0xff]
        %v999 = vld [vmem:[%s996 + $0x10] sm:$0xff]
        %v1000 = vld [vmem:[%s996 + $0x18] sm:$0xff]
        %v1005 = vunpack.c.l.b16 %v997
        %v1006 = vunpack.c.h.b16 %v997
        %v1007 = vunpack.c.l.b16 %v998
        %v1008 = vunpack.c.h.b16 %v998
        %v1009 = vunpack.c.l.b16 %v999
        %v1010 = vunpack.c.h.b16 %v999
        %v1011 = vunpack.c.l.b16 %v1000
        %v1012 = vunpack.c.h.b16 %v1000
        %v1013 = vpack.c.b16 %v1007, %v1005
        %v1014 = vpack.c.b16 %v1008, %v1006
        %v1015 = vpack.c.b16 %v1011, %v1009
        %v1016 = vpack.c.b16 %v1012, %v1010
        %v1022 = vsel %vm500, %v994, 0
        %v1025 = vsel %vm500, %v995, 0
        %1027 = vmatprep.subr.bf16.mxu0 %v1014
        %1028 = vmatpush1.bf16.msra.mxu0 %v1013
        %1029 = vmatprep.subr.bf16.mxu0 %v1016
        %1030 = vmatpush1.bf16.msra.mxu0 %v1015
        %1031 = vmatprep.subr.bf16.mxu0 0
        %1032 = vmatpush1.bf16.msra.mxu0 0
        %1033 = vmatprep.subr.bf16.mxu0 0
        %1034 = vmatpush1.bf16.msra.mxu0 0
        %1035 = vmatprep.subr.bf16.mxu0 0
        %1036 = vmatpush1.bf16.msra.mxu0 0
        %1037 = vmatprep.subr.bf16.mxu0 0
        %1038 = vmatpush1.bf16.msra.mxu0 0
        %1039 = vmatprep.subr.bf16.mxu0 0
        %1040 = vmatpush1.bf16.msra.mxu0 0
        %1041 = vmatprep.subr.bf16.mxu0 0
        %1042 = vmatpush1.bf16.msra.mxu0 0
        %1043 = vmatprep.subr.bf16.mxu0 0
        %1044 = vmatpush1.bf16.msra.mxu0 0
        %1045 = vmatprep.subr.bf16.mxu0 0
        %1046 = vmatpush1.bf16.msra.mxu0 0
        %1047 = vmatprep.subr.bf16.mxu0 0
        %1048 = vmatpush1.bf16.msra.mxu0 0
        %1049 = vmatprep.subr.bf16.mxu0 0
        %1050 = vmatpush1.bf16.msra.mxu0 0
        %1051 = vmatprep.subr.bf16.mxu0 0
        %1052 = vmatpush1.bf16.msra.mxu0 0
        %1053 = vmatprep.subr.bf16.mxu0 0
        %1054 = vmatpush1.bf16.msra.mxu0 0
        %1055 = vmatprep.subr.bf16.mxu0 0
        %1056 = vmatpush1.bf16.msra.mxu0 0
        %1057 = vmatprep.subr.bf16.mxu0 0
        %1058 = vmatpush1.bf16.msra.mxu0 0
        %1059 = vmatprep.mubr.bf16.mxu0 0
        %1060 = vmatmul.mubr.bf16.gmra.mrb[0].mxu0 %v1022
        %v1061 = vpop.f32.mrb[0].mxu0
        %v1062 = vadd.f32 0.0, %v1061
        %v1063 = vpop.f32.mrb[0].mxu0
        %v1064 = vadd.f32 0.0, %v1063
        %v1065 = vpop.f32.mrb[0].mxu0
        %v1066 = vadd.f32 0.0, %v1065
        %v1067 = vpop.f32.mrb[0].mxu0
        %v1068 = vadd.f32 0.0, %v1067
        %1069 = vmatprep.mubr.bf16.mxu0 0
        %1070 = vmatmul.mubr.bf16.gmra.mrb[0].mxu0 %v1025
        %v1071 = vpop.f32.mrb[0].mxu0
        %v1072 = vadd.f32 0.0, %v1071
        %v1073 = vpop.f32.mrb[0].mxu0
        %v1074 = vadd.f32 0.0, %v1073
        %v1075 = vpop.f32.mrb[0].mxu0
        %v1076 = vadd.f32 0.0, %v1075
        %v1077 = vpop.f32.mrb[0].mxu0
        %v1078 = vadd.f32 0.0, %v1077
        %1079 = vdwg.mxu0
        %v1080 = vadd.f32 %v982, %v1062
        %v1081 = vadd.f32 %v983, %v1064
        %v1082 = vadd.f32 %v984, %v1066
        %v1083 = vadd.f32 %v985, %v1068
        %v1084 = vadd.f32 %v986, %v1072
        %v1085 = vadd.f32 %v987, %v1074
        %v1086 = vadd.f32 %v988, %v1076
        %v1087 = vadd.f32 %v989, %v1078
        %v1088 = vld [vmem:[#allocation2 + $0x6] sm:$0xff]
        %v1089 = vld [vmem:[#allocation2 + $0xe] sm:$0xff]
        %v1090 = vld [vmem:[#allocation2 + $0x16] sm:$0xff]
        %v1091 = vld [vmem:[#allocation2 + $0x1e] sm:$0xff]
        %v1092 = vpack.c.bf16 %v1089, %v1088
        %v1093 = vpack.c.bf16 %v1091, %v1090
        %s1094 = scalar_lea.vmem [#allocation6], 192
        %v1095 = vld [vmem:[%s1094] sm:$0xff]
        %v1096 = vld [vmem:[%s1094 + $0x8] sm:$0xff]
        %v1097 = vld [vmem:[%s1094 + $0x10] sm:$0xff]
        %v1098 = vld [vmem:[%s1094 + $0x18] sm:$0xff]
        %v1103 = vunpack.c.l.b16 %v1095
        %v1104 = vunpack.c.h.b16 %v1095
        %v1105 = vunpack.c.l.b16 %v1096
        %v1106 = vunpack.c.h.b16 %v1096
        %v1107 = vunpack.c.l.b16 %v1097
        %v1108 = vunpack.c.h.b16 %v1097
        %v1109 = vunpack.c.l.b16 %v1098
        %v1110 = vunpack.c.h.b16 %v1098
        %v1111 = vpack.c.b16 %v1105, %v1103
        %v1112 = vpack.c.b16 %v1106, %v1104
        %v1113 = vpack.c.b16 %v1109, %v1107
        %v1114 = vpack.c.b16 %v1110, %v1108
        %v1120 = vsel %vm500, %v1092, 0
        %v1123 = vsel %vm500, %v1093, 0
        %1125 = vmatprep.subr.bf16.mxu0 %v1112
        %1126 = vmatpush1.bf16.msra.mxu0 %v1111
        %1127 = vmatprep.subr.bf16.mxu0 %v1114
        %1128 = vmatpush1.bf16.msra.mxu0 %v1113
        %1129 = vmatprep.subr.bf16.mxu0 0
        %1130 = vmatpush1.bf16.msra.mxu0 0
        %1131 = vmatprep.subr.bf16.mxu0 0
        %1132 = vmatpush1.bf16.msra.mxu0 0
        %1133 = vmatprep.subr.bf16.mxu0 0
        %1134 = vmatpush1.bf16.msra.mxu0 0
        %1135 = vmatprep.subr.bf16.mxu0 0
        %1136 = vmatpush1.bf16.msra.mxu0 0
        %1137 = vmatprep.subr.bf16.mxu0 0
        %1138 = vmatpush1.bf16.msra.mxu0 0
        %1139 = vmatprep.subr.bf16.mxu0 0
        %1140 = vmatpush1.bf16.msra.mxu0 0
        %1141 = vmatprep.subr.bf16.mxu0 0
        %1142 = vmatpush1.bf16.msra.mxu0 0
        %1143 = vmatprep.subr.bf16.mxu0 0
        %1144 = vmatpush1.bf16.msra.mxu0 0
        %1145 = vmatprep.subr.bf16.mxu0 0
        %1146 = vmatpush1.bf16.msra.mxu0 0
        %1147 = vmatprep.subr.bf16.mxu0 0
        %1148 = vmatpush1.bf16.msra.mxu0 0
        %1149 = vmatprep.subr.bf16.mxu0 0
        %1150 = vmatpush1.bf16.msra.mxu0 0
        %1151 = vmatprep.subr.bf16.mxu0 0
        %1152 = vmatpush1.bf16.msra.mxu0 0
        %1153 = vmatprep.subr.bf16.mxu0 0
        %1154 = vmatpush1.bf16.msra.mxu0 0
        %1155 = vmatprep.subr.bf16.mxu0 0
        %1156 = vmatpush1.bf16.msra.mxu0 0
        %1157 = vmatprep.mubr.bf16.mxu0 0
        %1158 = vmatmul.mubr.bf16.gmra.mrb[0].mxu0 %v1120
        %v1159 = vpop.f32.mrb[0].mxu0
        %v1160 = vadd.f32 0.0, %v1159
        %v1161 = vpop.f32.mrb[0].mxu0
        %v1162 = vadd.f32 0.0, %v1161
        %v1163 = vpop.f32.mrb[0].mxu0
        %v1164 = vadd.f32 0.0, %v1163
        %v1165 = vpop.f32.mrb[0].mxu0
        %v1166 = vadd.f32 0.0, %v1165
        %1167 = vmatprep.mubr.bf16.mxu0 0
        %1168 = vmatmul.mubr.bf16.gmra.mrb[0].mxu0 %v1123
        %v1169 = vpop.f32.mrb[0].mxu0
        %v1170 = vadd.f32 0.0, %v1169
        %v1171 = vpop.f32.mrb[0].mxu0
        %v1172 = vadd.f32 0.0, %v1171
        %v1173 = vpop.f32.mrb[0].mxu0
        %v1174 = vadd.f32 0.0, %v1173
        %v1175 = vpop.f32.mrb[0].mxu0
        %v1176 = vadd.f32 0.0, %v1175
        %1177 = vdwg.mxu0
        %v1178 = vadd.f32 %v1080, %v1160
        %v1179 = vadd.f32 %v1081, %v1162
        %v1180 = vadd.f32 %v1082, %v1164
        %v1181 = vadd.f32 %v1083, %v1166
        %v1182 = vadd.f32 %v1084, %v1170
        %v1183 = vadd.f32 %v1085, %v1172
        %v1184 = vadd.f32 %v1086, %v1174
        %v1185 = vadd.f32 %v1087, %v1176
        %v1187 = vlaneseq
        %v1188 = vshrl.u32 %v1187, 7
        %v1189 = vsub.s32 0, %v1188
        %v1190 = vrot.slane %v499, %v1189
        %v1191 = vlaneseq
        %v1192 = vshrl.u32 %v1191, 7
        %v1193 = vsub.s32 1, %v1192
        %v1194 = vrot.slane %v499, %v1193
        %v1197 = vadd.f32 %v1178, %v1190
        %v1198 = vadd.f32 %v1179, %v1194
        %v1199 = vadd.f32 %v1180, %v1190
        %v1200 = vadd.f32 %v1181, %v1194
        %v1201 = vadd.f32 %v1182, %v1190
        %v1202 = vadd.f32 %v1183, %v1194
        %v1203 = vadd.f32 %v1184, %v1190
        %v1204 = vadd.f32 %v1185, %v1194
        %v1205 = vtanh.pop %v1197
        %v1206 = vtanh.pop %v1198
        %v1207 = vtanh.pop %v1199
        %v1208 = vtanh.pop %v1200
        %v1209 = vtanh.pop %v1201
        %v1210 = vtanh.pop %v1202
        %v1211 = vtanh.pop %v1203
        %v1212 = vtanh.pop %v1204
        %v1213 = vld [vmem:[#allocation14] sm:$0xff]
        %v1214 = vld [vmem:[#allocation14 + $0x8] sm:$0xff]
        %s1215 = scalar_lea.vmem [#allocation14], 16
        %v1216 = vld [vmem:[%s1215] sm:$0xff]
        %v1217 = vld [vmem:[%s1215 + $0x8] sm:$0xff]
        %v1219 = vsel %vm500, %v1213, 0
        %v1222 = vsel %vm500, %v1214, 0
        %1224 = vmatprep.subr.mxu0 %v1206
        %1225 = vmatpush1.msra.mxu0 %v1205
        %1226 = vmatprep.subr.mxu0 %v1208
        %1227 = vmatpush1.msra.mxu0 %v1207
        %1228 = vmatprep.subr.mxu0 %v1210
        %1229 = vmatpush1.msra.mxu0 %v1209
        %1230 = vmatprep.subr.mxu0 %v1212
        %1231 = vmatpush1.msra.mxu0 %v1211
        %1232 = vmatprep.subr.mxu0 0.0
        %1233 = vmatpush1.msra.mxu0 0.0
        %1234 = vmatprep.subr.mxu0 0.0
        %1235 = vmatpush1.msra.mxu0 0.0
        %1236 = vmatprep.subr.mxu0 0.0
        %1237 = vmatpush1.msra.mxu0 0.0
        %1238 = vmatprep.subr.mxu0 0.0
        %1239 = vmatpush1.msra.mxu0 0.0
        %1240 = vmatprep.subr.mxu0 0.0
        %1241 = vmatpush1.msra.mxu0 0.0
        %1242 = vmatprep.subr.mxu0 0.0
        %1243 = vmatpush1.msra.mxu0 0.0
        %1244 = vmatprep.subr.mxu0 0.0
        %1245 = vmatpush1.msra.mxu0 0.0
        %1246 = vmatprep.subr.mxu0 0.0
        %1247 = vmatpush1.msra.mxu0 0.0
        %1248 = vmatprep.subr.mxu0 0.0
        %1249 = vmatpush1.msra.mxu0 0.0
        %1250 = vmatprep.subr.mxu0 0.0
        %1251 = vmatpush1.msra.mxu0 0.0
        %1252 = vmatprep.subr.mxu0 0.0
        %1253 = vmatpush1.msra.mxu0 0.0
        %1254 = vmatprep.subr.mxu0 0.0
        %1255 = vmatpush1.msra.mxu0 0.0
        %1256 = vmatprep.subr.mxu0 0.0
        %1257 = vmatpush1.msra.mxu0 0.0
        %1258 = vmatprep.subr.mxu0 0.0
        %1259 = vmatpush1.msra.mxu0 0.0
        %1260 = vmatprep.subr.mxu0 0.0
        %1261 = vmatpush1.msra.mxu0 0.0
        %1262 = vmatprep.subr.mxu0 0.0
        %1263 = vmatpush1.msra.mxu0 0.0
        %1264 = vmatprep.subr.mxu0 0.0
        %1265 = vmatpush1.msra.mxu0 0.0
        %1266 = vmatprep.subr.mxu0 0.0
        %1267 = vmatpush1.msra.mxu0 0.0
        %1268 = vmatprep.subr.mxu0 0.0
        %1269 = vmatpush1.msra.mxu0 0.0
        %1270 = vmatprep.subr.mxu0 0.0
        %1271 = vmatpush1.msra.mxu0 0.0
        %1272 = vmatprep.subr.mxu0 0.0
        %1273 = vmatpush1.msra.mxu0 0.0
        %1274 = vmatprep.subr.mxu0 0.0
        %1275 = vmatpush1.msra.mxu0 0.0
        %1276 = vmatprep.subr.mxu0 0.0
        %1277 = vmatpush1.msra.mxu0 0.0
        %1278 = vmatprep.subr.mxu0 0.0
        %1279 = vmatpush1.msra.mxu0 0.0
        %1280 = vmatprep.subr.mxu0 0.0
        %1281 = vmatpush1.msra.mxu0 0.0
        %1282 = vmatprep.subr.mxu0 0.0
        %1283 = vmatpush1.msra.mxu0 0.0
        %1284 = vmatprep.subr.mxu0 0.0
        %1285 = vmatpush1.msra.mxu0 0.0
        %1286 = vmatprep.subr.mxu0 0.0
        %1287 = vmatpush1.msra.mxu0 0.0
        %1288 = vmatprep.mubr.f32.mxu0 0.0
        %1289 = vmatmul.mubr.f32.gmra.mrb[0].mxu0 %v1219
        %v1290 = vpop.f32.mrb[0].mxu0
        %v1291 = vadd.f32 0.0, %v1290
        %v1292 = vpop.f32.mrb[0].mxu0
        %v1293 = vadd.f32 0.0, %v1292
        %1294 = vmatprep.mubr.f32.mxu0 0.0
        %1295 = vmatmul.mubr.f32.gmra.mrb[0].mxu0 %v1222
        %v1296 = vpop.f32.mrb[0].mxu0
        %v1297 = vadd.f32 0.0, %v1296
        %v1298 = vpop.f32.mrb[0].mxu0
        %v1299 = vadd.f32 0.0, %v1298
        %1300 = vdwg.mxu0
        %v1302 = vsel %vm500, %v1216, 0
        %v1305 = vsel %vm500, %v1217, 0
        %1307 = vmatprep.subr.mxu0 %v1206
        %1308 = vmatpush1.msra.mxu0 %v1205
        %1309 = vmatprep.subr.mxu0 %v1208
        %1310 = vmatpush1.msra.mxu0 %v1207
        %1311 = vmatprep.subr.mxu0 %v1210
        %1312 = vmatpush1.msra.mxu0 %v1209
        %1313 = vmatprep.subr.mxu0 %v1212
        %1314 = vmatpush1.msra.mxu0 %v1211
        %1315 = vmatprep.subr.mxu0 0.0
        %1316 = vmatpush1.msra.mxu0 0.0
        %1317 = vmatprep.subr.mxu0 0.0
        %1318 = vmatpush1.msra.mxu0 0.0
        %1319 = vmatprep.subr.mxu0 0.0
        %1320 = vmatpush1.msra.mxu0 0.0
        %1321 = vmatprep.subr.mxu0 0.0
        %1322 = vmatpush1.msra.mxu0 0.0
        %1323 = vmatprep.subr.mxu0 0.0
        %1324 = vmatpush1.msra.mxu0 0.0
        %1325 = vmatprep.subr.mxu0 0.0
        %1326 = vmatpush1.msra.mxu0 0.0
        %1327 = vmatprep.subr.mxu0 0.0
        %1328 = vmatpush1.msra.mxu0 0.0
        %1329 = vmatprep.subr.mxu0 0.0
        %1330 = vmatpush1.msra.mxu0 0.0
        %1331 = vmatprep.subr.mxu0 0.0
        %1332 = vmatpush1.msra.mxu0 0.0
        %1333 = vmatprep.subr.mxu0 0.0
        %1334 = vmatpush1.msra.mxu0 0.0
        %1335 = vmatprep.subr.mxu0 0.0
        %1336 = vmatpush1.msra.mxu0 0.0
        %1337 = vmatprep.subr.mxu0 0.0
        %1338 = vmatpush1.msra.mxu0 0.0
        %1339 = vmatprep.subr.mxu0 0.0
        %1340 = vmatpush1.msra.mxu0 0.0
        %1341 = vmatprep.subr.mxu0 0.0
        %1342 = vmatpush1.msra.mxu0 0.0
        %1343 = vmatprep.subr.mxu0 0.0
        %1344 = vmatpush1.msra.mxu0 0.0
        %1345 = vmatprep.subr.mxu0 0.0
        %1346 = vmatpush1.msra.mxu0 0.0
        %1347 = vmatprep.subr.mxu0 0.0
        %1348 = vmatpush1.msra.mxu0 0.0
        %1349 = vmatprep.subr.mxu0 0.0
        %1350 = vmatpush1.msra.mxu0 0.0
        %1351 = vmatprep.subr.mxu0 0.0
        %1352 = vmatpush1.msra.mxu0 0.0
        %1353 = vmatprep.subr.mxu0 0.0
        %1354 = vmatpush1.msra.mxu0 0.0
        %1355 = vmatprep.subr.mxu0 0.0
        %1356 = vmatpush1.msra.mxu0 0.0
        %1357 = vmatprep.subr.mxu0 0.0
        %1358 = vmatpush1.msra.mxu0 0.0
        %1359 = vmatprep.subr.mxu0 0.0
        %1360 = vmatpush1.msra.mxu0 0.0
        %1361 = vmatprep.subr.mxu0 0.0
        %1362 = vmatpush1.msra.mxu0 0.0
        %1363 = vmatprep.subr.mxu0 0.0
        %1364 = vmatpush1.msra.mxu0 0.0
        %1365 = vmatprep.subr.mxu0 0.0
        %1366 = vmatpush1.msra.mxu0 0.0
        %1367 = vmatprep.subr.mxu0 0.0
        %1368 = vmatpush1.msra.mxu0 0.0
        %1369 = vmatprep.subr.mxu0 0.0
        %1370 = vmatpush1.msra.mxu0 0.0
        %1371 = vmatprep.mubr.f32.mxu0 0.0
        %1372 = vmatmul.mubr.f32.gmra.mrb[0].mxu0 %v1302
        %v1373 = vpop.f32.mrb[0].mxu0
        %v1374 = vadd.f32 0.0, %v1373
        %v1375 = vpop.f32.mrb[0].mxu0
        %v1376 = vadd.f32 0.0, %v1375
        %1377 = vmatprep.mubr.f32.mxu0 0.0
        %1378 = vmatmul.mubr.f32.gmra.mrb[0].mxu0 %v1305
        %v1379 = vpop.f32.mrb[0].mxu0
        %v1380 = vadd.f32 0.0, %v1379
        %v1381 = vpop.f32.mrb[0].mxu0
        %v1382 = vadd.f32 0.0, %v1381
        %1383 = vdwg.mxu0
        %v1384 = vmax.f32 %v1291, %v1374
        %v1385 = vmax.f32 %v1293, %v1376
        %v1386 = vmax.f32 %v1297, %v1380
        %v1387 = vmax.f32 %v1299, %v1382
        %v1388 = vld [vmem:[#allocation15] sm:$0xff]
        %v1389 = vld [vmem:[#allocation15 + $0x8] sm:$0xff]
        %v1390 = vld [vmem:[#allocation15 + $0x10] sm:$0xff]
        %v1391 = vld [vmem:[#allocation15 + $0x18] sm:$0xff]
        %v1392 = vld [vmem:[#allocation15 + $0x20] sm:$0xff]
        %v1393 = vld [vmem:[#allocation15 + $0x28] sm:$0xff]
        %v1394 = vld [vmem:[#allocation15 + $0x30] sm:$0xff]
        %v1395 = vld [vmem:[#allocation15 + $0x38] sm:$0xff]
        %v1396 = vld [vmem:[#allocation15 + $0x40] sm:$0xff]
        %v1397 = vld [vmem:[#allocation15 + $0x48] sm:$0xff]
        %v1398 = vld [vmem:[#allocation15 + $0x50] sm:$0xff]
        %v1399 = vld [vmem:[#allocation15 + $0x58] sm:$0xff]
        %v1400 = vld [vmem:[#allocation15 + $0x60] sm:$0xff]
        %v1401 = vld [vmem:[#allocation15 + $0x68] sm:$0xff]
        %v1402 = vld [vmem:[#allocation15 + $0x70] sm:$0xff]
        %v1403 = vld [vmem:[#allocation15 + $0x78] sm:$0xff]
        %v1404 = vld [vmem:[#allocation15 + $0x80] sm:$0xff]
        %v1405 = vld [vmem:[#allocation15 + $0x88] sm:$0xff]
        %v1406 = vld [vmem:[#allocation15 + $0x90] sm:$0xff]
        %v1407 = vld [vmem:[#allocation15 + $0x98] sm:$0xff]
        %v1408 = vld [vmem:[#allocation15 + $0xa0] sm:$0xff]
        %v1409 = vld [vmem:[#allocation15 + $0xa8] sm:$0xff]
        %v1410 = vld [vmem:[#allocation15 + $0xb0] sm:$0xff]
        %v1411 = vld [vmem:[#allocation15 + $0xb8] sm:$0xff]
        %v1412 = vld [vmem:[#allocation15 + $0xc0] sm:$0xff]
        %v1413 = vld [vmem:[#allocation15 + $0xc8] sm:$0xff]
        %v1414 = vld [vmem:[#allocation15 + $0xd0] sm:$0xff]
        %v1415 = vld [vmem:[#allocation15 + $0xd8] sm:$0xff]
        %v1416 = vld [vmem:[#allocation15 + $0xe0] sm:$0xff]
        %v1417 = vld [vmem:[#allocation15 + $0xe8] sm:$0xff]
        %v1418 = vld [vmem:[#allocation15 + $0xf0] sm:$0xff]
        %v1419 = vld [vmem:[#allocation15 + $0xf8] sm:$0xff]
        %s1420 = scalar_lea.vmem [#allocation15], 256
        %v1421 = vld [vmem:[%s1420] sm:$0xff]
        %v1422 = vld [vmem:[%s1420 + $0x8] sm:$0xff]
        %v1423 = vld [vmem:[%s1420 + $0x10] sm:$0xff]
        %v1424 = vld [vmem:[%s1420 + $0x18] sm:$0xff]
        %v1425 = vld [vmem:[%s1420 + $0x20] sm:$0xff]
        %v1426 = vld [vmem:[%s1420 + $0x28] sm:$0xff]
        %v1427 = vld [vmem:[%s1420 + $0x30] sm:$0xff]
        %v1428 = vld [vmem:[%s1420 + $0x38] sm:$0xff]
        %v1429 = vld [vmem:[%s1420 + $0x40] sm:$0xff]
        %v1430 = vld [vmem:[%s1420 + $0x48] sm:$0xff]
        %v1431 = vld [vmem:[%s1420 + $0x50] sm:$0xff]
        %v1432 = vld [vmem:[%s1420 + $0x58] sm:$0xff]
        %v1433 = vld [vmem:[%s1420 + $0x60] sm:$0xff]
        %v1434 = vld [vmem:[%s1420 + $0x68] sm:$0xff]
        %v1435 = vld [vmem:[%s1420 + $0x70] sm:$0xff]
        %v1436 = vld [vmem:[%s1420 + $0x78] sm:$0xff]
        %v1437 = vld [vmem:[%s1420 + $0x80] sm:$0xff]
        %v1438 = vld [vmem:[%s1420 + $0x88] sm:$0xff]
        %v1439 = vld [vmem:[%s1420 + $0x90] sm:$0xff]
        %v1440 = vld [vmem:[%s1420 + $0x98] sm:$0xff]
        %v1441 = vld [vmem:[%s1420 + $0xa0] sm:$0xff]
        %v1442 = vld [vmem:[%s1420 + $0xa8] sm:$0xff]
        %v1443 = vld [vmem:[%s1420 + $0xb0] sm:$0xff]
        %v1444 = vld [vmem:[%s1420 + $0xb8] sm:$0xff]
        %v1445 = vld [vmem:[%s1420 + $0xc0] sm:$0xff]
        %v1446 = vld [vmem:[%s1420 + $0xc8] sm:$0xff]
        %v1447 = vld [vmem:[%s1420 + $0xd0] sm:$0xff]
        %v1448 = vld [vmem:[%s1420 + $0xd8] sm:$0xff]
        %v1449 = vld [vmem:[%s1420 + $0xe0] sm:$0xff]
        %v1450 = vld [vmem:[%s1420 + $0xe8] sm:$0xff]
        %v1451 = vld [vmem:[%s1420 + $0xf0] sm:$0xff]
        %v1452 = vld [vmem:[%s1420 + $0xf8] sm:$0xff]
        %1453 = vmatprep.subr.mxu0 0.0
        %1454 = vmatpush1.msra.mxu0 %v1388
        %1455 = vmatprep.subr.mxu0 0.0
        %1456 = vmatpush1.msra.mxu0 %v1389
        %1457 = vmatprep.subr.mxu0 0.0
        %1458 = vmatpush1.msra.mxu0 %v1390
        %1459 = vmatprep.subr.mxu0 0.0
        %1460 = vmatpush1.msra.mxu0 %v1391
        %1461 = vmatprep.subr.mxu0 0.0
        %1462 = vmatpush1.msra.mxu0 %v1392
        %1463 = vmatprep.subr.mxu0 0.0
        %1464 = vmatpush1.msra.mxu0 %v1393
        %1465 = vmatprep.subr.mxu0 0.0
        %1466 = vmatpush1.msra.mxu0 %v1394
        %1467 = vmatprep.subr.mxu0 0.0
        %1468 = vmatpush1.msra.mxu0 %v1395
        %1469 = vmatprep.subr.mxu0 0.0
        %1470 = vmatpush1.msra.mxu0 %v1396
        %1471 = vmatprep.subr.mxu0 0.0
        %1472 = vmatpush1.msra.mxu0 %v1397
        %1473 = vmatprep.subr.mxu0 0.0
        %1474 = vmatpush1.msra.mxu0 %v1398
        %1475 = vmatprep.subr.mxu0 0.0
        %1476 = vmatpush1.msra.mxu0 %v1399
        %1477 = vmatprep.subr.mxu0 0.0
        %1478 = vmatpush1.msra.mxu0 %v1400
        %1479 = vmatprep.subr.mxu0 0.0
        %1480 = vmatpush1.msra.mxu0 %v1401
        %1481 = vmatprep.subr.mxu0 0.0
        %1482 = vmatpush1.msra.mxu0 %v1402
        %1483 = vmatprep.subr.mxu0 0.0
        %1484 = vmatpush1.msra.mxu0 %v1403
        %1485 = vmatprep.subr.mxu0 0.0
        %1486 = vmatpush1.msra.mxu0 %v1404
        %1487 = vmatprep.subr.mxu0 0.0
        %1488 = vmatpush1.msra.mxu0 %v1405
        %1489 = vmatprep.subr.mxu0 0.0
        %1490 = vmatpush1.msra.mxu0 %v1406
        %1491 = vmatprep.subr.mxu0 0.0
        %1492 = vmatpush1.msra.mxu0 %v1407
        %1493 = vmatprep.subr.mxu0 0.0
        %1494 = vmatpush1.msra.mxu0 %v1408
        %1495 = vmatprep.subr.mxu0 0.0
        %1496 = vmatpush1.msra.mxu0 %v1409
        %1497 = vmatprep.subr.mxu0 0.0
        %1498 = vmatpush1.msra.mxu0 %v1410
        %1499 = vmatprep.subr.mxu0 0.0
        %1500 = vmatpush1.msra.mxu0 %v1411
        %1501 = vmatprep.subr.mxu0 0.0
        %1502 = vmatpush1.msra.mxu0 %v1412
        %1503 = vmatprep.subr.mxu0 0.0
        %1504 = vmatpush1.msra.mxu0 %v1413
        %1505 = vmatprep.subr.mxu0 0.0
        %1506 = vmatpush1.msra.mxu0 %v1414
        %1507 = vmatprep.subr.mxu0 0.0
        %1508 = vmatpush1.msra.mxu0 %v1415
        %1509 = vmatprep.subr.mxu0 0.0
        %1510 = vmatpush1.msra.mxu0 %v1416
        %1511 = vmatprep.subr.mxu0 0.0
        %1512 = vmatpush1.msra.mxu0 %v1417
        %1513 = vmatprep.subr.mxu0 0.0
        %1514 = vmatpush1.msra.mxu0 %v1418
        %1515 = vmatprep.subr.mxu0 0.0
        %1516 = vmatpush1.msra.mxu0 %v1419
        %1517 = vmatprep.mubr.f32.mxu0 %v1385
        %1518 = vmatmul.mubr.f32.gmra.mrb[0].mxu0 %v1384
        %v1519 = vpop.f32.mrb[0].mxu0
        %v1520 = vadd.f32 0.0, %v1519
        %v1521 = vpop.f32.mrb[0].mxu0
        %1522 = vmatprep.mubr.f32.mxu0 %v1387
        %1523 = vmatmul.mubr.f32.gmra.mrb[0].mxu0 %v1386
        %v1524 = vpop.f32.mrb[0].mxu0
        %v1525 = vadd.f32 0.0, %v1524
        %v1526 = vpop.f32.mrb[0].mxu0
        %1527 = vdwg.mxu0
        %1528 = vmatprep.subr.mxu0 0.0
        %1529 = vmatpush1.msra.mxu0 %v1421
        %1530 = vmatprep.subr.mxu0 0.0
        %1531 = vmatpush1.msra.mxu0 %v1422
        %1532 = vmatprep.subr.mxu0 0.0
        %1533 = vmatpush1.msra.mxu0 %v1423
        %1534 = vmatprep.subr.mxu0 0.0
        %1535 = vmatpush1.msra.mxu0 %v1424
        %1536 = vmatprep.subr.mxu0 0.0
        %1537 = vmatpush1.msra.mxu0 %v1425
        %1538 = vmatprep.subr.mxu0 0.0
        %1539 = vmatpush1.msra.mxu0 %v1426
        %1540 = vmatprep.subr.mxu0 0.0
        %1541 = vmatpush1.msra.mxu0 %v1427
        %1542 = vmatprep.subr.mxu0 0.0
        %1543 = vmatpush1.msra.mxu0 %v1428
        %1544 = vmatprep.subr.mxu0 0.0
        %1545 = vmatpush1.msra.mxu0 %v1429
        %1546 = vmatprep.subr.mxu0 0.0
        %1547 = vmatpush1.msra.mxu0 %v1430
        %1548 = vmatprep.subr.mxu0 0.0
        %1549 = vmatpush1.msra.mxu0 %v1431
        %1550 = vmatprep.subr.mxu0 0.0
        %1551 = vmatpush1.msra.mxu0 %v1432
        %1552 = vmatprep.subr.mxu0 0.0
        %1553 = vmatpush1.msra.mxu0 %v1433
        %1554 = vmatprep.subr.mxu0 0.0
        %1555 = vmatpush1.msra.mxu0 %v1434
        %1556 = vmatprep.subr.mxu0 0.0
        %1557 = vmatpush1.msra.mxu0 %v1435
        %1558 = vmatprep.subr.mxu0 0.0
        %1559 = vmatpush1.msra.mxu0 %v1436
        %1560 = vmatprep.subr.mxu0 0.0
        %1561 = vmatpush1.msra.mxu0 %v1437
        %1562 = vmatprep.subr.mxu0 0.0
        %1563 = vmatpush1.msra.mxu0 %v1438
        %1564 = vmatprep.subr.mxu0 0.0
        %1565 = vmatpush1.msra.mxu0 %v1439
        %1566 = vmatprep.subr.mxu0 0.0
        %1567 = vmatpush1.msra.mxu0 %v1440
        %1568 = vmatprep.subr.mxu0 0.0
        %1569 = vmatpush1.msra.mxu0 %v1441
        %1570 = vmatprep.subr.mxu0 0.0
        %1571 = vmatpush1.msra.mxu0 %v1442
        %1572 = vmatprep.subr.mxu0 0.0
        %1573 = vmatpush1.msra.mxu0 %v1443
        %1574 = vmatprep.subr.mxu0 0.0
        %1575 = vmatpush1.msra.mxu0 %v1444
        %1576 = vmatprep.subr.mxu0 0.0
        %1577 = vmatpush1.msra.mxu0 %v1445
        %1578 = vmatprep.subr.mxu0 0.0
        %1579 = vmatpush1.msra.mxu0 %v1446
        %1580 = vmatprep.subr.mxu0 0.0
        %1581 = vmatpush1.msra.mxu0 %v1447
        %1582 = vmatprep.subr.mxu0 0.0
        %1583 = vmatpush1.msra.mxu0 %v1448
        %1584 = vmatprep.subr.mxu0 0.0
        %1585 = vmatpush1.msra.mxu0 %v1449
        %1586 = vmatprep.subr.mxu0 0.0
        %1587 = vmatpush1.msra.mxu0 %v1450
        %1588 = vmatprep.subr.mxu0 0.0
        %1589 = vmatpush1.msra.mxu0 %v1451
        %1590 = vmatprep.subr.mxu0 0.0
        %1591 = vmatpush1.msra.mxu0 %v1452
        %1592 = vmatprep.mubr.f32.mxu0 %v1385
        %1593 = vmatmul.mubr.f32.gmra.mrb[0].mxu0 %v1384
        %v1594 = vpop.f32.mrb[0].mxu0
        %v1595 = vadd.f32 0.0, %v1594
        %v1596 = vpop.f32.mrb[0].mxu0
        %1597 = vmatprep.mubr.f32.mxu0 %v1387
        %1598 = vmatmul.mubr.f32.gmra.mrb[0].mxu0 %v1386
        %v1599 = vpop.f32.mrb[0].mxu0
        %v1600 = vadd.f32 0.0, %v1599
        %v1601 = vpop.f32.mrb[0].mxu0
        %1602 = vdwg.mxu0
        %v1603 = vmax.f32 %v1520, %v1595
        %v1604 = vmax.f32 %v1525, %v1600
        %s1605 = scalar_lea.vmem [#allocation12], 2
        %v1606 = vld [vmem:[%s1605] sm:$0x3]
        %1607 = vst [vmem:[#allocation2 + $0x2] sm:$0xff] %v1603
        %1608 = vst [vmem:[#allocation2 + $0xa] sm:$0xff] %v1604
        %1609 = vst [vmem:[#allocation2 - $0x2] sm:$0x4] %v1603
        %1610 = vst [vmem:[#allocation2 + $0xc] sm:$0x40] %v1604
        %1611 = vst [vmem:[#allocation2] sm:$0x2] %v1603
        %1612 = vst [vmem:[#allocation2 + $0xe] sm:$0x20] %v1604
        %v1613 = vld [vmem:[#allocation2] sm:$0xff]
        %v1614 = vld [vmem:[#allocation2 + $0x8] sm:$0xff]
        %v1615 = vpack.c.bf16 %v1614, %v1613
        %v1616 = vld [vmem:[#allocation8] sm:$0xff]
        %v1617 = vld [vmem:[#allocation8 + $0x8] sm:$0xff]
        %v1618 = vld [vmem:[#allocation8 + $0x10] sm:$0xff]
        %v1619 = vld [vmem:[#allocation8 + $0x18] sm:$0xff]
        %v1620 = vld [vmem:[#allocation8 + $0x20] sm:$0xff]
        %v1621 = vld [vmem:[#allocation8 + $0x28] sm:$0xff]
        %v1622 = vld [vmem:[#allocation8 + $0x30] sm:$0xff]
        %v1623 = vld [vmem:[#allocation8 + $0x38] sm:$0xff]
        %v1624 = vld [vmem:[#allocation8 + $0x40] sm:$0xff]
        %v1625 = vld [vmem:[#allocation8 + $0x48] sm:$0xff]
        %v1626 = vld [vmem:[#allocation8 + $0x50] sm:$0xff]
        %v1627 = vld [vmem:[#allocation8 + $0x58] sm:$0xff]
        %v1628 = vld [vmem:[#allocation8 + $0x60] sm:$0xff]
        %v1629 = vld [vmem:[#allocation8 + $0x68] sm:$0xff]
        %v1630 = vld [vmem:[#allocation8 + $0x70] sm:$0xff]
        %v1631 = vld [vmem:[#allocation8 + $0x78] sm:$0xff]
        %v1632 = vld [vmem:[#allocation2 + $0x1] sm:$0xff]
        %v1633 = vld [vmem:[#allocation2 + $0x9] sm:$0xff]
        %v1634 = vpack.c.bf16 %v1633, %v1632
        %s1635 = scalar_lea.vmem [#allocation8], 128
        %v1636 = vld [vmem:[%s1635] sm:$0xff]
        %v1637 = vld [vmem:[%s1635 + $0x8] sm:$0xff]
        %v1638 = vld [vmem:[%s1635 + $0x10] sm:$0xff]
        %v1639 = vld [vmem:[%s1635 + $0x18] sm:$0xff]
        %v1640 = vld [vmem:[%s1635 + $0x20] sm:$0xff]
        %v1641 = vld [vmem:[%s1635 + $0x28] sm:$0xff]
        %v1642 = vld [vmem:[%s1635 + $0x30] sm:$0xff]
        %v1643 = vld [vmem:[%s1635 + $0x38] sm:$0xff]
        %v1644 = vld [vmem:[%s1635 + $0x40] sm:$0xff]
        %v1645 = vld [vmem:[%s1635 + $0x48] sm:$0xff]
        %v1646 = vld [vmem:[%s1635 + $0x50] sm:$0xff]
        %v1647 = vld [vmem:[%s1635 + $0x58] sm:$0xff]
        %v1648 = vld [vmem:[%s1635 + $0x60] sm:$0xff]
        %v1649 = vld [vmem:[%s1635 + $0x68] sm:$0xff]
        %v1650 = vld [vmem:[%s1635 + $0x70] sm:$0xff]
        %v1651 = vld [vmem:[%s1635 + $0x78] sm:$0xff]
        %v1668 = vunpack.c.l.b16 %v1636
        %v1669 = vunpack.c.h.b16 %v1636
        %v1670 = vunpack.c.l.b16 %v1637
        %v1671 = vunpack.c.h.b16 %v1637
        %v1672 = vunpack.c.l.b16 %v1638
        %v1673 = vunpack.c.h.b16 %v1638
        %v1674 = vunpack.c.l.b16 %v1639
        %v1675 = vunpack.c.h.b16 %v1639
        %v1676 = vunpack.c.l.b16 %v1640
        %v1677 = vunpack.c.h.b16 %v1640
        %v1678 = vunpack.c.l.b16 %v1641
        %v1679 = vunpack.c.h.b16 %v1641
        %v1680 = vunpack.c.l.b16 %v1642
        %v1681 = vunpack.c.h.b16 %v1642
        %v1682 = vunpack.c.l.b16 %v1643
        %v1683 = vunpack.c.h.b16 %v1643
        %v1684 = vunpack.c.l.b16 %v1644
        %v1685 = vunpack.c.h.b16 %v1644
        %v1686 = vunpack.c.l.b16 %v1645
        %v1687 = vunpack.c.h.b16 %v1645
        %v1688 = vunpack.c.l.b16 %v1646
        %v1689 = vunpack.c.h.b16 %v1646
        %v1690 = vunpack.c.l.b16 %v1647
        %v1691 = vunpack.c.h.b16 %v1647
        %v1692 = vunpack.c.l.b16 %v1648
        %v1693 = vunpack.c.h.b16 %v1648
        %v1694 = vunpack.c.l.b16 %v1649
        %v1695 = vunpack.c.h.b16 %v1649
        %v1696 = vunpack.c.l.b16 %v1650
        %v1697 = vunpack.c.h.b16 %v1650
        %v1698 = vunpack.c.l.b16 %v1651
        %v1699 = vunpack.c.h.b16 %v1651
        %v1700 = vpack.c.b16 %v1670, %v1668
        %v1701 = vpack.c.b16 %v1671, %v1669
        %v1702 = vpack.c.b16 %v1674, %v1672
        %v1703 = vpack.c.b16 %v1675, %v1673
        %v1704 = vpack.c.b16 %v1678, %v1676
        %v1705 = vpack.c.b16 %v1679, %v1677
        %v1706 = vpack.c.b16 %v1682, %v1680
        %v1707 = vpack.c.b16 %v1683, %v1681
        %v1708 = vpack.c.b16 %v1686, %v1684
        %v1709 = vpack.c.b16 %v1687, %v1685
        %v1710 = vpack.c.b16 %v1690, %v1688
        %v1711 = vpack.c.b16 %v1691, %v1689
        %v1712 = vpack.c.b16 %v1694, %v1692
        %v1713 = vpack.c.b16 %v1695, %v1693
        %v1714 = vpack.c.b16 %v1698, %v1696
        %v1715 = vpack.c.b16 %v1699, %v1697
        %1732 = vmatprep.subr.bf16.mxu0 %v1701
        %1733 = vmatpush1.bf16.msra.mxu0 %v1700
        %1734 = vmatprep.subr.bf16.mxu0 %v1703
        %1735 = vmatpush1.bf16.msra.mxu0 %v1702
        %1736 = vmatprep.subr.bf16.mxu0 %v1705
        %1737 = vmatpush1.bf16.msra.mxu0 %v1704
        %1738 = vmatprep.subr.bf16.mxu0 %v1707
        %1739 = vmatpush1.bf16.msra.mxu0 %v1706
        %1740 = vmatprep.subr.bf16.mxu0 %v1709
        %1741 = vmatpush1.bf16.msra.mxu0 %v1708
        %1742 = vmatprep.subr.bf16.mxu0 %v1711
        %1743 = vmatpush1.bf16.msra.mxu0 %v1710
        %1744 = vmatprep.subr.bf16.mxu0 %v1713
        %1745 = vmatpush1.bf16.msra.mxu0 %v1712
        %1746 = vmatprep.subr.bf16.mxu0 %v1715
        %1747 = vmatpush1.bf16.msra.mxu0 %v1714
        %1748 = vmatprep.subr.bf16.mxu0 0
        %1749 = vmatpush1.bf16.msra.mxu0 0
        %1750 = vmatprep.subr.bf16.mxu0 0
        %1751 = vmatpush1.bf16.msra.mxu0 0
        %1752 = vmatprep.subr.bf16.mxu0 0
        %1753 = vmatpush1.bf16.msra.mxu0 0
        %1754 = vmatprep.subr.bf16.mxu0 0
        %1755 = vmatpush1.bf16.msra.mxu0 0
        %1756 = vmatprep.subr.bf16.mxu0 0
        %1757 = vmatpush1.bf16.msra.mxu0 0
        %1758 = vmatprep.subr.bf16.mxu0 0
        %1759 = vmatpush1.bf16.msra.mxu0 0
        %1760 = vmatprep.subr.bf16.mxu0 0
        %1761 = vmatpush1.bf16.msra.mxu0 0
        %1762 = vmatprep.subr.bf16.mxu0 0
        %1763 = vmatpush1.bf16.msra.mxu0 0
        %1764 = vmatprep.mubr.bf16.mxu0 0
        %1765 = vmatmul.mubr.bf16.gmra.mrb[0].mxu0 %v1634
        %v1766 = vpop.f32.mrb[0].mxu0
        %v1767 = vadd.f32 0.0, %v1766
        %v1768 = vpop.f32.mrb[0].mxu0
        %v1769 = vadd.f32 0.0, %v1768
        %v1770 = vpop.f32.mrb[0].mxu0
        %v1771 = vadd.f32 0.0, %v1770
        %v1772 = vpop.f32.mrb[0].mxu0
        %v1773 = vadd.f32 0.0, %v1772
        %1774 = vdwg.mxu0
        %v1791 = vunpack.c.l.b16 %v1616
        %v1792 = vunpack.c.h.b16 %v1616
        %v1793 = vunpack.c.l.b16 %v1617
        %v1794 = vunpack.c.h.b16 %v1617
        %v1795 = vunpack.c.l.b16 %v1618
        %v1796 = vunpack.c.h.b16 %v1618
        %v1797 = vunpack.c.l.b16 %v1619
        %v1798 = vunpack.c.h.b16 %v1619
        %v1799 = vunpack.c.l.b16 %v1620
        %v1800 = vunpack.c.h.b16 %v1620
        %v1801 = vunpack.c.l.b16 %v1621
        %v1802 = vunpack.c.h.b16 %v1621
        %v1803 = vunpack.c.l.b16 %v1622
        %v1804 = vunpack.c.h.b16 %v1622
        %v1805 = vunpack.c.l.b16 %v1623
        %v1806 = vunpack.c.h.b16 %v1623
        %v1807 = vunpack.c.l.b16 %v1624
        %v1808 = vunpack.c.h.b16 %v1624
        %v1809 = vunpack.c.l.b16 %v1625
        %v1810 = vunpack.c.h.b16 %v1625
        %v1811 = vunpack.c.l.b16 %v1626
        %v1812 = vunpack.c.h.b16 %v1626
        %v1813 = vunpack.c.l.b16 %v1627
        %v1814 = vunpack.c.h.b16 %v1627
        %v1815 = vunpack.c.l.b16 %v1628
        %v1816 = vunpack.c.h.b16 %v1628
        %v1817 = vunpack.c.l.b16 %v1629
        %v1818 = vunpack.c.h.b16 %v1629
        %v1819 = vunpack.c.l.b16 %v1630
        %v1820 = vunpack.c.h.b16 %v1630
        %v1821 = vunpack.c.l.b16 %v1631
        %v1822 = vunpack.c.h.b16 %v1631
        %v1823 = vpack.c.b16 %v1793, %v1791
        %v1824 = vpack.c.b16 %v1794, %v1792
        %v1825 = vpack.c.b16 %v1797, %v1795
        %v1826 = vpack.c.b16 %v1798, %v1796
        %v1827 = vpack.c.b16 %v1801, %v1799
        %v1828 = vpack.c.b16 %v1802, %v1800
        %v1829 = vpack.c.b16 %v1805, %v1803
        %v1830 = vpack.c.b16 %v1806, %v1804
        %v1831 = vpack.c.b16 %v1809, %v1807
        %v1832 = vpack.c.b16 %v1810, %v1808
        %v1833 = vpack.c.b16 %v1813, %v1811
        %v1834 = vpack.c.b16 %v1814, %v1812
        %v1835 = vpack.c.b16 %v1817, %v1815
        %v1836 = vpack.c.b16 %v1818, %v1816
        %v1837 = vpack.c.b16 %v1821, %v1819
        %v1838 = vpack.c.b16 %v1822, %v1820
        %1855 = vmatprep.subr.bf16.mxu0 %v1824
        %1856 = vmatpush1.bf16.msra.mxu0 %v1823
        %1857 = vmatprep.subr.bf16.mxu0 %v1826
        %1858 = vmatpush1.bf16.msra.mxu0 %v1825
        %1859 = vmatprep.subr.bf16.mxu0 %v1828
        %1860 = vmatpush1.bf16.msra.mxu0 %v1827
        %1861 = vmatprep.subr.bf16.mxu0 %v1830
        %1862 = vmatpush1.bf16.msra.mxu0 %v1829
        %1863 = vmatprep.subr.bf16.mxu0 %v1832
        %1864 = vmatpush1.bf16.msra.mxu0 %v1831
        %1865 = vmatprep.subr.bf16.mxu0 %v1834
        %1866 = vmatpush1.bf16.msra.mxu0 %v1833
        %1867 = vmatprep.subr.bf16.mxu0 %v1836
        %1868 = vmatpush1.bf16.msra.mxu0 %v1835
        %1869 = vmatprep.subr.bf16.mxu0 %v1838
        %1870 = vmatpush1.bf16.msra.mxu0 %v1837
        %1871 = vmatprep.subr.bf16.mxu0 0
        %1872 = vmatpush1.bf16.msra.mxu0 0
        %1873 = vmatprep.subr.bf16.mxu0 0
        %1874 = vmatpush1.bf16.msra.mxu0 0
        %1875 = vmatprep.subr.bf16.mxu0 0
        %1876 = vmatpush1.bf16.msra.mxu0 0
        %1877 = vmatprep.subr.bf16.mxu0 0
        %1878 = vmatpush1.bf16.msra.mxu0 0
        %1879 = vmatprep.subr.bf16.mxu0 0
        %1880 = vmatpush1.bf16.msra.mxu0 0
        %1881 = vmatprep.subr.bf16.mxu0 0
        %1882 = vmatpush1.bf16.msra.mxu0 0
        %1883 = vmatprep.subr.bf16.mxu0 0
        %1884 = vmatpush1.bf16.msra.mxu0 0
        %1885 = vmatprep.subr.bf16.mxu0 0
        %1886 = vmatpush1.bf16.msra.mxu0 0
        %1887 = vmatprep.mubr.bf16.mxu0 0
        %1888 = vmatmul.mubr.bf16.gmra.mrb[0].mxu0 %v1615
        %v1889 = vpop.f32.mrb[0].mxu0
        %v1890 = vadd.f32 %v1767, %v1889
        %v1891 = vpop.f32.mrb[0].mxu0
        %v1892 = vadd.f32 %v1769, %v1891
        %v1893 = vpop.f32.mrb[0].mxu0
        %v1894 = vadd.f32 %v1771, %v1893
        %v1895 = vpop.f32.mrb[0].mxu0
        %v1896 = vadd.f32 %v1773, %v1895
        %1897 = vdwg.mxu0
        %v1898 = vld [vmem:[#allocation2 + $0x2] sm:$0xff]
        %v1899 = vld [vmem:[#allocation2 + $0xa] sm:$0xff]
        %v1900 = vpack.c.bf16 %v1899, %v1898
        %s1901 = scalar_lea.vmem [#allocation8], 256
        %v1902 = vld [vmem:[%s1901] sm:$0xff]
        %v1903 = vld [vmem:[%s1901 + $0x8] sm:$0xff]
        %v1904 = vld [vmem:[%s1901 + $0x10] sm:$0xff]
        %v1905 = vld [vmem:[%s1901 + $0x18] sm:$0xff]
        %v1906 = vld [vmem:[%s1901 + $0x20] sm:$0xff]
        %v1907 = vld [vmem:[%s1901 + $0x28] sm:$0xff]
        %v1908 = vld [vmem:[%s1901 + $0x30] sm:$0xff]
        %v1909 = vld [vmem:[%s1901 + $0x38] sm:$0xff]
        %v1910 = vld [vmem:[%s1901 + $0x40] sm:$0xff]
        %v1911 = vld [vmem:[%s1901 + $0x48] sm:$0xff]
        %v1912 = vld [vmem:[%s1901 + $0x50] sm:$0xff]
        %v1913 = vld [vmem:[%s1901 + $0x58] sm:$0xff]
        %v1914 = vld [vmem:[%s1901 + $0x60] sm:$0xff]
        %v1915 = vld [vmem:[%s1901 + $0x68] sm:$0xff]
        %v1916 = vld [vmem:[%s1901 + $0x70] sm:$0xff]
        %v1917 = vld [vmem:[%s1901 + $0x78] sm:$0xff]
        %v1934 = vunpack.c.l.b16 %v1902
        %v1935 = vunpack.c.h.b16 %v1902
        %v1936 = vunpack.c.l.b16 %v1903
        %v1937 = vunpack.c.h.b16 %v1903
        %v1938 = vunpack.c.l.b16 %v1904
        %v1939 = vunpack.c.h.b16 %v1904
        %v1940 = vunpack.c.l.b16 %v1905
        %v1941 = vunpack.c.h.b16 %v1905
        %v1942 = vunpack.c.l.b16 %v1906
        %v1943 = vunpack.c.h.b16 %v1906
        %v1944 = vunpack.c.l.b16 %v1907
        %v1945 = vunpack.c.h.b16 %v1907
        %v1946 = vunpack.c.l.b16 %v1908
        %v1947 = vunpack.c.h.b16 %v1908
        %v1948 = vunpack.c.l.b16 %v1909
        %v1949 = vunpack.c.h.b16 %v1909
        %v1950 = vunpack.c.l.b16 %v1910
        %v1951 = vunpack.c.h.b16 %v1910
        %v1952 = vunpack.c.l.b16 %v1911
        %v1953 = vunpack.c.h.b16 %v1911
        %v1954 = vunpack.c.l.b16 %v1912
        %v1955 = vunpack.c.h.b16 %v1912
        %v1956 = vunpack.c.l.b16 %v1913
        %v1957 = vunpack.c.h.b16 %v1913
        %v1958 = vunpack.c.l.b16 %v1914
        %v1959 = vunpack.c.h.b16 %v1914
        %v1960 = vunpack.c.l.b16 %v1915
        %v1961 = vunpack.c.h.b16 %v1915
        %v1962 = vunpack.c.l.b16 %v1916
        %v1963 = vunpack.c.h.b16 %v1916
        %v1964 = vunpack.c.l.b16 %v1917
        %v1965 = vunpack.c.h.b16 %v1917
        %v1966 = vpack.c.b16 %v1936, %v1934
        %v1967 = vpack.c.b16 %v1937, %v1935
        %v1968 = vpack.c.b16 %v1940, %v1938
        %v1969 = vpack.c.b16 %v1941, %v1939
        %v1970 = vpack.c.b16 %v1944, %v1942
        %v1971 = vpack.c.b16 %v1945, %v1943
        %v1972 = vpack.c.b16 %v1948, %v1946
        %v1973 = vpack.c.b16 %v1949, %v1947
        %v1974 = vpack.c.b16 %v1952, %v1950
        %v1975 = vpack.c.b16 %v1953, %v1951
        %v1976 = vpack.c.b16 %v1956, %v1954
        %v1977 = vpack.c.b16 %v1957, %v1955
        %v1978 = vpack.c.b16 %v1960, %v1958
        %v1979 = vpack.c.b16 %v1961, %v1959
        %v1980 = vpack.c.b16 %v1964, %v1962
        %v1981 = vpack.c.b16 %v1965, %v1963
        %1998 = vmatprep.subr.bf16.mxu0 %v1967
        %1999 = vmatpush1.bf16.msra.mxu0 %v1966
        %2000 = vmatprep.subr.bf16.mxu0 %v1969
        %2001 = vmatpush1.bf16.msra.mxu0 %v1968
        %2002 = vmatprep.subr.bf16.mxu0 %v1971
        %2003 = vmatpush1.bf16.msra.mxu0 %v1970
        %2004 = vmatprep.subr.bf16.mxu0 %v1973
        %2005 = vmatpush1.bf16.msra.mxu0 %v1972
        %2006 = vmatprep.subr.bf16.mxu0 %v1975
        %2007 = vmatpush1.bf16.msra.mxu0 %v1974
        %2008 = vmatprep.subr.bf16.mxu0 %v1977
        %2009 = vmatpush1.bf16.msra.mxu0 %v1976
        %2010 = vmatprep.subr.bf16.mxu0 %v1979
        %2011 = vmatpush1.bf16.msra.mxu0 %v1978
        %2012 = vmatprep.subr.bf16.mxu0 %v1981
        %2013 = vmatpush1.bf16.msra.mxu0 %v1980
        %2014 = vmatprep.subr.bf16.mxu0 0
        %2015 = vmatpush1.bf16.msra.mxu0 0
        %2016 = vmatprep.subr.bf16.mxu0 0
        %2017 = vmatpush1.bf16.msra.mxu0 0
        %2018 = vmatprep.subr.bf16.mxu0 0
        %2019 = vmatpush1.bf16.msra.mxu0 0
        %2020 = vmatprep.subr.bf16.mxu0 0
        %2021 = vmatpush1.bf16.msra.mxu0 0
        %2022 = vmatprep.subr.bf16.mxu0 0
        %2023 = vmatpush1.bf16.msra.mxu0 0
        %2024 = vmatprep.subr.bf16.mxu0 0
        %2025 = vmatpush1.bf16.msra.mxu0 0
        %2026 = vmatprep.subr.bf16.mxu0 0
        %2027 = vmatpush1.bf16.msra.mxu0 0
        %2028 = vmatprep.subr.bf16.mxu0 0
        %2029 = vmatpush1.bf16.msra.mxu0 0
        %2030 = vmatprep.mubr.bf16.mxu0 0
        %2031 = vmatmul.mubr.bf16.gmra.mrb[0].mxu0 %v1900
        %v2032 = vpop.f32.mrb[0].mxu0
        %v2033 = vadd.f32 0.0, %v2032
        %v2034 = vpop.f32.mrb[0].mxu0
        %v2035 = vadd.f32 0.0, %v2034
        %v2036 = vpop.f32.mrb[0].mxu0
        %v2037 = vadd.f32 0.0, %v2036
        %v2038 = vpop.f32.mrb[0].mxu0
        %v2039 = vadd.f32 0.0, %v2038
        %2040 = vdwg.mxu0
        %v2041 = vadd.f32 %v1890, %v2033
        %v2042 = vadd.f32 %v1892, %v2035
        %v2043 = vadd.f32 %v1894, %v2037
        %v2044 = vadd.f32 %v1896, %v2039
        %v2045 = vld [vmem:[#allocation2 + $0x3] sm:$0xff]
        %v2046 = vld [vmem:[#allocation2 + $0xb] sm:$0xff]
        %v2047 = vpack.c.bf16 %v2046, %v2045
        %s2048 = scalar_lea.vmem [#allocation8], 384
        %v2049 = vld [vmem:[%s2048] sm:$0xff]
        %v2050 = vld [vmem:[%s2048 + $0x8] sm:$0xff]
        %v2051 = vld [vmem:[%s2048 + $0x10] sm:$0xff]
        %v2052 = vld [vmem:[%s2048 + $0x18] sm:$0xff]
        %v2053 = vld [vmem:[%s2048 + $0x20] sm:$0xff]
        %v2054 = vld [vmem:[%s2048 + $0x28] sm:$0xff]
        %v2055 = vld [vmem:[%s2048 + $0x30] sm:$0xff]
        %v2056 = vld [vmem:[%s2048 + $0x38] sm:$0xff]
        %v2057 = vld [vmem:[%s2048 + $0x40] sm:$0xff]
        %v2058 = vld [vmem:[%s2048 + $0x48] sm:$0xff]
        %v2059 = vld [vmem:[%s2048 + $0x50] sm:$0xff]
        %v2060 = vld [vmem:[%s2048 + $0x58] sm:$0xff]
        %v2061 = vld [vmem:[%s2048 + $0x60] sm:$0xff]
        %v2062 = vld [vmem:[%s2048 + $0x68] sm:$0xff]
        %v2063 = vld [vmem:[%s2048 + $0x70] sm:$0xff]
        %v2064 = vld [vmem:[%s2048 + $0x78] sm:$0xff]
        %v2081 = vunpack.c.l.b16 %v2049
        %v2082 = vunpack.c.h.b16 %v2049
        %v2083 = vunpack.c.l.b16 %v2050
        %v2084 = vunpack.c.h.b16 %v2050
        %v2085 = vunpack.c.l.b16 %v2051
        %v2086 = vunpack.c.h.b16 %v2051
        %v2087 = vunpack.c.l.b16 %v2052
        %v2088 = vunpack.c.h.b16 %v2052
        %v2089 = vunpack.c.l.b16 %v2053
        %v2090 = vunpack.c.h.b16 %v2053
        %v2091 = vunpack.c.l.b16 %v2054
        %v2092 = vunpack.c.h.b16 %v2054
        %v2093 = vunpack.c.l.b16 %v2055
        %v2094 = vunpack.c.h.b16 %v2055
        %v2095 = vunpack.c.l.b16 %v2056
        %v2096 = vunpack.c.h.b16 %v2056
        %v2097 = vunpack.c.l.b16 %v2057
        %v2098 = vunpack.c.h.b16 %v2057
        %v2099 = vunpack.c.l.b16 %v2058
        %v2100 = vunpack.c.h.b16 %v2058
        %v2101 = vunpack.c.l.b16 %v2059
        %v2102 = vunpack.c.h.b16 %v2059
        %v2103 = vunpack.c.l.b16 %v2060
        %v2104 = vunpack.c.h.b16 %v2060
        %v2105 = vunpack.c.l.b16 %v2061
        %v2106 = vunpack.c.h.b16 %v2061
        %v2107 = vunpack.c.l.b16 %v2062
        %v2108 = vunpack.c.h.b16 %v2062
        %v2109 = vunpack.c.l.b16 %v2063
        %v2110 = vunpack.c.h.b16 %v2063
        %v2111 = vunpack.c.l.b16 %v2064
        %v2112 = vunpack.c.h.b16 %v2064
        %v2113 = vpack.c.b16 %v2083, %v2081
        %v2114 = vpack.c.b16 %v2084, %v2082
        %v2115 = vpack.c.b16 %v2087, %v2085
        %v2116 = vpack.c.b16 %v2088, %v2086
        %v2117 = vpack.c.b16 %v2091, %v2089
        %v2118 = vpack.c.b16 %v2092, %v2090
        %v2119 = vpack.c.b16 %v2095, %v2093
        %v2120 = vpack.c.b16 %v2096, %v2094
        %v2121 = vpack.c.b16 %v2099, %v2097
        %v2122 = vpack.c.b16 %v2100, %v2098
        %v2123 = vpack.c.b16 %v2103, %v2101
        %v2124 = vpack.c.b16 %v2104, %v2102
        %v2125 = vpack.c.b16 %v2107, %v2105
        %v2126 = vpack.c.b16 %v2108, %v2106
        %v2127 = vpack.c.b16 %v2111, %v2109
        %v2128 = vpack.c.b16 %v2112, %v2110
        %2145 = vmatprep.subr.bf16.mxu0 %v2114
        %2146 = vmatpush1.bf16.msra.mxu0 %v2113
        %2147 = vmatprep.subr.bf16.mxu0 %v2116
        %2148 = vmatpush1.bf16.msra.mxu0 %v2115
        %2149 = vmatprep.subr.bf16.mxu0 %v2118
        %2150 = vmatpush1.bf16.msra.mxu0 %v2117
        %2151 = vmatprep.subr.bf16.mxu0 %v2120
        %2152 = vmatpush1.bf16.msra.mxu0 %v2119
        %2153 = vmatprep.subr.bf16.mxu0 %v2122
        %2154 = vmatpush1.bf16.msra.mxu0 %v2121
        %2155 = vmatprep.subr.bf16.mxu0 %v2124
        %2156 = vmatpush1.bf16.msra.mxu0 %v2123
        %2157 = vmatprep.subr.bf16.mxu0 %v2126
        %2158 = vmatpush1.bf16.msra.mxu0 %v2125
        %2159 = vmatprep.subr.bf16.mxu0 %v2128
        %2160 = vmatpush1.bf16.msra.mxu0 %v2127
        %2161 = vmatprep.subr.bf16.mxu0 0
        %2162 = vmatpush1.bf16.msra.mxu0 0
        %2163 = vmatprep.subr.bf16.mxu0 0
        %2164 = vmatpush1.bf16.msra.mxu0 0
        %2165 = vmatprep.subr.bf16.mxu0 0
        %2166 = vmatpush1.bf16.msra.mxu0 0
        %2167 = vmatprep.subr.bf16.mxu0 0
        %2168 = vmatpush1.bf16.msra.mxu0 0
        %2169 = vmatprep.subr.bf16.mxu0 0
        %2170 = vmatpush1.bf16.msra.mxu0 0
        %2171 = vmatprep.subr.bf16.mxu0 0
        %2172 = vmatpush1.bf16.msra.mxu0 0
        %2173 = vmatprep.subr.bf16.mxu0 0
        %2174 = vmatpush1.bf16.msra.mxu0 0
        %2175 = vmatprep.subr.bf16.mxu0 0
        %2176 = vmatpush1.bf16.msra.mxu0 0
        %2177 = vmatprep.mubr.bf16.mxu0 0
        %2178 = vmatmul.mubr.bf16.gmra.mrb[0].mxu0 %v2047
        %v2179 = vpop.f32.mrb[0].mxu0
        %v2180 = vadd.f32 0.0, %v2179
        %v2181 = vpop.f32.mrb[0].mxu0
        %v2182 = vadd.f32 0.0, %v2181
        %v2183 = vpop.f32.mrb[0].mxu0
        %v2184 = vadd.f32 0.0, %v2183
        %v2185 = vpop.f32.mrb[0].mxu0
        %v2186 = vadd.f32 0.0, %v2185
        %2187 = vdwg.mxu0
        %v2188 = vadd.f32 %v2041, %v2180
        %v2189 = vadd.f32 %v2042, %v2182
        %v2190 = vadd.f32 %v2043, %v2184
        %v2191 = vadd.f32 %v2044, %v2186
        %v2192 = vld [vmem:[#allocation2 + $0x4] sm:$0xff]
        %v2193 = vld [vmem:[#allocation2 + $0xc] sm:$0xff]
        %v2194 = vpack.c.bf16 %v2193, %v2192
        %s2195 = scalar_lea.vmem [#allocation8], 512
        %v2196 = vld [vmem:[%s2195] sm:$0xff]
        %v2197 = vld [vmem:[%s2195 + $0x8] sm:$0xff]
        %v2198 = vld [vmem:[%s2195 + $0x10] sm:$0xff]
        %v2199 = vld [vmem:[%s2195 + $0x18] sm:$0xff]
        %v2200 = vld [vmem:[%s2195 + $0x20] sm:$0xff]
        %v2201 = vld [vmem:[%s2195 + $0x28] sm:$0xff]
        %v2202 = vld [vmem:[%s2195 + $0x30] sm:$0xff]
        %v2203 = vld [vmem:[%s2195 + $0x38] sm:$0xff]
        %v2204 = vld [vmem:[%s2195 + $0x40] sm:$0xff]
        %v2205 = vld [vmem:[%s2195 + $0x48] sm:$0xff]
        %v2206 = vld [vmem:[%s2195 + $0x50] sm:$0xff]
        %v2207 = vld [vmem:[%s2195 + $0x58] sm:$0xff]
        %v2208 = vld [vmem:[%s2195 + $0x60] sm:$0xff]
        %v2209 = vld [vmem:[%s2195 + $0x68] sm:$0xff]
        %v2210 = vld [vmem:[%s2195 + $0x70] sm:$0xff]
        %v2211 = vld [vmem:[%s2195 + $0x78] sm:$0xff]
        %v2228 = vunpack.c.l.b16 %v2196
        %v2229 = vunpack.c.h.b16 %v2196
        %v2230 = vunpack.c.l.b16 %v2197
        %v2231 = vunpack.c.h.b16 %v2197
        %v2232 = vunpack.c.l.b16 %v2198
        %v2233 = vunpack.c.h.b16 %v2198
        %v2234 = vunpack.c.l.b16 %v2199
        %v2235 = vunpack.c.h.b16 %v2199
        %v2236 = vunpack.c.l.b16 %v2200
        %v2237 = vunpack.c.h.b16 %v2200
        %v2238 = vunpack.c.l.b16 %v2201
        %v2239 = vunpack.c.h.b16 %v2201
        %v2240 = vunpack.c.l.b16 %v2202
        %v2241 = vunpack.c.h.b16 %v2202
        %v2242 = vunpack.c.l.b16 %v2203
        %v2243 = vunpack.c.h.b16 %v2203
        %v2244 = vunpack.c.l.b16 %v2204
        %v2245 = vunpack.c.h.b16 %v2204
        %v2246 = vunpack.c.l.b16 %v2205
        %v2247 = vunpack.c.h.b16 %v2205
        %v2248 = vunpack.c.l.b16 %v2206
        %v2249 = vunpack.c.h.b16 %v2206
        %v2250 = vunpack.c.l.b16 %v2207
        %v2251 = vunpack.c.h.b16 %v2207
        %v2252 = vunpack.c.l.b16 %v2208
        %v2253 = vunpack.c.h.b16 %v2208
        %v2254 = vunpack.c.l.b16 %v2209
        %v2255 = vunpack.c.h.b16 %v2209
        %v2256 = vunpack.c.l.b16 %v2210
        %v2257 = vunpack.c.h.b16 %v2210
        %v2258 = vunpack.c.l.b16 %v2211
        %v2259 = vunpack.c.h.b16 %v2211
        %v2260 = vpack.c.b16 %v2230, %v2228
        %v2261 = vpack.c.b16 %v2231, %v2229
        %v2262 = vpack.c.b16 %v2234, %v2232
        %v2263 = vpack.c.b16 %v2235, %v2233
        %v2264 = vpack.c.b16 %v2238, %v2236
        %v2265 = vpack.c.b16 %v2239, %v2237
        %v2266 = vpack.c.b16 %v2242, %v2240
        %v2267 = vpack.c.b16 %v2243, %v2241
        %v2268 = vpack.c.b16 %v2246, %v2244
        %v2269 = vpack.c.b16 %v2247, %v2245
        %v2270 = vpack.c.b16 %v2250, %v2248
        %v2271 = vpack.c.b16 %v2251, %v2249
        %v2272 = vpack.c.b16 %v2254, %v2252
        %v2273 = vpack.c.b16 %v2255, %v2253
        %v2274 = vpack.c.b16 %v2258, %v2256
        %v2275 = vpack.c.b16 %v2259, %v2257
        %2292 = vmatprep.subr.bf16.mxu0 %v2261
        %2293 = vmatpush1.bf16.msra.mxu0 %v2260
        %2294 = vmatprep.subr.bf16.mxu0 %v2263
        %2295 = vmatpush1.bf16.msra.mxu0 %v2262
        %2296 = vmatprep.subr.bf16.mxu0 %v2265
        %2297 = vmatpush1.bf16.msra.mxu0 %v2264
        %2298 = vmatprep.subr.bf16.mxu0 %v2267
        %2299 = vmatpush1.bf16.msra.mxu0 %v2266
        %2300 = vmatprep.subr.bf16.mxu0 %v2269
        %2301 = vmatpush1.bf16.msra.mxu0 %v2268
        %2302 = vmatprep.subr.bf16.mxu0 %v2271
        %2303 = vmatpush1.bf16.msra.mxu0 %v2270
        %2304 = vmatprep.subr.bf16.mxu0 %v2273
        %2305 = vmatpush1.bf16.msra.mxu0 %v2272
        %2306 = vmatprep.subr.bf16.mxu0 %v2275
        %2307 = vmatpush1.bf16.msra.mxu0 %v2274
        %2308 = vmatprep.subr.bf16.mxu0 0
        %2309 = vmatpush1.bf16.msra.mxu0 0
        %2310 = vmatprep.subr.bf16.mxu0 0
        %2311 = vmatpush1.bf16.msra.mxu0 0
        %2312 = vmatprep.subr.bf16.mxu0 0
        %2313 = vmatpush1.bf16.msra.mxu0 0
        %2314 = vmatprep.subr.bf16.mxu0 0
        %2315 = vmatpush1.bf16.msra.mxu0 0
        %2316 = vmatprep.subr.bf16.mxu0 0
        %2317 = vmatpush1.bf16.msra.mxu0 0
        %2318 = vmatprep.subr.bf16.mxu0 0
        %2319 = vmatpush1.bf16.msra.mxu0 0
        %2320 = vmatprep.subr.bf16.mxu0 0
        %2321 = vmatpush1.bf16.msra.mxu0 0
        %2322 = vmatprep.subr.bf16.mxu0 0
        %2323 = vmatpush1.bf16.msra.mxu0 0
        %2324 = vmatprep.mubr.bf16.mxu0 0
        %2325 = vmatmul.mubr.bf16.gmra.mrb[0].mxu0 %v2194
        %v2326 = vpop.f32.mrb[0].mxu0
        %v2327 = vadd.f32 0.0, %v2326
        %v2328 = vpop.f32.mrb[0].mxu0
        %v2329 = vadd.f32 0.0, %v2328
        %v2330 = vpop.f32.mrb[0].mxu0
        %v2331 = vadd.f32 0.0, %v2330
        %v2332 = vpop.f32.mrb[0].mxu0
        %v2333 = vadd.f32 0.0, %v2332
        %2334 = vdwg.mxu0
        %v2335 = vadd.f32 %v2188, %v2327
        %v2336 = vadd.f32 %v2189, %v2329
        %v2337 = vadd.f32 %v2190, %v2331
        %v2338 = vadd.f32 %v2191, %v2333
        %v2340 = vlaneseq
        %v2341 = vshrl.u32 %v2340, 7
        %v2342 = vsub.s32 0, %v2341
        %v2343 = vrot.slane %v1606, %v2342
        %v2344 = vlaneseq
        %v2345 = vshrl.u32 %v2344, 7
        %v2346 = vsub.s32 1, %v2345
        %v2347 = vrot.slane %v1606, %v2346
        %v2350 = vadd.f32 %v2335, %v2343
        %v2351 = vadd.f32 %v2336, %v2347
        %v2352 = vadd.f32 %v2337, %v2343
        %v2353 = vadd.f32 %v2338, %v2347
        %v2354 = vadd.f32 %v2350, %v2352
        %v2355 = vrot.slane %v2354, 4
        %v2356 = vadd.f32 %v2354, %v2355
        %v2357 = vrot.slane %v2356, 2
        %v2358 = vadd.f32 %v2356, %v2357
        %v2359 = vrot.slane %v2358, 1
        %v2360 = vadd.f32 %v2358, %v2359
        %v2361 = vadd.f32 %v2351, %v2353
        %v2362 = vrot.slane %v2361, 4
        %v2363 = vadd.f32 %v2361, %v2362
        %v2364 = vrot.slane %v2363, 2
        %v2365 = vadd.f32 %v2363, %v2364
        %v2366 = vrot.slane %v2365, 1
        %v2367 = vadd.f32 %v2365, %v2366
        %2368 = vrot.lane.b32.xlu0 %v2360, 16
        %v2369 = vpop.permute.xlu0 %2368
        %2370 = vrot.lane.b32.xlu0 %v2367, 16
        %v2371 = vpop.permute.xlu0 %2370
        %v2372 = vlaneseq
        %v2373 = vand.u32 %v2372, 127
        %vm2374 = vcmp.lt.s32.totalorder %v2373, 16
        %v2375 = vsel %vm2374, %v2369, %v2371
        %v2376 = vsel %vm2374, %v2371, %v2369
        %v2377 = vadd.f32 %v2360, %v2376
        %v2378 = vadd.f32 %v2367, %v2375
        %2379 = vrot.lane.b32.xlu0 %v2376, 16
        %v2380 = vpop.permute.xlu0 %2379
        %2381 = vrot.lane.b32.xlu0 %v2375, 16
        %v2382 = vpop.permute.xlu0 %2381
        %v2383 = vsel %vm2374, %v2380, %v2382
        %v2384 = vsel %vm2374, %v2382, %v2380
        %v2385 = vadd.f32 %v2377, %v2384
        %v2386 = vadd.f32 %v2378, %v2383
        %2387 = vrot.lane.b32.xlu0 %v2384, 16
        %v2388 = vpop.permute.xlu0 %2387
        %2389 = vrot.lane.b32.xlu0 %v2383, 16
        %v2390 = vpop.permute.xlu0 %2389
        %v2391 = vsel %vm2374, %v2388, %v2390
        %v2392 = vsel %vm2374, %v2390, %v2388
        %v2393 = vadd.f32 %v2385, %v2392
        %v2394 = vadd.f32 %v2386, %v2391
        %2395 = vrot.lane.b32.xlu0 %v2392, 16
        %v2396 = vpop.permute.xlu0 %2395
        %2397 = vrot.lane.b32.xlu0 %v2391, 16
        %v2398 = vpop.permute.xlu0 %2397
        %v2399 = vsel %vm2374, %v2396, %v2398
        %v2400 = vsel %vm2374, %v2398, %v2396
        %v2401 = vadd.f32 %v2393, %v2400
        %v2402 = vadd.f32 %v2394, %v2399
        %2403 = vrot.lane.b32.xlu0 %v2400, 16
        %v2404 = vpop.permute.xlu0 %2403
        %2405 = vrot.lane.b32.xlu0 %v2399, 16
        %v2406 = vpop.permute.xlu0 %2405
        %v2407 = vsel %vm2374, %v2404, %v2406
        %v2408 = vsel %vm2374, %v2406, %v2404
        %v2409 = vadd.f32 %v2401, %v2408
        %v2410 = vadd.f32 %v2402, %v2407
        %2411 = vrot.lane.b32.xlu0 %v2408, 16
        %v2412 = vpop.permute.xlu0 %2411
        %2413 = vrot.lane.b32.xlu0 %v2407, 16
        %v2414 = vpop.permute.xlu0 %2413
        %v2415 = vsel %vm2374, %v2412, %v2414
        %v2416 = vsel %vm2374, %v2414, %v2412
        %v2417 = vadd.f32 %v2409, %v2416
        %v2418 = vadd.f32 %v2410, %v2415
        %2419 = vrot.lane.b32.xlu0 %v2416, 16
        %v2420 = vpop.permute.xlu0 %2419
        %2421 = vrot.lane.b32.xlu0 %v2415, 16
        %v2422 = vpop.permute.xlu0 %2421
        %v2423 = vsel %vm2374, %v2420, %v2422
        %v2424 = vsel %vm2374, %v2422, %v2420
        %v2425 = vadd.f32 %v2417, %v2424
        %v2426 = vadd.f32 %v2418, %v2423
        %2427 = vrot.lane.b32.xlu0 %v2424, 16
        %v2428 = vpop.permute.xlu0 %2427
        %2429 = vrot.lane.b32.xlu0 %v2423, 16
        %v2430 = vpop.permute.xlu0 %2429
        %v2431 = vsel %vm2374, %v2428, %v2430
        %v2432 = vsel %vm2374, %v2430, %v2428
        %v2433 = vadd.f32 %v2425, %v2432
        %v2434 = vadd.f32 %v2426, %v2431
        %2435 = vrot.lane.b32.xlu0 %v2432, 16
        %v2436 = vpop.permute.xlu0 %2435
        %2437 = vrot.lane.b32.xlu0 %v2431, 16
        %v2438 = vpop.permute.xlu0 %2437
        %v2439 = vsel %vm2374, %v2436, %v2438
        %v2440 = vsel %vm2374, %v2438, %v2436
        %v2441 = vadd.f32 %v2433, %v2440
        %v2442 = vadd.f32 %v2434, %v2439
        %2443 = vrot.lane.b32.xlu0 %v2440, 16
        %v2444 = vpop.permute.xlu0 %2443
        %2445 = vrot.lane.b32.xlu0 %v2439, 16
        %v2446 = vpop.permute.xlu0 %2445
        %v2447 = vsel %vm2374, %v2444, %v2446
        %v2448 = vsel %vm2374, %v2446, %v2444
        %v2449 = vadd.f32 %v2441, %v2448
        %v2450 = vadd.f32 %v2442, %v2447
        %2451 = vrot.lane.b32.xlu0 %v2448, 16
        %v2452 = vpop.permute.xlu0 %2451
        %2453 = vrot.lane.b32.xlu0 %v2447, 16
        %v2454 = vpop.permute.xlu0 %2453
        %v2455 = vsel %vm2374, %v2452, %v2454
        %v2456 = vsel %vm2374, %v2454, %v2452
        %v2457 = vadd.f32 %v2449, %v2456
        %v2458 = vadd.f32 %v2450, %v2455
        %2459 = vrot.lane.b32.xlu0 %v2456, 16
        %v2460 = vpop.permute.xlu0 %2459
        %2461 = vrot.lane.b32.xlu0 %v2455, 16
        %v2462 = vpop.permute.xlu0 %2461
        %v2463 = vsel %vm2374, %v2460, %v2462
        %v2464 = vsel %vm2374, %v2462, %v2460
        %v2465 = vadd.f32 %v2457, %v2464
        %v2466 = vadd.f32 %v2458, %v2463
        %2467 = vrot.lane.b32.xlu0 %v2464, 16
        %v2468 = vpop.permute.xlu0 %2467
        %2469 = vrot.lane.b32.xlu0 %v2463, 16
        %v2470 = vpop.permute.xlu0 %2469
        %v2471 = vsel %vm2374, %v2468, %v2470
        %v2472 = vsel %vm2374, %v2470, %v2468
        %v2473 = vadd.f32 %v2465, %v2472
        %v2474 = vadd.f32 %v2466, %v2471
        %2475 = vrot.lane.b32.xlu0 %v2472, 16
        %v2476 = vpop.permute.xlu0 %2475
        %2477 = vrot.lane.b32.xlu0 %v2471, 16
        %v2478 = vpop.permute.xlu0 %2477
        %v2479 = vsel %vm2374, %v2476, %v2478
        %v2480 = vsel %vm2374, %v2478, %v2476
        %v2481 = vadd.f32 %v2473, %v2480
        %v2482 = vadd.f32 %v2474, %v2479
        %2483 = vrot.lane.b32.xlu0 %v2480, 16
        %v2484 = vpop.permute.xlu0 %2483
        %2485 = vrot.lane.b32.xlu0 %v2479, 16
        %v2486 = vpop.permute.xlu0 %2485
        %v2487 = vsel %vm2374, %v2484, %v2486
        %v2488 = vsel %vm2374, %v2486, %v2484
        %v2489 = vadd.f32 %v2481, %v2488
        %v2490 = vadd.f32 %v2482, %v2487
        %v2491 = vmul.f32 %v2489, 0.00390625
        %v2492 = vmul.f32 %v2490, 0.00390625
        %v2493 = vlaneseq
        %v2494 = vshrl.u32 %v2493, 7
        %v2495 = vsub.s32 0, %v2494
        %v2496 = vrot.slane %v2491, %v2495
        %v2497 = vlaneseq
        %v2498 = vshrl.u32 %v2497, 7
        %v2499 = vsub.s32 0, %v2498
        %v2500 = vrot.slane %v2492, %v2499
        %v2501 = vsub.f32 %v2350, %v2496
        %v2502 = vsub.f32 %v2351, %v2500
        %v2503 = vsub.f32 %v2352, %v2496
        %v2504 = vsub.f32 %v2353, %v2500
        %v2505 = vmul.f32 %v2501, %v2501
        %v2506 = vmul.f32 %v2502, %v2502
        %v2507 = vmul.f32 %v2503, %v2503
        %v2508 = vmul.f32 %v2504, %v2504
        %v2509 = vadd.f32 %v2505, %v2507
        %v2510 = vrot.slane %v2509, 4
        %v2511 = vadd.f32 %v2509, %v2510
        %v2512 = vrot.slane %v2511, 2
        %v2513 = vadd.f32 %v2511, %v2512
        %v2514 = vrot.slane %v2513, 1
        %v2515 = vadd.f32 %v2513, %v2514
        %v2516 = vadd.f32 %v2506, %v2508
        %v2517 = vrot.slane %v2516, 4
        %v2518 = vadd.f32 %v2516, %v2517
        %v2519 = vrot.slane %v2518, 2
        %v2520 = vadd.f32 %v2518, %v2519
        %v2521 = vrot.slane %v2520, 1
        %v2522 = vadd.f32 %v2520, %v2521
        %2523 = vrot.lane.b32.xlu0 %v2515, 16
        %v2524 = vpop.permute.xlu0 %2523
        %2525 = vrot.lane.b32.xlu0 %v2522, 16
        %v2526 = vpop.permute.xlu0 %2525
        %v2527 = vsel %vm2374, %v2524, %v2526
        %v2528 = vsel %vm2374, %v2526, %v2524
        %v2529 = vadd.f32 %v2515, %v2528
        %v2530 = vadd.f32 %v2522, %v2527
        %2531 = vrot.lane.b32.xlu0 %v2528, 16
        %v2532 = vpop.permute.xlu0 %2531
        %2533 = vrot.lane.b32.xlu0 %v2527, 16
        %v2534 = vpop.permute.xlu0 %2533
        %v2535 = vsel %vm2374, %v2532, %v2534
        %v2536 = vsel %vm2374, %v2534, %v2532
        %v2537 = vadd.f32 %v2529, %v2536
        %v2538 = vadd.f32 %v2530, %v2535
        %2539 = vrot.lane.b32.xlu0 %v2536, 16
        %v2540 = vpop.permute.xlu0 %2539
        %2541 = vrot.lane.b32.xlu0 %v2535, 16
        %v2542 = vpop.permute.xlu0 %2541
        %v2543 = vsel %vm2374, %v2540, %v2542
        %v2544 = vsel %vm2374, %v2542, %v2540
        %v2545 = vadd.f32 %v2537, %v2544
        %v2546 = vadd.f32 %v2538, %v2543
        %2547 = vrot.lane.b32.xlu0 %v2544, 16
        %v2548 = vpop.permute.xlu0 %2547
        %2549 = vrot.lane.b32.xlu0 %v2543, 16
        %v2550 = vpop.permute.xlu0 %2549
        %v2551 = vsel %vm2374, %v2548, %v2550
        %v2552 = vsel %vm2374, %v2550, %v2548
        %v2553 = vadd.f32 %v2545, %v2552
        %v2554 = vadd.f32 %v2546, %v2551
        %2555 = vrot.lane.b32.xlu0 %v2552, 16
        %v2556 = vpop.permute.xlu0 %2555
        %2557 = vrot.lane.b32.xlu0 %v2551, 16
        %v2558 = vpop.permute.xlu0 %2557
        %v2559 = vsel %vm2374, %v2556, %v2558
        %v2560 = vsel %vm2374, %v2558, %v2556
        %v2561 = vadd.f32 %v2553, %v2560
        %v2562 = vadd.f32 %v2554, %v2559
        %2563 = vrot.lane.b32.xlu0 %v2560, 16
        %v2564 = vpop.permute.xlu0 %2563
        %2565 = vrot.lane.b32.xlu0 %v2559, 16
        %v2566 = vpop.permute.xlu0 %2565
        %v2567 = vsel %vm2374, %v2564, %v2566
        %v2568 = vsel %vm2374, %v2566, %v2564
        %v2569 = vadd.f32 %v2561, %v2568
        %v2570 = vadd.f32 %v2562, %v2567
        %2571 = vrot.lane.b32.xlu0 %v2568, 16
        %v2572 = vpop.permute.xlu0 %2571
        %2573 = vrot.lane.b32.xlu0 %v2567, 16
        %v2574 = vpop.permute.xlu0 %2573
        %v2575 = vsel %vm2374, %v2572, %v2574
        %v2576 = vsel %vm2374, %v2574, %v2572
        %v2577 = vadd.f32 %v2569, %v2576
        %v2578 = vadd.f32 %v2570, %v2575
        %2579 = vrot.lane.b32.xlu0 %v2576, 16
        %v2580 = vpop.permute.xlu0 %2579
        %2581 = vrot.lane.b32.xlu0 %v2575, 16
        %v2582 = vpop.permute.xlu0 %2581
        %v2583 = vsel %vm2374, %v2580, %v2582
        %v2584 = vsel %vm2374, %v2582, %v2580
        %v2585 = vadd.f32 %v2577, %v2584
        %v2586 = vadd.f32 %v2578, %v2583
        %2587 = vrot.lane.b32.xlu0 %v2584, 16
        %v2588 = vpop.permute.xlu0 %2587
        %2589 = vrot.lane.b32.xlu0 %v2583, 16
        %v2590 = vpop.permute.xlu0 %2589
        %v2591 = vsel %vm2374, %v2588, %v2590
        %v2592 = vsel %vm2374, %v2590, %v2588
        %v2593 = vadd.f32 %v2585, %v2592
        %v2594 = vadd.f32 %v2586, %v2591
        %2595 = vrot.lane.b32.xlu0 %v2592, 16
        %v2596 = vpop.permute.xlu0 %2595
        %2597 = vrot.lane.b32.xlu0 %v2591, 16
        %v2598 = vpop.permute.xlu0 %2597
        %v2599 = vsel %vm2374, %v2596, %v2598
        %v2600 = vsel %vm2374, %v2598, %v2596
        %v2601 = vadd.f32 %v2593, %v2600
        %v2602 = vadd.f32 %v2594, %v2599
        %2603 = vrot.lane.b32.xlu0 %v2600, 16
        %v2604 = vpop.permute.xlu0 %2603
        %2605 = vrot.lane.b32.xlu0 %v2599, 16
        %v2606 = vpop.permute.xlu0 %2605
        %v2607 = vsel %vm2374, %v2604, %v2606
        %v2608 = vsel %vm2374, %v2606, %v2604
        %v2609 = vadd.f32 %v2601, %v2608
        %v2610 = vadd.f32 %v2602, %v2607
        %2611 = vrot.lane.b32.xlu0 %v2608, 16
        %v2612 = vpop.permute.xlu0 %2611
        %2613 = vrot.lane.b32.xlu0 %v2607, 16
        %v2614 = vpop.permute.xlu0 %2613
        %v2615 = vsel %vm2374, %v2612, %v2614
        %v2616 = vsel %vm2374, %v2614, %v2612
        %v2617 = vadd.f32 %v2609, %v2616
        %v2618 = vadd.f32 %v2610, %v2615
        %2619 = vrot.lane.b32.xlu0 %v2616, 16
        %v2620 = vpop.permute.xlu0 %2619
        %2621 = vrot.lane.b32.xlu0 %v2615, 16
        %v2622 = vpop.permute.xlu0 %2621
        %v2623 = vsel %vm2374, %v2620, %v2622
        %v2624 = vsel %vm2374, %v2622, %v2620
        %v2625 = vadd.f32 %v2617, %v2624
        %v2626 = vadd.f32 %v2618, %v2623
        %2627 = vrot.lane.b32.xlu0 %v2624, 16
        %v2628 = vpop.permute.xlu0 %2627
        %2629 = vrot.lane.b32.xlu0 %v2623, 16
        %v2630 = vpop.permute.xlu0 %2629
        %v2631 = vsel %vm2374, %v2628, %v2630
        %v2632 = vsel %vm2374, %v2630, %v2628
        %v2633 = vadd.f32 %v2625, %v2632
        %v2634 = vadd.f32 %v2626, %v2631
        %2635 = vrot.lane.b32.xlu0 %v2632, 16
        %v2636 = vpop.permute.xlu0 %2635
        %2637 = vrot.lane.b32.xlu0 %v2631, 16
        %v2638 = vpop.permute.xlu0 %2637
        %v2639 = vsel %vm2374, %v2636, %v2638
        %v2640 = vsel %vm2374, %v2638, %v2636
        %v2641 = vadd.f32 %v2633, %v2640
        %v2642 = vadd.f32 %v2634, %v2639
        %v2643 = vmul.f32 %v2641, 0.00390625
        %v2644 = vmul.f32 %v2642, 0.00390625
        %v2645 = vadd.f32 %v2643, 1e-05
        %v2646 = vadd.f32 %v2644, 1e-05
        %v2647 = vrsqrt.pop %v2645
        %v2648 = vrsqrt.pop %v2646
        %v2649 = vlaneseq
        %v2650 = vshrl.u32 %v2649, 7
        %v2651 = vsub.s32 0, %v2650
        %v2652 = vrot.slane %v2647, %v2651
        %v2653 = vlaneseq
        %v2654 = vshrl.u32 %v2653, 7
        %v2655 = vsub.s32 0, %v2654
        %v2656 = vrot.slane %v2648, %v2655
        %v2657 = vmul.f32 %v2501, %v2652
        %v2658 = vmul.f32 %v2502, %v2656
        %v2659 = vmul.f32 %v2503, %v2652
        %v2660 = vmul.f32 %v2504, %v2656
        %v2661 = vmax.f32 %v2657, 0.0
        %v2662 = vmax.f32 %v2658, 0.0
        %v2663 = vmax.f32 %v2659, 0.0
        %v2664 = vmax.f32 %v2660, 0.0
        %s2665 = scalar_lea.vmem [#allocation14], 32
        %v2666 = vld [vmem:[%s2665] sm:$0xff]
        %s2667 = scalar_lea.vmem [#allocation14], 48
        %v2668 = vld [vmem:[%s2667] sm:$0xff]
        %vm2669 = vcmask 130048
        %v2671 = vsel %vm2669, %v2666, 0
        %2673 = vmatprep.subr.mxu0 %v2662
        %2674 = vmatpush1.msra.mxu0 %v2661
        %2675 = vmatprep.subr.mxu0 %v2664
        %2676 = vmatpush1.msra.mxu0 %v2663
        %2677 = vmatprep.subr.mxu0 0.0
        %2678 = vmatpush1.msra.mxu0 0.0
        %2679 = vmatprep.subr.mxu0 0.0
        %2680 = vmatpush1.msra.mxu0 0.0
        %2681 = vmatprep.subr.mxu0 0.0
        %2682 = vmatpush1.msra.mxu0 0.0
        %2683 = vmatprep.subr.mxu0 0.0
        %2684 = vmatpush1.msra.mxu0 0.0
        %2685 = vmatprep.subr.mxu0 0.0
        %2686 = vmatpush1.msra.mxu0 0.0
        %2687 = vmatprep.subr.mxu0 0.0
        %2688 = vmatpush1.msra.mxu0 0.0
        %2689 = vmatprep.subr.mxu0 0.0
        %2690 = vmatpush1.msra.mxu0 0.0
        %2691 = vmatprep.subr.mxu0 0.0
        %2692 = vmatpush1.msra.mxu0 0.0
        %2693 = vmatprep.subr.mxu0 0.0
        %2694 = vmatpush1.msra.mxu0 0.0
        %2695 = vmatprep.subr.mxu0 0.0
        %2696 = vmatpush1.msra.mxu0 0.0
        %2697 = vmatprep.subr.mxu0 0.0
        %2698 = vmatpush1.msra.mxu0 0.0
        %2699 = vmatprep.subr.mxu0 0.0
        %2700 = vmatpush1.msra.mxu0 0.0
        %2701 = vmatprep.subr.mxu0 0.0
        %2702 = vmatpush1.msra.mxu0 0.0
        %2703 = vmatprep.subr.mxu0 0.0
        %2704 = vmatpush1.msra.mxu0 0.0
        %2705 = vmatprep.subr.mxu0 0.0
        %2706 = vmatpush1.msra.mxu0 0.0
        %2707 = vmatprep.subr.mxu0 0.0
        %2708 = vmatpush1.msra.mxu0 0.0
        %2709 = vmatprep.subr.mxu0 0.0
        %2710 = vmatpush1.msra.mxu0 0.0
        %2711 = vmatprep.subr.mxu0 0.0
        %2712 = vmatpush1.msra.mxu0 0.0
        %2713 = vmatprep.subr.mxu0 0.0
        %2714 = vmatpush1.msra.mxu0 0.0
        %2715 = vmatprep.subr.mxu0 0.0
        %2716 = vmatpush1.msra.mxu0 0.0
        %2717 = vmatprep.subr.mxu0 0.0
        %2718 = vmatpush1.msra.mxu0 0.0
        %2719 = vmatprep.subr.mxu0 0.0
        %2720 = vmatpush1.msra.mxu0 0.0
        %2721 = vmatprep.subr.mxu0 0.0
        %2722 = vmatpush1.msra.mxu0 0.0
        %2723 = vmatprep.subr.mxu0 0.0
        %2724 = vmatpush1.msra.mxu0 0.0
        %2725 = vmatprep.subr.mxu0 0.0
        %2726 = vmatpush1.msra.mxu0 0.0
        %2727 = vmatprep.subr.mxu0 0.0
        %2728 = vmatpush1.msra.mxu0 0.0
        %2729 = vmatprep.subr.mxu0 0.0
        %2730 = vmatpush1.msra.mxu0 0.0
        %2731 = vmatprep.subr.mxu0 0.0
        %2732 = vmatpush1.msra.mxu0 0.0
        %2733 = vmatprep.subr.mxu0 0.0
        %2734 = vmatpush1.msra.mxu0 0.0
        %2735 = vmatprep.subr.mxu0 0.0
        %2736 = vmatpush1.msra.mxu0 0.0
        %2737 = vmatprep.mubr.f32.mxu0 0.0
        %2738 = vmatmul.mubr.f32.gmra.mrb[0].mxu0 %v2671
        %v2739 = vpop.f32.mrb[0].mxu0
        %v2740 = vadd.f32 0.0, %v2739
        %v2741 = vpop.f32.mrb[0].mxu0
        %v2742 = vadd.f32 0.0, %v2741
        %2743 = vdwg.mxu0
        %v2745 = vsel %vm2669, %v2668, 0
        %2747 = vmatprep.subr.mxu0 %v2662
        %2748 = vmatpush1.msra.mxu0 %v2661
        %2749 = vmatprep.subr.mxu0 %v2664
        %2750 = vmatpush1.msra.mxu0 %v2663
        %2751 = vmatprep.subr.mxu0 0.0
        %2752 = vmatpush1.msra.mxu0 0.0
        %2753 = vmatprep.subr.mxu0 0.0
        %2754 = vmatpush1.msra.mxu0 0.0
        %2755 = vmatprep.subr.mxu0 0.0
        %2756 = vmatpush1.msra.mxu0 0.0
        %2757 = vmatprep.subr.mxu0 0.0
        %2758 = vmatpush1.msra.mxu0 0.0
        %2759 = vmatprep.subr.mxu0 0.0
        %2760 = vmatpush1.msra.mxu0 0.0
        %2761 = vmatprep.subr.mxu0 0.0
        %2762 = vmatpush1.msra.mxu0 0.0
        %2763 = vmatprep.subr.mxu0 0.0
        %2764 = vmatpush1.msra.mxu0 0.0
        %2765 = vmatprep.subr.mxu0 0.0
        %2766 = vmatpush1.msra.mxu0 0.0
        %2767 = vmatprep.subr.mxu0 0.0
        %2768 = vmatpush1.msra.mxu0 0.0
        %2769 = vmatprep.subr.mxu0 0.0
        %2770 = vmatpush1.msra.mxu0 0.0
        %2771 = vmatprep.subr.mxu0 0.0
        %2772 = vmatpush1.msra.mxu0 0.0
        %2773 = vmatprep.subr.mxu0 0.0
        %2774 = vmatpush1.msra.mxu0 0.0
        %2775 = vmatprep.subr.mxu0 0.0
        %2776 = vmatpush1.msra.mxu0 0.0
        %2777 = vmatprep.subr.mxu0 0.0
        %2778 = vmatpush1.msra.mxu0 0.0
        %2779 = vmatprep.subr.mxu0 0.0
        %2780 = vmatpush1.msra.mxu0 0.0
        %2781 = vmatprep.subr.mxu0 0.0
        %2782 = vmatpush1.msra.mxu0 0.0
        %2783 = vmatprep.subr.mxu0 0.0
        %2784 = vmatpush1.msra.mxu0 0.0
        %2785 = vmatprep.subr.mxu0 0.0
        %2786 = vmatpush1.msra.mxu0 0.0
        %2787 = vmatprep.subr.mxu0 0.0
        %2788 = vmatpush1.msra.mxu0 0.0
        %2789 = vmatprep.subr.mxu0 0.0
        %2790 = vmatpush1.msra.mxu0 0.0
        %2791 = vmatprep.subr.mxu0 0.0
        %2792 = vmatpush1.msra.mxu0 0.0
        %2793 = vmatprep.subr.mxu0 0.0
        %2794 = vmatpush1.msra.mxu0 0.0
        %2795 = vmatprep.subr.mxu0 0.0
        %2796 = vmatpush1.msra.mxu0 0.0
        %2797 = vmatprep.subr.mxu0 0.0
        %2798 = vmatpush1.msra.mxu0 0.0
        %2799 = vmatprep.subr.mxu0 0.0
        %2800 = vmatpush1.msra.mxu0 0.0
        %2801 = vmatprep.subr.mxu0 0.0
        %2802 = vmatpush1.msra.mxu0 0.0
        %2803 = vmatprep.subr.mxu0 0.0
        %2804 = vmatpush1.msra.mxu0 0.0
        %2805 = vmatprep.subr.mxu0 0.0
        %2806 = vmatpush1.msra.mxu0 0.0
        %2807 = vmatprep.subr.mxu0 0.0
        %2808 = vmatpush1.msra.mxu0 0.0
        %2809 = vmatprep.subr.mxu0 0.0
        %2810 = vmatpush1.msra.mxu0 0.0
        %2811 = vmatprep.mubr.f32.mxu0 0.0
        %2812 = vmatmul.mubr.f32.gmra.mrb[0].mxu0 %v2745
        %v2813 = vpop.f32.mrb[0].mxu0
        %v2814 = vadd.f32 0.0, %v2813
        %v2815 = vpop.f32.mrb[0].mxu0
        %v2816 = vadd.f32 0.0, %v2815
        %2817 = vdwg.mxu0
        %v2818 = vmax.f32 %v2740, %v2814
        %v2819 = vmax.f32 %v2742, %v2816
        %s2820 = scalar_lea.vmem [#allocation15], 512
        %v2821 = vld [vmem:[%s2820] sm:$0xff]
        %v2822 = vld [vmem:[%s2820 + $0x8] sm:$0xff]
        %v2823 = vld [vmem:[%s2820 + $0x10] sm:$0xff]
        %v2824 = vld [vmem:[%s2820 + $0x18] sm:$0xff]
        %v2825 = vld [vmem:[%s2820 + $0x20] sm:$0xff]
        %v2826 = vld [vmem:[%s2820 + $0x28] sm:$0xff]
        %v2827 = vld [vmem:[%s2820 + $0x30] sm:$0xff]
        %v2828 = vld [vmem:[%s2820 + $0x38] sm:$0xff]
        %v2829 = vld [vmem:[%s2820 + $0x40] sm:$0xff]
        %v2830 = vld [vmem:[%s2820 + $0x48] sm:$0xff]
        %v2831 = vld [vmem:[%s2820 + $0x50] sm:$0xff]
        %v2832 = vld [vmem:[%s2820 + $0x58] sm:$0xff]
        %v2833 = vld [vmem:[%s2820 + $0x60] sm:$0xff]
        %v2834 = vld [vmem:[%s2820 + $0x68] sm:$0xff]
        %v2835 = vld [vmem:[%s2820 + $0x70] sm:$0xff]
        %v2836 = vld [vmem:[%s2820 + $0x78] sm:$0xff]
        %v2837 = vld [vmem:[%s2820 + $0x80] sm:$0xff]
        %v2838 = vld [vmem:[%s2820 + $0x88] sm:$0xff]
        %v2839 = vld [vmem:[%s2820 + $0x90] sm:$0xff]
        %v2840 = vld [vmem:[%s2820 + $0x98] sm:$0xff]
        %v2841 = vld [vmem:[%s2820 + $0xa0] sm:$0xff]
        %v2842 = vld [vmem:[%s2820 + $0xa8] sm:$0xff]
        %v2843 = vld [vmem:[%s2820 + $0xb0] sm:$0xff]
        %v2844 = vld [vmem:[%s2820 + $0xb8] sm:$0xff]
        %v2845 = vld [vmem:[%s2820 + $0xc0] sm:$0xff]
        %v2846 = vld [vmem:[%s2820 + $0xc8] sm:$0xff]
        %v2847 = vld [vmem:[%s2820 + $0xd0] sm:$0xff]
        %v2848 = vld [vmem:[%s2820 + $0xd8] sm:$0xff]
        %v2849 = vld [vmem:[%s2820 + $0xe0] sm:$0xff]
        %v2850 = vld [vmem:[%s2820 + $0xe8] sm:$0xff]
        %v2851 = vld [vmem:[%s2820 + $0xf0] sm:$0xff]
        %v2852 = vld [vmem:[%s2820 + $0xf8] sm:$0xff]
        %s2853 = scalar_lea.vmem [#allocation15], 768
        %v2854 = vld [vmem:[%s2853] sm:$0xff]
        %v2855 = vld [vmem:[%s2853 + $0x8] sm:$0xff]
        %v2856 = vld [vmem:[%s2853 + $0x10] sm:$0xff]
        %v2857 = vld [vmem:[%s2853 + $0x18] sm:$0xff]
        %v2858 = vld [vmem:[%s2853 + $0x20] sm:$0xff]
        %v2859 = vld [vmem:[%s2853 + $0x28] sm:$0xff]
        %v2860 = vld [vmem:[%s2853 + $0x30] sm:$0xff]
        %v2861 = vld [vmem:[%s2853 + $0x38] sm:$0xff]
        %v2862 = vld [vmem:[%s2853 + $0x40] sm:$0xff]
        %v2863 = vld [vmem:[%s2853 + $0x48] sm:$0xff]
        %v2864 = vld [vmem:[%s2853 + $0x50] sm:$0xff]
        %v2865 = vld [vmem:[%s2853 + $0x58] sm:$0xff]
        %v2866 = vld [vmem:[%s2853 + $0x60] sm:$0xff]
        %v2867 = vld [vmem:[%s2853 + $0x68] sm:$0xff]
        %v2868 = vld [vmem:[%s2853 + $0x70] sm:$0xff]
        %v2869 = vld [vmem:[%s2853 + $0x78] sm:$0xff]
        %v2870 = vld [vmem:[%s2853 + $0x80] sm:$0xff]
        %v2871 = vld [vmem:[%s2853 + $0x88] sm:$0xff]
        %v2872 = vld [vmem:[%s2853 + $0x90] sm:$0xff]
        %v2873 = vld [vmem:[%s2853 + $0x98] sm:$0xff]
        %v2874 = vld [vmem:[%s2853 + $0xa0] sm:$0xff]
        %v2875 = vld [vmem:[%s2853 + $0xa8] sm:$0xff]
        %v2876 = vld [vmem:[%s2853 + $0xb0] sm:$0xff]
        %v2877 = vld [vmem:[%s2853 + $0xb8] sm:$0xff]
        %v2878 = vld [vmem:[%s2853 + $0xc0] sm:$0xff]
        %v2879 = vld [vmem:[%s2853 + $0xc8] sm:$0xff]
        %v2880 = vld [vmem:[%s2853 + $0xd0] sm:$0xff]
        %v2881 = vld [vmem:[%s2853 + $0xd8] sm:$0xff]
        %v2882 = vld [vmem:[%s2853 + $0xe0] sm:$0xff]
        %v2883 = vld [vmem:[%s2853 + $0xe8] sm:$0xff]
        %v2884 = vld [vmem:[%s2853 + $0xf0] sm:$0xff]
        %v2885 = vld [vmem:[%s2853 + $0xf8] sm:$0xff]
        %2886 = vmatprep.subr.mxu0 0.0
        %2887 = vmatpush1.msra.mxu0 %v2821
        %2888 = vmatprep.subr.mxu0 0.0
        %2889 = vmatpush1.msra.mxu0 %v2822
        %2890 = vmatprep.subr.mxu0 0.0
        %2891 = vmatpush1.msra.mxu0 %v2823
        %2892 = vmatprep.subr.mxu0 0.0
        %2893 = vmatpush1.msra.mxu0 %v2824
        %2894 = vmatprep.subr.mxu0 0.0
        %2895 = vmatpush1.msra.mxu0 %v2825
        %2896 = vmatprep.subr.mxu0 0.0
        %2897 = vmatpush1.msra.mxu0 %v2826
        %2898 = vmatprep.subr.mxu0 0.0
        %2899 = vmatpush1.msra.mxu0 %v2827
        %2900 = vmatprep.subr.mxu0 0.0
        %2901 = vmatpush1.msra.mxu0 %v2828
        %2902 = vmatprep.subr.mxu0 0.0
        %2903 = vmatpush1.msra.mxu0 %v2829
        %2904 = vmatprep.subr.mxu0 0.0
        %2905 = vmatpush1.msra.mxu0 %v2830
        %2906 = vmatprep.subr.mxu0 0.0
        %2907 = vmatpush1.msra.mxu0 %v2831
        %2908 = vmatprep.subr.mxu0 0.0
        %2909 = vmatpush1.msra.mxu0 %v2832
        %2910 = vmatprep.subr.mxu0 0.0
        %2911 = vmatpush1.msra.mxu0 %v2833
        %2912 = vmatprep.subr.mxu0 0.0
        %2913 = vmatpush1.msra.mxu0 %v2834
        %2914 = vmatprep.subr.mxu0 0.0
        %2915 = vmatpush1.msra.mxu0 %v2835
        %2916 = vmatprep.subr.mxu0 0.0
        %2917 = vmatpush1.msra.mxu0 %v2836
        %2918 = vmatprep.subr.mxu0 0.0
        %2919 = vmatpush1.msra.mxu0 %v2837
        %2920 = vmatprep.subr.mxu0 0.0
        %2921 = vmatpush1.msra.mxu0 %v2838
        %2922 = vmatprep.subr.mxu0 0.0
        %2923 = vmatpush1.msra.mxu0 %v2839
        %2924 = vmatprep.subr.mxu0 0.0
        %2925 = vmatpush1.msra.mxu0 %v2840
        %2926 = vmatprep.subr.mxu0 0.0
        %2927 = vmatpush1.msra.mxu0 %v2841
        %2928 = vmatprep.subr.mxu0 0.0
        %2929 = vmatpush1.msra.mxu0 %v2842
        %2930 = vmatprep.subr.mxu0 0.0
        %2931 = vmatpush1.msra.mxu0 %v2843
        %2932 = vmatprep.subr.mxu0 0.0
        %2933 = vmatpush1.msra.mxu0 %v2844
        %2934 = vmatprep.subr.mxu0 0.0
        %2935 = vmatpush1.msra.mxu0 %v2845
        %2936 = vmatprep.subr.mxu0 0.0
        %2937 = vmatpush1.msra.mxu0 %v2846
        %2938 = vmatprep.subr.mxu0 0.0
        %2939 = vmatpush1.msra.mxu0 %v2847
        %2940 = vmatprep.subr.mxu0 0.0
        %2941 = vmatpush1.msra.mxu0 %v2848
        %2942 = vmatprep.subr.mxu0 0.0
        %2943 = vmatpush1.msra.mxu0 %v2849
        %2944 = vmatprep.subr.mxu0 0.0
        %2945 = vmatpush1.msra.mxu0 %v2850
        %2946 = vmatprep.subr.mxu0 0.0
        %2947 = vmatpush1.msra.mxu0 %v2851
        %2948 = vmatprep.subr.mxu0 0.0
        %2949 = vmatpush1.msra.mxu0 %v2852
        %2950 = vmatprep.mubr.f32.mxu0 %v2819
        %2951 = vmatmul.mubr.f32.gmra.mrb[0].mxu0 %v2818
        %v2952 = vpop.f32.mrb[0].mxu0
        %v2953 = vadd.f32 0.0, %v2952
        %v2954 = vpop.f32.mrb[0].mxu0
        %2955 = vdwg.mxu0
        %2956 = vmatprep.subr.mxu0 0.0
        %2957 = vmatpush1.msra.mxu0 %v2854
        %2958 = vmatprep.subr.mxu0 0.0
        %2959 = vmatpush1.msra.mxu0 %v2855
        %2960 = vmatprep.subr.mxu0 0.0
        %2961 = vmatpush1.msra.mxu0 %v2856
        %2962 = vmatprep.subr.mxu0 0.0
        %2963 = vmatpush1.msra.mxu0 %v2857
        %2964 = vmatprep.subr.mxu0 0.0
        %2965 = vmatpush1.msra.mxu0 %v2858
        %2966 = vmatprep.subr.mxu0 0.0
        %2967 = vmatpush1.msra.mxu0 %v2859
        %2968 = vmatprep.subr.mxu0 0.0
        %2969 = vmatpush1.msra.mxu0 %v2860
        %2970 = vmatprep.subr.mxu0 0.0
        %2971 = vmatpush1.msra.mxu0 %v2861
        %2972 = vmatprep.subr.mxu0 0.0
        %2973 = vmatpush1.msra.mxu0 %v2862
        %2974 = vmatprep.subr.mxu0 0.0
        %2975 = vmatpush1.msra.mxu0 %v2863
        %2976 = vmatprep.subr.mxu0 0.0
        %2977 = vmatpush1.msra.mxu0 %v2864
        %2978 = vmatprep.subr.mxu0 0.0
        %2979 = vmatpush1.msra.mxu0 %v2865
        %2980 = vmatprep.subr.mxu0 0.0
        %2981 = vmatpush1.msra.mxu0 %v2866
        %2982 = vmatprep.subr.mxu0 0.0
        %2983 = vmatpush1.msra.mxu0 %v2867
        %2984 = vmatprep.subr.mxu0 0.0
        %2985 = vmatpush1.msra.mxu0 %v2868
        %2986 = vmatprep.subr.mxu0 0.0
        %2987 = vmatpush1.msra.mxu0 %v2869
        %2988 = vmatprep.subr.mxu0 0.0
        %2989 = vmatpush1.msra.mxu0 %v2870
        %2990 = vmatprep.subr.mxu0 0.0
        %2991 = vmatpush1.msra.mxu0 %v2871
        %2992 = vmatprep.subr.mxu0 0.0
        %2993 = vmatpush1.msra.mxu0 %v2872
        %2994 = vmatprep.subr.mxu0 0.0
        %2995 = vmatpush1.msra.mxu0 %v2873
        %2996 = vmatprep.subr.mxu0 0.0
        %2997 = vmatpush1.msra.mxu0 %v2874
        %2998 = vmatprep.subr.mxu0 0.0
        %2999 = vmatpush1.msra.mxu0 %v2875
        %3000 = vmatprep.subr.mxu0 0.0
        %3001 = vmatpush1.msra.mxu0 %v2876
        %3002 = vmatprep.subr.mxu0 0.0
        %3003 = vmatpush1.msra.mxu0 %v2877
        %3004 = vmatprep.subr.mxu0 0.0
        %3005 = vmatpush1.msra.mxu0 %v2878
        %3006 = vmatprep.subr.mxu0 0.0
        %3007 = vmatpush1.msra.mxu0 %v2879
        %3008 = vmatprep.subr.mxu0 0.0
        %3009 = vmatpush1.msra.mxu0 %v2880
        %3010 = vmatprep.subr.mxu0 0.0
        %3011 = vmatpush1.msra.mxu0 %v2881
        %3012 = vmatprep.subr.mxu0 0.0
        %3013 = vmatpush1.msra.mxu0 %v2882
        %3014 = vmatprep.subr.mxu0 0.0
        %3015 = vmatpush1.msra.mxu0 %v2883
        %3016 = vmatprep.subr.mxu0 0.0
        %3017 = vmatpush1.msra.mxu0 %v2884
        %3018 = vmatprep.subr.mxu0 0.0
        %3019 = vmatpush1.msra.mxu0 %v2885
        %3020 = vmatprep.mubr.f32.mxu0 %v2819
        %3021 = vmatmul.mubr.f32.gmra.mrb[0].mxu0 %v2818
        %v3022 = vpop.f32.mrb[0].mxu0
        %v3023 = vadd.f32 0.0, %v3022
        %v3024 = vpop.f32.mrb[0].mxu0
        %3025 = vdwg.mxu0
        %v3026 = vmax.f32 %v2953, %v3023
        %s3027 = scalar_lea.vmem [#allocation12], 4
        %v3028 = vld [vmem:[%s3027] sm:$0x3]
        %3029 = vst [vmem:[#allocation2 + $0x2] sm:$0xff] %v3026
        %3030 = vst [vmem:[#allocation2 - $0x2] sm:$0x4] %v3026
        %3031 = vst [vmem:[#allocation2 + $0x4] sm:$0x40] %v3026
        %3032 = vst [vmem:[#allocation2] sm:$0x2] %v3026
        %3033 = vst [vmem:[#allocation2 + $0x6] sm:$0x20] %v3026
        %v3034 = vld [vmem:[#allocation2] sm:$0xff]
        %v3035 = vpack.c.bf16 %v3034, %v3034
        %v3036 = vld [vmem:[#allocation9] sm:$0xff]
        %v3037 = vld [vmem:[#allocation9 + $0x8] sm:$0xff]
        %v3038 = vld [vmem:[#allocation9 + $0x10] sm:$0xff]
        %v3039 = vld [vmem:[#allocation9 + $0x18] sm:$0xff]
        %v3040 = vld [vmem:[#allocation9 + $0x20] sm:$0xff]
        %v3041 = vld [vmem:[#allocation9 + $0x28] sm:$0xff]
        %v3042 = vld [vmem:[#allocation9 + $0x30] sm:$0xff]
        %v3043 = vld [vmem:[#allocation9 + $0x38] sm:$0xff]
        %v3044 = vld [vmem:[#allocation9 + $0x40] sm:$0xff]
        %v3045 = vld [vmem:[#allocation9 + $0x48] sm:$0xff]
        %v3046 = vld [vmem:[#allocation9 + $0x50] sm:$0xff]
        %v3047 = vld [vmem:[#allocation9 + $0x58] sm:$0xff]
        %v3048 = vld [vmem:[#allocation9 + $0x60] sm:$0xff]
        %v3049 = vld [vmem:[#allocation9 + $0x68] sm:$0xff]
        %v3050 = vld [vmem:[#allocation9 + $0x70] sm:$0xff]
        %v3051 = vld [vmem:[#allocation9 + $0x78] sm:$0xff]
        %v3052 = vld [vmem:[#allocation2 + $0x1] sm:$0xff]
        %v3053 = vpack.c.bf16 %v3052, %v3052
        %s3054 = scalar_lea.vmem [#allocation9], 128
        %v3055 = vld [vmem:[%s3054] sm:$0xff]
        %v3056 = vld [vmem:[%s3054 + $0x8] sm:$0xff]
        %v3057 = vld [vmem:[%s3054 + $0x10] sm:$0xff]
        %v3058 = vld [vmem:[%s3054 + $0x18] sm:$0xff]
        %v3059 = vld [vmem:[%s3054 + $0x20] sm:$0xff]
        %v3060 = vld [vmem:[%s3054 + $0x28] sm:$0xff]
        %v3061 = vld [vmem:[%s3054 + $0x30] sm:$0xff]
        %v3062 = vld [vmem:[%s3054 + $0x38] sm:$0xff]
        %v3063 = vld [vmem:[%s3054 + $0x40] sm:$0xff]
        %v3064 = vld [vmem:[%s3054 + $0x48] sm:$0xff]
        %v3065 = vld [vmem:[%s3054 + $0x50] sm:$0xff]
        %v3066 = vld [vmem:[%s3054 + $0x58] sm:$0xff]
        %v3067 = vld [vmem:[%s3054 + $0x60] sm:$0xff]
        %v3068 = vld [vmem:[%s3054 + $0x68] sm:$0xff]
        %v3069 = vld [vmem:[%s3054 + $0x70] sm:$0xff]
        %v3070 = vld [vmem:[%s3054 + $0x78] sm:$0xff]
        %v3087 = vunpack.c.l.b16 %v3055
        %v3088 = vunpack.c.h.b16 %v3055
        %v3089 = vunpack.c.l.b16 %v3056
        %v3090 = vunpack.c.h.b16 %v3056
        %v3091 = vunpack.c.l.b16 %v3057
        %v3092 = vunpack.c.h.b16 %v3057
        %v3093 = vunpack.c.l.b16 %v3058
        %v3094 = vunpack.c.h.b16 %v3058
        %v3095 = vunpack.c.l.b16 %v3059
        %v3096 = vunpack.c.h.b16 %v3059
        %v3097 = vunpack.c.l.b16 %v3060
        %v3098 = vunpack.c.h.b16 %v3060
        %v3099 = vunpack.c.l.b16 %v3061
        %v3100 = vunpack.c.h.b16 %v3061
        %v3101 = vunpack.c.l.b16 %v3062
        %v3102 = vunpack.c.h.b16 %v3062
        %v3103 = vunpack.c.l.b16 %v3063
        %v3104 = vunpack.c.h.b16 %v3063
        %v3105 = vunpack.c.l.b16 %v3064
        %v3106 = vunpack.c.h.b16 %v3064
        %v3107 = vunpack.c.l.b16 %v3065
        %v3108 = vunpack.c.h.b16 %v3065
        %v3109 = vunpack.c.l.b16 %v3066
        %v3110 = vunpack.c.h.b16 %v3066
        %v3111 = vunpack.c.l.b16 %v3067
        %v3112 = vunpack.c.h.b16 %v3067
        %v3113 = vunpack.c.l.b16 %v3068
        %v3114 = vunpack.c.h.b16 %v3068
        %v3115 = vunpack.c.l.b16 %v3069
        %v3116 = vunpack.c.h.b16 %v3069
        %v3117 = vunpack.c.l.b16 %v3070
        %v3118 = vunpack.c.h.b16 %v3070
        %v3119 = vpack.c.b16 %v3089, %v3087
        %v3120 = vpack.c.b16 %v3090, %v3088
        %v3121 = vpack.c.b16 %v3093, %v3091
        %v3122 = vpack.c.b16 %v3094, %v3092
        %v3123 = vpack.c.b16 %v3097, %v3095
        %v3124 = vpack.c.b16 %v3098, %v3096
        %v3125 = vpack.c.b16 %v3101, %v3099
        %v3126 = vpack.c.b16 %v3102, %v3100
        %v3127 = vpack.c.b16 %v3105, %v3103
        %v3128 = vpack.c.b16 %v3106, %v3104
        %v3129 = vpack.c.b16 %v3109, %v3107
        %v3130 = vpack.c.b16 %v3110, %v3108
        %v3131 = vpack.c.b16 %v3113, %v3111
        %v3132 = vpack.c.b16 %v3114, %v3112
        %v3133 = vpack.c.b16 %v3117, %v3115
        %v3134 = vpack.c.b16 %v3118, %v3116
        %3151 = vmatprep.subr.bf16.mxu0 %v3120
        %3152 = vmatpush1.bf16.msra.mxu0 %v3119
        %3153 = vmatprep.subr.bf16.mxu0 %v3122
        %3154 = vmatpush1.bf16.msra.mxu0 %v3121
        %3155 = vmatprep.subr.bf16.mxu0 %v3124
        %3156 = vmatpush1.bf16.msra.mxu0 %v3123
        %3157 = vmatprep.subr.bf16.mxu0 %v3126
        %3158 = vmatpush1.bf16.msra.mxu0 %v3125
        %3159 = vmatprep.subr.bf16.mxu0 %v3128
        %3160 = vmatpush1.bf16.msra.mxu0 %v3127
        %3161 = vmatprep.subr.bf16.mxu0 %v3130
        %3162 = vmatpush1.bf16.msra.mxu0 %v3129
        %3163 = vmatprep.subr.bf16.mxu0 %v3132
        %3164 = vmatpush1.bf16.msra.mxu0 %v3131
        %3165 = vmatprep.subr.bf16.mxu0 %v3134
        %3166 = vmatpush1.bf16.msra.mxu0 %v3133
        %3167 = vmatprep.subr.bf16.mxu0 0
        %3168 = vmatpush1.bf16.msra.mxu0 0
        %3169 = vmatprep.subr.bf16.mxu0 0
        %3170 = vmatpush1.bf16.msra.mxu0 0
        %3171 = vmatprep.subr.bf16.mxu0 0
        %3172 = vmatpush1.bf16.msra.mxu0 0
        %3173 = vmatprep.subr.bf16.mxu0 0
        %3174 = vmatpush1.bf16.msra.mxu0 0
        %3175 = vmatprep.subr.bf16.mxu0 0
        %3176 = vmatpush1.bf16.msra.mxu0 0
        %3177 = vmatprep.subr.bf16.mxu0 0
        %3178 = vmatpush1.bf16.msra.mxu0 0
        %3179 = vmatprep.subr.bf16.mxu0 0
        %3180 = vmatpush1.bf16.msra.mxu0 0
        %3181 = vmatprep.subr.bf16.mxu0 0
        %3182 = vmatpush1.bf16.msra.mxu0 0
        %3183 = vmatprep.mubr.bf16.mxu0 0
        %3184 = vmatmul.mubr.bf16.gmra.mrb[0].mxu0 %v3053
        %v3185 = vpop.f32.mrb[0].mxu0
        %v3186 = vadd.f32 0.0, %v3185
        %v3187 = vpop.f32.mrb[0].mxu0
        %v3188 = vadd.f32 0.0, %v3187
        %v3189 = vpop.f32.mrb[0].mxu0
        %v3190 = vpop.f32.mrb[0].mxu0
        %3191 = vdwg.mxu0
        %v3208 = vunpack.c.l.b16 %v3036
        %v3209 = vunpack.c.h.b16 %v3036
        %v3210 = vunpack.c.l.b16 %v3037
        %v3211 = vunpack.c.h.b16 %v3037
        %v3212 = vunpack.c.l.b16 %v3038
        %v3213 = vunpack.c.h.b16 %v3038
        %v3214 = vunpack.c.l.b16 %v3039
        %v3215 = vunpack.c.h.b16 %v3039
        %v3216 = vunpack.c.l.b16 %v3040
        %v3217 = vunpack.c.h.b16 %v3040
        %v3218 = vunpack.c.l.b16 %v3041
        %v3219 = vunpack.c.h.b16 %v3041
        %v3220 = vunpack.c.l.b16 %v3042
        %v3221 = vunpack.c.h.b16 %v3042
        %v3222 = vunpack.c.l.b16 %v3043
        %v3223 = vunpack.c.h.b16 %v3043
        %v3224 = vunpack.c.l.b16 %v3044
        %v3225 = vunpack.c.h.b16 %v3044
        %v3226 = vunpack.c.l.b16 %v3045
        %v3227 = vunpack.c.h.b16 %v3045
        %v3228 = vunpack.c.l.b16 %v3046
        %v3229 = vunpack.c.h.b16 %v3046
        %v3230 = vunpack.c.l.b16 %v3047
        %v3231 = vunpack.c.h.b16 %v3047
        %v3232 = vunpack.c.l.b16 %v3048
        %v3233 = vunpack.c.h.b16 %v3048
        %v3234 = vunpack.c.l.b16 %v3049
        %v3235 = vunpack.c.h.b16 %v3049
        %v3236 = vunpack.c.l.b16 %v3050
        %v3237 = vunpack.c.h.b16 %v3050
        %v3238 = vunpack.c.l.b16 %v3051
        %v3239 = vunpack.c.h.b16 %v3051
        %v3240 = vpack.c.b16 %v3210, %v3208
        %v3241 = vpack.c.b16 %v3211, %v3209
        %v3242 = vpack.c.b16 %v3214, %v3212
        %v3243 = vpack.c.b16 %v3215, %v3213
        %v3244 = vpack.c.b16 %v3218, %v3216
        %v3245 = vpack.c.b16 %v3219, %v3217
        %v3246 = vpack.c.b16 %v3222, %v3220
        %v3247 = vpack.c.b16 %v3223, %v3221
        %v3248 = vpack.c.b16 %v3226, %v3224
        %v3249 = vpack.c.b16 %v3227, %v3225
        %v3250 = vpack.c.b16 %v3230, %v3228
        %v3251 = vpack.c.b16 %v3231, %v3229
        %v3252 = vpack.c.b16 %v3234, %v3232
        %v3253 = vpack.c.b16 %v3235, %v3233
        %v3254 = vpack.c.b16 %v3238, %v3236
        %v3255 = vpack.c.b16 %v3239, %v3237
        %3272 = vmatprep.subr.bf16.mxu0 %v3241
        %3273 = vmatpush1.bf16.msra.mxu0 %v3240
        %3274 = vmatprep.subr.bf16.mxu0 %v3243
        %3275 = vmatpush1.bf16.msra.mxu0 %v3242
        %3276 = vmatprep.subr.bf16.mxu0 %v3245
        %3277 = vmatpush1.bf16.msra.mxu0 %v3244
        %3278 = vmatprep.subr.bf16.mxu0 %v3247
        %3279 = vmatpush1.bf16.msra.mxu0 %v3246
        %3280 = vmatprep.subr.bf16.mxu0 %v3249
        %3281 = vmatpush1.bf16.msra.mxu0 %v3248
        %3282 = vmatprep.subr.bf16.mxu0 %v3251
        %3283 = vmatpush1.bf16.msra.mxu0 %v3250
        %3284 = vmatprep.subr.bf16.mxu0 %v3253
        %3285 = vmatpush1.bf16.msra.mxu0 %v3252
        %3286 = vmatprep.subr.bf16.mxu0 %v3255
        %3287 = vmatpush1.bf16.msra.mxu0 %v3254
        %3288 = vmatprep.subr.bf16.mxu0 0
        %3289 = vmatpush1.bf16.msra.mxu0 0
        %3290 = vmatprep.subr.bf16.mxu0 0
        %3291 = vmatpush1.bf16.msra.mxu0 0
        %3292 = vmatprep.subr.bf16.mxu0 0
        %3293 = vmatpush1.bf16.msra.mxu0 0
        %3294 = vmatprep.subr.bf16.mxu0 0
        %3295 = vmatpush1.bf16.msra.mxu0 0
        %3296 = vmatprep.subr.bf16.mxu0 0
        %3297 = vmatpush1.bf16.msra.mxu0 0
        %3298 = vmatprep.subr.bf16.mxu0 0
        %3299 = vmatpush1.bf16.msra.mxu0 0
        %3300 = vmatprep.subr.bf16.mxu0 0
        %3301 = vmatpush1.bf16.msra.mxu0 0
        %3302 = vmatprep.subr.bf16.mxu0 0
        %3303 = vmatpush1.bf16.msra.mxu0 0
        %3304 = vmatprep.mubr.bf16.mxu0 0
        %3305 = vmatmul.mubr.bf16.gmra.mrb[0].mxu0 %v3035
        %v3306 = vpop.f32.mrb[0].mxu0
        %v3307 = vadd.f32 %v3186, %v3306
        %v3308 = vpop.f32.mrb[0].mxu0
        %v3309 = vadd.f32 %v3188, %v3308
        %v3310 = vpop.f32.mrb[0].mxu0
        %v3311 = vpop.f32.mrb[0].mxu0
        %3312 = vdwg.mxu0
        %v3313 = vld [vmem:[#allocation2 + $0x2] sm:$0xff]
        %v3314 = vpack.c.bf16 %v3313, %v3313
        %s3315 = scalar_lea.vmem [#allocation9], 256
        %v3316 = vld [vmem:[%s3315] sm:$0xff]
        %v3317 = vld [vmem:[%s3315 + $0x8] sm:$0xff]
        %v3318 = vld [vmem:[%s3315 + $0x10] sm:$0xff]
        %v3319 = vld [vmem:[%s3315 + $0x18] sm:$0xff]
        %v3320 = vld [vmem:[%s3315 + $0x20] sm:$0xff]
        %v3321 = vld [vmem:[%s3315 + $0x28] sm:$0xff]
        %v3322 = vld [vmem:[%s3315 + $0x30] sm:$0xff]
        %v3323 = vld [vmem:[%s3315 + $0x38] sm:$0xff]
        %v3324 = vld [vmem:[%s3315 + $0x40] sm:$0xff]
        %v3325 = vld [vmem:[%s3315 + $0x48] sm:$0xff]
        %v3326 = vld [vmem:[%s3315 + $0x50] sm:$0xff]
        %v3327 = vld [vmem:[%s3315 + $0x58] sm:$0xff]
        %v3328 = vld [vmem:[%s3315 + $0x60] sm:$0xff]
        %v3329 = vld [vmem:[%s3315 + $0x68] sm:$0xff]
        %v3330 = vld [vmem:[%s3315 + $0x70] sm:$0xff]
        %v3331 = vld [vmem:[%s3315 + $0x78] sm:$0xff]
        %v3348 = vunpack.c.l.b16 %v3316
        %v3349 = vunpack.c.h.b16 %v3316
        %v3350 = vunpack.c.l.b16 %v3317
        %v3351 = vunpack.c.h.b16 %v3317
        %v3352 = vunpack.c.l.b16 %v3318
        %v3353 = vunpack.c.h.b16 %v3318
        %v3354 = vunpack.c.l.b16 %v3319
        %v3355 = vunpack.c.h.b16 %v3319
        %v3356 = vunpack.c.l.b16 %v3320
        %v3357 = vunpack.c.h.b16 %v3320
        %v3358 = vunpack.c.l.b16 %v3321
        %v3359 = vunpack.c.h.b16 %v3321
        %v3360 = vunpack.c.l.b16 %v3322
        %v3361 = vunpack.c.h.b16 %v3322
        %v3362 = vunpack.c.l.b16 %v3323
        %v3363 = vunpack.c.h.b16 %v3323
        %v3364 = vunpack.c.l.b16 %v3324
        %v3365 = vunpack.c.h.b16 %v3324
        %v3366 = vunpack.c.l.b16 %v3325
        %v3367 = vunpack.c.h.b16 %v3325
        %v3368 = vunpack.c.l.b16 %v3326
        %v3369 = vunpack.c.h.b16 %v3326
        %v3370 = vunpack.c.l.b16 %v3327
        %v3371 = vunpack.c.h.b16 %v3327
        %v3372 = vunpack.c.l.b16 %v3328
        %v3373 = vunpack.c.h.b16 %v3328
        %v3374 = vunpack.c.l.b16 %v3329
        %v3375 = vunpack.c.h.b16 %v3329
        %v3376 = vunpack.c.l.b16 %v3330
        %v3377 = vunpack.c.h.b16 %v3330
        %v3378 = vunpack.c.l.b16 %v3331
        %v3379 = vunpack.c.h.b16 %v3331
        %v3380 = vpack.c.b16 %v3350, %v3348
        %v3381 = vpack.c.b16 %v3351, %v3349
        %v3382 = vpack.c.b16 %v3354, %v3352
        %v3383 = vpack.c.b16 %v3355, %v3353
        %v3384 = vpack.c.b16 %v3358, %v3356
        %v3385 = vpack.c.b16 %v3359, %v3357
        %v3386 = vpack.c.b16 %v3362, %v3360
        %v3387 = vpack.c.b16 %v3363, %v3361
        %v3388 = vpack.c.b16 %v3366, %v3364
        %v3389 = vpack.c.b16 %v3367, %v3365
        %v3390 = vpack.c.b16 %v3370, %v3368
        %v3391 = vpack.c.b16 %v3371, %v3369
        %v3392 = vpack.c.b16 %v3374, %v3372
        %v3393 = vpack.c.b16 %v3375, %v3373
        %v3394 = vpack.c.b16 %v3378, %v3376
        %v3395 = vpack.c.b16 %v3379, %v3377
        %3412 = vmatprep.subr.bf16.mxu0 %v3381
        %3413 = vmatpush1.bf16.msra.mxu0 %v3380
        %3414 = vmatprep.subr.bf16.mxu0 %v3383
        %3415 = vmatpush1.bf16.msra.mxu0 %v3382
        %3416 = vmatprep.subr.bf16.mxu0 %v3385
        %3417 = vmatpush1.bf16.msra.mxu0 %v3384
        %3418 = vmatprep.subr.bf16.mxu0 %v3387
        %3419 = vmatpush1.bf16.msra.mxu0 %v3386
        %3420 = vmatprep.subr.bf16.mxu0 %v3389
        %3421 = vmatpush1.bf16.msra.mxu0 %v3388
        %3422 = vmatprep.subr.bf16.mxu0 %v3391
        %3423 = vmatpush1.bf16.msra.mxu0 %v3390
        %3424 = vmatprep.subr.bf16.mxu0 %v3393
        %3425 = vmatpush1.bf16.msra.mxu0 %v3392
        %3426 = vmatprep.subr.bf16.mxu0 %v3395
        %3427 = vmatpush1.bf16.msra.mxu0 %v3394
        %3428 = vmatprep.subr.bf16.mxu0 0
        %3429 = vmatpush1.bf16.msra.mxu0 0
        %3430 = vmatprep.subr.bf16.mxu0 0
        %3431 = vmatpush1.bf16.msra.mxu0 0
        %3432 = vmatprep.subr.bf16.mxu0 0
        %3433 = vmatpush1.bf16.msra.mxu0 0
        %3434 = vmatprep.subr.bf16.mxu0 0
        %3435 = vmatpush1.bf16.msra.mxu0 0
        %3436 = vmatprep.subr.bf16.mxu0 0
        %3437 = vmatpush1.bf16.msra.mxu0 0
        %3438 = vmatprep.subr.bf16.mxu0 0
        %3439 = vmatpush1.bf16.msra.mxu0 0
        %3440 = vmatprep.subr.bf16.mxu0 0
        %3441 = vmatpush1.bf16.msra.mxu0 0
        %3442 = vmatprep.subr.bf16.mxu0 0
        %3443 = vmatpush1.bf16.msra.mxu0 0
        %3444 = vmatprep.mubr.bf16.mxu0 0
        %3445 = vmatmul.mubr.bf16.gmra.mrb[0].mxu0 %v3314
        %v3446 = vpop.f32.mrb[0].mxu0
        %v3447 = vadd.f32 0.0, %v3446
        %v3448 = vpop.f32.mrb[0].mxu0
        %v3449 = vadd.f32 0.0, %v3448
        %v3450 = vpop.f32.mrb[0].mxu0
        %v3451 = vpop.f32.mrb[0].mxu0
        %3452 = vdwg.mxu0
        %v3453 = vadd.f32 %v3307, %v3447
        %v3454 = vadd.f32 %v3309, %v3449
        %v3455 = vld [vmem:[#allocation2 + $0x3] sm:$0xff]
        %v3456 = vpack.c.bf16 %v3455, %v3455
        %s3457 = scalar_lea.vmem [#allocation9], 384
        %v3458 = vld [vmem:[%s3457] sm:$0xff]
        %v3459 = vld [vmem:[%s3457 + $0x8] sm:$0xff]
        %v3460 = vld [vmem:[%s3457 + $0x10] sm:$0xff]
        %v3461 = vld [vmem:[%s3457 + $0x18] sm:$0xff]
        %v3462 = vld [vmem:[%s3457 + $0x20] sm:$0xff]
        %v3463 = vld [vmem:[%s3457 + $0x28] sm:$0xff]
        %v3464 = vld [vmem:[%s3457 + $0x30] sm:$0xff]
        %v3465 = vld [vmem:[%s3457 + $0x38] sm:$0xff]
        %v3466 = vld [vmem:[%s3457 + $0x40] sm:$0xff]
        %v3467 = vld [vmem:[%s3457 + $0x48] sm:$0xff]
        %v3468 = vld [vmem:[%s3457 + $0x50] sm:$0xff]
        %v3469 = vld [vmem:[%s3457 + $0x58] sm:$0xff]
        %v3470 = vld [vmem:[%s3457 + $0x60] sm:$0xff]
        %v3471 = vld [vmem:[%s3457 + $0x68] sm:$0xff]
        %v3472 = vld [vmem:[%s3457 + $0x70] sm:$0xff]
        %v3473 = vld [vmem:[%s3457 + $0x78] sm:$0xff]
        %v3490 = vunpack.c.l.b16 %v3458
        %v3491 = vunpack.c.h.b16 %v3458
        %v3492 = vunpack.c.l.b16 %v3459
        %v3493 = vunpack.c.h.b16 %v3459
        %v3494 = vunpack.c.l.b16 %v3460
        %v3495 = vunpack.c.h.b16 %v3460
        %v3496 = vunpack.c.l.b16 %v3461
        %v3497 = vunpack.c.h.b16 %v3461
        %v3498 = vunpack.c.l.b16 %v3462
        %v3499 = vunpack.c.h.b16 %v3462
        %v3500 = vunpack.c.l.b16 %v3463
        %v3501 = vunpack.c.h.b16 %v3463
        %v3502 = vunpack.c.l.b16 %v3464
        %v3503 = vunpack.c.h.b16 %v3464
        %v3504 = vunpack.c.l.b16 %v3465
        %v3505 = vunpack.c.h.b16 %v3465
        %v3506 = vunpack.c.l.b16 %v3466
        %v3507 = vunpack.c.h.b16 %v3466
        %v3508 = vunpack.c.l.b16 %v3467
        %v3509 = vunpack.c.h.b16 %v3467
        %v3510 = vunpack.c.l.b16 %v3468
        %v3511 = vunpack.c.h.b16 %v3468
        %v3512 = vunpack.c.l.b16 %v3469
        %v3513 = vunpack.c.h.b16 %v3469
        %v3514 = vunpack.c.l.b16 %v3470
        %v3515 = vunpack.c.h.b16 %v3470
        %v3516 = vunpack.c.l.b16 %v3471
        %v3517 = vunpack.c.h.b16 %v3471
        %v3518 = vunpack.c.l.b16 %v3472
        %v3519 = vunpack.c.h.b16 %v3472
        %v3520 = vunpack.c.l.b16 %v3473
        %v3521 = vunpack.c.h.b16 %v3473
        %v3522 = vpack.c.b16 %v3492, %v3490
        %v3523 = vpack.c.b16 %v3493, %v3491
        %v3524 = vpack.c.b16 %v3496, %v3494
        %v3525 = vpack.c.b16 %v3497, %v3495
        %v3526 = vpack.c.b16 %v3500, %v3498
        %v3527 = vpack.c.b16 %v3501, %v3499
        %v3528 = vpack.c.b16 %v3504, %v3502
        %v3529 = vpack.c.b16 %v3505, %v3503
        %v3530 = vpack.c.b16 %v3508, %v3506
        %v3531 = vpack.c.b16 %v3509, %v3507
        %v3532 = vpack.c.b16 %v3512, %v3510
        %v3533 = vpack.c.b16 %v3513, %v3511
        %v3534 = vpack.c.b16 %v3516, %v3514
        %v3535 = vpack.c.b16 %v3517, %v3515
        %v3536 = vpack.c.b16 %v3520, %v3518
        %v3537 = vpack.c.b16 %v3521, %v3519
        %3554 = vmatprep.subr.bf16.mxu0 %v3523
        %3555 = vmatpush1.bf16.msra.mxu0 %v3522
        %3556 = vmatprep.subr.bf16.mxu0 %v3525
        %3557 = vmatpush1.bf16.msra.mxu0 %v3524
        %3558 = vmatprep.subr.bf16.mxu0 %v3527
        %3559 = vmatpush1.bf16.msra.mxu0 %v3526
        %3560 = vmatprep.subr.bf16.mxu0 %v3529
        %3561 = vmatpush1.bf16.msra.mxu0 %v3528
        %3562 = vmatprep.subr.bf16.mxu0 %v3531
        %3563 = vmatpush1.bf16.msra.mxu0 %v3530
        %3564 = vmatprep.subr.bf16.mxu0 %v3533
        %3565 = vmatpush1.bf16.msra.mxu0 %v3532
        %3566 = vmatprep.subr.bf16.mxu0 %v3535
        %3567 = vmatpush1.bf16.msra.mxu0 %v3534
        %3568 = vmatprep.subr.bf16.mxu0 %v3537
        %3569 = vmatpush1.bf16.msra.mxu0 %v3536
        %3570 = vmatprep.subr.bf16.mxu0 0
        %3571 = vmatpush1.bf16.msra.mxu0 0
        %3572 = vmatprep.subr.bf16.mxu0 0
        %3573 = vmatpush1.bf16.msra.mxu0 0
        %3574 = vmatprep.subr.bf16.mxu0 0
        %3575 = vmatpush1.bf16.msra.mxu0 0
        %3576 = vmatprep.subr.bf16.mxu0 0
        %3577 = vmatpush1.bf16.msra.mxu0 0
        %3578 = vmatprep.subr.bf16.mxu0 0
        %3579 = vmatpush1.bf16.msra.mxu0 0
        %3580 = vmatprep.subr.bf16.mxu0 0
        %3581 = vmatpush1.bf16.msra.mxu0 0
        %3582 = vmatprep.subr.bf16.mxu0 0
        %3583 = vmatpush1.bf16.msra.mxu0 0
        %3584 = vmatprep.subr.bf16.mxu0 0
        %3585 = vmatpush1.bf16.msra.mxu0 0
        %3586 = vmatprep.mubr.bf16.mxu0 0
        %3587 = vmatmul.mubr.bf16.gmra.mrb[0].mxu0 %v3456
        %v3588 = vpop.f32.mrb[0].mxu0
        %v3589 = vadd.f32 0.0, %v3588
        %v3590 = vpop.f32.mrb[0].mxu0
        %v3591 = vadd.f32 0.0, %v3590
        %v3592 = vpop.f32.mrb[0].mxu0
        %v3593 = vpop.f32.mrb[0].mxu0
        %3594 = vdwg.mxu0
        %v3595 = vadd.f32 %v3453, %v3589
        %v3596 = vadd.f32 %v3454, %v3591
        %v3597 = vld [vmem:[#allocation2 + $0x4] sm:$0xff]
        %v3598 = vpack.c.bf16 %v3597, %v3597
        %s3599 = scalar_lea.vmem [#allocation9], 512
        %v3600 = vld [vmem:[%s3599] sm:$0xff]
        %v3601 = vld [vmem:[%s3599 + $0x8] sm:$0xff]
        %v3602 = vld [vmem:[%s3599 + $0x10] sm:$0xff]
        %v3603 = vld [vmem:[%s3599 + $0x18] sm:$0xff]
        %v3604 = vld [vmem:[%s3599 + $0x20] sm:$0xff]
        %v3605 = vld [vmem:[%s3599 + $0x28] sm:$0xff]
        %v3606 = vld [vmem:[%s3599 + $0x30] sm:$0xff]
        %v3607 = vld [vmem:[%s3599 + $0x38] sm:$0xff]
        %v3608 = vld [vmem:[%s3599 + $0x40] sm:$0xff]
        %v3609 = vld [vmem:[%s3599 + $0x48] sm:$0xff]
        %v3610 = vld [vmem:[%s3599 + $0x50] sm:$0xff]
        %v3611 = vld [vmem:[%s3599 + $0x58] sm:$0xff]
        %v3612 = vld [vmem:[%s3599 + $0x60] sm:$0xff]
        %v3613 = vld [vmem:[%s3599 + $0x68] sm:$0xff]
        %v3614 = vld [vmem:[%s3599 + $0x70] sm:$0xff]
        %v3615 = vld [vmem:[%s3599 + $0x78] sm:$0xff]
        %v3632 = vunpack.c.l.b16 %v3600
        %v3633 = vunpack.c.h.b16 %v3600
        %v3634 = vunpack.c.l.b16 %v3601
        %v3635 = vunpack.c.h.b16 %v3601
        %v3636 = vunpack.c.l.b16 %v3602
        %v3637 = vunpack.c.h.b16 %v3602
        %v3638 = vunpack.c.l.b16 %v3603
        %v3639 = vunpack.c.h.b16 %v3603
        %v3640 = vunpack.c.l.b16 %v3604
        %v3641 = vunpack.c.h.b16 %v3604
        %v3642 = vunpack.c.l.b16 %v3605
        %v3643 = vunpack.c.h.b16 %v3605
        %v3644 = vunpack.c.l.b16 %v3606
        %v3645 = vunpack.c.h.b16 %v3606
        %v3646 = vunpack.c.l.b16 %v3607
        %v3647 = vunpack.c.h.b16 %v3607
        %v3648 = vunpack.c.l.b16 %v3608
        %v3649 = vunpack.c.h.b16 %v3608
        %v3650 = vunpack.c.l.b16 %v3609
        %v3651 = vunpack.c.h.b16 %v3609
        %v3652 = vunpack.c.l.b16 %v3610
        %v3653 = vunpack.c.h.b16 %v3610
        %v3654 = vunpack.c.l.b16 %v3611
        %v3655 = vunpack.c.h.b16 %v3611
        %v3656 = vunpack.c.l.b16 %v3612
        %v3657 = vunpack.c.h.b16 %v3612
        %v3658 = vunpack.c.l.b16 %v3613
        %v3659 = vunpack.c.h.b16 %v3613
        %v3660 = vunpack.c.l.b16 %v3614
        %v3661 = vunpack.c.h.b16 %v3614
        %v3662 = vunpack.c.l.b16 %v3615
        %v3663 = vunpack.c.h.b16 %v3615
        %v3664 = vpack.c.b16 %v3634, %v3632
        %v3665 = vpack.c.b16 %v3635, %v3633
        %v3666 = vpack.c.b16 %v3638, %v3636
        %v3667 = vpack.c.b16 %v3639, %v3637
        %v3668 = vpack.c.b16 %v3642, %v3640
        %v3669 = vpack.c.b16 %v3643, %v3641
        %v3670 = vpack.c.b16 %v3646, %v3644
        %v3671 = vpack.c.b16 %v3647, %v3645
        %v3672 = vpack.c.b16 %v3650, %v3648
        %v3673 = vpack.c.b16 %v3651, %v3649
        %v3674 = vpack.c.b16 %v3654, %v3652
        %v3675 = vpack.c.b16 %v3655, %v3653
        %v3676 = vpack.c.b16 %v3658, %v3656
        %v3677 = vpack.c.b16 %v3659, %v3657
        %v3678 = vpack.c.b16 %v3662, %v3660
        %v3679 = vpack.c.b16 %v3663, %v3661
        %3696 = vmatprep.subr.bf16.mxu0 %v3665
        %3697 = vmatpush1.bf16.msra.mxu0 %v3664
        %3698 = vmatprep.subr.bf16.mxu0 %v3667
        %3699 = vmatpush1.bf16.msra.mxu0 %v3666
        %3700 = vmatprep.subr.bf16.mxu0 %v3669
        %3701 = vmatpush1.bf16.msra.mxu0 %v3668
        %3702 = vmatprep.subr.bf16.mxu0 %v3671
        %3703 = vmatpush1.bf16.msra.mxu0 %v3670
        %3704 = vmatprep.subr.bf16.mxu0 %v3673
        %3705 = vmatpush1.bf16.msra.mxu0 %v3672
        %3706 = vmatprep.subr.bf16.mxu0 %v3675
        %3707 = vmatpush1.bf16.msra.mxu0 %v3674
        %3708 = vmatprep.subr.bf16.mxu0 %v3677
        %3709 = vmatpush1.bf16.msra.mxu0 %v3676
        %3710 = vmatprep.subr.bf16.mxu0 %v3679
        %3711 = vmatpush1.bf16.msra.mxu0 %v3678
        %3712 = vmatprep.subr.bf16.mxu0 0
        %3713 = vmatpush1.bf16.msra.mxu0 0
        %3714 = vmatprep.subr.bf16.mxu0 0
        %3715 = vmatpush1.bf16.msra.mxu0 0
        %3716 = vmatprep.subr.bf16.mxu0 0
        %3717 = vmatpush1.bf16.msra.mxu0 0
        %3718 = vmatprep.subr.bf16.mxu0 0
        %3719 = vmatpush1.bf16.msra.mxu0 0
        %3720 = vmatprep.subr.bf16.mxu0 0
        %3721 = vmatpush1.bf16.msra.mxu0 0
        %3722 = vmatprep.subr.bf16.mxu0 0
        %3723 = vmatpush1.bf16.msra.mxu0 0
        %3724 = vmatprep.subr.bf16.mxu0 0
        %3725 = vmatpush1.bf16.msra.mxu0 0
        %3726 = vmatprep.subr.bf16.mxu0 0
        %3727 = vmatpush1.bf16.msra.mxu0 0
        %3728 = vmatprep.mubr.bf16.mxu0 0
        %3729 = vmatmul.mubr.bf16.gmra.mrb[0].mxu0 %v3598
        %v3730 = vpop.f32.mrb[0].mxu0
        %v3731 = vadd.f32 0.0, %v3730
        %v3732 = vpop.f32.mrb[0].mxu0
        %v3733 = vadd.f32 0.0, %v3732
        %v3734 = vpop.f32.mrb[0].mxu0
        %v3735 = vpop.f32.mrb[0].mxu0
        %3736 = vdwg.mxu0
        %v3737 = vadd.f32 %v3595, %v3731
        %v3738 = vadd.f32 %v3596, %v3733
        %v3740 = vlaneseq
        %v3741 = vshrl.u32 %v3740, 7
        %v3742 = vsub.s32 0, %v3741
        %v3743 = vrot.slane %v3028, %v3742
        %v3744 = vlaneseq
        %v3745 = vshrl.u32 %v3744, 7
        %v3746 = vsub.s32 1, %v3745
        %v3747 = vrot.slane %v3028, %v3746
        %v3750 = vadd.f32 %v3737, %v3743
        %v3751 = vadd.f32 %v3738, %v3747
        %v3752 = vrot.slane %v3750, 4
        %v3753 = vadd.f32 %v3750, %v3752
        %v3754 = vrot.slane %v3753, 2
        %v3755 = vadd.f32 %v3753, %v3754
        %v3756 = vrot.slane %v3755, 1
        %v3757 = vadd.f32 %v3755, %v3756
        %v3758 = vrot.slane %v3751, 4
        %v3759 = vadd.f32 %v3751, %v3758
        %v3760 = vrot.slane %v3759, 2
        %v3761 = vadd.f32 %v3759, %v3760
        %v3762 = vrot.slane %v3761, 1
        %v3763 = vadd.f32 %v3761, %v3762
        %3764 = vrot.lane.b32.xlu0 %v3757, 32
        %v3765 = vpop.permute.xlu0 %3764
        %3766 = vrot.lane.b32.xlu0 %v3763, 32
        %v3767 = vpop.permute.xlu0 %3766
        %vm3768 = vcmp.lt.s32.totalorder %v2373, 32
        %v3769 = vsel %vm3768, %v3765, %v3767
        %v3770 = vsel %vm3768, %v3767, %v3765
        %v3771 = vadd.f32 %v3757, %v3770
        %v3772 = vadd.f32 %v3763, %v3769
        %3773 = vrot.lane.b32.xlu0 %v3770, 32
        %v3774 = vpop.permute.xlu0 %3773
        %3775 = vrot.lane.b32.xlu0 %v3769, 32
        %v3776 = vpop.permute.xlu0 %3775
        %v3777 = vsel %vm3768, %v3774, %v3776
        %v3778 = vsel %vm3768, %v3776, %v3774
        %v3779 = vadd.f32 %v3771, %v3778
        %v3780 = vadd.f32 %v3772, %v3777
        %3781 = vrot.lane.b32.xlu0 %v3778, 32
        %v3782 = vpop.permute.xlu0 %3781
        %3783 = vrot.lane.b32.xlu0 %v3777, 32
        %v3784 = vpop.permute.xlu0 %3783
        %v3785 = vsel %vm3768, %v3782, %v3784
        %v3786 = vsel %vm3768, %v3784, %v3782
        %v3787 = vadd.f32 %v3779, %v3786
        %v3788 = vadd.f32 %v3780, %v3785
        %3789 = vrot.lane.b32.xlu0 %v3786, 32
        %v3790 = vpop.permute.xlu0 %3789
        %3791 = vrot.lane.b32.xlu0 %v3785, 32
        %v3792 = vpop.permute.xlu0 %3791
        %v3793 = vsel %vm3768, %v3790, %v3792
        %v3794 = vsel %vm3768, %v3792, %v3790
        %v3795 = vadd.f32 %v3787, %v3794
        %v3796 = vadd.f32 %v3788, %v3793
        %3797 = vrot.lane.b32.xlu0 %v3794, 32
        %v3798 = vpop.permute.xlu0 %3797
        %3799 = vrot.lane.b32.xlu0 %v3793, 32
        %v3800 = vpop.permute.xlu0 %3799
        %v3801 = vsel %vm3768, %v3798, %v3800
        %v3802 = vsel %vm3768, %v3800, %v3798
        %v3803 = vadd.f32 %v3795, %v3802
        %v3804 = vadd.f32 %v3796, %v3801
        %3805 = vrot.lane.b32.xlu0 %v3802, 32
        %v3806 = vpop.permute.xlu0 %3805
        %3807 = vrot.lane.b32.xlu0 %v3801, 32
        %v3808 = vpop.permute.xlu0 %3807
        %v3809 = vsel %vm3768, %v3806, %v3808
        %v3810 = vsel %vm3768, %v3808, %v3806
        %v3811 = vadd.f32 %v3803, %v3810
        %v3812 = vadd.f32 %v3804, %v3809
        %3813 = vrot.lane.b32.xlu0 %v3810, 32
        %v3814 = vpop.permute.xlu0 %3813
        %3815 = vrot.lane.b32.xlu0 %v3809, 32
        %v3816 = vpop.permute.xlu0 %3815
        %v3817 = vsel %vm3768, %v3814, %v3816
        %v3818 = vsel %vm3768, %v3816, %v3814
        %v3819 = vadd.f32 %v3811, %v3818
        %v3820 = vadd.f32 %v3812, %v3817
        %v3821 = vmul.f32 %v3819, 0.015625
        %v3822 = vmul.f32 %v3820, 0.015625
        %v3823 = vlaneseq
        %v3824 = vshrl.u32 %v3823, 7
        %v3825 = vsub.s32 0, %v3824
        %v3826 = vrot.slane %v3821, %v3825
        %v3827 = vlaneseq
        %v3828 = vshrl.u32 %v3827, 7
        %v3829 = vsub.s32 0, %v3828
        %v3830 = vrot.slane %v3822, %v3829
        %v3831 = vsub.f32 %v3750, %v3826
        %v3832 = vsub.f32 %v3751, %v3830
        %v3833 = vmul.f32 %v3831, %v3831
        %v3834 = vmul.f32 %v3832, %v3832
        %v3835 = vrot.slane %v3833, 4
        %v3836 = vadd.f32 %v3833, %v3835
        %v3837 = vrot.slane %v3836, 2
        %v3838 = vadd.f32 %v3836, %v3837
        %v3839 = vrot.slane %v3838, 1
        %v3840 = vadd.f32 %v3838, %v3839
        %v3841 = vrot.slane %v3834, 4
        %v3842 = vadd.f32 %v3834, %v3841
        %v3843 = vrot.slane %v3842, 2
        %v3844 = vadd.f32 %v3842, %v3843
        %v3845 = vrot.slane %v3844, 1
        %v3846 = vadd.f32 %v3844, %v3845
        %3847 = vrot.lane.b32.xlu0 %v3840, 32
        %v3848 = vpop.permute.xlu0 %3847
        %3849 = vrot.lane.b32.xlu0 %v3846, 32
        %v3850 = vpop.permute.xlu0 %3849
        %v3851 = vsel %vm3768, %v3848, %v3850
        %v3852 = vsel %vm3768, %v3850, %v3848
        %v3853 = vadd.f32 %v3840, %v3852
        %v3854 = vadd.f32 %v3846, %v3851
        %3855 = vrot.lane.b32.xlu0 %v3852, 32
        %v3856 = vpop.permute.xlu0 %3855
        %3857 = vrot.lane.b32.xlu0 %v3851, 32
        %v3858 = vpop.permute.xlu0 %3857
        %v3859 = vsel %vm3768, %v3856, %v3858
        %v3860 = vsel %vm3768, %v3858, %v3856
        %v3861 = vadd.f32 %v3853, %v3860
        %v3862 = vadd.f32 %v3854, %v3859
        %3863 = vrot.lane.b32.xlu0 %v3860, 32
        %v3864 = vpop.permute.xlu0 %3863
        %3865 = vrot.lane.b32.xlu0 %v3859, 32
        %v3866 = vpop.permute.xlu0 %3865
        %v3867 = vsel %vm3768, %v3864, %v3866
        %v3868 = vsel %vm3768, %v3866, %v3864
        %v3869 = vadd.f32 %v3861, %v3868
        %v3870 = vadd.f32 %v3862, %v3867
        %3871 = vrot.lane.b32.xlu0 %v3868, 32
        %v3872 = vpop.permute.xlu0 %3871
        %3873 = vrot.lane.b32.xlu0 %v3867, 32
        %v3874 = vpop.permute.xlu0 %3873
        %v3875 = vsel %vm3768, %v3872, %v3874
        %v3876 = vsel %vm3768, %v3874, %v3872
        %v3877 = vadd.f32 %v3869, %v3876
        %v3878 = vadd.f32 %v3870, %v3875
        %3879 = vrot.lane.b32.xlu0 %v3876, 32
        %v3880 = vpop.permute.xlu0 %3879
        %3881 = vrot.lane.b32.xlu0 %v3875, 32
        %v3882 = vpop.permute.xlu0 %3881
        %v3883 = vsel %vm3768, %v3880, %v3882
        %v3884 = vsel %vm3768, %v3882, %v3880
        %v3885 = vadd.f32 %v3877, %v3884
        %v3886 = vadd.f32 %v3878, %v3883
        %3887 = vrot.lane.b32.xlu0 %v3884, 32
        %v3888 = vpop.permute.xlu0 %3887
        %3889 = vrot.lane.b32.xlu0 %v3883, 32
        %v3890 = vpop.permute.xlu0 %3889
        %v3891 = vsel %vm3768, %v3888, %v3890
        %v3892 = vsel %vm3768, %v3890, %v3888
        %v3893 = vadd.f32 %v3885, %v3892
        %v3894 = vadd.f32 %v3886, %v3891
        %3895 = vrot.lane.b32.xlu0 %v3892, 32
        %v3896 = vpop.permute.xlu0 %3895
        %3897 = vrot.lane.b32.xlu0 %v3891, 32
        %v3898 = vpop.permute.xlu0 %3897
        %v3899 = vsel %vm3768, %v3896, %v3898
        %v3900 = vsel %vm3768, %v3898, %v3896
        %v3901 = vadd.f32 %v3893, %v3900
        %v3902 = vadd.f32 %v3894, %v3899
        %v3903 = vmul.f32 %v3901, 0.015625
        %v3904 = vmul.f32 %v3902, 0.015625
        %v3905 = vadd.f32 %v3903, 1e-05
        %v3906 = vadd.f32 %v3904, 1e-05
        %v3907 = vrsqrt.pop %v3905
        %v3908 = vrsqrt.pop %v3906
        %v3909 = vlaneseq
        %v3910 = vshrl.u32 %v3909, 7
        %v3911 = vsub.s32 0, %v3910
        %v3912 = vrot.slane %v3907, %v3911
        %v3913 = vlaneseq
        %v3914 = vshrl.u32 %v3913, 7
        %v3915 = vsub.s32 0, %v3914
        %v3916 = vrot.slane %v3908, %v3915
        %v3917 = vmul.f32 %v3831, %v3912
        %v3918 = vmul.f32 %v3832, %v3916
        %v3919 = vmax.f32 %v3917, 0.0
        %v3920 = vmax.f32 %v3918, 0.0
        %s3921 = scalar_lea.vmem [#allocation14], 64
        %v3922 = vld [vmem:[%s3921] sm:$0xff]
        %s3923 = scalar_lea.vmem [#allocation14], 80
        %v3924 = vld [vmem:[%s3923] sm:$0xff]
        %vm3925 = vcmask 64512
        %v3927 = vsel %vm3925, %v3922, 0
        %3929 = vmatprep.subr.mxu0 %v3920
        %3930 = vmatpush1.msra.mxu0 %v3919
        %3931 = vmatprep.subr.mxu0 0.0
        %3932 = vmatpush1.msra.mxu0 0.0
        %3933 = vmatprep.subr.mxu0 0.0
        %3934 = vmatpush1.msra.mxu0 0.0
        %3935 = vmatprep.subr.mxu0 0.0
        %3936 = vmatpush1.msra.mxu0 0.0
        %3937 = vmatprep.subr.mxu0 0.0
        %3938 = vmatpush1.msra.mxu0 0.0
        %3939 = vmatprep.subr.mxu0 0.0
        %3940 = vmatpush1.msra.mxu0 0.0
        %3941 = vmatprep.subr.mxu0 0.0
        %3942 = vmatpush1.msra.mxu0 0.0
        %3943 = vmatprep.subr.mxu0 0.0
        %3944 = vmatpush1.msra.mxu0 0.0
        %3945 = vmatprep.subr.mxu0 0.0
        %3946 = vmatpush1.msra.mxu0 0.0
        %3947 = vmatprep.subr.mxu0 0.0
        %3948 = vmatpush1.msra.mxu0 0.0
        %3949 = vmatprep.subr.mxu0 0.0
        %3950 = vmatpush1.msra.mxu0 0.0
        %3951 = vmatprep.subr.mxu0 0.0
        %3952 = vmatpush1.msra.mxu0 0.0
        %3953 = vmatprep.subr.mxu0 0.0
        %3954 = vmatpush1.msra.mxu0 0.0
        %3955 = vmatprep.subr.mxu0 0.0
        %3956 = vmatpush1.msra.mxu0 0.0
        %3957 = vmatprep.subr.mxu0 0.0
        %3958 = vmatpush1.msra.mxu0 0.0
        %3959 = vmatprep.subr.mxu0 0.0
        %3960 = vmatpush1.msra.mxu0 0.0
        %3961 = vmatprep.subr.mxu0 0.0
        %3962 = vmatpush1.msra.mxu0 0.0
        %3963 = vmatprep.subr.mxu0 0.0
        %3964 = vmatpush1.msra.mxu0 0.0
        %3965 = vmatprep.subr.mxu0 0.0
        %3966 = vmatpush1.msra.mxu0 0.0
        %3967 = vmatprep.subr.mxu0 0.0
        %3968 = vmatpush1.msra.mxu0 0.0
        %3969 = vmatprep.subr.mxu0 0.0
        %3970 = vmatpush1.msra.mxu0 0.0
        %3971 = vmatprep.subr.mxu0 0.0
        %3972 = vmatpush1.msra.mxu0 0.0
        %3973 = vmatprep.subr.mxu0 0.0
        %3974 = vmatpush1.msra.mxu0 0.0
        %3975 = vmatprep.subr.mxu0 0.0
        %3976 = vmatpush1.msra.mxu0 0.0
        %3977 = vmatprep.subr.mxu0 0.0
        %3978 = vmatpush1.msra.mxu0 0.0
        %3979 = vmatprep.subr.mxu0 0.0
        %3980 = vmatpush1.msra.mxu0 0.0
        %3981 = vmatprep.subr.mxu0 0.0
        %3982 = vmatpush1.msra.mxu0 0.0
        %3983 = vmatprep.subr.mxu0 0.0
        %3984 = vmatpush1.msra.mxu0 0.0
        %3985 = vmatprep.subr.mxu0 0.0
        %3986 = vmatpush1.msra.mxu0 0.0
        %3987 = vmatprep.subr.mxu0 0.0
        %3988 = vmatpush1.msra.mxu0 0.0
        %3989 = vmatprep.subr.mxu0 0.0
        %3990 = vmatpush1.msra.mxu0 0.0
        %3991 = vmatprep.subr.mxu0 0.0
        %3992 = vmatpush1.msra.mxu0 0.0
        %3993 = vmatprep.mubr.f32.mxu0 0.0
        %3994 = vmatmul.mubr.f32.gmra.mrb[0].mxu0 %v3927
        %v3995 = vpop.f32.mrb[0].mxu0
        %v3996 = vadd.f32 0.0, %v3995
        %v3997 = vpop.f32.mrb[0].mxu0
        %v3998 = vadd.f32 0.0, %v3997
        %3999 = vdwg.mxu0
        %v4001 = vsel %vm3925, %v3924, 0
        %4003 = vmatprep.subr.mxu0 %v3920
        %4004 = vmatpush1.msra.mxu0 %v3919
        %4005 = vmatprep.subr.mxu0 0.0
        %4006 = vmatpush1.msra.mxu0 0.0
        %4007 = vmatprep.subr.mxu0 0.0
        %4008 = vmatpush1.msra.mxu0 0.0
        %4009 = vmatprep.subr.mxu0 0.0
        %4010 = vmatpush1.msra.mxu0 0.0
        %4011 = vmatprep.subr.mxu0 0.0
        %4012 = vmatpush1.msra.mxu0 0.0
        %4013 = vmatprep.subr.mxu0 0.0
        %4014 = vmatpush1.msra.mxu0 0.0
        %4015 = vmatprep.subr.mxu0 0.0
        %4016 = vmatpush1.msra.mxu0 0.0
        %4017 = vmatprep.subr.mxu0 0.0
        %4018 = vmatpush1.msra.mxu0 0.0
        %4019 = vmatprep.subr.mxu0 0.0
        %4020 = vmatpush1.msra.mxu0 0.0
        %4021 = vmatprep.subr.mxu0 0.0
        %4022 = vmatpush1.msra.mxu0 0.0
        %4023 = vmatprep.subr.mxu0 0.0
        %4024 = vmatpush1.msra.mxu0 0.0
        %4025 = vmatprep.subr.mxu0 0.0
        %4026 = vmatpush1.msra.mxu0 0.0
        %4027 = vmatprep.subr.mxu0 0.0
        %4028 = vmatpush1.msra.mxu0 0.0
        %4029 = vmatprep.subr.mxu0 0.0
        %4030 = vmatpush1.msra.mxu0 0.0
        %4031 = vmatprep.subr.mxu0 0.0
        %4032 = vmatpush1.msra.mxu0 0.0
        %4033 = vmatprep.subr.mxu0 0.0
        %4034 = vmatpush1.msra.mxu0 0.0
        %4035 = vmatprep.subr.mxu0 0.0
        %4036 = vmatpush1.msra.mxu0 0.0
        %4037 = vmatprep.subr.mxu0 0.0
        %4038 = vmatpush1.msra.mxu0 0.0
        %4039 = vmatprep.subr.mxu0 0.0
        %4040 = vmatpush1.msra.mxu0 0.0
        %4041 = vmatprep.subr.mxu0 0.0
        %4042 = vmatpush1.msra.mxu0 0.0
        %4043 = vmatprep.subr.mxu0 0.0
        %4044 = vmatpush1.msra.mxu0 0.0
        %4045 = vmatprep.subr.mxu0 0.0
        %4046 = vmatpush1.msra.mxu0 0.0
        %4047 = vmatprep.subr.mxu0 0.0
        %4048 = vmatpush1.msra.mxu0 0.0
        %4049 = vmatprep.subr.mxu0 0.0
        %4050 = vmatpush1.msra.mxu0 0.0
        %4051 = vmatprep.subr.mxu0 0.0
        %4052 = vmatpush1.msra.mxu0 0.0
        %4053 = vmatprep.subr.mxu0 0.0
        %4054 = vmatpush1.msra.mxu0 0.0
        %4055 = vmatprep.subr.mxu0 0.0
        %4056 = vmatpush1.msra.mxu0 0.0
        %4057 = vmatprep.subr.mxu0 0.0
        %4058 = vmatpush1.msra.mxu0 0.0
        %4059 = vmatprep.subr.mxu0 0.0
        %4060 = vmatpush1.msra.mxu0 0.0
        %4061 = vmatprep.subr.mxu0 0.0
        %4062 = vmatpush1.msra.mxu0 0.0
        %4063 = vmatprep.subr.mxu0 0.0
        %4064 = vmatpush1.msra.mxu0 0.0
        %4065 = vmatprep.subr.mxu0 0.0
        %4066 = vmatpush1.msra.mxu0 0.0
        %4067 = vmatprep.mubr.f32.mxu0 0.0
        %4068 = vmatmul.mubr.f32.gmra.mrb[0].mxu0 %v4001
        %v4069 = vpop.f32.mrb[0].mxu0
        %v4070 = vadd.f32 0.0, %v4069
        %v4071 = vpop.f32.mrb[0].mxu0
        %v4072 = vadd.f32 0.0, %v4071
        %4073 = vdwg.mxu0
        %v4074 = vmax.f32 %v3996, %v4070
        %v4075 = vmax.f32 %v3998, %v4072
        %s4076 = scalar_lea.vmem [#allocation15], 1024
        %v4077 = vld [vmem:[%s4076] sm:$0xff]
        %v4078 = vld [vmem:[%s4076 + $0x8] sm:$0xff]
        %v4079 = vld [vmem:[%s4076 + $0x10] sm:$0xff]
        %v4080 = vld [vmem:[%s4076 + $0x18] sm:$0xff]
        %v4081 = vld [vmem:[%s4076 + $0x20] sm:$0xff]
        %v4082 = vld [vmem:[%s4076 + $0x28] sm:$0xff]
        %v4083 = vld [vmem:[%s4076 + $0x30] sm:$0xff]
        %v4084 = vld [vmem:[%s4076 + $0x38] sm:$0xff]
        %v4085 = vld [vmem:[%s4076 + $0x40] sm:$0xff]
        %v4086 = vld [vmem:[%s4076 + $0x48] sm:$0xff]
        %v4087 = vld [vmem:[%s4076 + $0x50] sm:$0xff]
        %v4088 = vld [vmem:[%s4076 + $0x58] sm:$0xff]
        %v4089 = vld [vmem:[%s4076 + $0x60] sm:$0xff]
        %v4090 = vld [vmem:[%s4076 + $0x68] sm:$0xff]
        %v4091 = vld [vmem:[%s4076 + $0x70] sm:$0xff]
        %v4092 = vld [vmem:[%s4076 + $0x78] sm:$0xff]
        %v4093 = vld [vmem:[%s4076 + $0x80] sm:$0xff]
        %v4094 = vld [vmem:[%s4076 + $0x88] sm:$0xff]
        %v4095 = vld [vmem:[%s4076 + $0x90] sm:$0xff]
        %v4096 = vld [vmem:[%s4076 + $0x98] sm:$0xff]
        %v4097 = vld [vmem:[%s4076 + $0xa0] sm:$0xff]
        %v4098 = vld [vmem:[%s4076 + $0xa8] sm:$0xff]
        %v4099 = vld [vmem:[%s4076 + $0xb0] sm:$0xff]
        %v4100 = vld [vmem:[%s4076 + $0xb8] sm:$0xff]
        %v4101 = vld [vmem:[%s4076 + $0xc0] sm:$0xff]
        %v4102 = vld [vmem:[%s4076 + $0xc8] sm:$0xff]
        %v4103 = vld [vmem:[%s4076 + $0xd0] sm:$0xff]
        %v4104 = vld [vmem:[%s4076 + $0xd8] sm:$0xff]
        %v4105 = vld [vmem:[%s4076 + $0xe0] sm:$0xff]
        %v4106 = vld [vmem:[%s4076 + $0xe8] sm:$0xff]
        %v4107 = vld [vmem:[%s4076 + $0xf0] sm:$0xff]
        %v4108 = vld [vmem:[%s4076 + $0xf8] sm:$0xff]
        %s4109 = scalar_lea.vmem [#allocation15], 1280
        %v4110 = vld [vmem:[%s4109] sm:$0xff]
        %v4111 = vld [vmem:[%s4109 + $0x8] sm:$0xff]
        %v4112 = vld [vmem:[%s4109 + $0x10] sm:$0xff]
        %v4113 = vld [vmem:[%s4109 + $0x18] sm:$0xff]
        %v4114 = vld [vmem:[%s4109 + $0x20] sm:$0xff]
        %v4115 = vld [vmem:[%s4109 + $0x28] sm:$0xff]
        %v4116 = vld [vmem:[%s4109 + $0x30] sm:$0xff]
        %v4117 = vld [vmem:[%s4109 + $0x38] sm:$0xff]
        %v4118 = vld [vmem:[%s4109 + $0x40] sm:$0xff]
        %v4119 = vld [vmem:[%s4109 + $0x48] sm:$0xff]
        %v4120 = vld [vmem:[%s4109 + $0x50] sm:$0xff]
        %v4121 = vld [vmem:[%s4109 + $0x58] sm:$0xff]
        %v4122 = vld [vmem:[%s4109 + $0x60] sm:$0xff]
        %v4123 = vld [vmem:[%s4109 + $0x68] sm:$0xff]
        %v4124 = vld [vmem:[%s4109 + $0x70] sm:$0xff]
        %v4125 = vld [vmem:[%s4109 + $0x78] sm:$0xff]
        %v4126 = vld [vmem:[%s4109 + $0x80] sm:$0xff]
        %v4127 = vld [vmem:[%s4109 + $0x88] sm:$0xff]
        %v4128 = vld [vmem:[%s4109 + $0x90] sm:$0xff]
        %v4129 = vld [vmem:[%s4109 + $0x98] sm:$0xff]
        %v4130 = vld [vmem:[%s4109 + $0xa0] sm:$0xff]
        %v4131 = vld [vmem:[%s4109 + $0xa8] sm:$0xff]
        %v4132 = vld [vmem:[%s4109 + $0xb0] sm:$0xff]
        %v4133 = vld [vmem:[%s4109 + $0xb8] sm:$0xff]
        %v4134 = vld [vmem:[%s4109 + $0xc0] sm:$0xff]
        %v4135 = vld [vmem:[%s4109 + $0xc8] sm:$0xff]
        %v4136 = vld [vmem:[%s4109 + $0xd0] sm:$0xff]
        %v4137 = vld [vmem:[%s4109 + $0xd8] sm:$0xff]
        %v4138 = vld [vmem:[%s4109 + $0xe0] sm:$0xff]
        %v4139 = vld [vmem:[%s4109 + $0xe8] sm:$0xff]
        %v4140 = vld [vmem:[%s4109 + $0xf0] sm:$0xff]
        %v4141 = vld [vmem:[%s4109 + $0xf8] sm:$0xff]
        %4142 = vmatprep.subr.mxu0 0.0
        %4143 = vmatpush1.msra.mxu0 %v4077
        %4144 = vmatprep.subr.mxu0 0.0
        %4145 = vmatpush1.msra.mxu0 %v4078
        %4146 = vmatprep.subr.mxu0 0.0
        %4147 = vmatpush1.msra.mxu0 %v4079
        %4148 = vmatprep.subr.mxu0 0.0
        %4149 = vmatpush1.msra.mxu0 %v4080
        %4150 = vmatprep.subr.mxu0 0.0
        %4151 = vmatpush1.msra.mxu0 %v4081
        %4152 = vmatprep.subr.mxu0 0.0
        %4153 = vmatpush1.msra.mxu0 %v4082
        %4154 = vmatprep.subr.mxu0 0.0
        %4155 = vmatpush1.msra.mxu0 %v4083
        %4156 = vmatprep.subr.mxu0 0.0
        %4157 = vmatpush1.msra.mxu0 %v4084
        %4158 = vmatprep.subr.mxu0 0.0
        %4159 = vmatpush1.msra.mxu0 %v4085
        %4160 = vmatprep.subr.mxu0 0.0
        %4161 = vmatpush1.msra.mxu0 %v4086
        %4162 = vmatprep.subr.mxu0 0.0
        %4163 = vmatpush1.msra.mxu0 %v4087
        %4164 = vmatprep.subr.mxu0 0.0
        %4165 = vmatpush1.msra.mxu0 %v4088
        %4166 = vmatprep.subr.mxu0 0.0
        %4167 = vmatpush1.msra.mxu0 %v4089
        %4168 = vmatprep.subr.mxu0 0.0
        %4169 = vmatpush1.msra.mxu0 %v4090
        %4170 = vmatprep.subr.mxu0 0.0
        %4171 = vmatpush1.msra.mxu0 %v4091
        %4172 = vmatprep.subr.mxu0 0.0
        %4173 = vmatpush1.msra.mxu0 %v4092
        %4174 = vmatprep.subr.mxu0 0.0
        %4175 = vmatpush1.msra.mxu0 %v4093
        %4176 = vmatprep.subr.mxu0 0.0
        %4177 = vmatpush1.msra.mxu0 %v4094
        %4178 = vmatprep.subr.mxu0 0.0
        %4179 = vmatpush1.msra.mxu0 %v4095
        %4180 = vmatprep.subr.mxu0 0.0
        %4181 = vmatpush1.msra.mxu0 %v4096
        %4182 = vmatprep.subr.mxu0 0.0
        %4183 = vmatpush1.msra.mxu0 %v4097
        %4184 = vmatprep.subr.mxu0 0.0
        %4185 = vmatpush1.msra.mxu0 %v4098
        %4186 = vmatprep.subr.mxu0 0.0
        %4187 = vmatpush1.msra.mxu0 %v4099
        %4188 = vmatprep.subr.mxu0 0.0
        %4189 = vmatpush1.msra.mxu0 %v4100
        %4190 = vmatprep.subr.mxu0 0.0
        %4191 = vmatpush1.msra.mxu0 %v4101
        %4192 = vmatprep.subr.mxu0 0.0
        %4193 = vmatpush1.msra.mxu0 %v4102
        %4194 = vmatprep.subr.mxu0 0.0
        %4195 = vmatpush1.msra.mxu0 %v4103
        %4196 = vmatprep.subr.mxu0 0.0
        %4197 = vmatpush1.msra.mxu0 %v4104
        %4198 = vmatprep.subr.mxu0 0.0
        %4199 = vmatpush1.msra.mxu0 %v4105
        %4200 = vmatprep.subr.mxu0 0.0
        %4201 = vmatpush1.msra.mxu0 %v4106
        %4202 = vmatprep.subr.mxu0 0.0
        %4203 = vmatpush1.msra.mxu0 %v4107
        %4204 = vmatprep.subr.mxu0 0.0
        %4205 = vmatpush1.msra.mxu0 %v4108
        %4206 = vmatprep.mubr.f32.mxu0 %v4075
        %4207 = vmatmul.mubr.f32.gmra.mrb[0].mxu0 %v4074
        %v4208 = vpop.f32.mrb[0].mxu0
        %v4209 = vadd.f32 0.0, %v4208
        %v4210 = vpop.f32.mrb[0].mxu0
        %4211 = vdwg.mxu0
        %4212 = vmatprep.subr.mxu0 0.0
        %4213 = vmatpush1.msra.mxu0 %v4110
        %4214 = vmatprep.subr.mxu0 0.0
        %4215 = vmatpush1.msra.mxu0 %v4111
        %4216 = vmatprep.subr.mxu0 0.0
        %4217 = vmatpush1.msra.mxu0 %v4112
        %4218 = vmatprep.subr.mxu0 0.0
        %4219 = vmatpush1.msra.mxu0 %v4113
        %4220 = vmatprep.subr.mxu0 0.0
        %4221 = vmatpush1.msra.mxu0 %v4114
        %4222 = vmatprep.subr.mxu0 0.0
        %4223 = vmatpush1.msra.mxu0 %v4115
        %4224 = vmatprep.subr.mxu0 0.0
        %4225 = vmatpush1.msra.mxu0 %v4116
        %4226 = vmatprep.subr.mxu0 0.0
        %4227 = vmatpush1.msra.mxu0 %v4117
        %4228 = vmatprep.subr.mxu0 0.0
        %4229 = vmatpush1.msra.mxu0 %v4118
        %4230 = vmatprep.subr.mxu0 0.0
        %4231 = vmatpush1.msra.mxu0 %v4119
        %4232 = vmatprep.subr.mxu0 0.0
        %4233 = vmatpush1.msra.mxu0 %v4120
        %4234 = vmatprep.subr.mxu0 0.0
        %4235 = vmatpush1.msra.mxu0 %v4121
        %4236 = vmatprep.subr.mxu0 0.0
        %4237 = vmatpush1.msra.mxu0 %v4122
        %4238 = vmatprep.subr.mxu0 0.0
        %4239 = vmatpush1.msra.mxu0 %v4123
        %4240 = vmatprep.subr.mxu0 0.0
        %4241 = vmatpush1.msra.mxu0 %v4124
        %4242 = vmatprep.subr.mxu0 0.0
        %4243 = vmatpush1.msra.mxu0 %v4125
        %4244 = vmatprep.subr.mxu0 0.0
        %4245 = vmatpush1.msra.mxu0 %v4126
        %4246 = vmatprep.subr.mxu0 0.0
        %4247 = vmatpush1.msra.mxu0 %v4127
        %4248 = vmatprep.subr.mxu0 0.0
        %4249 = vmatpush1.msra.mxu0 %v4128
        %4250 = vmatprep.subr.mxu0 0.0
        %4251 = vmatpush1.msra.mxu0 %v4129
        %4252 = vmatprep.subr.mxu0 0.0
        %4253 = vmatpush1.msra.mxu0 %v4130
        %4254 = vmatprep.subr.mxu0 0.0
        %4255 = vmatpush1.msra.mxu0 %v4131
        %4256 = vmatprep.subr.mxu0 0.0
        %4257 = vmatpush1.msra.mxu0 %v4132
        %4258 = vmatprep.subr.mxu0 0.0
        %4259 = vmatpush1.msra.mxu0 %v4133
        %4260 = vmatprep.subr.mxu0 0.0
        %4261 = vmatpush1.msra.mxu0 %v4134
        %4262 = vmatprep.subr.mxu0 0.0
        %4263 = vmatpush1.msra.mxu0 %v4135
        %4264 = vmatprep.subr.mxu0 0.0
        %4265 = vmatpush1.msra.mxu0 %v4136
        %4266 = vmatprep.subr.mxu0 0.0
        %4267 = vmatpush1.msra.mxu0 %v4137
        %4268 = vmatprep.subr.mxu0 0.0
        %4269 = vmatpush1.msra.mxu0 %v4138
        %4270 = vmatprep.subr.mxu0 0.0
        %4271 = vmatpush1.msra.mxu0 %v4139
        %4272 = vmatprep.subr.mxu0 0.0
        %4273 = vmatpush1.msra.mxu0 %v4140
        %4274 = vmatprep.subr.mxu0 0.0
        %4275 = vmatpush1.msra.mxu0 %v4141
        %4276 = vmatprep.mubr.f32.mxu0 %v4075
        %4277 = vmatmul.mubr.f32.gmra.mrb[0].mxu0 %v4074
        %v4278 = vpop.f32.mrb[0].mxu0
        %v4279 = vadd.f32 0.0, %v4278
        %v4280 = vpop.f32.mrb[0].mxu0
        %4281 = vdwg.mxu0
        %v4282 = vmax.f32 %v4209, %v4279
        %s4283 = scalar_lea.vmem [#allocation12], 6
        %v4284 = vld [vmem:[%s4283] sm:$0x3]
        %4285 = vst [vmem:[#allocation2 + $0x2] sm:$0xf] %v4282
        %4286 = vst [vmem:[#allocation2 - $0x2] sm:$0x4] %v4282
        %4287 = vst [vmem:[#allocation2 + $0x4] sm:$0x4] %v4282
        %4288 = vst [vmem:[#allocation2] sm:$0x2] %v4282
        %4289 = vst [vmem:[#allocation2 + $0x6] sm:$0x2] %v4282
        %v4290 = vld [vmem:[#allocation2] sm:$0xf]
        %v4291 = vpack.c.bf16 %v4290, %v4290
        %v4292 = vld [vmem:[#allocation11] sm:$0xff]
        %v4293 = vld [vmem:[#allocation11 + $0x8] sm:$0xff]
        %v4294 = vld [vmem:[#allocation11 + $0x10] sm:$0xff]
        %v4295 = vld [vmem:[#allocation11 + $0x18] sm:$0xff]
        %v4296 = vld [vmem:[#allocation11 + $0x20] sm:$0xff]
        %v4297 = vld [vmem:[#allocation11 + $0x28] sm:$0xff]
        %v4298 = vld [vmem:[#allocation11 + $0x30] sm:$0xff]
        %v4299 = vld [vmem:[#allocation11 + $0x38] sm:$0xff]
        %v4300 = vld [vmem:[#allocation11 + $0x40] sm:$0xff]
        %v4301 = vld [vmem:[#allocation11 + $0x48] sm:$0xff]
        %v4302 = vld [vmem:[#allocation11 + $0x50] sm:$0xff]
        %v4303 = vld [vmem:[#allocation11 + $0x58] sm:$0xff]
        %v4304 = vld [vmem:[#allocation11 + $0x60] sm:$0xff]
        %v4305 = vld [vmem:[#allocation11 + $0x68] sm:$0xff]
        %v4306 = vld [vmem:[#allocation11 + $0x70] sm:$0xff]
        %v4307 = vld [vmem:[#allocation11 + $0x78] sm:$0xff]
        %v4308 = vld [vmem:[#allocation2 + $0x1] sm:$0xf]
        %v4309 = vpack.c.bf16 %v4308, %v4308
        %s4310 = scalar_lea.vmem [#allocation11], 128
        %v4311 = vld [vmem:[%s4310] sm:$0xff]
        %v4312 = vld [vmem:[%s4310 + $0x8] sm:$0xff]
        %v4313 = vld [vmem:[%s4310 + $0x10] sm:$0xff]
        %v4314 = vld [vmem:[%s4310 + $0x18] sm:$0xff]
        %v4315 = vld [vmem:[%s4310 + $0x20] sm:$0xff]
        %v4316 = vld [vmem:[%s4310 + $0x28] sm:$0xff]
        %v4317 = vld [vmem:[%s4310 + $0x30] sm:$0xff]
        %v4318 = vld [vmem:[%s4310 + $0x38] sm:$0xff]
        %v4319 = vld [vmem:[%s4310 + $0x40] sm:$0xff]
        %v4320 = vld [vmem:[%s4310 + $0x48] sm:$0xff]
        %v4321 = vld [vmem:[%s4310 + $0x50] sm:$0xff]
        %v4322 = vld [vmem:[%s4310 + $0x58] sm:$0xff]
        %v4323 = vld [vmem:[%s4310 + $0x60] sm:$0xff]
        %v4324 = vld [vmem:[%s4310 + $0x68] sm:$0xff]
        %v4325 = vld [vmem:[%s4310 + $0x70] sm:$0xff]
        %v4326 = vld [vmem:[%s4310 + $0x78] sm:$0xff]
        %v4343 = vunpack.c.l.b16 %v4311
        %v4344 = vunpack.c.h.b16 %v4311
        %v4345 = vunpack.c.l.b16 %v4312
        %v4346 = vunpack.c.h.b16 %v4312
        %v4347 = vunpack.c.l.b16 %v4313
        %v4348 = vunpack.c.h.b16 %v4313
        %v4349 = vunpack.c.l.b16 %v4314
        %v4350 = vunpack.c.h.b16 %v4314
        %v4351 = vunpack.c.l.b16 %v4315
        %v4352 = vunpack.c.h.b16 %v4315
        %v4353 = vunpack.c.l.b16 %v4316
        %v4354 = vunpack.c.h.b16 %v4316
        %v4355 = vunpack.c.l.b16 %v4317
        %v4356 = vunpack.c.h.b16 %v4317
        %v4357 = vunpack.c.l.b16 %v4318
        %v4358 = vunpack.c.h.b16 %v4318
        %v4359 = vunpack.c.l.b16 %v4319
        %v4360 = vunpack.c.h.b16 %v4319
        %v4361 = vunpack.c.l.b16 %v4320
        %v4362 = vunpack.c.h.b16 %v4320
        %v4363 = vunpack.c.l.b16 %v4321
        %v4364 = vunpack.c.h.b16 %v4321
        %v4365 = vunpack.c.l.b16 %v4322
        %v4366 = vunpack.c.h.b16 %v4322
        %v4367 = vunpack.c.l.b16 %v4323
        %v4368 = vunpack.c.h.b16 %v4323
        %v4369 = vunpack.c.l.b16 %v4324
        %v4370 = vunpack.c.h.b16 %v4324
        %v4371 = vunpack.c.l.b16 %v4325
        %v4372 = vunpack.c.h.b16 %v4325
        %v4373 = vunpack.c.l.b16 %v4326
        %v4374 = vunpack.c.h.b16 %v4326
        %v4375 = vpack.c.b16 %v4345, %v4343
        %v4376 = vpack.c.b16 %v4346, %v4344
        %v4377 = vpack.c.b16 %v4349, %v4347
        %v4378 = vpack.c.b16 %v4350, %v4348
        %v4379 = vpack.c.b16 %v4353, %v4351
        %v4380 = vpack.c.b16 %v4354, %v4352
        %v4381 = vpack.c.b16 %v4357, %v4355
        %v4382 = vpack.c.b16 %v4358, %v4356
        %v4383 = vpack.c.b16 %v4361, %v4359
        %v4384 = vpack.c.b16 %v4362, %v4360
        %v4385 = vpack.c.b16 %v4365, %v4363
        %v4386 = vpack.c.b16 %v4366, %v4364
        %v4387 = vpack.c.b16 %v4369, %v4367
        %v4388 = vpack.c.b16 %v4370, %v4368
        %v4389 = vpack.c.b16 %v4373, %v4371
        %v4390 = vpack.c.b16 %v4374, %v4372
        %4407 = vmatprep.subr.bf16.mxu0 %v4376
        %4408 = vmatpush1.bf16.msra.mxu0 %v4375
        %4409 = vmatprep.subr.bf16.mxu0 %v4378
        %4410 = vmatpush1.bf16.msra.mxu0 %v4377
        %4411 = vmatprep.subr.bf16.mxu0 %v4380
        %4412 = vmatpush1.bf16.msra.mxu0 %v4379
        %4413 = vmatprep.subr.bf16.mxu0 %v4382
        %4414 = vmatpush1.bf16.msra.mxu0 %v4381
        %4415 = vmatprep.subr.bf16.mxu0 %v4384
        %4416 = vmatpush1.bf16.msra.mxu0 %v4383
        %4417 = vmatprep.subr.bf16.mxu0 %v4386
        %4418 = vmatpush1.bf16.msra.mxu0 %v4385
        %4419 = vmatprep.subr.bf16.mxu0 %v4388
        %4420 = vmatpush1.bf16.msra.mxu0 %v4387
        %4421 = vmatprep.subr.bf16.mxu0 %v4390
        %4422 = vmatpush1.bf16.msra.mxu0 %v4389
        %4423 = vmatprep.subr.bf16.mxu0 0
        %4424 = vmatpush1.bf16.msra.mxu0 0
        %4425 = vmatprep.subr.bf16.mxu0 0
        %4426 = vmatpush1.bf16.msra.mxu0 0
        %4427 = vmatprep.subr.bf16.mxu0 0
        %4428 = vmatpush1.bf16.msra.mxu0 0
        %4429 = vmatprep.subr.bf16.mxu0 0
        %4430 = vmatpush1.bf16.msra.mxu0 0
        %4431 = vmatprep.subr.bf16.mxu0 0
        %4432 = vmatpush1.bf16.msra.mxu0 0
        %4433 = vmatprep.subr.bf16.mxu0 0
        %4434 = vmatpush1.bf16.msra.mxu0 0
        %4435 = vmatprep.subr.bf16.mxu0 0
        %4436 = vmatpush1.bf16.msra.mxu0 0
        %4437 = vmatprep.subr.bf16.mxu0 0
        %4438 = vmatpush1.bf16.msra.mxu0 0
        %4439 = vmatprep.mubr.bf16.mxu0 0
        %4440 = vmatmul.mubr.bf16.gmra.mrb[0].mxu0 %v4309
        %v4441 = vpop.f32.mrb[0].mxu0
        %v4442 = vadd.f32 0.0, %v4441
        %v4443 = vpop.f32.mrb[0].mxu0
        %v4444 = vadd.f32 0.0, %v4443
        %v4445 = vpop.f32.mrb[0].mxu0
        %v4446 = vpop.f32.mrb[0].mxu0
        %4447 = vdwg.mxu0
        %v4464 = vunpack.c.l.b16 %v4292
        %v4465 = vunpack.c.h.b16 %v4292
        %v4466 = vunpack.c.l.b16 %v4293
        %v4467 = vunpack.c.h.b16 %v4293
        %v4468 = vunpack.c.l.b16 %v4294
        %v4469 = vunpack.c.h.b16 %v4294
        %v4470 = vunpack.c.l.b16 %v4295
        %v4471 = vunpack.c.h.b16 %v4295
        %v4472 = vunpack.c.l.b16 %v4296
        %v4473 = vunpack.c.h.b16 %v4296
        %v4474 = vunpack.c.l.b16 %v4297
        %v4475 = vunpack.c.h.b16 %v4297
        %v4476 = vunpack.c.l.b16 %v4298
        %v4477 = vunpack.c.h.b16 %v4298
        %v4478 = vunpack.c.l.b16 %v4299
        %v4479 = vunpack.c.h.b16 %v4299
        %v4480 = vunpack.c.l.b16 %v4300
        %v4481 = vunpack.c.h.b16 %v4300
        %v4482 = vunpack.c.l.b16 %v4301
        %v4483 = vunpack.c.h.b16 %v4301
        %v4484 = vunpack.c.l.b16 %v4302
        %v4485 = vunpack.c.h.b16 %v4302
        %v4486 = vunpack.c.l.b16 %v4303
        %v4487 = vunpack.c.h.b16 %v4303
        %v4488 = vunpack.c.l.b16 %v4304
        %v4489 = vunpack.c.h.b16 %v4304
        %v4490 = vunpack.c.l.b16 %v4305
        %v4491 = vunpack.c.h.b16 %v4305
        %v4492 = vunpack.c.l.b16 %v4306
        %v4493 = vunpack.c.h.b16 %v4306
        %v4494 = vunpack.c.l.b16 %v4307
        %v4495 = vunpack.c.h.b16 %v4307
        %v4496 = vpack.c.b16 %v4466, %v4464
        %v4497 = vpack.c.b16 %v4467, %v4465
        %v4498 = vpack.c.b16 %v4470, %v4468
        %v4499 = vpack.c.b16 %v4471, %v4469
        %v4500 = vpack.c.b16 %v4474, %v4472
        %v4501 = vpack.c.b16 %v4475, %v4473
        %v4502 = vpack.c.b16 %v4478, %v4476
        %v4503 = vpack.c.b16 %v4479, %v4477
        %v4504 = vpack.c.b16 %v4482, %v4480
        %v4505 = vpack.c.b16 %v4483, %v4481
        %v4506 = vpack.c.b16 %v4486, %v4484
        %v4507 = vpack.c.b16 %v4487, %v4485
        %v4508 = vpack.c.b16 %v4490, %v4488
        %v4509 = vpack.c.b16 %v4491, %v4489
        %v4510 = vpack.c.b16 %v4494, %v4492
        %v4511 = vpack.c.b16 %v4495, %v4493
        %4528 = vmatprep.subr.bf16.mxu0 %v4497
        %4529 = vmatpush1.bf16.msra.mxu0 %v4496
        %4530 = vmatprep.subr.bf16.mxu0 %v4499
        %4531 = vmatpush1.bf16.msra.mxu0 %v4498
        %4532 = vmatprep.subr.bf16.mxu0 %v4501
        %4533 = vmatpush1.bf16.msra.mxu0 %v4500
        %4534 = vmatprep.subr.bf16.mxu0 %v4503
        %4535 = vmatpush1.bf16.msra.mxu0 %v4502
        %4536 = vmatprep.subr.bf16.mxu0 %v4505
        %4537 = vmatpush1.bf16.msra.mxu0 %v4504
        %4538 = vmatprep.subr.bf16.mxu0 %v4507
        %4539 = vmatpush1.bf16.msra.mxu0 %v4506
        %4540 = vmatprep.subr.bf16.mxu0 %v4509
        %4541 = vmatpush1.bf16.msra.mxu0 %v4508
        %4542 = vmatprep.subr.bf16.mxu0 %v4511
        %4543 = vmatpush1.bf16.msra.mxu0 %v4510
        %4544 = vmatprep.subr.bf16.mxu0 0
        %4545 = vmatpush1.bf16.msra.mxu0 0
        %4546 = vmatprep.subr.bf16.mxu0 0
        %4547 = vmatpush1.bf16.msra.mxu0 0
        %4548 = vmatprep.subr.bf16.mxu0 0
        %4549 = vmatpush1.bf16.msra.mxu0 0
        %4550 = vmatprep.subr.bf16.mxu0 0
        %4551 = vmatpush1.bf16.msra.mxu0 0
        %4552 = vmatprep.subr.bf16.mxu0 0
        %4553 = vmatpush1.bf16.msra.mxu0 0
        %4554 = vmatprep.subr.bf16.mxu0 0
        %4555 = vmatpush1.bf16.msra.mxu0 0
        %4556 = vmatprep.subr.bf16.mxu0 0
        %4557 = vmatpush1.bf16.msra.mxu0 0
        %4558 = vmatprep.subr.bf16.mxu0 0
        %4559 = vmatpush1.bf16.msra.mxu0 0
        %4560 = vmatprep.mubr.bf16.mxu0 0
        %4561 = vmatmul.mubr.bf16.gmra.mrb[0].mxu0 %v4291
        %v4562 = vpop.f32.mrb[0].mxu0
        %v4563 = vadd.f32 %v4442, %v4562
        %v4564 = vpop.f32.mrb[0].mxu0
        %v4565 = vadd.f32 %v4444, %v4564
        %v4566 = vpop.f32.mrb[0].mxu0
        %v4567 = vpop.f32.mrb[0].mxu0
        %4568 = vdwg.mxu0
        %v4569 = vld [vmem:[#allocation2 + $0x2] sm:$0xf]
        %v4570 = vpack.c.bf16 %v4569, %v4569
        %s4571 = scalar_lea.vmem [#allocation11], 256
        %v4572 = vld [vmem:[%s4571] sm:$0xff]
        %v4573 = vld [vmem:[%s4571 + $0x8] sm:$0xff]
        %v4574 = vld [vmem:[%s4571 + $0x10] sm:$0xff]
        %v4575 = vld [vmem:[%s4571 + $0x18] sm:$0xff]
        %v4576 = vld [vmem:[%s4571 + $0x20] sm:$0xff]
        %v4577 = vld [vmem:[%s4571 + $0x28] sm:$0xff]
        %v4578 = vld [vmem:[%s4571 + $0x30] sm:$0xff]
        %v4579 = vld [vmem:[%s4571 + $0x38] sm:$0xff]
        %v4580 = vld [vmem:[%s4571 + $0x40] sm:$0xff]
        %v4581 = vld [vmem:[%s4571 + $0x48] sm:$0xff]
        %v4582 = vld [vmem:[%s4571 + $0x50] sm:$0xff]
        %v4583 = vld [vmem:[%s4571 + $0x58] sm:$0xff]
        %v4584 = vld [vmem:[%s4571 + $0x60] sm:$0xff]
        %v4585 = vld [vmem:[%s4571 + $0x68] sm:$0xff]
        %v4586 = vld [vmem:[%s4571 + $0x70] sm:$0xff]
        %v4587 = vld [vmem:[%s4571 + $0x78] sm:$0xff]
        %v4604 = vunpack.c.l.b16 %v4572
        %v4605 = vunpack.c.h.b16 %v4572
        %v4606 = vunpack.c.l.b16 %v4573
        %v4607 = vunpack.c.h.b16 %v4573
        %v4608 = vunpack.c.l.b16 %v4574
        %v4609 = vunpack.c.h.b16 %v4574
        %v4610 = vunpack.c.l.b16 %v4575
        %v4611 = vunpack.c.h.b16 %v4575
        %v4612 = vunpack.c.l.b16 %v4576
        %v4613 = vunpack.c.h.b16 %v4576
        %v4614 = vunpack.c.l.b16 %v4577
        %v4615 = vunpack.c.h.b16 %v4577
        %v4616 = vunpack.c.l.b16 %v4578
        %v4617 = vunpack.c.h.b16 %v4578
        %v4618 = vunpack.c.l.b16 %v4579
        %v4619 = vunpack.c.h.b16 %v4579
        %v4620 = vunpack.c.l.b16 %v4580
        %v4621 = vunpack.c.h.b16 %v4580
        %v4622 = vunpack.c.l.b16 %v4581
        %v4623 = vunpack.c.h.b16 %v4581
        %v4624 = vunpack.c.l.b16 %v4582
        %v4625 = vunpack.c.h.b16 %v4582
        %v4626 = vunpack.c.l.b16 %v4583
        %v4627 = vunpack.c.h.b16 %v4583
        %v4628 = vunpack.c.l.b16 %v4584
        %v4629 = vunpack.c.h.b16 %v4584
        %v4630 = vunpack.c.l.b16 %v4585
        %v4631 = vunpack.c.h.b16 %v4585
        %v4632 = vunpack.c.l.b16 %v4586
        %v4633 = vunpack.c.h.b16 %v4586
        %v4634 = vunpack.c.l.b16 %v4587
        %v4635 = vunpack.c.h.b16 %v4587
        %v4636 = vpack.c.b16 %v4606, %v4604
        %v4637 = vpack.c.b16 %v4607, %v4605
        %v4638 = vpack.c.b16 %v4610, %v4608
        %v4639 = vpack.c.b16 %v4611, %v4609
        %v4640 = vpack.c.b16 %v4614, %v4612
        %v4641 = vpack.c.b16 %v4615, %v4613
        %v4642 = vpack.c.b16 %v4618, %v4616
        %v4643 = vpack.c.b16 %v4619, %v4617
        %v4644 = vpack.c.b16 %v4622, %v4620
        %v4645 = vpack.c.b16 %v4623, %v4621
        %v4646 = vpack.c.b16 %v4626, %v4624
        %v4647 = vpack.c.b16 %v4627, %v4625
        %v4648 = vpack.c.b16 %v4630, %v4628
        %v4649 = vpack.c.b16 %v4631, %v4629
        %v4650 = vpack.c.b16 %v4634, %v4632
        %v4651 = vpack.c.b16 %v4635, %v4633
        %4668 = vmatprep.subr.bf16.mxu0 %v4637
        %4669 = vmatpush1.bf16.msra.mxu0 %v4636
        %4670 = vmatprep.subr.bf16.mxu0 %v4639
        %4671 = vmatpush1.bf16.msra.mxu0 %v4638
        %4672 = vmatprep.subr.bf16.mxu0 %v4641
        %4673 = vmatpush1.bf16.msra.mxu0 %v4640
        %4674 = vmatprep.subr.bf16.mxu0 %v4643
        %4675 = vmatpush1.bf16.msra.mxu0 %v4642
        %4676 = vmatprep.subr.bf16.mxu0 %v4645
        %4677 = vmatpush1.bf16.msra.mxu0 %v4644
        %4678 = vmatprep.subr.bf16.mxu0 %v4647
        %4679 = vmatpush1.bf16.msra.mxu0 %v4646
        %4680 = vmatprep.subr.bf16.mxu0 %v4649
        %4681 = vmatpush1.bf16.msra.mxu0 %v4648
        %4682 = vmatprep.subr.bf16.mxu0 %v4651
        %4683 = vmatpush1.bf16.msra.mxu0 %v4650
        %4684 = vmatprep.subr.bf16.mxu0 0
        %4685 = vmatpush1.bf16.msra.mxu0 0
        %4686 = vmatprep.subr.bf16.mxu0 0
        %4687 = vmatpush1.bf16.msra.mxu0 0
        %4688 = vmatprep.subr.bf16.mxu0 0
        %4689 = vmatpush1.bf16.msra.mxu0 0
        %4690 = vmatprep.subr.bf16.mxu0 0
        %4691 = vmatpush1.bf16.msra.mxu0 0
        %4692 = vmatprep.subr.bf16.mxu0 0
        %4693 = vmatpush1.bf16.msra.mxu0 0
        %4694 = vmatprep.subr.bf16.mxu0 0
        %4695 = vmatpush1.bf16.msra.mxu0 0
        %4696 = vmatprep.subr.bf16.mxu0 0
        %4697 = vmatpush1.bf16.msra.mxu0 0
        %4698 = vmatprep.subr.bf16.mxu0 0
        %4699 = vmatpush1.bf16.msra.mxu0 0
        %4700 = vmatprep.mubr.bf16.mxu0 0
        %4701 = vmatmul.mubr.bf16.gmra.mrb[0].mxu0 %v4570
        %v4702 = vpop.f32.mrb[0].mxu0
        %v4703 = vadd.f32 0.0, %v4702
        %v4704 = vpop.f32.mrb[0].mxu0
        %v4705 = vadd.f32 0.0, %v4704
        %v4706 = vpop.f32.mrb[0].mxu0
        %v4707 = vpop.f32.mrb[0].mxu0
        %4708 = vdwg.mxu0
        %v4709 = vadd.f32 %v4563, %v4703
        %v4710 = vadd.f32 %v4565, %v4705
        %v4711 = vld [vmem:[#allocation2 + $0x3] sm:$0xf]
        %v4712 = vpack.c.bf16 %v4711, %v4711
        %s4713 = scalar_lea.vmem [#allocation11], 384
        %v4714 = vld [vmem:[%s4713] sm:$0xff]
        %v4715 = vld [vmem:[%s4713 + $0x8] sm:$0xff]
        %v4716 = vld [vmem:[%s4713 + $0x10] sm:$0xff]
        %v4717 = vld [vmem:[%s4713 + $0x18] sm:$0xff]
        %v4718 = vld [vmem:[%s4713 + $0x20] sm:$0xff]
        %v4719 = vld [vmem:[%s4713 + $0x28] sm:$0xff]
        %v4720 = vld [vmem:[%s4713 + $0x30] sm:$0xff]
        %v4721 = vld [vmem:[%s4713 + $0x38] sm:$0xff]
        %v4722 = vld [vmem:[%s4713 + $0x40] sm:$0xff]
        %v4723 = vld [vmem:[%s4713 + $0x48] sm:$0xff]
        %v4724 = vld [vmem:[%s4713 + $0x50] sm:$0xff]
        %v4725 = vld [vmem:[%s4713 + $0x58] sm:$0xff]
        %v4726 = vld [vmem:[%s4713 + $0x60] sm:$0xff]
        %v4727 = vld [vmem:[%s4713 + $0x68] sm:$0xff]
        %v4728 = vld [vmem:[%s4713 + $0x70] sm:$0xff]
        %v4729 = vld [vmem:[%s4713 + $0x78] sm:$0xff]
        %v4746 = vunpack.c.l.b16 %v4714
        %v4747 = vunpack.c.h.b16 %v4714
        %v4748 = vunpack.c.l.b16 %v4715
        %v4749 = vunpack.c.h.b16 %v4715
        %v4750 = vunpack.c.l.b16 %v4716
        %v4751 = vunpack.c.h.b16 %v4716
        %v4752 = vunpack.c.l.b16 %v4717
        %v4753 = vunpack.c.h.b16 %v4717
        %v4754 = vunpack.c.l.b16 %v4718
        %v4755 = vunpack.c.h.b16 %v4718
        %v4756 = vunpack.c.l.b16 %v4719
        %v4757 = vunpack.c.h.b16 %v4719
        %v4758 = vunpack.c.l.b16 %v4720
        %v4759 = vunpack.c.h.b16 %v4720
        %v4760 = vunpack.c.l.b16 %v4721
        %v4761 = vunpack.c.h.b16 %v4721
        %v4762 = vunpack.c.l.b16 %v4722
        %v4763 = vunpack.c.h.b16 %v4722
        %v4764 = vunpack.c.l.b16 %v4723
        %v4765 = vunpack.c.h.b16 %v4723
        %v4766 = vunpack.c.l.b16 %v4724
        %v4767 = vunpack.c.h.b16 %v4724
        %v4768 = vunpack.c.l.b16 %v4725
        %v4769 = vunpack.c.h.b16 %v4725
        %v4770 = vunpack.c.l.b16 %v4726
        %v4771 = vunpack.c.h.b16 %v4726
        %v4772 = vunpack.c.l.b16 %v4727
        %v4773 = vunpack.c.h.b16 %v4727
        %v4774 = vunpack.c.l.b16 %v4728
        %v4775 = vunpack.c.h.b16 %v4728
        %v4776 = vunpack.c.l.b16 %v4729
        %v4777 = vunpack.c.h.b16 %v4729
        %v4778 = vpack.c.b16 %v4748, %v4746
        %v4779 = vpack.c.b16 %v4749, %v4747
        %v4780 = vpack.c.b16 %v4752, %v4750
        %v4781 = vpack.c.b16 %v4753, %v4751
        %v4782 = vpack.c.b16 %v4756, %v4754
        %v4783 = vpack.c.b16 %v4757, %v4755
        %v4784 = vpack.c.b16 %v4760, %v4758
        %v4785 = vpack.c.b16 %v4761, %v4759
        %v4786 = vpack.c.b16 %v4764, %v4762
        %v4787 = vpack.c.b16 %v4765, %v4763
        %v4788 = vpack.c.b16 %v4768, %v4766
        %v4789 = vpack.c.b16 %v4769, %v4767
        %v4790 = vpack.c.b16 %v4772, %v4770
        %v4791 = vpack.c.b16 %v4773, %v4771
        %v4792 = vpack.c.b16 %v4776, %v4774
        %v4793 = vpack.c.b16 %v4777, %v4775
        %4810 = vmatprep.subr.bf16.mxu0 %v4779
        %4811 = vmatpush1.bf16.msra.mxu0 %v4778
        %4812 = vmatprep.subr.bf16.mxu0 %v4781
        %4813 = vmatpush1.bf16.msra.mxu0 %v4780
        %4814 = vmatprep.subr.bf16.mxu0 %v4783
        %4815 = vmatpush1.bf16.msra.mxu0 %v4782
        %4816 = vmatprep.subr.bf16.mxu0 %v4785
        %4817 = vmatpush1.bf16.msra.mxu0 %v4784
        %4818 = vmatprep.subr.bf16.mxu0 %v4787
        %4819 = vmatpush1.bf16.msra.mxu0 %v4786
        %4820 = vmatprep.subr.bf16.mxu0 %v4789
        %4821 = vmatpush1.bf16.msra.mxu0 %v4788
        %4822 = vmatprep.subr.bf16.mxu0 %v4791
        %4823 = vmatpush1.bf16.msra.mxu0 %v4790
        %4824 = vmatprep.subr.bf16.mxu0 %v4793
        %4825 = vmatpush1.bf16.msra.mxu0 %v4792
        %4826 = vmatprep.subr.bf16.mxu0 0
        %4827 = vmatpush1.bf16.msra.mxu0 0
        %4828 = vmatprep.subr.bf16.mxu0 0
        %4829 = vmatpush1.bf16.msra.mxu0 0
        %4830 = vmatprep.subr.bf16.mxu0 0
        %4831 = vmatpush1.bf16.msra.mxu0 0
        %4832 = vmatprep.subr.bf16.mxu0 0
        %4833 = vmatpush1.bf16.msra.mxu0 0
        %4834 = vmatprep.subr.bf16.mxu0 0
        %4835 = vmatpush1.bf16.msra.mxu0 0
        %4836 = vmatprep.subr.bf16.mxu0 0
        %4837 = vmatpush1.bf16.msra.mxu0 0
        %4838 = vmatprep.subr.bf16.mxu0 0
        %4839 = vmatpush1.bf16.msra.mxu0 0
        %4840 = vmatprep.subr.bf16.mxu0 0
        %4841 = vmatpush1.bf16.msra.mxu0 0
        %4842 = vmatprep.mubr.bf16.mxu0 0
        %4843 = vmatmul.mubr.bf16.gmra.mrb[0].mxu0 %v4712
        %v4844 = vpop.f32.mrb[0].mxu0
        %v4845 = vadd.f32 0.0, %v4844
        %v4846 = vpop.f32.mrb[0].mxu0
        %v4847 = vadd.f32 0.0, %v4846
        %v4848 = vpop.f32.mrb[0].mxu0
        %v4849 = vpop.f32.mrb[0].mxu0
        %4850 = vdwg.mxu0
        %v4851 = vadd.f32 %v4709, %v4845
        %v4852 = vadd.f32 %v4710, %v4847
        %v4853 = vld [vmem:[#allocation2 + $0x4] sm:$0xf]
        %v4854 = vpack.c.bf16 %v4853, %v4853
        %s4855 = scalar_lea.vmem [#allocation11], 512
        %v4856 = vld [vmem:[%s4855] sm:$0xff]
        %v4857 = vld [vmem:[%s4855 + $0x8] sm:$0xff]
        %v4858 = vld [vmem:[%s4855 + $0x10] sm:$0xff]
        %v4859 = vld [vmem:[%s4855 + $0x18] sm:$0xff]
        %v4860 = vld [vmem:[%s4855 + $0x20] sm:$0xff]
        %v4861 = vld [vmem:[%s4855 + $0x28] sm:$0xff]
        %v4862 = vld [vmem:[%s4855 + $0x30] sm:$0xff]
        %v4863 = vld [vmem:[%s4855 + $0x38] sm:$0xff]
        %v4864 = vld [vmem:[%s4855 + $0x40] sm:$0xff]
        %v4865 = vld [vmem:[%s4855 + $0x48] sm:$0xff]
        %v4866 = vld [vmem:[%s4855 + $0x50] sm:$0xff]
        %v4867 = vld [vmem:[%s4855 + $0x58] sm:$0xff]
        %v4868 = vld [vmem:[%s4855 + $0x60] sm:$0xff]
        %v4869 = vld [vmem:[%s4855 + $0x68] sm:$0xff]
        %v4870 = vld [vmem:[%s4855 + $0x70] sm:$0xff]
        %v4871 = vld [vmem:[%s4855 + $0x78] sm:$0xff]
        %v4888 = vunpack.c.l.b16 %v4856
        %v4889 = vunpack.c.h.b16 %v4856
        %v4890 = vunpack.c.l.b16 %v4857
        %v4891 = vunpack.c.h.b16 %v4857
        %v4892 = vunpack.c.l.b16 %v4858
        %v4893 = vunpack.c.h.b16 %v4858
        %v4894 = vunpack.c.l.b16 %v4859
        %v4895 = vunpack.c.h.b16 %v4859
        %v4896 = vunpack.c.l.b16 %v4860
        %v4897 = vunpack.c.h.b16 %v4860
        %v4898 = vunpack.c.l.b16 %v4861
        %v4899 = vunpack.c.h.b16 %v4861
        %v4900 = vunpack.c.l.b16 %v4862
        %v4901 = vunpack.c.h.b16 %v4862
        %v4902 = vunpack.c.l.b16 %v4863
        %v4903 = vunpack.c.h.b16 %v4863
        %v4904 = vunpack.c.l.b16 %v4864
        %v4905 = vunpack.c.h.b16 %v4864
        %v4906 = vunpack.c.l.b16 %v4865
        %v4907 = vunpack.c.h.b16 %v4865
        %v4908 = vunpack.c.l.b16 %v4866
        %v4909 = vunpack.c.h.b16 %v4866
        %v4910 = vunpack.c.l.b16 %v4867
        %v4911 = vunpack.c.h.b16 %v4867
        %v4912 = vunpack.c.l.b16 %v4868
        %v4913 = vunpack.c.h.b16 %v4868
        %v4914 = vunpack.c.l.b16 %v4869
        %v4915 = vunpack.c.h.b16 %v4869
        %v4916 = vunpack.c.l.b16 %v4870
        %v4917 = vunpack.c.h.b16 %v4870
        %v4918 = vunpack.c.l.b16 %v4871
        %v4919 = vunpack.c.h.b16 %v4871
        %v4920 = vpack.c.b16 %v4890, %v4888
        %v4921 = vpack.c.b16 %v4891, %v4889
        %v4922 = vpack.c.b16 %v4894, %v4892
        %v4923 = vpack.c.b16 %v4895, %v4893
        %v4924 = vpack.c.b16 %v4898, %v4896
        %v4925 = vpack.c.b16 %v4899, %v4897
        %v4926 = vpack.c.b16 %v4902, %v4900
        %v4927 = vpack.c.b16 %v4903, %v4901
        %v4928 = vpack.c.b16 %v4906, %v4904
        %v4929 = vpack.c.b16 %v4907, %v4905
        %v4930 = vpack.c.b16 %v4910, %v4908
        %v4931 = vpack.c.b16 %v4911, %v4909
        %v4932 = vpack.c.b16 %v4914, %v4912
        %v4933 = vpack.c.b16 %v4915, %v4913
        %v4934 = vpack.c.b16 %v4918, %v4916
        %v4935 = vpack.c.b16 %v4919, %v4917
        %4952 = vmatprep.subr.bf16.mxu0 %v4921
        %4953 = vmatpush1.bf16.msra.mxu0 %v4920
        %4954 = vmatprep.subr.bf16.mxu0 %v4923
        %4955 = vmatpush1.bf16.msra.mxu0 %v4922
        %4956 = vmatprep.subr.bf16.mxu0 %v4925
        %4957 = vmatpush1.bf16.msra.mxu0 %v4924
        %4958 = vmatprep.subr.bf16.mxu0 %v4927
        %4959 = vmatpush1.bf16.msra.mxu0 %v4926
        %4960 = vmatprep.subr.bf16.mxu0 %v4929
        %4961 = vmatpush1.bf16.msra.mxu0 %v4928
        %4962 = vmatprep.subr.bf16.mxu0 %v4931
        %4963 = vmatpush1.bf16.msra.mxu0 %v4930
        %4964 = vmatprep.subr.bf16.mxu0 %v4933
        %4965 = vmatpush1.bf16.msra.mxu0 %v4932
        %4966 = vmatprep.subr.bf16.mxu0 %v4935
        %4967 = vmatpush1.bf16.msra.mxu0 %v4934
        %4968 = vmatprep.subr.bf16.mxu0 0
        %4969 = vmatpush1.bf16.msra.mxu0 0
        %4970 = vmatprep.subr.bf16.mxu0 0
        %4971 = vmatpush1.bf16.msra.mxu0 0
        %4972 = vmatprep.subr.bf16.mxu0 0
        %4973 = vmatpush1.bf16.msra.mxu0 0
        %4974 = vmatprep.subr.bf16.mxu0 0
        %4975 = vmatpush1.bf16.msra.mxu0 0
        %4976 = vmatprep.subr.bf16.mxu0 0
        %4977 = vmatpush1.bf16.msra.mxu0 0
        %4978 = vmatprep.subr.bf16.mxu0 0
        %4979 = vmatpush1.bf16.msra.mxu0 0
        %4980 = vmatprep.subr.bf16.mxu0 0
        %4981 = vmatpush1.bf16.msra.mxu0 0
        %4982 = vmatprep.subr.bf16.mxu0 0
        %4983 = vmatpush1.bf16.msra.mxu0 0
        %4984 = vmatprep.mubr.bf16.mxu0 0
        %4985 = vmatmul.mubr.bf16.gmra.mrb[0].mxu0 %v4854
        %v4986 = vpop.f32.mrb[0].mxu0
        %v4987 = vadd.f32 0.0, %v4986
        %v4988 = vpop.f32.mrb[0].mxu0
        %v4989 = vadd.f32 0.0, %v4988
        %v4990 = vpop.f32.mrb[0].mxu0
        %v4991 = vpop.f32.mrb[0].mxu0
        %4992 = vdwg.mxu0
        %v4993 = vadd.f32 %v4851, %v4987
        %v4994 = vadd.f32 %v4852, %v4989
        %v4996 = vlaneseq
        %v4997 = vshrl.u32 %v4996, 7
        %v4998 = vsub.s32 0, %v4997
        %v4999 = vrot.slane %v4284, %v4998
        %v5000 = vlaneseq
        %v5001 = vshrl.u32 %v5000, 7
        %v5002 = vsub.s32 1, %v5001
        %v5003 = vrot.slane %v4284, %v5002
        %v5006 = vadd.f32 %v4993, %v4999
        %v5007 = vadd.f32 %v4994, %v5003
        %vm5008 = vcmask 1043456
        %v5009 = vsel %vm5008, %v5006, 0.0
        %v5010 = vrot.slane %v5009, 4
        %v5011 = vadd.f32 %v5009, %v5010
        %v5012 = vrot.slane %v5011, 2
        %v5013 = vadd.f32 %v5011, %v5012
        %v5014 = vrot.slane %v5013, 1
        %v5015 = vadd.f32 %v5013, %v5014
        %v5016 = vsel %vm5008, %v5007, 0.0
        %v5017 = vrot.slane %v5016, 4
        %v5018 = vadd.f32 %v5016, %v5017
        %v5019 = vrot.slane %v5018, 2
        %v5020 = vadd.f32 %v5018, %v5019
        %v5021 = vrot.slane %v5020, 1
        %v5022 = vadd.f32 %v5020, %v5021
        %5023 = vrot.lane.b32.xlu0 %v5015, 64
        %v5024 = vpop.permute.xlu0 %5023
        %5025 = vrot.lane.b32.xlu0 %v5022, 64
        %v5026 = vpop.permute.xlu0 %5025
        %vm5027 = vcmp.lt.s32.totalorder %v2373, 64
        %v5028 = vsel %vm5027, %v5024, %v5026
        %v5029 = vsel %vm5027, %v5026, %v5024
        %v5030 = vadd.f32 %v5015, %v5029
        %v5031 = vadd.f32 %v5022, %v5028
        %5032 = vrot.lane.b32.xlu0 %v5029, 64
        %v5033 = vpop.permute.xlu0 %5032
        %5034 = vrot.lane.b32.xlu0 %v5028, 64
        %v5035 = vpop.permute.xlu0 %5034
        %v5036 = vsel %vm5027, %v5033, %v5035
        %v5037 = vsel %vm5027, %v5035, %v5033
        %v5038 = vadd.f32 %v5030, %v5037
        %v5039 = vadd.f32 %v5031, %v5036
        %5040 = vrot.lane.b32.xlu0 %v5037, 64
        %v5041 = vpop.permute.xlu0 %5040
        %5042 = vrot.lane.b32.xlu0 %v5036, 64
        %v5043 = vpop.permute.xlu0 %5042
        %v5044 = vsel %vm5027, %v5041, %v5043
        %v5045 = vsel %vm5027, %v5043, %v5041
        %v5046 = vadd.f32 %v5038, %v5045
        %v5047 = vadd.f32 %v5039, %v5044
        %v5048 = vmul.f32 %v5046, 0.0625
        %v5049 = vmul.f32 %v5047, 0.0625
        %v5050 = vlaneseq
        %v5051 = vshrl.u32 %v5050, 7
        %v5052 = vsub.s32 0, %v5051
        %v5053 = vrot.slane %v5048, %v5052
        %v5054 = vlaneseq
        %v5055 = vshrl.u32 %v5054, 7
        %v5056 = vsub.s32 0, %v5055
        %v5057 = vrot.slane %v5049, %v5056
        %v5058 = vsub.f32 %v5006, %v5053
        %v5059 = vsub.f32 %v5007, %v5057
        %v5060 = vmul.f32 %v5058, %v5058
        %v5061 = vmul.f32 %v5059, %v5059
        %v5062 = vsel %vm5008, %v5060, 0.0
        %v5063 = vrot.slane %v5062, 4
        %v5064 = vadd.f32 %v5062, %v5063
        %v5065 = vrot.slane %v5064, 2
        %v5066 = vadd.f32 %v5064, %v5065
        %v5067 = vrot.slane %v5066, 1
        %v5068 = vadd.f32 %v5066, %v5067
        %v5069 = vsel %vm5008, %v5061, 0.0
        %v5070 = vrot.slane %v5069, 4
        %v5071 = vadd.f32 %v5069, %v5070
        %v5072 = vrot.slane %v5071, 2
        %v5073 = vadd.f32 %v5071, %v5072
        %v5074 = vrot.slane %v5073, 1
        %v5075 = vadd.f32 %v5073, %v5074
        %5076 = vrot.lane.b32.xlu0 %v5068, 64
        %v5077 = vpop.permute.xlu0 %5076
        %5078 = vrot.lane.b32.xlu0 %v5075, 64
        %v5079 = vpop.permute.xlu0 %5078
        %v5080 = vsel %vm5027, %v5077, %v5079
        %v5081 = vsel %vm5027, %v5079, %v5077
        %v5082 = vadd.f32 %v5068, %v5081
        %v5083 = vadd.f32 %v5075, %v5080
        %5084 = vrot.lane.b32.xlu0 %v5081, 64
        %v5085 = vpop.permute.xlu0 %5084
        %5086 = vrot.lane.b32.xlu0 %v5080, 64
        %v5087 = vpop.permute.xlu0 %5086
        %v5088 = vsel %vm5027, %v5085, %v5087
        %v5089 = vsel %vm5027, %v5087, %v5085
        %v5090 = vadd.f32 %v5082, %v5089
        %v5091 = vadd.f32 %v5083, %v5088
        %5092 = vrot.lane.b32.xlu0 %v5089, 64
        %v5093 = vpop.permute.xlu0 %5092
        %5094 = vrot.lane.b32.xlu0 %v5088, 64
        %v5095 = vpop.permute.xlu0 %5094
        %v5096 = vsel %vm5027, %v5093, %v5095
        %v5097 = vsel %vm5027, %v5095, %v5093
        %v5098 = vadd.f32 %v5090, %v5097
        %v5099 = vadd.f32 %v5091, %v5096
        %v5100 = vmul.f32 %v5098, 0.0625
        %v5101 = vmul.f32 %v5099, 0.0625
        %v5102 = vadd.f32 %v5100, 1e-05
        %v5103 = vadd.f32 %v5101, 1e-05
        %v5104 = vrsqrt.pop %v5102
        %v5105 = vrsqrt.pop %v5103
        %v5106 = vlaneseq
        %v5107 = vshrl.u32 %v5106, 7
        %v5108 = vsub.s32 0, %v5107
        %v5109 = vrot.slane %v5104, %v5108
        %v5110 = vlaneseq
        %v5111 = vshrl.u32 %v5110, 7
        %v5112 = vsub.s32 0, %v5111
        %v5113 = vrot.slane %v5105, %v5112
        %v5114 = vmul.f32 %v5058, %v5109
        %v5115 = vmul.f32 %v5059, %v5113
        %v5116 = vmax.f32 %v5114, 0.0
        %v5117 = vmax.f32 %v5115, 0.0
        %s5118 = scalar_lea.vmem [#allocation14], 96
        %v5119 = vld [vmem:[%s5118] sm:$0xff]
        %s5120 = scalar_lea.vmem [#allocation14], 112
        %v5121 = vld [vmem:[%s5120] sm:$0xff]
        %vm5122 = vcmask 31744
        %v5124 = vsel %vm5122, %v5119, 0
        %v5127 = vsel %vm5008, %v5116, 0
        %v5130 = vsel %vm5008, %v5117, 0
        %5132 = vmatprep.subr.mxu0 %v5130
        %5133 = vmatpush1.msra.mxu0 %v5127
        %5134 = vmatprep.subr.mxu0 0.0
        %5135 = vmatpush1.msra.mxu0 0.0
        %5136 = vmatprep.subr.mxu0 0.0
        %5137 = vmatpush1.msra.mxu0 0.0
        %5138 = vmatprep.subr.mxu0 0.0
        %5139 = vmatpush1.msra.mxu0 0.0
        %5140 = vmatprep.subr.mxu0 0.0
        %5141 = vmatpush1.msra.mxu0 0.0
        %5142 = vmatprep.subr.mxu0 0.0
        %5143 = vmatpush1.msra.mxu0 0.0
        %5144 = vmatprep.subr.mxu0 0.0
        %5145 = vmatpush1.msra.mxu0 0.0
        %5146 = vmatprep.subr.mxu0 0.0
        %5147 = vmatpush1.msra.mxu0 0.0
        %5148 = vmatprep.subr.mxu0 0.0
        %5149 = vmatpush1.msra.mxu0 0.0
        %5150 = vmatprep.subr.mxu0 0.0
        %5151 = vmatpush1.msra.mxu0 0.0
        %5152 = vmatprep.subr.mxu0 0.0
        %5153 = vmatpush1.msra.mxu0 0.0
        %5154 = vmatprep.subr.mxu0 0.0
        %5155 = vmatpush1.msra.mxu0 0.0
        %5156 = vmatprep.subr.mxu0 0.0
        %5157 = vmatpush1.msra.mxu0 0.0
        %5158 = vmatprep.subr.mxu0 0.0
        %5159 = vmatpush1.msra.mxu0 0.0
        %5160 = vmatprep.subr.mxu0 0.0
        %5161 = vmatpush1.msra.mxu0 0.0
        %5162 = vmatprep.subr.mxu0 0.0
        %5163 = vmatpush1.msra.mxu0 0.0
        %5164 = vmatprep.subr.mxu0 0.0
        %5165 = vmatpush1.msra.mxu0 0.0
        %5166 = vmatprep.subr.mxu0 0.0
        %5167 = vmatpush1.msra.mxu0 0.0
        %5168 = vmatprep.subr.mxu0 0.0
        %5169 = vmatpush1.msra.mxu0 0.0
        %5170 = vmatprep.subr.mxu0 0.0
        %5171 = vmatpush1.msra.mxu0 0.0
        %5172 = vmatprep.subr.mxu0 0.0
        %5173 = vmatpush1.msra.mxu0 0.0
        %5174 = vmatprep.subr.mxu0 0.0
        %5175 = vmatpush1.msra.mxu0 0.0
        %5176 = vmatprep.subr.mxu0 0.0
        %5177 = vmatpush1.msra.mxu0 0.0
        %5178 = vmatprep.subr.mxu0 0.0
        %5179 = vmatpush1.msra.mxu0 0.0
        %5180 = vmatprep.subr.mxu0 0.0
        %5181 = vmatpush1.msra.mxu0 0.0
        %5182 = vmatprep.subr.mxu0 0.0
        %5183 = vmatpush1.msra.mxu0 0.0
        %5184 = vmatprep.subr.mxu0 0.0
        %5185 = vmatpush1.msra.mxu0 0.0
        %5186 = vmatprep.subr.mxu0 0.0
        %5187 = vmatpush1.msra.mxu0 0.0
        %5188 = vmatprep.subr.mxu0 0.0
        %5189 = vmatpush1.msra.mxu0 0.0
        %5190 = vmatprep.subr.mxu0 0.0
        %5191 = vmatpush1.msra.mxu0 0.0
        %5192 = vmatprep.subr.mxu0 0.0
        %5193 = vmatpush1.msra.mxu0 0.0
        %5194 = vmatprep.subr.mxu0 0.0
        %5195 = vmatpush1.msra.mxu0 0.0
        %5196 = vmatprep.mubr.f32.mxu0 0.0
        %5197 = vmatmul.mubr.f32.gmra.mrb[0].mxu0 %v5124
        %v5198 = vpop.f32.mrb[0].mxu0
        %v5199 = vadd.f32 0.0, %v5198
        %v5200 = vpop.f32.mrb[0].mxu0
        %v5201 = vadd.f32 0.0, %v5200
        %5202 = vdwg.mxu0
        %v5204 = vsel %vm5122, %v5121, 0
        %5206 = vmatprep.subr.mxu0 %v5130
        %5207 = vmatpush1.msra.mxu0 %v5127
        %5208 = vmatprep.subr.mxu0 0.0
        %5209 = vmatpush1.msra.mxu0 0.0
        %5210 = vmatprep.subr.mxu0 0.0
        %5211 = vmatpush1.msra.mxu0 0.0
        %5212 = vmatprep.subr.mxu0 0.0
        %5213 = vmatpush1.msra.mxu0 0.0
        %5214 = vmatprep.subr.mxu0 0.0
        %5215 = vmatpush1.msra.mxu0 0.0
        %5216 = vmatprep.subr.mxu0 0.0
        %5217 = vmatpush1.msra.mxu0 0.0
        %5218 = vmatprep.subr.mxu0 0.0
        %5219 = vmatpush1.msra.mxu0 0.0
        %5220 = vmatprep.subr.mxu0 0.0
        %5221 = vmatpush1.msra.mxu0 0.0
        %5222 = vmatprep.subr.mxu0 0.0
        %5223 = vmatpush1.msra.mxu0 0.0
        %5224 = vmatprep.subr.mxu0 0.0
        %5225 = vmatpush1.msra.mxu0 0.0
        %5226 = vmatprep.subr.mxu0 0.0
        %5227 = vmatpush1.msra.mxu0 0.0
        %5228 = vmatprep.subr.mxu0 0.0
        %5229 = vmatpush1.msra.mxu0 0.0
        %5230 = vmatprep.subr.mxu0 0.0
        %5231 = vmatpush1.msra.mxu0 0.0
        %5232 = vmatprep.subr.mxu0 0.0
        %5233 = vmatpush1.msra.mxu0 0.0
        %5234 = vmatprep.subr.mxu0 0.0
        %5235 = vmatpush1.msra.mxu0 0.0
        %5236 = vmatprep.subr.mxu0 0.0
        %5237 = vmatpush1.msra.mxu0 0.0
        %5238 = vmatprep.subr.mxu0 0.0
        %5239 = vmatpush1.msra.mxu0 0.0
        %5240 = vmatprep.subr.mxu0 0.0
        %5241 = vmatpush1.msra.mxu0 0.0
        %5242 = vmatprep.subr.mxu0 0.0
        %5243 = vmatpush1.msra.mxu0 0.0
        %5244 = vmatprep.subr.mxu0 0.0
        %5245 = vmatpush1.msra.mxu0 0.0
        %5246 = vmatprep.subr.mxu0 0.0
        %5247 = vmatpush1.msra.mxu0 0.0
        %5248 = vmatprep.subr.mxu0 0.0
        %5249 = vmatpush1.msra.mxu0 0.0
        %5250 = vmatprep.subr.mxu0 0.0
        %5251 = vmatpush1.msra.mxu0 0.0
        %5252 = vmatprep.subr.mxu0 0.0
        %5253 = vmatpush1.msra.mxu0 0.0
        %5254 = vmatprep.subr.mxu0 0.0
        %5255 = vmatpush1.msra.mxu0 0.0
        %5256 = vmatprep.subr.mxu0 0.0
        %5257 = vmatpush1.msra.mxu0 0.0
        %5258 = vmatprep.subr.mxu0 0.0
        %5259 = vmatpush1.msra.mxu0 0.0
        %5260 = vmatprep.subr.mxu0 0.0
        %5261 = vmatpush1.msra.mxu0 0.0
        %5262 = vmatprep.subr.mxu0 0.0
        %5263 = vmatpush1.msra.mxu0 0.0
        %5264 = vmatprep.subr.mxu0 0.0
        %5265 = vmatpush1.msra.mxu0 0.0
        %5266 = vmatprep.subr.mxu0 0.0
        %5267 = vmatpush1.msra.mxu0 0.0
        %5268 = vmatprep.subr.mxu0 0.0
        %5269 = vmatpush1.msra.mxu0 0.0
        %5270 = vmatprep.mubr.f32.mxu0 0.0
        %5271 = vmatmul.mubr.f32.gmra.mrb[0].mxu0 %v5204
        %v5272 = vpop.f32.mrb[0].mxu0
        %v5273 = vadd.f32 0.0, %v5272
        %v5274 = vpop.f32.mrb[0].mxu0
        %v5275 = vadd.f32 0.0, %v5274
        %5276 = vdwg.mxu0
        %v5277 = vmax.f32 %v5199, %v5273
        %v5278 = vmax.f32 %v5201, %v5275
        %s5279 = scalar_lea.vmem [#allocation15], 1536
        %v5280 = vld [vmem:[%s5279] sm:$0xff]
        %v5281 = vld [vmem:[%s5279 + $0x8] sm:$0xff]
        %v5282 = vld [vmem:[%s5279 + $0x10] sm:$0xff]
        %v5283 = vld [vmem:[%s5279 + $0x18] sm:$0xff]
        %v5284 = vld [vmem:[%s5279 + $0x20] sm:$0xff]
        %v5285 = vld [vmem:[%s5279 + $0x28] sm:$0xff]
        %v5286 = vld [vmem:[%s5279 + $0x30] sm:$0xff]
        %v5287 = vld [vmem:[%s5279 + $0x38] sm:$0xff]
        %v5288 = vld [vmem:[%s5279 + $0x40] sm:$0xff]
        %v5289 = vld [vmem:[%s5279 + $0x48] sm:$0xff]
        %v5290 = vld [vmem:[%s5279 + $0x50] sm:$0xff]
        %v5291 = vld [vmem:[%s5279 + $0x58] sm:$0xff]
        %v5292 = vld [vmem:[%s5279 + $0x60] sm:$0xff]
        %v5293 = vld [vmem:[%s5279 + $0x68] sm:$0xff]
        %v5294 = vld [vmem:[%s5279 + $0x70] sm:$0xff]
        %v5295 = vld [vmem:[%s5279 + $0x78] sm:$0xff]
        %v5296 = vld [vmem:[%s5279 + $0x80] sm:$0xff]
        %v5297 = vld [vmem:[%s5279 + $0x88] sm:$0xff]
        %v5298 = vld [vmem:[%s5279 + $0x90] sm:$0xff]
        %v5299 = vld [vmem:[%s5279 + $0x98] sm:$0xff]
        %v5300 = vld [vmem:[%s5279 + $0xa0] sm:$0xff]
        %v5301 = vld [vmem:[%s5279 + $0xa8] sm:$0xff]
        %v5302 = vld [vmem:[%s5279 + $0xb0] sm:$0xff]
        %v5303 = vld [vmem:[%s5279 + $0xb8] sm:$0xff]
        %v5304 = vld [vmem:[%s5279 + $0xc0] sm:$0xff]
        %v5305 = vld [vmem:[%s5279 + $0xc8] sm:$0xff]
        %v5306 = vld [vmem:[%s5279 + $0xd0] sm:$0xff]
        %v5307 = vld [vmem:[%s5279 + $0xd8] sm:$0xff]
        %v5308 = vld [vmem:[%s5279 + $0xe0] sm:$0xff]
        %v5309 = vld [vmem:[%s5279 + $0xe8] sm:$0xff]
        %v5310 = vld [vmem:[%s5279 + $0xf0] sm:$0xff]
        %v5311 = vld [vmem:[%s5279 + $0xf8] sm:$0xff]
        %s5312 = scalar_lea.vmem [#allocation15], 1792
        %v5313 = vld [vmem:[%s5312] sm:$0xff]
        %v5314 = vld [vmem:[%s5312 + $0x8] sm:$0xff]
        %v5315 = vld [vmem:[%s5312 + $0x10] sm:$0xff]
        %v5316 = vld [vmem:[%s5312 + $0x18] sm:$0xff]
        %v5317 = vld [vmem:[%s5312 + $0x20] sm:$0xff]
        %v5318 = vld [vmem:[%s5312 + $0x28] sm:$0xff]
        %v5319 = vld [vmem:[%s5312 + $0x30] sm:$0xff]
        %v5320 = vld [vmem:[%s5312 + $0x38] sm:$0xff]
        %v5321 = vld [vmem:[%s5312 + $0x40] sm:$0xff]
        %v5322 = vld [vmem:[%s5312 + $0x48] sm:$0xff]
        %v5323 = vld [vmem:[%s5312 + $0x50] sm:$0xff]
        %v5324 = vld [vmem:[%s5312 + $0x58] sm:$0xff]
        %v5325 = vld [vmem:[%s5312 + $0x60] sm:$0xff]
        %v5326 = vld [vmem:[%s5312 + $0x68] sm:$0xff]
        %v5327 = vld [vmem:[%s5312 + $0x70] sm:$0xff]
        %v5328 = vld [vmem:[%s5312 + $0x78] sm:$0xff]
        %v5329 = vld [vmem:[%s5312 + $0x80] sm:$0xff]
        %v5330 = vld [vmem:[%s5312 + $0x88] sm:$0xff]
        %v5331 = vld [vmem:[%s5312 + $0x90] sm:$0xff]
        %v5332 = vld [vmem:[%s5312 + $0x98] sm:$0xff]
        %v5333 = vld [vmem:[%s5312 + $0xa0] sm:$0xff]
        %v5334 = vld [vmem:[%s5312 + $0xa8] sm:$0xff]
        %v5335 = vld [vmem:[%s5312 + $0xb0] sm:$0xff]
        %v5336 = vld [vmem:[%s5312 + $0xb8] sm:$0xff]
        %v5337 = vld [vmem:[%s5312 + $0xc0] sm:$0xff]
        %v5338 = vld [vmem:[%s5312 + $0xc8] sm:$0xff]
        %v5339 = vld [vmem:[%s5312 + $0xd0] sm:$0xff]
        %v5340 = vld [vmem:[%s5312 + $0xd8] sm:$0xff]
        %v5341 = vld [vmem:[%s5312 + $0xe0] sm:$0xff]
        %v5342 = vld [vmem:[%s5312 + $0xe8] sm:$0xff]
        %v5343 = vld [vmem:[%s5312 + $0xf0] sm:$0xff]
        %v5344 = vld [vmem:[%s5312 + $0xf8] sm:$0xff]
        %5345 = vmatprep.subr.mxu0 0.0
        %5346 = vmatpush1.msra.mxu0 %v5280
        %5347 = vmatprep.subr.mxu0 0.0
        %5348 = vmatpush1.msra.mxu0 %v5281
        %5349 = vmatprep.subr.mxu0 0.0
        %5350 = vmatpush1.msra.mxu0 %v5282
        %5351 = vmatprep.subr.mxu0 0.0
        %5352 = vmatpush1.msra.mxu0 %v5283
        %5353 = vmatprep.subr.mxu0 0.0
        %5354 = vmatpush1.msra.mxu0 %v5284
        %5355 = vmatprep.subr.mxu0 0.0
        %5356 = vmatpush1.msra.mxu0 %v5285
        %5357 = vmatprep.subr.mxu0 0.0
        %5358 = vmatpush1.msra.mxu0 %v5286
        %5359 = vmatprep.subr.mxu0 0.0
        %5360 = vmatpush1.msra.mxu0 %v5287
        %5361 = vmatprep.subr.mxu0 0.0
        %5362 = vmatpush1.msra.mxu0 %v5288
        %5363 = vmatprep.subr.mxu0 0.0
        %5364 = vmatpush1.msra.mxu0 %v5289
        %5365 = vmatprep.subr.mxu0 0.0
        %5366 = vmatpush1.msra.mxu0 %v5290
        %5367 = vmatprep.subr.mxu0 0.0
        %5368 = vmatpush1.msra.mxu0 %v5291
        %5369 = vmatprep.subr.mxu0 0.0
        %5370 = vmatpush1.msra.mxu0 %v5292
        %5371 = vmatprep.subr.mxu0 0.0
        %5372 = vmatpush1.msra.mxu0 %v5293
        %5373 = vmatprep.subr.mxu0 0.0
        %5374 = vmatpush1.msra.mxu0 %v5294
        %5375 = vmatprep.subr.mxu0 0.0
        %5376 = vmatpush1.msra.mxu0 %v5295
        %5377 = vmatprep.subr.mxu0 0.0
        %5378 = vmatpush1.msra.mxu0 %v5296
        %5379 = vmatprep.subr.mxu0 0.0
        %5380 = vmatpush1.msra.mxu0 %v5297
        %5381 = vmatprep.subr.mxu0 0.0
        %5382 = vmatpush1.msra.mxu0 %v5298
        %5383 = vmatprep.subr.mxu0 0.0
        %5384 = vmatpush1.msra.mxu0 %v5299
        %5385 = vmatprep.subr.mxu0 0.0
        %5386 = vmatpush1.msra.mxu0 %v5300
        %5387 = vmatprep.subr.mxu0 0.0
        %5388 = vmatpush1.msra.mxu0 %v5301
        %5389 = vmatprep.subr.mxu0 0.0
        %5390 = vmatpush1.msra.mxu0 %v5302
        %5391 = vmatprep.subr.mxu0 0.0
        %5392 = vmatpush1.msra.mxu0 %v5303
        %5393 = vmatprep.subr.mxu0 0.0
        %5394 = vmatpush1.msra.mxu0 %v5304
        %5395 = vmatprep.subr.mxu0 0.0
        %5396 = vmatpush1.msra.mxu0 %v5305
        %5397 = vmatprep.subr.mxu0 0.0
        %5398 = vmatpush1.msra.mxu0 %v5306
        %5399 = vmatprep.subr.mxu0 0.0
        %5400 = vmatpush1.msra.mxu0 %v5307
        %5401 = vmatprep.subr.mxu0 0.0
        %5402 = vmatpush1.msra.mxu0 %v5308
        %5403 = vmatprep.subr.mxu0 0.0
        %5404 = vmatpush1.msra.mxu0 %v5309
        %5405 = vmatprep.subr.mxu0 0.0
        %5406 = vmatpush1.msra.mxu0 %v5310
        %5407 = vmatprep.subr.mxu0 0.0
        %5408 = vmatpush1.msra.mxu0 %v5311
        %5409 = vmatprep.mubr.f32.mxu0 %v5278
        %5410 = vmatmul.mubr.f32.gmra.mrb[0].mxu0 %v5277
        %v5411 = vpop.f32.mrb[0].mxu0
        %v5412 = vadd.f32 0.0, %v5411
        %v5413 = vpop.f32.mrb[0].mxu0
        %5414 = vdwg.mxu0
        %5415 = vmatprep.subr.mxu0 0.0
        %5416 = vmatpush1.msra.mxu0 %v5313
        %5417 = vmatprep.subr.mxu0 0.0
        %5418 = vmatpush1.msra.mxu0 %v5314
        %5419 = vmatprep.subr.mxu0 0.0
        %5420 = vmatpush1.msra.mxu0 %v5315
        %5421 = vmatprep.subr.mxu0 0.0
        %5422 = vmatpush1.msra.mxu0 %v5316
        %5423 = vmatprep.subr.mxu0 0.0
        %5424 = vmatpush1.msra.mxu0 %v5317
        %5425 = vmatprep.subr.mxu0 0.0
        %5426 = vmatpush1.msra.mxu0 %v5318
        %5427 = vmatprep.subr.mxu0 0.0
        %5428 = vmatpush1.msra.mxu0 %v5319
        %5429 = vmatprep.subr.mxu0 0.0
        %5430 = vmatpush1.msra.mxu0 %v5320
        %5431 = vmatprep.subr.mxu0 0.0
        %5432 = vmatpush1.msra.mxu0 %v5321
        %5433 = vmatprep.subr.mxu0 0.0
        %5434 = vmatpush1.msra.mxu0 %v5322
        %5435 = vmatprep.subr.mxu0 0.0
        %5436 = vmatpush1.msra.mxu0 %v5323
        %5437 = vmatprep.subr.mxu0 0.0
        %5438 = vmatpush1.msra.mxu0 %v5324
        %5439 = vmatprep.subr.mxu0 0.0
        %5440 = vmatpush1.msra.mxu0 %v5325
        %5441 = vmatprep.subr.mxu0 0.0
        %5442 = vmatpush1.msra.mxu0 %v5326
        %5443 = vmatprep.subr.mxu0 0.0
        %5444 = vmatpush1.msra.mxu0 %v5327
        %5445 = vmatprep.subr.mxu0 0.0
        %5446 = vmatpush1.msra.mxu0 %v5328
        %5447 = vmatprep.subr.mxu0 0.0
        %5448 = vmatpush1.msra.mxu0 %v5329
        %5449 = vmatprep.subr.mxu0 0.0
        %5450 = vmatpush1.msra.mxu0 %v5330
        %5451 = vmatprep.subr.mxu0 0.0
        %5452 = vmatpush1.msra.mxu0 %v5331
        %5453 = vmatprep.subr.mxu0 0.0
        %5454 = vmatpush1.msra.mxu0 %v5332
        %5455 = vmatprep.subr.mxu0 0.0
        %5456 = vmatpush1.msra.mxu0 %v5333
        %5457 = vmatprep.subr.mxu0 0.0
        %5458 = vmatpush1.msra.mxu0 %v5334
        %5459 = vmatprep.subr.mxu0 0.0
        %5460 = vmatpush1.msra.mxu0 %v5335
        %5461 = vmatprep.subr.mxu0 0.0
        %5462 = vmatpush1.msra.mxu0 %v5336
        %5463 = vmatprep.subr.mxu0 0.0
        %5464 = vmatpush1.msra.mxu0 %v5337
        %5465 = vmatprep.subr.mxu0 0.0
        %5466 = vmatpush1.msra.mxu0 %v5338
        %5467 = vmatprep.subr.mxu0 0.0
        %5468 = vmatpush1.msra.mxu0 %v5339
        %5469 = vmatprep.subr.mxu0 0.0
        %5470 = vmatpush1.msra.mxu0 %v5340
        %5471 = vmatprep.subr.mxu0 0.0
        %5472 = vmatpush1.msra.mxu0 %v5341
        %5473 = vmatprep.subr.mxu0 0.0
        %5474 = vmatpush1.msra.mxu0 %v5342
        %5475 = vmatprep.subr.mxu0 0.0
        %5476 = vmatpush1.msra.mxu0 %v5343
        %5477 = vmatprep.subr.mxu0 0.0
        %5478 = vmatpush1.msra.mxu0 %v5344
        %5479 = vmatprep.mubr.f32.mxu0 %v5278
        %5480 = vmatmul.mubr.f32.gmra.mrb[0].mxu0 %v5277
        %v5481 = vpop.f32.mrb[0].mxu0
        %v5482 = vadd.f32 0.0, %v5481
        %v5483 = vpop.f32.mrb[0].mxu0
        %5484 = vdwg.mxu0
        %v5485 = vmax.f32 %v5412, %v5482
        %v5486 = vld [vmem:[%s9] sm:$0x1]
        %v5487 = vld [vmem:[#allocation17] sm:$0xff]
        %v5488 = vld [vmem:[#allocation17 + $0x8] sm:$0xff]
        %v5489 = vld [vmem:[#allocation17 + $0x10] sm:$0xff]
        %v5490 = vld [vmem:[#allocation17 + $0x18] sm:$0xff]
        %v5491 = vld [vmem:[#allocation17 + $0x20] sm:$0xff]
        %v5492 = vld [vmem:[#allocation17 + $0x28] sm:$0xff]
        %v5493 = vld [vmem:[#allocation17 + $0x30] sm:$0xff]
        %v5494 = vld [vmem:[#allocation17 + $0x38] sm:$0xff]
        %vm5495 = vcmask 523264
        %v5497 = vsel %vm5495, %v5485, 0
        %5499 = vmatprep.subr.mxu0 0.0
        %5500 = vmatpush1.msra.mxu0 %v5487
        %5501 = vmatprep.subr.mxu0 0.0
        %5502 = vmatpush1.msra.mxu0 %v5488
        %5503 = vmatprep.subr.mxu0 0.0
        %5504 = vmatpush1.msra.mxu0 %v5489
        %5505 = vmatprep.subr.mxu0 0.0
        %5506 = vmatpush1.msra.mxu0 %v5490
        %5507 = vmatprep.subr.mxu0 0.0
        %5508 = vmatpush1.msra.mxu0 %v5491
        %5509 = vmatprep.subr.mxu0 0.0
        %5510 = vmatpush1.msra.mxu0 %v5492
        %5511 = vmatprep.subr.mxu0 0.0
        %5512 = vmatpush1.msra.mxu0 %v5493
        %5513 = vmatprep.subr.mxu0 0.0
        %5514 = vmatpush1.msra.mxu0 %v5494
        %5515 = vmatprep.subr.mxu0 0.0
        %5516 = vmatpush1.msra.mxu0 0.0
        %5517 = vmatprep.subr.mxu0 0.0
        %5518 = vmatpush1.msra.mxu0 0.0
        %5519 = vmatprep.subr.mxu0 0.0
        %5520 = vmatpush1.msra.mxu0 0.0
        %5521 = vmatprep.subr.mxu0 0.0
        %5522 = vmatpush1.msra.mxu0 0.0
        %5523 = vmatprep.subr.mxu0 0.0
        %5524 = vmatpush1.msra.mxu0 0.0
        %5525 = vmatprep.subr.mxu0 0.0
        %5526 = vmatpush1.msra.mxu0 0.0
        %5527 = vmatprep.subr.mxu0 0.0
        %5528 = vmatpush1.msra.mxu0 0.0
        %5529 = vmatprep.subr.mxu0 0.0
        %5530 = vmatpush1.msra.mxu0 0.0
        %5531 = vmatprep.subr.mxu0 0.0
        %5532 = vmatpush1.msra.mxu0 0.0
        %5533 = vmatprep.subr.mxu0 0.0
        %5534 = vmatpush1.msra.mxu0 0.0
        %5535 = vmatprep.subr.mxu0 0.0
        %5536 = vmatpush1.msra.mxu0 0.0
        %5537 = vmatprep.subr.mxu0 0.0
        %5538 = vmatpush1.msra.mxu0 0.0
        %5539 = vmatprep.subr.mxu0 0.0
        %5540 = vmatpush1.msra.mxu0 0.0
        %5541 = vmatprep.subr.mxu0 0.0
        %5542 = vmatpush1.msra.mxu0 0.0
        %5543 = vmatprep.subr.mxu0 0.0
        %5544 = vmatpush1.msra.mxu0 0.0
        %5545 = vmatprep.subr.mxu0 0.0
        %5546 = vmatpush1.msra.mxu0 0.0
        %5547 = vmatprep.subr.mxu0 0.0
        %5548 = vmatpush1.msra.mxu0 0.0
        %5549 = vmatprep.subr.mxu0 0.0
        %5550 = vmatpush1.msra.mxu0 0.0
        %5551 = vmatprep.subr.mxu0 0.0
        %5552 = vmatpush1.msra.mxu0 0.0
        %5553 = vmatprep.subr.mxu0 0.0
        %5554 = vmatpush1.msra.mxu0 0.0
        %5555 = vmatprep.subr.mxu0 0.0
        %5556 = vmatpush1.msra.mxu0 0.0
        %5557 = vmatprep.subr.mxu0 0.0
        %5558 = vmatpush1.msra.mxu0 0.0
        %5559 = vmatprep.subr.mxu0 0.0
        %5560 = vmatpush1.msra.mxu0 0.0
        %5561 = vmatprep.subr.mxu0 0.0
        %5562 = vmatpush1.msra.mxu0 0.0
        %5563 = vmatprep.mubr.f32.mxu0 0.0
        %5564 = vmatmul.mubr.f32.gmra.mrb[0].mxu0 %v5497
        %v5565 = vpop.f32.mrb[0].mxu0
        %v5566 = vadd.f32 0.0, %v5565
        %v5567 = vpop.f32.mrb[0].mxu0
        %5568 = vdwg.mxu0
        %v5569 = vadd.f32 %v5486, %v5566
        %s5570 = scalar_lea.vmem [#allocation17], 64
        %v5571 = vld [vmem:[%s5570] sm:$0xff]
        %v5572 = vld [vmem:[%s5570 + $0x8] sm:$0xff]
        %v5573 = vld [vmem:[%s5570 + $0x10] sm:$0xff]
        %v5574 = vld [vmem:[%s5570 + $0x18] sm:$0xff]
        %v5575 = vld [vmem:[%s5570 + $0x20] sm:$0xff]
        %v5576 = vld [vmem:[%s5570 + $0x28] sm:$0xff]
        %v5577 = vld [vmem:[%s5570 + $0x30] sm:$0xff]
        %v5578 = vld [vmem:[%s5570 + $0x38] sm:$0xff]
        %v5579 = vrot.slane %v5485, 1
        %v5580 = vsel %vm5495, %v5579, 0
        %5582 = vmatprep.subr.mxu0 0.0
        %5583 = vmatpush1.msra.mxu0 %v5571
        %5584 = vmatprep.subr.mxu0 0.0
        %5585 = vmatpush1.msra.mxu0 %v5572
        %5586 = vmatprep.subr.mxu0 0.0
        %5587 = vmatpush1.msra.mxu0 %v5573
        %5588 = vmatprep.subr.mxu0 0.0
        %5589 = vmatpush1.msra.mxu0 %v5574
        %5590 = vmatprep.subr.mxu0 0.0
        %5591 = vmatpush1.msra.mxu0 %v5575
        %5592 = vmatprep.subr.mxu0 0.0
        %5593 = vmatpush1.msra.mxu0 %v5576
        %5594 = vmatprep.subr.mxu0 0.0
        %5595 = vmatpush1.msra.mxu0 %v5577
        %5596 = vmatprep.subr.mxu0 0.0
        %5597 = vmatpush1.msra.mxu0 %v5578
        %5598 = vmatprep.subr.mxu0 0.0
        %5599 = vmatpush1.msra.mxu0 0.0
        %5600 = vmatprep.subr.mxu0 0.0
        %5601 = vmatpush1.msra.mxu0 0.0
        %5602 = vmatprep.subr.mxu0 0.0
        %5603 = vmatpush1.msra.mxu0 0.0
        %5604 = vmatprep.subr.mxu0 0.0
        %5605 = vmatpush1.msra.mxu0 0.0
        %5606 = vmatprep.subr.mxu0 0.0
        %5607 = vmatpush1.msra.mxu0 0.0
        %5608 = vmatprep.subr.mxu0 0.0
        %5609 = vmatpush1.msra.mxu0 0.0
        %5610 = vmatprep.subr.mxu0 0.0
        %5611 = vmatpush1.msra.mxu0 0.0
        %5612 = vmatprep.subr.mxu0 0.0
        %5613 = vmatpush1.msra.mxu0 0.0
        %5614 = vmatprep.subr.mxu0 0.0
        %5615 = vmatpush1.msra.mxu0 0.0
        %5616 = vmatprep.subr.mxu0 0.0
        %5617 = vmatpush1.msra.mxu0 0.0
        %5618 = vmatprep.subr.mxu0 0.0
        %5619 = vmatpush1.msra.mxu0 0.0
        %5620 = vmatprep.subr.mxu0 0.0
        %5621 = vmatpush1.msra.mxu0 0.0
        %5622 = vmatprep.subr.mxu0 0.0
        %5623 = vmatpush1.msra.mxu0 0.0
        %5624 = vmatprep.subr.mxu0 0.0
        %5625 = vmatpush1.msra.mxu0 0.0
        %5626 = vmatprep.subr.mxu0 0.0
        %5627 = vmatpush1.msra.mxu0 0.0
        %5628 = vmatprep.subr.mxu0 0.0
        %5629 = vmatpush1.msra.mxu0 0.0
        %5630 = vmatprep.subr.mxu0 0.0
        %5631 = vmatpush1.msra.mxu0 0.0
        %5632 = vmatprep.subr.mxu0 0.0
        %5633 = vmatpush1.msra.mxu0 0.0
        %5634 = vmatprep.subr.mxu0 0.0
        %5635 = vmatpush1.msra.mxu0 0.0
        %5636 = vmatprep.subr.mxu0 0.0
        %5637 = vmatpush1.msra.mxu0 0.0
        %5638 = vmatprep.subr.mxu0 0.0
        %5639 = vmatpush1.msra.mxu0 0.0
        %5640 = vmatprep.subr.mxu0 0.0
        %5641 = vmatpush1.msra.mxu0 0.0
        %5642 = vmatprep.subr.mxu0 0.0
        %5643 = vmatpush1.msra.mxu0 0.0
        %5644 = vmatprep.subr.mxu0 0.0
        %5645 = vmatpush1.msra.mxu0 0.0
        %5646 = vmatprep.mubr.f32.mxu0 0.0
        %5647 = vmatmul.mubr.f32.gmra.mrb[0].mxu0 %v5580
        %v5648 = vpop.f32.mrb[0].mxu0
        %v5649 = vadd.f32 0.0, %v5648
        %v5650 = vpop.f32.mrb[0].mxu0
        %5651 = vdwg.mxu0
        %v5652 = vadd.f32 %v5569, %v5649
        %vm5653 = vcmask 516096
        %5654 = vst.msk [vmem:[%s493] sm:$0x1] %vm5653, %v5652
        %v5655 = vld [vmem:[#allocation17] sm:$0xff]
        %v5656 = vld [vmem:[#allocation17 + $0x8] sm:$0xff]
        %v5657 = vld [vmem:[#allocation17 + $0x10] sm:$0xff]
        %v5658 = vld [vmem:[#allocation17 + $0x18] sm:$0xff]
        %v5659 = vld [vmem:[#allocation17 + $0x20] sm:$0xff]
        %v5660 = vld [vmem:[#allocation17 + $0x28] sm:$0xff]
        %v5661 = vld [vmem:[#allocation17 + $0x30] sm:$0xff]
        %v5662 = vld [vmem:[#allocation17 + $0x38] sm:$0xff]
        %5663 = vrot.lane.b32.xlu0 %v5485, 64
        %v5664 = vpop.permute.xlu0 %5663
        %v5665 = vsel %vm5495, %v5664, 0
        %5667 = vmatprep.subr.mxu0 0.0
        %5668 = vmatpush1.msra.mxu0 %v5655
        %5669 = vmatprep.subr.mxu0 0.0
        %5670 = vmatpush1.msra.mxu0 %v5656
        %5671 = vmatprep.subr.mxu0 0.0
        %5672 = vmatpush1.msra.mxu0 %v5657
        %5673 = vmatprep.subr.mxu0 0.0
        %5674 = vmatpush1.msra.mxu0 %v5658
        %5675 = vmatprep.subr.mxu0 0.0
        %5676 = vmatpush1.msra.mxu0 %v5659
        %5677 = vmatprep.subr.mxu0 0.0
        %5678 = vmatpush1.msra.mxu0 %v5660
        %5679 = vmatprep.subr.mxu0 0.0
        %5680 = vmatpush1.msra.mxu0 %v5661
        %5681 = vmatprep.subr.mxu0 0.0
        %5682 = vmatpush1.msra.mxu0 %v5662
        %5683 = vmatprep.subr.mxu0 0.0
        %5684 = vmatpush1.msra.mxu0 0.0
        %5685 = vmatprep.subr.mxu0 0.0
        %5686 = vmatpush1.msra.mxu0 0.0
        %5687 = vmatprep.subr.mxu0 0.0
        %5688 = vmatpush1.msra.mxu0 0.0
        %5689 = vmatprep.subr.mxu0 0.0
        %5690 = vmatpush1.msra.mxu0 0.0
        %5691 = vmatprep.subr.mxu0 0.0
        %5692 = vmatpush1.msra.mxu0 0.0
        %5693 = vmatprep.subr.mxu0 0.0
        %5694 = vmatpush1.msra.mxu0 0.0
        %5695 = vmatprep.subr.mxu0 0.0
        %5696 = vmatpush1.msra.mxu0 0.0
        %5697 = vmatprep.subr.mxu0 0.0
        %5698 = vmatpush1.msra.mxu0 0.0
        %5699 = vmatprep.subr.mxu0 0.0
        %5700 = vmatpush1.msra.mxu0 0.0
        %5701 = vmatprep.subr.mxu0 0.0
        %5702 = vmatpush1.msra.mxu0 0.0
        %5703 = vmatprep.subr.mxu0 0.0
        %5704 = vmatpush1.msra.mxu0 0.0
        %5705 = vmatprep.subr.mxu0 0.0
        %5706 = vmatpush1.msra.mxu0 0.0
        %5707 = vmatprep.subr.mxu0 0.0
        %5708 = vmatpush1.msra.mxu0 0.0
        %5709 = vmatprep.subr.mxu0 0.0
        %5710 = vmatpush1.msra.mxu0 0.0
        %5711 = vmatprep.subr.mxu0 0.0
        %5712 = vmatpush1.msra.mxu0 0.0
        %5713 = vmatprep.subr.mxu0 0.0
        %5714 = vmatpush1.msra.mxu0 0.0
        %5715 = vmatprep.subr.mxu0 0.0
        %5716 = vmatpush1.msra.mxu0 0.0
        %5717 = vmatprep.subr.mxu0 0.0
        %5718 = vmatpush1.msra.mxu0 0.0
        %5719 = vmatprep.subr.mxu0 0.0
        %5720 = vmatpush1.msra.mxu0 0.0
        %5721 = vmatprep.subr.mxu0 0.0
        %5722 = vmatpush1.msra.mxu0 0.0
        %5723 = vmatprep.subr.mxu0 0.0
        %5724 = vmatpush1.msra.mxu0 0.0
        %5725 = vmatprep.subr.mxu0 0.0
        %5726 = vmatpush1.msra.mxu0 0.0
        %5727 = vmatprep.subr.mxu0 0.0
        %5728 = vmatpush1.msra.mxu0 0.0
        %5729 = vmatprep.subr.mxu0 0.0
        %5730 = vmatpush1.msra.mxu0 0.0
        %5731 = vmatprep.mubr.f32.mxu0 0.0
        %5732 = vmatmul.mubr.f32.gmra.mrb[0].mxu0 %v5665
        %v5733 = vpop.f32.mrb[0].mxu0
        %v5734 = vadd.f32 0.0, %v5733
        %v5735 = vpop.f32.mrb[0].mxu0
        %5736 = vdwg.mxu0
        %v5737 = vadd.f32 %v5486, %v5734
        %v5738 = vld [vmem:[%s5570] sm:$0xff]
        %v5739 = vld [vmem:[%s5570 + $0x8] sm:$0xff]
        %v5740 = vld [vmem:[%s5570 + $0x10] sm:$0xff]
        %v5741 = vld [vmem:[%s5570 + $0x18] sm:$0xff]
        %v5742 = vld [vmem:[%s5570 + $0x20] sm:$0xff]
        %v5743 = vld [vmem:[%s5570 + $0x28] sm:$0xff]
        %v5744 = vld [vmem:[%s5570 + $0x30] sm:$0xff]
        %v5745 = vld [vmem:[%s5570 + $0x38] sm:$0xff]
        %5746 = vrot.lane.b32.xlu0 %v5579, 64
        %v5747 = vpop.permute.xlu0 %5746
        %v5748 = vsel %vm5495, %v5747, 0
        %5750 = vmatprep.subr.mxu0 0.0
        %5751 = vmatpush1.msra.mxu0 %v5738
        %5752 = vmatprep.subr.mxu0 0.0
        %5753 = vmatpush1.msra.mxu0 %v5739
        %5754 = vmatprep.subr.mxu0 0.0
        %5755 = vmatpush1.msra.mxu0 %v5740
        %5756 = vmatprep.subr.mxu0 0.0
        %5757 = vmatpush1.msra.mxu0 %v5741
        %5758 = vmatprep.subr.mxu0 0.0
        %5759 = vmatpush1.msra.mxu0 %v5742
        %5760 = vmatprep.subr.mxu0 0.0
        %5761 = vmatpush1.msra.mxu0 %v5743
        %5762 = vmatprep.subr.mxu0 0.0
        %5763 = vmatpush1.msra.mxu0 %v5744
        %5764 = vmatprep.subr.mxu0 0.0
        %5765 = vmatpush1.msra.mxu0 %v5745
        %5766 = vmatprep.subr.mxu0 0.0
        %5767 = vmatpush1.msra.mxu0 0.0
        %5768 = vmatprep.subr.mxu0 0.0
        %5769 = vmatpush1.msra.mxu0 0.0
        %5770 = vmatprep.subr.mxu0 0.0
        %5771 = vmatpush1.msra.mxu0 0.0
        %5772 = vmatprep.subr.mxu0 0.0
        %5773 = vmatpush1.msra.mxu0 0.0
        %5774 = vmatprep.subr.mxu0 0.0
        %5775 = vmatpush1.msra.mxu0 0.0
        %5776 = vmatprep.subr.mxu0 0.0
        %5777 = vmatpush1.msra.mxu0 0.0
        %5778 = vmatprep.subr.mxu0 0.0
        %5779 = vmatpush1.msra.mxu0 0.0
        %5780 = vmatprep.subr.mxu0 0.0
        %5781 = vmatpush1.msra.mxu0 0.0
        %5782 = vmatprep.subr.mxu0 0.0
        %5783 = vmatpush1.msra.mxu0 0.0
        %5784 = vmatprep.subr.mxu0 0.0
        %5785 = vmatpush1.msra.mxu0 0.0
        %5786 = vmatprep.subr.mxu0 0.0
        %5787 = vmatpush1.msra.mxu0 0.0
        %5788 = vmatprep.subr.mxu0 0.0
        %5789 = vmatpush1.msra.mxu0 0.0
        %5790 = vmatprep.subr.mxu0 0.0
        %5791 = vmatpush1.msra.mxu0 0.0
        %5792 = vmatprep.subr.mxu0 0.0
        %5793 = vmatpush1.msra.mxu0 0.0
        %5794 = vmatprep.subr.mxu0 0.0
        %5795 = vmatpush1.msra.mxu0 0.0
        %5796 = vmatprep.subr.mxu0 0.0
        %5797 = vmatpush1.msra.mxu0 0.0
        %5798 = vmatprep.subr.mxu0 0.0
        %5799 = vmatpush1.msra.mxu0 0.0
        %5800 = vmatprep.subr.mxu0 0.0
        %5801 = vmatpush1.msra.mxu0 0.0
        %5802 = vmatprep.subr.mxu0 0.0
        %5803 = vmatpush1.msra.mxu0 0.0
        %5804 = vmatprep.subr.mxu0 0.0
        %5805 = vmatpush1.msra.mxu0 0.0
        %5806 = vmatprep.subr.mxu0 0.0
        %5807 = vmatpush1.msra.mxu0 0.0
        %5808 = vmatprep.subr.mxu0 0.0
        %5809 = vmatpush1.msra.mxu0 0.0
        %5810 = vmatprep.subr.mxu0 0.0
        %5811 = vmatpush1.msra.mxu0 0.0
        %5812 = vmatprep.subr.mxu0 0.0
        %5813 = vmatpush1.msra.mxu0 0.0
        %5814 = vmatprep.mubr.f32.mxu0 0.0
        %5815 = vmatmul.mubr.f32.gmra.mrb[0].mxu0 %v5748
        %v5816 = vpop.f32.mrb[0].mxu0
        %v5817 = vadd.f32 0.0, %v5816
        %v5818 = vpop.f32.mrb[0].mxu0
        %5819 = vdwg.mxu0
        %v5820 = vadd.f32 %v5737, %v5817
        %5821 = vst.msk [vmem:[%s493 + $0x1] sm:$0x1] %vm5653, %v5820
        %s5822 = sand.u32 %s254, 1
        %s5823 = scalar_lea.sflag [#allocation5], %s5822
        %s5824 = sand.u32 %s254, 1
        %s5825 = smul.addr %s5824, 2
        %s5826 = scalar_lea.vmem [#allocation18], %s5825
        // Predicated region
        $region97: #{encoder_forward.1} parent=59 // pred_check
          %p5827 = pneg %p264
        $region98: #{encoder_forward.1} parent=59 // pred_check_branch
          %5829 = sbr.rel (%p5827) target = $region100
        $region99: #{encoder_forward.1} parent=59 // pred_region
          %s5831 = ssub.s32 32, 32
          %5832 = vsyncadd %s5823, %s5831
          %s5833 = smul.addr %s31, 32
          %s5834 = scalar_lea.hbm %s10, %s5833
          %s5836 = sshll.u32 %s5826, 4
          %s5837 = int_to_ptr.vmem [resolvable:$true] %s5836
          %5839 = dma.vmem_to_hbm [thread:$0]  %s5837, 32, %s5834, %s5823
        $region100: #{encoder_forward.1} parent=59 // pred_fallthru
          _
      $region60: #{encoder_forward.1} parent=5 // pred_fallthru
        _
      %p5840 = scmp.le.s32.totalorder 2, %s26
      // Predicated region
      $region101: #{encoder_forward.1} parent=5 // pred_check
        %p5841 = pneg %p5840
      $region102: #{encoder_forward.1} parent=5 // pred_check_branch
        %5843 = sbr.rel (%p5841) target = $region104
      $region103: #{encoder_forward.1} parent=5 // pred_region
        %s5844 = ssub.s32 %s26, 2
        // Predicated region
        $region105: #{encoder_forward.1} parent=103 // pred_check
          %p5845 = pneg %p270
        $region106: #{encoder_forward.1} parent=103 // pred_check_branch
          %5847 = sbr.rel (%p5845) target = $region108
        $region107: #{encoder_forward.1} parent=103 // pred_region
          %s5848 = sand.u32 %s255, 1
          %s5849 = scalar_lea.sflag [#allocation5], %s5848
          %s5850 = sand.u32 %s255, 1
          %s5851 = smul.addr %s5850, 2
          %s5852 = scalar_lea.vmem [#allocation18], %s5851
          %5853 = dma.done %s5849, 32
        $region108: #{encoder_forward.1} parent=103 // pred_fallthru
          _
      $region104: #{encoder_forward.1} parent=5 // pred_fallthru
        _
    $region6: #{encoder_forward.1} parent=1 // loop_footer
      %s30 = sadd.s32 1, %s26
    $region7: #{encoder_forward.1} parent=1 // loop_footer_branch
      %25 = sbr.rel target = $region3
    $region8: #{encoder_forward.1} parent=1 // loop_exit
      _
    %5854 = vsyncpa [#allocation4], 1
    %s5855 = scalar_lea.sflag [#allocation4], 1
    %5856 = vsyncpa %s5855, 1
    %5857 = vsyncpa [#allocation7], 1
    %5858 = vsyncpa [#allocation10], 1
    %5859 = vsyncpa [#allocation13], 1
    %5860 = vsyncpa [#allocation16], 1
    %5861 = vsyncpa [#allocation5], 1
    %s5862 = scalar_lea.sflag [#allocation5], 1
    %5863 = vsyncpa %s5862, 1

</llo_original>
